<compile_context>
chip_gen: v7x
topology: tpu7x:2x2x1
jax: 0.10.0
libtpu: 0.0.40
codegen_flags: <defaults>
</compile_context>

<pallas_src>
import functools

import jax
import jax.numpy as jnp
from jax.experimental import pallas as pl
from jax.experimental.pallas import tpu as pltpu

BN_EPS = 1e-5
FC_LOGVAR_INIT = 0.1          # gain constant referenced (but undefined) in the source
VMEM_LIMIT = 32 * 1024 * 1024  # explicit scoped-VMEM budget, safe on v5e/v6e/v7x


# ---------------------------------------------------------------------------
# Kernels
# ---------------------------------------------------------------------------
def _conv_stats_kernel(*refs, stride, tho, wo, cout):
    """3x3 conv as 9 accumulated row-matmuls + per-tile BN partial statistics.

    refs = (x_par_0, ..., x_par_{stride-1}, w_ref, y_ref, stats_ref)
      x_par_q  : (1, Hp, Wq, Cin) bf16  column-parity-q slice of padded image
      w_ref    : (9, Cin, Cout)   bf16  tap-major conv weights
      y_ref    : (1, tho, wo, Cout) f32 pre-BN conv output tile
      stats_ref: (1, 1, 2, Cout)  f32   [sum, sum-of-squares] over this tile
    """
    x_par = refs[:stride]
    w_ref, y_ref, stats_ref = refs[stride:]

    t = pl.program_id(1)          # output-row tile index
    row0 = t * tho                # first output row of this tile

    def row_body(i, carry):
        r_base = stride * (row0 + i)                    # padded input row of tap kh=0
        acc = jnp.zeros((wo, cout), jnp.float32)
        for kh in range(3):
            for kw in range(3):
                q, off = kw % stride, kw // stride      # parity / column offset
                tap = x_par[q][0, r_base + kh, pl.ds(off, wo), :]   # (wo, Cin) bf16
                acc = acc + jnp.dot(tap, w_ref[kh * 3 + kw],
                                    preferred_element_type=jnp.float32)
        y_ref[0, i, :, :] = acc
        return carry

    jax.lax.fori_loop(0, tho, row_body, 0)

    # Partial BN statistics for this tile (full-batch stats assembled later).
    y = y_ref[...]                                          # (1, tho, wo, Cout) f32
    stats_ref[:, :, 0:1, :] = jnp.sum(y, axis=(1, 2), keepdims=True)
    stats_ref[:, :, 1:2, :] = jnp.sum(y * y, axis=(1, 2), keepdims=True)


def _bn_relu_kernel(y_ref, stats_ref, gamma_ref, beta_ref, o_ref, *, inv_count):
    """Pass 2: apply full-batch BN (training mode) + ReLU, cast to bf16."""
    s = stats_ref[...]                              # (2, Cout) f32
    mean = s[0:1, :] * inv_count                    # (1, Cout)
    var = s[1:2, :] * inv_count - mean * mean       # biased variance
    scale = gamma_ref[...] * jax.lax.rsqrt(var + BN_EPS)
    shift = beta_ref[...] - mean * scale
    y = y_ref[...]                                  # (1, tho, wo, Cout) f32
    o_ref[...] = jnp.maximum(y * scale + shift, 0.0).astype(o_ref.dtype)


def _fc_heads_kernel(x_ref, w_ref, b_ref, o_ref):
    """Fused fc_mu / fc_logvar: one MXU pass producing (N, 2*latent)."""
    o_ref[...] = (jnp.dot(x_ref[...], w_ref[...],
                          preferred_element_type=jnp.float32) + b_ref[...])


# ---------------------------------------------------------------------------
# Layer wrapper (JAX glue: zero pad + parity split only -- 1x data, no im2col)
# ---------------------------------------------------------------------------
def _row_tile(ho, target=8):
    t = min(ho, target)
    while ho % t != 0:
        t -= 1
    return t


def _conv_bn_relu(x, w9, gamma, beta, stride):
    """x: (N,H,W,Cin) bf16, w9: (9,Cin,Cout) bf16 -> (N,Ho,Wo,Cout) bf16."""
    n, h, w, cin = x.shape
    cout = w9.shape[-1]
    assert stride == 1 or (h % 2 == 0 and w % 2 == 0)
    ho = (h + 2 - 3) // stride + 1
    wo = (w + 2 - 3) // stride + 1
    hp, wp = h + 2, w + 2

    xp = jnp.pad(x, ((0, 0), (1, 1), (1, 1), (0, 0)))
    # Column-parity split: tap (kh, kw) becomes a contiguous (un-strided) row
    # slice of parity tensor kw % stride at column offset kw // stride.
    x_parts = [xp[:, :, q::stride, :] for q in range(stride)]
    wq = x_parts[0].shape[2]

    tho = _row_tile(ho)
    nt = ho // tho

    conv = functools.partial(_conv_stats_kernel,
                             stride=stride, tho=tho, wo=wo, cout=cout)
    in_specs = [pl.BlockSpec((1, hp, wq, cin), lambda ni, ti: (ni, 0, 0, 0))
                for _ in range(stride)]
    in_specs.append(pl.BlockSpec((9, cin, cout), lambda ni, ti: (0, 0, 0)))

    y, part = pl.pallas_call(
        conv,
        grid=(n, nt),
        in_specs=in_specs,
        out_specs=(pl.BlockSpec((1, tho, wo, cout), lambda ni, ti: (ni, ti, 0, 0)),
                   pl.BlockSpec((1, 1, 2, cout), lambda ni, ti: (ni, ti, 0, 0))),
        out_shape=(jax.ShapeDtypeStruct((n, ho, wo, cout), jnp.float32),
                   jax.ShapeDtypeStruct((n, nt, 2, cout), jnp.float32)),
        compiler_params=pltpu.CompilerParams(
            dimension_semantics=("parallel", "parallel"),
            vmem_limit_bytes=VMEM_LIMIT),
    )(*x_parts, w9)

    # Tiny (N*nt, 2, Cout) -> (2, Cout) reduction to get full-batch statistics.
    stats = jnp.sum(part, axis=(0, 1))
    inv_count = 1.0 / float(n * ho * wo)

    bn = functools.partial(_bn_relu_kernel, inv_count=inv_count)
    act = pl.pallas_call(
        bn,
        grid=(n, nt),
        in_specs=[pl.BlockSpec((1, tho, wo, cout), lambda ni, ti: (ni, ti, 0, 0)),
                  pl.BlockSpec((2, cout), lambda ni, ti: (0, 0)),
                  pl.BlockSpec((1, cout), lambda ni, ti: (0, 0)),
                  pl.BlockSpec((1, cout), lambda ni, ti: (0, 0))],
        out_specs=pl.BlockSpec((1, tho, wo, cout), lambda ni, ti: (ni, ti, 0, 0)),
        out_shape=jax.ShapeDtypeStruct((n, ho, wo, cout), jnp.bfloat16),
        compiler_params=pltpu.CompilerParams(
            dimension_semantics=("parallel", "parallel"),
            vmem_limit_bytes=VMEM_LIMIT),
    )(y, stats, gamma, beta)
    return act


# ---------------------------------------------------------------------------
# Forward
# ---------------------------------------------------------------------------
def encoder_forward(x_nchw, prep):
    x = jnp.transpose(x_nchw, (0, 2, 3, 1)).astype(jnp.bfloat16)   # NCHW -> NHWC bf16
    strides = (1, 2, 2, 2)
    for i in range(4):
        x = _conv_bn_relu(x, prep[f"w{i + 1}"], prep[f"g{i + 1}"],
                          prep[f"be{i + 1}"], strides[i])

    n = x.shape[0]
    feat = x.reshape(n, -1)          # NHWC flatten; NCHW order folded into w_fc
    latent = prep["b_fc"].shape[-1] // 2

    # Single fused matmul for both heads.  Batch (N rows) is tiny, so a single
    # VMEM-resident block is the right shape; at larger batch this would be
    # tiled over N exactly like the conv layers.
    out = pl.pallas_call(
        _fc_heads_kernel,
        out_shape=jax.ShapeDtypeStruct((n, 2 * latent), jnp.float32),
        in_specs=[pl.BlockSpec(memory_space=pltpu.MemorySpace.VMEM)] * 3,
        out_specs=pl.BlockSpec(memory_space=pltpu.MemorySpace.VMEM),
        compiler_params=pltpu.CompilerParams(vmem_limit_bytes=VMEM_LIMIT),
    )(feat, prep["w_fc"], prep["b_fc"])
    return out[:, :latent], out[:, latent:]


# ---------------------------------------------------------------------------
# Parameters: PyTorch-layout synthesis + one-time TPU-layout preparation
# ---------------------------------------------------------------------------
def init_params(key, latent_dim, img_size, channels, hidden_dims):
    dims = [channels] + list(hidden_dims)
    keys = jax.random.split(key, 14)
    p = {}
    for i in range(4):
        cin, cout = dims[i], dims[i + 1]
        p[f"w{i + 1}"] = (jax.random.normal(keys[3 * i], (cout, cin, 3, 3),
                                            jnp.float32) / jnp.sqrt(9.0 * cin))
        # conv bias omitted: training-mode BN subtracts the batch mean, so a
        # per-channel conv bias is mathematically cancelled.
        p[f"g{i + 1}"] = 1.0 + 0.1 * jax.random.normal(keys[3 * i + 1], (cout,),
                                                       jnp.float32)
        p[f"be{i + 1}"] = 0.1 * jax.random.normal(keys[3 * i + 2], (cout,),
                                                  jnp.float32)
    feat = hidden_dims[3] * (img_size // 8) ** 2
    p["wmu"] = jax.random.normal(keys[12], (latent_dim, feat), jnp.float32) / jnp.sqrt(feat)
    p["bmu"] = 0.1 * jax.random.normal(keys[13], (latent_dim,), jnp.float32)
    p["wlv"] = (FC_LOGVAR_INIT *
                jax.random.normal(keys[13], (latent_dim, feat), jnp.float32) / jnp.sqrt(feat))
    p["blv"] = jnp.zeros((latent_dim,), jnp.float32)
    return p


def prepare_params(p, latent_dim, img_size, hidden_dims):
    """One-time layout / dtype prep (review: no per-forward weight transposes)."""
    prep = {}
    for i in range(4):
        w = p[f"w{i + 1}"]                              # (Cout, Cin, 3, 3)
        cout, cin = w.shape[0], w.shape[1]
        prep[f"w{i + 1}"] = (jnp.transpose(w, (2, 3, 1, 0))
                             .reshape(9, cin, cout).astype(jnp.bfloat16))
        prep[f"g{i + 1}"] = p[f"g{i + 1}"].reshape(1, cout).astype(jnp.float32)
        prep[f"be{i + 1}"] = p[f"be{i + 1}"].reshape(1, cout).astype(jnp.float32)

    # Fold PyTorch's NCHW x.view(-1, C*H*W) flatten into the FC weight columns.
    hs = ws = img_size // 8
    c4 = hidden_dims[3]
    hh = jnp.arange(hs).reshape(hs, 1, 1)
    ww = jnp.arange(ws).reshape(1, ws, 1)
    cc = jnp.arange(c4).reshape(1, 1, c4)
    perm = (cc * (hs * ws) + hh * ws + ww).reshape(-1)   # NHWC pos -> NCHW feature idx
    w_mu = p["wmu"][:, perm].T                           # (F, L), NHWC-ordered rows
    w_lv = p["wlv"][:, perm].T
    prep["w_fc"] = jnp.concatenate([w_mu, w_lv], axis=1).astype(jnp.bfloat16)  # (F, 2L)
    prep["b_fc"] = jnp.concatenate([p["bmu"], p["blv"]]).reshape(1, 2 * latent_dim)
    return prep


# ---------------------------------------------------------------------------
# Pure-JAX reference (mirrors kernel's bf16 input rounding) for validation
# ---------------------------------------------------------------------------
def reference_forward(x_nchw, params):
    f32 = jnp.float32

    def bq(a):                                           # bf16 round-trip
        return a.astype(jnp.bfloat16).astype(f32)

    x = bq(jnp.transpose(x_nchw, (0, 2, 3, 1)))
    strides = (1, 2, 2, 2)
    for i in range(4):
        w = bq(params[f"w{i + 1}"])
        y = jax.lax.conv_general_dilated(
            x, w, window_strides=(strides[i], strides[i]),
            padding=((1, 1), (1, 1)),
            dimension_numbers=("NHWC", "OIHW", "NHWC"),
            precision=jax.lax.Precision.HIGHEST)
        mean = jnp.mean(y, axis=(0, 1, 2))
        var = jnp.mean(jnp.square(y - mean), axis=(0, 1, 2))
        y = (y - mean) * jax.lax.rsqrt(var + BN_EPS) * params[f"g{i + 1}"] + params[f"be{i + 1}"]
        x = bq(jnp.maximum(y, 0.0))
    feat = jnp.transpose(x, (0, 3, 1, 2)).reshape(x.shape[0], -1)   # NCHW flatten
    mu = jnp.dot(feat, bq(params["wmu"]).T,
                 precision=jax.lax.Precision.HIGHEST) + params["bmu"]
    logvar = jnp.dot(feat, bq(params["wlv"]).T,
                     precision=jax.lax.Precision.HIGHEST) + params["blv"]
    return mu, logvar


# ---------------------------------------------------------------------------
if __name__ == "__main__":
    latent_dim = 8
    img_size = 16
    channels = 3
    batch = 2
    hidden_dims = [32, 64, 128, 256]

    key = jax.random.PRNGKey(0)
    k_x, k_p = jax.random.split(key)
    x = jax.random.normal(k_x, (batch, channels, img_size, img_size), jnp.float32)
    params = init_params(k_p, latent_dim, img_size, channels, hidden_dims)
    prep = prepare_params(params, latent_dim, img_size, hidden_dims)

    fwd = jax.jit(encoder_forward)
    mu, logvar = fwd(x, prep)
    jax.block_until_ready((mu, logvar))

    mu_ref, logvar_ref = reference_forward(x, params)

    assert mu.shape == (batch, latent_dim) and logvar.shape == (batch, latent_dim)
    assert bool(jnp.all(jnp.isfinite(mu))) and bool(jnp.all(jnp.isfinite(logvar)))
    assert bool(jnp.allclose(mu, mu_ref, atol=2e-2, rtol=2e-2))
    assert bool(jnp.allclose(logvar, logvar_ref, atol=2e-2, rtol=2e-2))
    print("KERNEL_OK")
</pallas_src>

<mosaic_0001>
module attributes {stable_mosaic.version = 11 : i64} {
  func.func @_conv_stats_kernel(%arg0: i32, %arg1: i32, %arg2: memref<1x18x18x3xbf16, #tpu.memory_space<vmem>>, %arg3: memref<9x3x32xbf16, #tpu.memory_space<vmem>>, %arg4: memref<1x8x16x32xf32, #tpu.memory_space<vmem>>, %arg5: memref<1x1x2x32xf32, #tpu.memory_space<vmem>>) attributes {dimension_semantics = [#tpu.dimension_semantics<parallel>, #tpu.dimension_semantics<parallel>], iteration_bounds = array<i64: 2, 2>, scalar_prefetch = 0 : i64, scratch_operands = 0 : i64, tpu.core_type = #tpu.core_type<tc>, window_params = [{transform_indices = @transform_0, window_bounds = array<i64: 1, 18, 18, 3>}, {pipeline_mode = #tpu.pipeline_mode<synchronous>, transform_indices = @transform_1, window_bounds = array<i64: 9, 3, 32>}, {transform_indices = @transform_2, window_bounds = array<i64: 1, 8, 16, 32>}, {transform_indices = @transform_3, window_bounds = array<i64: 1, 1, 2, 32>}]} {
    %c8_i32 = arith.constant 8 : i32
    %0 = arith.muli %arg1, %c8_i32 : i32
    %c0_i32 = arith.constant 0 : i32
    %c8_i32_0 = arith.constant 8 : i32
    %1 = arith.addi %c0_i32, %c8_i32_0 : i32
    %c1_i32 = arith.constant 1 : i32
    scf.for %arg6 = %c0_i32 to %1 step %c1_i32  : i32 {
      %10 = arith.addi %0, %arg6 : i32
      %c1_i32_13 = arith.constant 1 : i32
      %11 = arith.muli %c1_i32_13, %10 : i32
      %cst_14 = arith.constant 0.000000e+00 : f32
      %12 = vector.broadcast %cst_14 : f32 to vector<16x32xf32>
      %c0_i32_15 = arith.constant 0 : i32
      %13 = arith.addi %11, %c0_i32_15 : i32
      %c0_16 = arith.constant 0 : index
      %14 = arith.index_cast %13 : i32 to index
      %c0_17 = arith.constant 0 : index
      %c0_18 = arith.constant 0 : index
      %15 = vector.load %arg2[%c0_16, %14, %c0_17, %c0_18] : memref<1x18x18x3xbf16, #tpu.memory_space<vmem>>, vector<1x1x16x3xbf16>
      %16 = vector.shape_cast %15 : vector<1x1x16x3xbf16> to vector<16x3xbf16>
      %c0_19 = arith.constant 0 : index
      %c0_20 = arith.constant 0 : index
      %c0_21 = arith.constant 0 : index
      %17 = vector.load %arg3[%c0_19, %c0_20, %c0_21] : memref<9x3x32xbf16, #tpu.memory_space<vmem>>, vector<1x3x32xbf16>
      %18 = vector.shape_cast %17 : vector<1x3x32xbf16> to vector<3x32xbf16>
      %cst_22 = arith.constant dense<0.000000e+00> : vector<16x32xf32>
      %19 = tpu.matmul %16, %18, %cst_22 {dimension_numbers = #tpu.dot_dimension_numbers<[1], [0], [0], [1], [0, 0, 1, 1], [], []>} : vector<16x3xbf16>, vector<3x32xbf16>, vector<16x32xf32> -> vector<16x32xf32>
      %20 = arith.addf %12, %19 : vector<16x32xf32>
      %c0_i32_23 = arith.constant 0 : i32
      %21 = arith.addi %11, %c0_i32_23 : i32
      %c0_24 = arith.constant 0 : index
      %22 = arith.index_cast %21 : i32 to index
      %c1_25 = arith.constant 1 : index
      %c0_26 = arith.constant 0 : index
      %23 = vector.load %arg2[%c0_24, %22, %c1_25, %c0_26] : memref<1x18x18x3xbf16, #tpu.memory_space<vmem>>, vector<1x1x16x3xbf16>
      %24 = vector.shape_cast %23 : vector<1x1x16x3xbf16> to vector<16x3xbf16>
      %c1_27 = arith.constant 1 : index
      %c0_28 = arith.constant 0 : index
      %c0_29 = arith.constant 0 : index
      %25 = vector.load %arg3[%c1_27, %c0_28, %c0_29] : memref<9x3x32xbf16, #tpu.memory_space<vmem>>, vector<1x3x32xbf16>
      %26 = vector.shape_cast %25 : vector<1x3x32xbf16> to vector<3x32xbf16>
      %cst_30 = arith.constant dense<0.000000e+00> : vector<16x32xf32>
      %27 = tpu.matmul %24, %26, %cst_30 {dimension_numbers = #tpu.dot_dimension_numbers<[1], [0], [0], [1], [0, 0, 1, 1], [], []>} : vector<16x3xbf16>, vector<3x32xbf16>, vector<16x32xf32> -> vector<16x32xf32>
      %28 = arith.addf %20, %27 : vector<16x32xf32>
      %c0_i32_31 = arith.constant 0 : i32
      %29 = arith.addi %11, %c0_i32_31 : i32
      %c0_32 = arith.constant 0 : index
      %30 = arith.index_cast %29 : i32 to index
      %c2 = arith.constant 2 : index
      %c0_33 = arith.constant 0 : index
      %31 = vector.load %arg2[%c0_32, %30, %c2, %c0_33] : memref<1x18x18x3xbf16, #tpu.memory_space<vmem>>, vector<1x1x16x3xbf16>
      %32 = vector.shape_cast %31 : vector<1x1x16x3xbf16> to vector<16x3xbf16>
      %c2_34 = arith.constant 2 : index
      %c0_35 = arith.constant 0 : index
      %c0_36 = arith.constant 0 : index
      %33 = vector.load %arg3[%c2_34, %c0_35, %c0_36] : memref<9x3x32xbf16, #tpu.memory_space<vmem>>, vector<1x3x32xbf16>
      %34 = vector.shape_cast %33 : vector<1x3x32xbf16> to vector<3x32xbf16>
      %cst_37 = arith.constant dense<0.000000e+00> : vector<16x32xf32>
      %35 = tpu.matmul %32, %34, %cst_37 {dimension_numbers = #tpu.dot_dimension_numbers<[1], [0], [0], [1], [0, 0, 1, 1], [], []>} : vector<16x3xbf16>, vector<3x32xbf16>, vector<16x32xf32> -> vector<16x32xf32>
      %36 = arith.addf %28, %35 : vector<16x32xf32>
      %c1_i32_38 = arith.constant 1 : i32
      %37 = arith.addi %11, %c1_i32_38 : i32
      %c0_39 = arith.constant 0 : index
      %38 = arith.index_cast %37 : i32 to index
      %c0_40 = arith.constant 0 : index
      %c0_41 = arith.constant 0 : index
      %39 = vector.load %arg2[%c0_39, %38, %c0_40, %c0_41] : memref<1x18x18x3xbf16, #tpu.memory_space<vmem>>, vector<1x1x16x3xbf16>
      %40 = vector.shape_cast %39 : vector<1x1x16x3xbf16> to vector<16x3xbf16>
      %c3 = arith.constant 3 : index
      %c0_42 = arith.constant 0 : index
      %c0_43 = arith.constant 0 : index
      %41 = vector.load %arg3[%c3, %c0_42, %c0_43] : memref<9x3x32xbf16, #tpu.memory_space<vmem>>, vector<1x3x32xbf16>
      %42 = vector.shape_cast %41 : vector<1x3x32xbf16> to vector<3x32xbf16>
      %cst_44 = arith.constant dense<0.000000e+00> : vector<16x32xf32>
      %43 = tpu.matmul %40, %42, %cst_44 {dimension_numbers = #tpu.dot_dimension_numbers<[1], [0], [0], [1], [0, 0, 1, 1], [], []>} : vector<16x3xbf16>, vector<3x32xbf16>, vector<16x32xf32> -> vector<16x32xf32>
      %44 = arith.addf %36, %43 : vector<16x32xf32>
      %c1_i32_45 = arith.constant 1 : i32
      %45 = arith.addi %11, %c1_i32_45 : i32
      %c0_46 = arith.constant 0 : index
      %46 = arith.index_cast %45 : i32 to index
      %c1_47 = arith.constant 1 : index
      %c0_48 = arith.constant 0 : index
      %47 = vector.load %arg2[%c0_46, %46, %c1_47, %c0_48] : memref<1x18x18x3xbf16, #tpu.memory_space<vmem>>, vector<1x1x16x3xbf16>
      %48 = vector.shape_cast %47 : vector<1x1x16x3xbf16> to vector<16x3xbf16>
      %c4 = arith.constant 4 : index
      %c0_49 = arith.constant 0 : index
      %c0_50 = arith.constant 0 : index
      %49 = vector.load %arg3[%c4, %c0_49, %c0_50] : memref<9x3x32xbf16, #tpu.memory_space<vmem>>, vector<1x3x32xbf16>
      %50 = vector.shape_cast %49 : vector<1x3x32xbf16> to vector<3x32xbf16>
      %cst_51 = arith.constant dense<0.000000e+00> : vector<16x32xf32>
      %51 = tpu.matmul %48, %50, %cst_51 {dimension_numbers = #tpu.dot_dimension_numbers<[1], [0], [0], [1], [0, 0, 1, 1], [], []>} : vector<16x3xbf16>, vector<3x32xbf16>, vector<16x32xf32> -> vector<16x32xf32>
      %52 = arith.addf %44, %51 : vector<16x32xf32>
      %c1_i32_52 = arith.constant 1 : i32
      %53 = arith.addi %11, %c1_i32_52 : i32
      %c0_53 = arith.constant 0 : index
      %54 = arith.index_cast %53 : i32 to index
      %c2_54 = arith.constant 2 : index
      %c0_55 = arith.constant 0 : index
      %55 = vector.load %arg2[%c0_53, %54, %c2_54, %c0_55] : memref<1x18x18x3xbf16, #tpu.memory_space<vmem>>, vector<1x1x16x3xbf16>
      %56 = vector.shape_cast %55 : vector<1x1x16x3xbf16> to vector<16x3xbf16>
      %c5 = arith.constant 5 : index
      %c0_56 = arith.constant 0 : index
      %c0_57 = arith.constant 0 : index
      %57 = vector.load %arg3[%c5, %c0_56, %c0_57] : memref<9x3x32xbf16, #tpu.memory_space<vmem>>, vector<1x3x32xbf16>
      %58 = vector.shape_cast %57 : vector<1x3x32xbf16> to vector<3x32xbf16>
      %cst_58 = arith.constant dense<0.000000e+00> : vector<16x32xf32>
      %59 = tpu.matmul %56, %58, %cst_58 {dimension_numbers = #tpu.dot_dimension_numbers<[1], [0], [0], [1], [0, 0, 1, 1], [], []>} : vector<16x3xbf16>, vector<3x32xbf16>, vector<16x32xf32> -> vector<16x32xf32>
      %60 = arith.addf %52, %59 : vector<16x32xf32>
      %c2_i32 = arith.constant 2 : i32
      %61 = arith.addi %11, %c2_i32 : i32
      %c0_59 = arith.constant 0 : index
      %62 = arith.index_cast %61 : i32 to index
      %c0_60 = arith.constant 0 : index
      %c0_61 = arith.constant 0 : index
      %63 = vector.load %arg2[%c0_59, %62, %c0_60, %c0_61] : memref<1x18x18x3xbf16, #tpu.memory_space<vmem>>, vector<1x1x16x3xbf16>
      %64 = vector.shape_cast %63 : vector<1x1x16x3xbf16> to vector<16x3xbf16>
      %c6 = arith.constant 6 : index
      %c0_62 = arith.constant 0 : index
      %c0_63 = arith.constant 0 : index
      %65 = vector.load %arg3[%c6, %c0_62, %c0_63] : memref<9x3x32xbf16, #tpu.memory_space<vmem>>, vector<1x3x32xbf16>
      %66 = vector.shape_cast %65 : vector<1x3x32xbf16> to vector<3x32xbf16>
      %cst_64 = arith.constant dense<0.000000e+00> : vector<16x32xf32>
      %67 = tpu.matmul %64, %66, %cst_64 {dimension_numbers = #tpu.dot_dimension_numbers<[1], [0], [0], [1], [0, 0, 1, 1], [], []>} : vector<16x3xbf16>, vector<3x32xbf16>, vector<16x32xf32> -> vector<16x32xf32>
      %68 = arith.addf %60, %67 : vector<16x32xf32>
      %c2_i32_65 = arith.constant 2 : i32
      %69 = arith.addi %11, %c2_i32_65 : i32
      %c0_66 = arith.constant 0 : index
      %70 = arith.index_cast %69 : i32 to index
      %c1_67 = arith.constant 1 : index
      %c0_68 = arith.constant 0 : index
      %71 = vector.load %arg2[%c0_66, %70, %c1_67, %c0_68] : memref<1x18x18x3xbf16, #tpu.memory_space<vmem>>, vector<1x1x16x3xbf16>
      %72 = vector.shape_cast %71 : vector<1x1x16x3xbf16> to vector<16x3xbf16>
      %c7 = arith.constant 7 : index
      %c0_69 = arith.constant 0 : index
      %c0_70 = arith.constant 0 : index
      %73 = vector.load %arg3[%c7, %c0_69, %c0_70] : memref<9x3x32xbf16, #tpu.memory_space<vmem>>, vector<1x3x32xbf16>
      %74 = vector.shape_cast %73 : vector<1x3x32xbf16> to vector<3x32xbf16>
      %cst_71 = arith.constant dense<0.000000e+00> : vector<16x32xf32>
      %75 = tpu.matmul %72, %74, %cst_71 {dimension_numbers = #tpu.dot_dimension_numbers<[1], [0], [0], [1], [0, 0, 1, 1], [], []>} : vector<16x3xbf16>, vector<3x32xbf16>, vector<16x32xf32> -> vector<16x32xf32>
      %76 = arith.addf %68, %75 : vector<16x32xf32>
      %c2_i32_72 = arith.constant 2 : i32
      %77 = arith.addi %11, %c2_i32_72 : i32
      %c0_73 = arith.constant 0 : index
      %78 = arith.index_cast %77 : i32 to index
      %c2_74 = arith.constant 2 : index
      %c0_75 = arith.constant 0 : index
      %79 = vector.load %arg2[%c0_73, %78, %c2_74, %c0_75] : memref<1x18x18x3xbf16, #tpu.memory_space<vmem>>, vector<1x1x16x3xbf16>
      %80 = vector.shape_cast %79 : vector<1x1x16x3xbf16> to vector<16x3xbf16>
      %c8 = arith.constant 8 : index
      %c0_76 = arith.constant 0 : index
      %c0_77 = arith.constant 0 : index
      %81 = vector.load %arg3[%c8, %c0_76, %c0_77] : memref<9x3x32xbf16, #tpu.memory_space<vmem>>, vector<1x3x32xbf16>
      %82 = vector.shape_cast %81 : vector<1x3x32xbf16> to vector<3x32xbf16>
      %cst_78 = arith.constant dense<0.000000e+00> : vector<16x32xf32>
      %83 = tpu.matmul %80, %82, %cst_78 {dimension_numbers = #tpu.dot_dimension_numbers<[1], [0], [0], [1], [0, 0, 1, 1], [], []>} : vector<16x3xbf16>, vector<3x32xbf16>, vector<16x32xf32> -> vector<16x32xf32>
      %84 = arith.addf %76, %83 : vector<16x32xf32>
      %c0_79 = arith.constant 0 : index
      %85 = arith.index_cast %arg6 : i32 to index
      %c0_80 = arith.constant 0 : index
      %c0_81 = arith.constant 0 : index
      %86 = vector.load %arg4[%c0_79, %85, %c0_80, %c0_81] : memref<1x8x16x32xf32, #tpu.memory_space<vmem>>, vector<1x1x16x32xf32>
      %87 = vector.shape_cast %86 : vector<1x1x16x32xf32> to vector<16x32xf32>
      %88 = vector.shape_cast %84 : vector<16x32xf32> to vector<1x1x16x32xf32>
      tpu.vector_store %arg4[%c0_79, %85, %c0_80, %c0_81], %88 {strides = array<i32>} : memref<1x8x16x32xf32, #tpu.memory_space<vmem>>, vector<1x1x16x32xf32>,
    }
    %c8_i32_1 = arith.constant 8 : i32
    %c0 = arith.constant 0 : index
    %c0_2 = arith.constant 0 : index
    %c0_3 = arith.constant 0 : index
    %c0_4 = arith.constant 0 : index
    %2 = vector.load %arg4[%c0, %c0_2, %c0_3, %c0_4] : memref<1x8x16x32xf32, #tpu.memory_space<vmem>>, vector<1x8x16x32xf32>
    %cst = arith.constant dense<0.000000e+00> : vector<1x32xf32>
    %3 = vector.multi_reduction <add>, %2, %cst [1, 2] : vector<1x8x16x32xf32> to vector<1x32xf32>
    %4 = vector.shape_cast %3 : vector<1x32xf32> to vector<1x1x1x32xf32>
    %c0_5 = arith.constant 0 : index
    %c0_6 = arith.constant 0 : index
    %c0_7 = arith.constant 0 : index
    %c0_8 = arith.constant 0 : index
    %5 = vector.load %arg5[%c0_5, %c0_6, %c0_7, %c0_8] : memref<1x1x2x32xf32, #tpu.memory_space<vmem>>, vector<1x1x1x32xf32>
    tpu.vector_store %arg5[%c0_5, %c0_6, %c0_7, %c0_8], %4 {strides = array<i32>} : memref<1x1x2x32xf32, #tpu.memory_space<vmem>>, vector<1x1x1x32xf32>,
    %6 = arith.mulf %2, %2 : vector<1x8x16x32xf32>
    %cst_9 = arith.constant dense<0.000000e+00> : vector<1x32xf32>
    %7 = vector.multi_reduction <add>, %6, %cst_9 [1, 2] : vector<1x8x16x32xf32> to vector<1x32xf32>
    %8 = vector.shape_cast %7 : vector<1x32xf32> to vector<1x1x1x32xf32>
    %c0_10 = arith.constant 0 : index
    %c0_11 = arith.constant 0 : index
    %c1 = arith.constant 1 : index
    %c0_12 = arith.constant 0 : index
    %9 = vector.load %arg5[%c0_10, %c0_11, %c1, %c0_12] : memref<1x1x2x32xf32, #tpu.memory_space<vmem>>, vector<1x1x1x32xf32>
    tpu.vector_store %arg5[%c0_10, %c0_11, %c1, %c0_12], %8 {strides = array<i32>} : memref<1x1x2x32xf32, #tpu.memory_space<vmem>>, vector<1x1x1x32xf32>,
    return
  }
  func.func @transform_0(%arg0: i32, %arg1: i32) -> (i32, i32, i32, i32) {
    %c0_i32 = arith.constant 0 : i32
    %c0_i32_0 = arith.constant 0 : i32
    %c0_i32_1 = arith.constant 0 : i32
    %c0_i32_2 = arith.constant 0 : i32
    return %arg0, %c0_i32, %c0_i32_0, %c0_i32_1 : i32, i32, i32, i32
  }
  func.func @transform_1(%arg0: i32, %arg1: i32) -> (i32, i32, i32) {
    %c0_i32 = arith.constant 0 : i32
    %c0_i32_0 = arith.constant 0 : i32
    %c0_i32_1 = arith.constant 0 : i32
    %c0_i32_2 = arith.constant 0 : i32
    return %c0_i32, %c0_i32_0, %c0_i32_1 : i32, i32, i32
  }
  func.func @transform_2(%arg0: i32, %arg1: i32) -> (i32, i32, i32, i32) {
    %c0_i32 = arith.constant 0 : i32
    %c0_i32_0 = arith.constant 0 : i32
    %c0_i32_1 = arith.constant 0 : i32
    return %arg0, %arg1, %c0_i32, %c0_i32_0 : i32, i32, i32, i32
  }
  func.func @transform_3(%arg0: i32, %arg1: i32) -> (i32, i32, i32, i32) {
    %c0_i32 = arith.constant 0 : i32
    %c0_i32_0 = arith.constant 0 : i32
    %c0_i32_1 = arith.constant 0 : i32
    return %arg0, %arg1, %c0_i32, %c0_i32_0 : i32, i32, i32, i32
  }
}

module attributes {stable_mosaic.version = 11 : i64} {
  func.func @_bn_relu_kernel(%arg0: i32, %arg1: i32, %arg2: memref<1x8x16x32xf32, #tpu.memory_space<vmem>>, %arg3: memref<2x32xf32, #tpu.memory_space<vmem>>, %arg4: memref<1x32xf32, #tpu.memory_space<vmem>>, %arg5: memref<1x32xf32, #tpu.memory_space<vmem>>, %arg6: memref<1x8x16x32xbf16, #tpu.memory_space<vmem>>) attributes {dimension_semantics = [#tpu.dimension_semantics<parallel>, #tpu.dimension_semantics<parallel>], iteration_bounds = array<i64: 2, 2>, scalar_prefetch = 0 : i64, scratch_operands = 0 : i64, tpu.core_type = #tpu.core_type<tc>, window_params = [{transform_indices = @transform_0, window_bounds = array<i64: 1, 8, 16, 32>}, {pipeline_mode = #tpu.pipeline_mode<synchronous>, transform_indices = @transform_1, window_bounds = array<i64: 2, 32>}, {pipeline_mode = #tpu.pipeline_mode<synchronous>, transform_indices = @transform_2, window_bounds = array<i64: 1, 32>}, {pipeline_mode = #tpu.pipeline_mode<synchronous>, transform_indices = @transform_3, window_bounds = array<i64: 1, 32>}, {transform_indices = @transform_4, window_bounds = array<i64: 1, 8, 16, 32>}]} {
    %c0 = arith.constant 0 : index
    %c0_0 = arith.constant 0 : index
    %0 = vector.load %arg3[%c0, %c0_0] : memref<2x32xf32, #tpu.memory_space<vmem>>, vector<2x32xf32>
    %1 = vector.extract_strided_slice %0 {offsets = [0, 0], sizes = [1, 32], strides = [1, 1]} : vector<2x32xf32> to vector<1x32xf32>
    %cst = arith.constant 0.001953125 : f32
    %2 = vector.broadcast %cst : f32 to vector<1x32xf32>
    %3 = arith.mulf %1, %2 : vector<1x32xf32>
    %4 = vector.extract_strided_slice %0 {offsets = [1, 0], sizes = [1, 32], strides = [1, 1]} : vector<2x32xf32> to vector<1x32xf32>
    %cst_1 = arith.constant 0.001953125 : f32
    %5 = vector.broadcast %cst_1 : f32 to vector<1x32xf32>
    %6 = arith.mulf %4, %5 : vector<1x32xf32>
    %7 = arith.mulf %3, %3 : vector<1x32xf32>
    %8 = arith.subf %6, %7 : vector<1x32xf32>
    %c0_2 = arith.constant 0 : index
    %c0_3 = arith.constant 0 : index
    %9 = vector.load %arg4[%c0_2, %c0_3] : memref<1x32xf32, #tpu.memory_space<vmem>>, vector<1x32xf32>
    %cst_4 = arith.constant 9.99999974E-6 : f32
    %10 = vector.broadcast %cst_4 : f32 to vector<1x32xf32>
    %11 = arith.addf %8, %10 : vector<1x32xf32>
    %12 = math.rsqrt %11 : vector<1x32xf32>
    %13 = arith.mulf %9, %12 : vector<1x32xf32>
    %c0_5 = arith.constant 0 : index
    %c0_6 = arith.constant 0 : index
    %14 = vector.load %arg5[%c0_5, %c0_6] : memref<1x32xf32, #tpu.memory_space<vmem>>, vector<1x32xf32>
    %15 = arith.mulf %3, %13 : vector<1x32xf32>
    %16 = arith.subf %14, %15 : vector<1x32xf32>
    %c0_7 = arith.constant 0 : index
    %c0_8 = arith.constant 0 : index
    %c0_9 = arith.constant 0 : index
    %c0_10 = arith.constant 0 : index
    %17 = vector.load %arg2[%c0_7, %c0_8, %c0_9, %c0_10] : memref<1x8x16x32xf32, #tpu.memory_space<vmem>>, vector<1x8x16x32xf32>
    %18 = vector.shape_cast %13 : vector<1x32xf32> to vector<1x1x1x32xf32>
    %19 = vector.broadcast %18 : vector<1x1x1x32xf32> to vector<1x8x16x32xf32>
    %20 = arith.mulf %17, %19 : vector<1x8x16x32xf32>
    %21 = vector.shape_cast %16 : vector<1x32xf32> to vector<1x1x1x32xf32>
    %22 = vector.broadcast %21 : vector<1x1x1x32xf32> to vector<1x8x16x32xf32>
    %23 = arith.addf %20, %22 : vector<1x8x16x32xf32>
    %cst_11 = arith.constant 0.000000e+00 : f32
    %24 = vector.broadcast %cst_11 : f32 to vector<1x8x16x32xf32>
    %25 = arith.maximumf %23, %24 : vector<1x8x16x32xf32>
    %26 = arith.truncf %25 : vector<1x8x16x32xf32> to vector<1x8x16x32xbf16>
    %c0_12 = arith.constant 0 : index
    %c0_13 = arith.constant 0 : index
    %c0_14 = arith.constant 0 : index
    %c0_15 = arith.constant 0 : index
    %27 = vector.load %arg6[%c0_12, %c0_13, %c0_14, %c0_15] : memref<1x8x16x32xbf16, #tpu.memory_space<vmem>>, vector<1x8x16x32xbf16>
    tpu.vector_store %arg6[%c0_12, %c0_13, %c0_14, %c0_15], %26 {strides = array<i32>} : memref<1x8x16x32xbf16, #tpu.memory_space<vmem>>, vector<1x8x16x32xbf16>,
    return
  }
  func.func @transform_0(%arg0: i32, %arg1: i32) -> (i32, i32, i32, i32) {
    %c0_i32 = arith.constant 0 : i32
    %c0_i32_0 = arith.constant 0 : i32
    %c0_i32_1 = arith.constant 0 : i32
    return %arg0, %arg1, %c0_i32, %c0_i32_0 : i32, i32, i32, i32
  }
  func.func @transform_1(%arg0: i32, %arg1: i32) -> (i32, i32) {
    %c0_i32 = arith.constant 0 : i32
    %c0_i32_0 = arith.constant 0 : i32
    %c0_i32_1 = arith.constant 0 : i32
    return %c0_i32, %c0_i32_0 : i32, i32
  }
  func.func @transform_2(%arg0: i32, %arg1: i32) -> (i32, i32) {
    %c0_i32 = arith.constant 0 : i32
    %c0_i32_0 = arith.constant 0 : i32
    %c0_i32_1 = arith.constant 0 : i32
    return %c0_i32, %c0_i32_0 : i32, i32
  }
  func.func @transform_3(%arg0: i32, %arg1: i32) -> (i32, i32) {
    %c0_i32 = arith.constant 0 : i32
    %c0_i32_0 = arith.constant 0 : i32
    %c0_i32_1 = arith.constant 0 : i32
    return %c0_i32, %c0_i32_0 : i32, i32
  }
  func.func @transform_4(%arg0: i32, %arg1: i32) -> (i32, i32, i32, i32) {
    %c0_i32 = arith.constant 0 : i32
    %c0_i32_0 = arith.constant 0 : i32
    %c0_i32_1 = arith.constant 0 : i32
    return %arg0, %arg1, %c0_i32, %c0_i32_0 : i32, i32, i32, i32
  }
}

module attributes {stable_mosaic.version = 11 : i64} {
  func.func @_conv_stats_kernel(%arg0: i32, %arg1: i32, %arg2: memref<1x18x9x32xbf16, #tpu.memory_space<vmem>>, %arg3: memref<1x18x9x32xbf16, #tpu.memory_space<vmem>>, %arg4: memref<9x32x64xbf16, #tpu.memory_space<vmem>>, %arg5: memref<1x8x8x64xf32, #tpu.memory_space<vmem>>, %arg6: memref<1x1x2x64xf32, #tpu.memory_space<vmem>>) attributes {dimension_semantics = [#tpu.dimension_semantics<parallel>, #tpu.dimension_semantics<parallel>], iteration_bounds = array<i64: 2, 1>, scalar_prefetch = 0 : i64, scratch_operands = 0 : i64, tpu.core_type = #tpu.core_type<tc>, window_params = [{transform_indices = @transform_0, window_bounds = array<i64: 1, 18, 9, 32>}, {transform_indices = @transform_1, window_bounds = array<i64: 1, 18, 9, 32>}, {pipeline_mode = #tpu.pipeline_mode<synchronous>, transform_indices = @transform_2, window_bounds = array<i64: 9, 32, 64>}, {transform_indices = @transform_3, window_bounds = array<i64: 1, 8, 8, 64>}, {transform_indices = @transform_4, window_bounds = array<i64: 1, 1, 2, 64>}]} {
    %c8_i32 = arith.constant 8 : i32
    %0 = arith.muli %arg1, %c8_i32 : i32
    %c0_i32 = arith.constant 0 : i32
    %c8_i32_0 = arith.constant 8 : i32
    %1 = arith.addi %c0_i32, %c8_i32_0 : i32
    %c1_i32 = arith.constant 1 : i32
    scf.for %arg7 = %c0_i32 to %1 step %c1_i32  : i32 {
      %10 = arith.addi %0, %arg7 : i32
      %c2_i32 = arith.constant 2 : i32
      %11 = arith.muli %c2_i32, %10 : i32
      %cst_13 = arith.constant 0.000000e+00 : f32
      %12 = vector.broadcast %cst_13 : f32 to vector<8x64xf32>
      %c0_i32_14 = arith.constant 0 : i32
      %13 = arith.addi %11, %c0_i32_14 : i32
      %c0_15 = arith.constant 0 : index
      %14 = arith.index_cast %13 : i32 to index
      %c0_16 = arith.constant 0 : index
      %c0_17 = arith.constant 0 : index
      %15 = vector.load %arg2[%c0_15, %14, %c0_16, %c0_17] : memref<1x18x9x32xbf16, #tpu.memory_space<vmem>>, vector<1x1x8x32xbf16>
      %16 = vector.shape_cast %15 : vector<1x1x8x32xbf16> to vector<8x32xbf16>
      %c0_18 = arith.constant 0 : index
      %c0_19 = arith.constant 0 : index
      %c0_20 = arith.constant 0 : index
      %17 = vector.load %arg4[%c0_18, %c0_19, %c0_20] : memref<9x32x64xbf16, #tpu.memory_space<vmem>>, vector<1x32x64xbf16>
      %18 = vector.shape_cast %17 : vector<1x32x64xbf16> to vector<32x64xbf16>
      %cst_21 = arith.constant dense<0.000000e+00> : vector<8x64xf32>
      %19 = tpu.matmul %16, %18, %cst_21 {dimension_numbers = #tpu.dot_dimension_numbers<[1], [0], [0], [1], [0, 0, 1, 1], [], []>} : vector<8x32xbf16>, vector<32x64xbf16>, vector<8x64xf32> -> vector<8x64xf32>
      %20 = arith.addf %12, %19 : vector<8x64xf32>
      %c0_i32_22 = arith.constant 0 : i32
      %21 = arith.addi %11, %c0_i32_22 : i32
      %c0_23 = arith.constant 0 : index
      %22 = arith.index_cast %21 : i32 to index
      %c0_24 = arith.constant 0 : index
      %c0_25 = arith.constant 0 : index
      %23 = vector.load %arg3[%c0_23, %22, %c0_24, %c0_25] : memref<1x18x9x32xbf16, #tpu.memory_space<vmem>>, vector<1x1x8x32xbf16>
      %24 = vector.shape_cast %23 : vector<1x1x8x32xbf16> to vector<8x32xbf16>
      %c1_26 = arith.constant 1 : index
      %c0_27 = arith.constant 0 : index
      %c0_28 = arith.constant 0 : index
      %25 = vector.load %arg4[%c1_26, %c0_27, %c0_28] : memref<9x32x64xbf16, #tpu.memory_space<vmem>>, vector<1x32x64xbf16>
      %26 = vector.shape_cast %25 : vector<1x32x64xbf16> to vector<32x64xbf16>
      %cst_29 = arith.constant dense<0.000000e+00> : vector<8x64xf32>
      %27 = tpu.matmul %24, %26, %cst_29 {dimension_numbers = #tpu.dot_dimension_numbers<[1], [0], [0], [1], [0, 0, 1, 1], [], []>} : vector<8x32xbf16>, vector<32x64xbf16>, vector<8x64xf32> -> vector<8x64xf32>
      %28 = arith.addf %20, %27 : vector<8x64xf32>
      %c0_i32_30 = arith.constant 0 : i32
      %29 = arith.addi %11, %c0_i32_30 : i32
      %c0_31 = arith.constant 0 : index
      %30 = arith.index_cast %29 : i32 to index
      %c1_32 = arith.constant 1 : index
      %c0_33 = arith.constant 0 : index
      %31 = vector.load %arg2[%c0_31, %30, %c1_32, %c0_33] : memref<1x18x9x32xbf16, #tpu.memory_space<vmem>>, vector<1x1x8x32xbf16>
      %32 = vector.shape_cast %31 : vector<1x1x8x32xbf16> to vector<8x32xbf16>
      %c2 = arith.constant 2 : index
      %c0_34 = arith.constant 0 : index
      %c0_35 = arith.constant 0 : index
      %33 = vector.load %arg4[%c2, %c0_34, %c0_35] : memref<9x32x64xbf16, #tpu.memory_space<vmem>>, vector<1x32x64xbf16>
      %34 = vector.shape_cast %33 : vector<1x32x64xbf16> to vector<32x64xbf16>
      %cst_36 = arith.constant dense<0.000000e+00> : vector<8x64xf32>
      %35 = tpu.matmul %32, %34, %cst_36 {dimension_numbers = #tpu.dot_dimension_numbers<[1], [0], [0], [1], [0, 0, 1, 1], [], []>} : vector<8x32xbf16>, vector<32x64xbf16>, vector<8x64xf32> -> vector<8x64xf32>
      %36 = arith.addf %28, %35 : vector<8x64xf32>
      %c1_i32_37 = arith.constant 1 : i32
      %37 = arith.addi %11, %c1_i32_37 : i32
      %c0_38 = arith.constant 0 : index
      %38 = arith.index_cast %37 : i32 to index
      %c0_39 = arith.constant 0 : index
      %c0_40 = arith.constant 0 : index
      %39 = vector.load %arg2[%c0_38, %38, %c0_39, %c0_40] : memref<1x18x9x32xbf16, #tpu.memory_space<vmem>>, vector<1x1x8x32xbf16>
      %40 = vector.shape_cast %39 : vector<1x1x8x32xbf16> to vector<8x32xbf16>
      %c3 = arith.constant 3 : index
      %c0_41 = arith.constant 0 : index
      %c0_42 = arith.constant 0 : index
      %41 = vector.load %arg4[%c3, %c0_41, %c0_42] : memref<9x32x64xbf16, #tpu.memory_space<vmem>>, vector<1x32x64xbf16>
      %42 = vector.shape_cast %41 : vector<1x32x64xbf16> to vector<32x64xbf16>
      %cst_43 = arith.constant dense<0.000000e+00> : vector<8x64xf32>
      %43 = tpu.matmul %40, %42, %cst_43 {dimension_numbers = #tpu.dot_dimension_numbers<[1], [0], [0], [1], [0, 0, 1, 1], [], []>} : vector<8x32xbf16>, vector<32x64xbf16>, vector<8x64xf32> -> vector<8x64xf32>
      %44 = arith.addf %36, %43 : vector<8x64xf32>
      %c1_i32_44 = arith.constant 1 : i32
      %45 = arith.addi %11, %c1_i32_44 : i32
      %c0_45 = arith.constant 0 : index
      %46 = arith.index_cast %45 : i32 to index
      %c0_46 = arith.constant 0 : index
      %c0_47 = arith.constant 0 : index
      %47 = vector.load %arg3[%c0_45, %46, %c0_46, %c0_47] : memref<1x18x9x32xbf16, #tpu.memory_space<vmem>>, vector<1x1x8x32xbf16>
      %48 = vector.shape_cast %47 : vector<1x1x8x32xbf16> to vector<8x32xbf16>
      %c4 = arith.constant 4 : index
      %c0_48 = arith.constant 0 : index
      %c0_49 = arith.constant 0 : index
      %49 = vector.load %arg4[%c4, %c0_48, %c0_49] : memref<9x32x64xbf16, #tpu.memory_space<vmem>>, vector<1x32x64xbf16>
      %50 = vector.shape_cast %49 : vector<1x32x64xbf16> to vector<32x64xbf16>
      %cst_50 = arith.constant dense<0.000000e+00> : vector<8x64xf32>
      %51 = tpu.matmul %48, %50, %cst_50 {dimension_numbers = #tpu.dot_dimension_numbers<[1], [0], [0], [1], [0, 0, 1, 1], [], []>} : vector<8x32xbf16>, vector<32x64xbf16>, vector<8x64xf32> -> vector<8x64xf32>
      %52 = arith.addf %44, %51 : vector<8x64xf32>
      %c1_i32_51 = arith.constant 1 : i32
      %53 = arith.addi %11, %c1_i32_51 : i32
      %c0_52 = arith.constant 0 : index
      %54 = arith.index_cast %53 : i32 to index
      %c1_53 = arith.constant 1 : index
      %c0_54 = arith.constant 0 : index
      %55 = vector.load %arg2[%c0_52, %54, %c1_53, %c0_54] : memref<1x18x9x32xbf16, #tpu.memory_space<vmem>>, vector<1x1x8x32xbf16>
      %56 = vector.shape_cast %55 : vector<1x1x8x32xbf16> to vector<8x32xbf16>
      %c5 = arith.constant 5 : index
      %c0_55 = arith.constant 0 : index
      %c0_56 = arith.constant 0 : index
      %57 = vector.load %arg4[%c5, %c0_55, %c0_56] : memref<9x32x64xbf16, #tpu.memory_space<vmem>>, vector<1x32x64xbf16>
      %58 = vector.shape_cast %57 : vector<1x32x64xbf16> to vector<32x64xbf16>
      %cst_57 = arith.constant dense<0.000000e+00> : vector<8x64xf32>
      %59 = tpu.matmul %56, %58, %cst_57 {dimension_numbers = #tpu.dot_dimension_numbers<[1], [0], [0], [1], [0, 0, 1, 1], [], []>} : vector<8x32xbf16>, vector<32x64xbf16>, vector<8x64xf32> -> vector<8x64xf32>
      %60 = arith.addf %52, %59 : vector<8x64xf32>
      %c2_i32_58 = arith.constant 2 : i32
      %61 = arith.addi %11, %c2_i32_58 : i32
      %c0_59 = arith.constant 0 : index
      %62 = arith.index_cast %61 : i32 to index
      %c0_60 = arith.constant 0 : index
      %c0_61 = arith.constant 0 : index
      %63 = vector.load %arg2[%c0_59, %62, %c0_60, %c0_61] : memref<1x18x9x32xbf16, #tpu.memory_space<vmem>>, vector<1x1x8x32xbf16>
      %64 = vector.shape_cast %63 : vector<1x1x8x32xbf16> to vector<8x32xbf16>
      %c6 = arith.constant 6 : index
      %c0_62 = arith.constant 0 : index
      %c0_63 = arith.constant 0 : index
      %65 = vector.load %arg4[%c6, %c0_62, %c0_63] : memref<9x32x64xbf16, #tpu.memory_space<vmem>>, vector<1x32x64xbf16>
      %66 = vector.shape_cast %65 : vector<1x32x64xbf16> to vector<32x64xbf16>
      %cst_64 = arith.constant dense<0.000000e+00> : vector<8x64xf32>
      %67 = tpu.matmul %64, %66, %cst_64 {dimension_numbers = #tpu.dot_dimension_numbers<[1], [0], [0], [1], [0, 0, 1, 1], [], []>} : vector<8x32xbf16>, vector<32x64xbf16>, vector<8x64xf32> -> vector<8x64xf32>
      %68 = arith.addf %60, %67 : vector<8x64xf32>
      %c2_i32_65 = arith.constant 2 : i32
      %69 = arith.addi %11, %c2_i32_65 : i32
      %c0_66 = arith.constant 0 : index
      %70 = arith.index_cast %69 : i32 to index
      %c0_67 = arith.constant 0 : index
      %c0_68 = arith.constant 0 : index
      %71 = vector.load %arg3[%c0_66, %70, %c0_67, %c0_68] : memref<1x18x9x32xbf16, #tpu.memory_space<vmem>>, vector<1x1x8x32xbf16>
      %72 = vector.shape_cast %71 : vector<1x1x8x32xbf16> to vector<8x32xbf16>
      %c7 = arith.constant 7 : index
      %c0_69 = arith.constant 0 : index
      %c0_70 = arith.constant 0 : index
      %73 = vector.load %arg4[%c7, %c0_69, %c0_70] : memref<9x32x64xbf16, #tpu.memory_space<vmem>>, vector<1x32x64xbf16>
      %74 = vector.shape_cast %73 : vector<1x32x64xbf16> to vector<32x64xbf16>
      %cst_71 = arith.constant dense<0.000000e+00> : vector<8x64xf32>
      %75 = tpu.matmul %72, %74, %cst_71 {dimension_numbers = #tpu.dot_dimension_numbers<[1], [0], [0], [1], [0, 0, 1, 1], [], []>} : vector<8x32xbf16>, vector<32x64xbf16>, vector<8x64xf32> -> vector<8x64xf32>
      %76 = arith.addf %68, %75 : vector<8x64xf32>
      %c2_i32_72 = arith.constant 2 : i32
      %77 = arith.addi %11, %c2_i32_72 : i32
      %c0_73 = arith.constant 0 : index
      %78 = arith.index_cast %77 : i32 to index
      %c1_74 = arith.constant 1 : index
      %c0_75 = arith.constant 0 : index
      %79 = vector.load %arg2[%c0_73, %78, %c1_74, %c0_75] : memref<1x18x9x32xbf16, #tpu.memory_space<vmem>>, vector<1x1x8x32xbf16>
      %80 = vector.shape_cast %79 : vector<1x1x8x32xbf16> to vector<8x32xbf16>
      %c8 = arith.constant 8 : index
      %c0_76 = arith.constant 0 : index
      %c0_77 = arith.constant 0 : index
      %81 = vector.load %arg4[%c8, %c0_76, %c0_77] : memref<9x32x64xbf16, #tpu.memory_space<vmem>>, vector<1x32x64xbf16>
      %82 = vector.shape_cast %81 : vector<1x32x64xbf16> to vector<32x64xbf16>
      %cst_78 = arith.constant dense<0.000000e+00> : vector<8x64xf32>
      %83 = tpu.matmul %80, %82, %cst_78 {dimension_numbers = #tpu.dot_dimension_numbers<[1], [0], [0], [1], [0, 0, 1, 1], [], []>} : vector<8x32xbf16>, vector<32x64xbf16>, vector<8x64xf32> -> vector<8x64xf32>
      %84 = arith.addf %76, %83 : vector<8x64xf32>
      %c0_79 = arith.constant 0 : index
      %85 = arith.index_cast %arg7 : i32 to index
      %c0_80 = arith.constant 0 : index
      %c0_81 = arith.constant 0 : index
      %86 = vector.load %arg5[%c0_79, %85, %c0_80, %c0_81] : memref<1x8x8x64xf32, #tpu.memory_space<vmem>>, vector<1x1x8x64xf32>
      %87 = vector.shape_cast %86 : vector<1x1x8x64xf32> to vector<8x64xf32>
      %88 = vector.shape_cast %84 : vector<8x64xf32> to vector<1x1x8x64xf32>
      tpu.vector_store %arg5[%c0_79, %85, %c0_80, %c0_81], %88 {strides = array<i32>} : memref<1x8x8x64xf32, #tpu.memory_space<vmem>>, vector<1x1x8x64xf32>,
    }
    %c8_i32_1 = arith.constant 8 : i32
    %c0 = arith.constant 0 : index
    %c0_2 = arith.constant 0 : index
    %c0_3 = arith.constant 0 : index
    %c0_4 = arith.constant 0 : index
    %2 = vector.load %arg5[%c0, %c0_2, %c0_3, %c0_4] : memref<1x8x8x64xf32, #tpu.memory_space<vmem>>, vector<1x8x8x64xf32>
    %cst = arith.constant dense<0.000000e+00> : vector<1x64xf32>
    %3 = vector.multi_reduction <add>, %2, %cst [1, 2] : vector<1x8x8x64xf32> to vector<1x64xf32>
    %4 = vector.shape_cast %3 : vector<1x64xf32> to vector<1x1x1x64xf32>
    %c0_5 = arith.constant 0 : index
    %c0_6 = arith.constant 0 : index
    %c0_7 = arith.constant 0 : index
    %c0_8 = arith.constant 0 : index
    %5 = vector.load %arg6[%c0_5, %c0_6, %c0_7, %c0_8] : memref<1x1x2x64xf32, #tpu.memory_space<vmem>>, vector<1x1x1x64xf32>
    tpu.vector_store %arg6[%c0_5, %c0_6, %c0_7, %c0_8], %4 {strides = array<i32>} : memref<1x1x2x64xf32, #tpu.memory_space<vmem>>, vector<1x1x1x64xf32>,
    %6 = arith.mulf %2, %2 : vector<1x8x8x64xf32>
    %cst_9 = arith.constant dense<0.000000e+00> : vector<1x64xf32>
    %7 = vector.multi_reduction <add>, %6, %cst_9 [1, 2] : vector<1x8x8x64xf32> to vector<1x64xf32>
    %8 = vector.shape_cast %7 : vector<1x64xf32> to vector<1x1x1x64xf32>
    %c0_10 = arith.constant 0 : index
    %c0_11 = arith.constant 0 : index
    %c1 = arith.constant 1 : index
    %c0_12 = arith.constant 0 : index
    %9 = vector.load %arg6[%c0_10, %c0_11, %c1, %c0_12] : memref<1x1x2x64xf32, #tpu.memory_space<vmem>>, vector<1x1x1x64xf32>
    tpu.vector_store %arg6[%c0_10, %c0_11, %c1, %c0_12], %8 {strides = array<i32>} : memref<1x1x2x64xf32, #tpu.memory_space<vmem>>, vector<1x1x1x64xf32>,
    return
  }
  func.func @transform_0(%arg0: i32, %arg1: i32) -> (i32, i32, i32, i32) {
    %c0_i32 = arith.constant 0 : i32
    %c0_i32_0 = arith.constant 0 : i32
    %c0_i32_1 = arith.constant 0 : i32
    %c0_i32_2 = arith.constant 0 : i32
    return %arg0, %c0_i32, %c0_i32_0, %c0_i32_1 : i32, i32, i32, i32
  }
  func.func @transform_1(%arg0: i32, %arg1: i32) -> (i32, i32, i32, i32) {
    %c0_i32 = arith.constant 0 : i32
    %c0_i32_0 = arith.constant 0 : i32
    %c0_i32_1 = arith.constant 0 : i32
    %c0_i32_2 = arith.constant 0 : i32
    return %arg0, %c0_i32, %c0_i32_0, %c0_i32_1 : i32, i32, i32, i32
  }
  func.func @transform_2(%arg0: i32, %arg1: i32) -> (i32, i32, i32) {
    %c0_i32 = arith.constant 0 : i32
    %c0_i32_0 = arith.constant 0 : i32
    %c0_i32_1 = arith.constant 0 : i32
    %c0_i32_2 = arith.constant 0 : i32
    return %c0_i32, %c0_i32_0, %c0_i32_1 : i32, i32, i32
  }
  func.func @transform_3(%arg0: i32, %arg1: i32) -> (i32, i32, i32, i32) {
    %c0_i32 = arith.constant 0 : i32
    %c0_i32_0 = arith.constant 0 : i32
    %c0_i32_1 = arith.constant 0 : i32
    return %arg0, %arg1, %c0_i32, %c0_i32_0 : i32, i32, i32, i32
  }
  func.func @transform_4(%arg0: i32, %arg1: i32) -> (i32, i32, i32, i32) {
    %c0_i32 = arith.constant 0 : i32
    %c0_i32_0 = arith.constant 0 : i32
    %c0_i32_1 = arith.constant 0 : i32
    return %arg0, %arg1, %c0_i32, %c0_i32_0 : i32, i32, i32, i32
  }
}

module attributes {stable_mosaic.version = 11 : i64} {
  func.func @_bn_relu_kernel(%arg0: i32, %arg1: i32, %arg2: memref<1x8x8x64xf32, #tpu.memory_space<vmem>>, %arg3: memref<2x64xf32, #tpu.memory_space<vmem>>, %arg4: memref<1x64xf32, #tpu.memory_space<vmem>>, %arg5: memref<1x64xf32, #tpu.memory_space<vmem>>, %arg6: memref<1x8x8x64xbf16, #tpu.memory_space<vmem>>) attributes {dimension_semantics = [#tpu.dimension_semantics<parallel>, #tpu.dimension_semantics<parallel>], iteration_bounds = array<i64: 2, 1>, scalar_prefetch = 0 : i64, scratch_operands = 0 : i64, tpu.core_type = #tpu.core_type<tc>, window_params = [{transform_indices = @transform_0, window_bounds = array<i64: 1, 8, 8, 64>}, {pipeline_mode = #tpu.pipeline_mode<synchronous>, transform_indices = @transform_1, window_bounds = array<i64: 2, 64>}, {pipeline_mode = #tpu.pipeline_mode<synchronous>, transform_indices = @transform_2, window_bounds = array<i64: 1, 64>}, {pipeline_mode = #tpu.pipeline_mode<synchronous>, transform_indices = @transform_3, window_bounds = array<i64: 1, 64>}, {transform_indices = @transform_4, window_bounds = array<i64: 1, 8, 8, 64>}]} {
    %c0 = arith.constant 0 : index
    %c0_0 = arith.constant 0 : index
    %0 = vector.load %arg3[%c0, %c0_0] : memref<2x64xf32, #tpu.memory_space<vmem>>, vector<2x64xf32>
    %1 = vector.extract_strided_slice %0 {offsets = [0, 0], sizes = [1, 64], strides = [1, 1]} : vector<2x64xf32> to vector<1x64xf32>
    %cst = arith.constant 7.812500e-03 : f32
    %2 = vector.broadcast %cst : f32 to vector<1x64xf32>
    %3 = arith.mulf %1, %2 : vector<1x64xf32>
    %4 = vector.extract_strided_slice %0 {offsets = [1, 0], sizes = [1, 64], strides = [1, 1]} : vector<2x64xf32> to vector<1x64xf32>
    %cst_1 = arith.constant 7.812500e-03 : f32
    %5 = vector.broadcast %cst_1 : f32 to vector<1x64xf32>
    %6 = arith.mulf %4, %5 : vector<1x64xf32>
    %7 = arith.mulf %3, %3 : vector<1x64xf32>
    %8 = arith.subf %6, %7 : vector<1x64xf32>
    %c0_2 = arith.constant 0 : index
    %c0_3 = arith.constant 0 : index
    %9 = vector.load %arg4[%c0_2, %c0_3] : memref<1x64xf32, #tpu.memory_space<vmem>>, vector<1x64xf32>
    %cst_4 = arith.constant 9.99999974E-6 : f32
    %10 = vector.broadcast %cst_4 : f32 to vector<1x64xf32>
    %11 = arith.addf %8, %10 : vector<1x64xf32>
    %12 = math.rsqrt %11 : vector<1x64xf32>
    %13 = arith.mulf %9, %12 : vector<1x64xf32>
    %c0_5 = arith.constant 0 : index
    %c0_6 = arith.constant 0 : index
    %14 = vector.load %arg5[%c0_5, %c0_6] : memref<1x64xf32, #tpu.memory_space<vmem>>, vector<1x64xf32>
    %15 = arith.mulf %3, %13 : vector<1x64xf32>
    %16 = arith.subf %14, %15 : vector<1x64xf32>
    %c0_7 = arith.constant 0 : index
    %c0_8 = arith.constant 0 : index
    %c0_9 = arith.constant 0 : index
    %c0_10 = arith.constant 0 : index
    %17 = vector.load %arg2[%c0_7, %c0_8, %c0_9, %c0_10] : memref<1x8x8x64xf32, #tpu.memory_space<vmem>>, vector<1x8x8x64xf32>
    %18 = vector.shape_cast %13 : vector<1x64xf32> to vector<1x1x1x64xf32>
    %19 = vector.broadcast %18 : vector<1x1x1x64xf32> to vector<1x8x8x64xf32>
    %20 = arith.mulf %17, %19 : vector<1x8x8x64xf32>
    %21 = vector.shape_cast %16 : vector<1x64xf32> to vector<1x1x1x64xf32>
    %22 = vector.broadcast %21 : vector<1x1x1x64xf32> to vector<1x8x8x64xf32>
    %23 = arith.addf %20, %22 : vector<1x8x8x64xf32>
    %cst_11 = arith.constant 0.000000e+00 : f32
    %24 = vector.broadcast %cst_11 : f32 to vector<1x8x8x64xf32>
    %25 = arith.maximumf %23, %24 : vector<1x8x8x64xf32>
    %26 = arith.truncf %25 : vector<1x8x8x64xf32> to vector<1x8x8x64xbf16>
    %c0_12 = arith.constant 0 : index
    %c0_13 = arith.constant 0 : index
    %c0_14 = arith.constant 0 : index
    %c0_15 = arith.constant 0 : index
    %27 = vector.load %arg6[%c0_12, %c0_13, %c0_14, %c0_15] : memref<1x8x8x64xbf16, #tpu.memory_space<vmem>>, vector<1x8x8x64xbf16>
    tpu.vector_store %arg6[%c0_12, %c0_13, %c0_14, %c0_15], %26 {strides = array<i32>} : memref<1x8x8x64xbf16, #tpu.memory_space<vmem>>, vector<1x8x8x64xbf16>,
    return
  }
  func.func @transform_0(%arg0: i32, %arg1: i32) -> (i32, i32, i32, i32) {
    %c0_i32 = arith.constant 0 : i32
    %c0_i32_0 = arith.constant 0 : i32
    %c0_i32_1 = arith.constant 0 : i32
    return %arg0, %arg1, %c0_i32, %c0_i32_0 : i32, i32, i32, i32
  }
  func.func @transform_1(%arg0: i32, %arg1: i32) -> (i32, i32) {
    %c0_i32 = arith.constant 0 : i32
    %c0_i32_0 = arith.constant 0 : i32
    %c0_i32_1 = arith.constant 0 : i32
    return %c0_i32, %c0_i32_0 : i32, i32
  }
  func.func @transform_2(%arg0: i32, %arg1: i32) -> (i32, i32) {
    %c0_i32 = arith.constant 0 : i32
    %c0_i32_0 = arith.constant 0 : i32
    %c0_i32_1 = arith.constant 0 : i32
    return %c0_i32, %c0_i32_0 : i32, i32
  }
  func.func @transform_3(%arg0: i32, %arg1: i32) -> (i32, i32) {
    %c0_i32 = arith.constant 0 : i32
    %c0_i32_0 = arith.constant 0 : i32
    %c0_i32_1 = arith.constant 0 : i32
    return %c0_i32, %c0_i32_0 : i32, i32
  }
  func.func @transform_4(%arg0: i32, %arg1: i32) -> (i32, i32, i32, i32) {
    %c0_i32 = arith.constant 0 : i32
    %c0_i32_0 = arith.constant 0 : i32
    %c0_i32_1 = arith.constant 0 : i32
    return %arg0, %arg1, %c0_i32, %c0_i32_0 : i32, i32, i32, i32
  }
}

module attributes {stable_mosaic.version = 11 : i64} {
  func.func @_conv_stats_kernel(%arg0: i32, %arg1: i32, %arg2: memref<1x10x5x64xbf16, #tpu.memory_space<vmem>>, %arg3: memref<1x10x5x64xbf16, #tpu.memory_space<vmem>>, %arg4: memref<9x64x128xbf16, #tpu.memory_space<vmem>>, %arg5: memref<1x4x4x128xf32, #tpu.memory_space<vmem>>, %arg6: memref<1x1x2x128xf32, #tpu.memory_space<vmem>>) attributes {dimension_semantics = [#tpu.dimension_semantics<parallel>, #tpu.dimension_semantics<parallel>], iteration_bounds = array<i64: 2, 1>, scalar_prefetch = 0 : i64, scratch_operands = 0 : i64, tpu.core_type = #tpu.core_type<tc>, window_params = [{transform_indices = @transform_0, window_bounds = array<i64: 1, 10, 5, 64>}, {transform_indices = @transform_1, window_bounds = array<i64: 1, 10, 5, 64>}, {pipeline_mode = #tpu.pipeline_mode<synchronous>, transform_indices = @transform_2, window_bounds = array<i64: 9, 64, 128>}, {transform_indices = @transform_3, window_bounds = array<i64: 1, 4, 4, 128>}, {transform_indices = @transform_4, window_bounds = array<i64: 1, 1, 2, 128>}]} {
    %c4_i32 = arith.constant 4 : i32
    %0 = arith.muli %arg1, %c4_i32 : i32
    %c0_i32 = arith.constant 0 : i32
    %c4_i32_0 = arith.constant 4 : i32
    %1 = arith.addi %c0_i32, %c4_i32_0 : i32
    %c1_i32 = arith.constant 1 : i32
    scf.for %arg7 = %c0_i32 to %1 step %c1_i32  : i32 {
      %10 = arith.addi %0, %arg7 : i32
      %c2_i32 = arith.constant 2 : i32
      %11 = arith.muli %c2_i32, %10 : i32
      %cst_13 = arith.constant 0.000000e+00 : f32
      %12 = vector.broadcast %cst_13 : f32 to vector<4x128xf32>
      %c0_i32_14 = arith.constant 0 : i32
      %13 = arith.addi %11, %c0_i32_14 : i32
      %c0_15 = arith.constant 0 : index
      %14 = arith.index_cast %13 : i32 to index
      %c0_16 = arith.constant 0 : index
      %c0_17 = arith.constant 0 : index
      %15 = vector.load %arg2[%c0_15, %14, %c0_16, %c0_17] : memref<1x10x5x64xbf16, #tpu.memory_space<vmem>>, vector<1x1x4x64xbf16>
      %16 = vector.shape_cast %15 : vector<1x1x4x64xbf16> to vector<4x64xbf16>
      %c0_18 = arith.constant 0 : index
      %c0_19 = arith.constant 0 : index
      %c0_20 = arith.constant 0 : index
      %17 = vector.load %arg4[%c0_18, %c0_19, %c0_20] : memref<9x64x128xbf16, #tpu.memory_space<vmem>>, vector<1x64x128xbf16>
      %18 = vector.shape_cast %17 : vector<1x64x128xbf16> to vector<64x128xbf16>
      %cst_21 = arith.constant dense<0.000000e+00> : vector<4x128xf32>
      %19 = tpu.matmul %16, %18, %cst_21 {dimension_numbers = #tpu.dot_dimension_numbers<[1], [0], [0], [1], [0, 0, 1, 1], [], []>} : vector<4x64xbf16>, vector<64x128xbf16>, vector<4x128xf32> -> vector<4x128xf32>
      %20 = arith.addf %12, %19 : vector<4x128xf32>
      %c0_i32_22 = arith.constant 0 : i32
      %21 = arith.addi %11, %c0_i32_22 : i32
      %c0_23 = arith.constant 0 : index
      %22 = arith.index_cast %21 : i32 to index
      %c0_24 = arith.constant 0 : index
      %c0_25 = arith.constant 0 : index
      %23 = vector.load %arg3[%c0_23, %22, %c0_24, %c0_25] : memref<1x10x5x64xbf16, #tpu.memory_space<vmem>>, vector<1x1x4x64xbf16>
      %24 = vector.shape_cast %23 : vector<1x1x4x64xbf16> to vector<4x64xbf16>
      %c1_26 = arith.constant 1 : index
      %c0_27 = arith.constant 0 : index
      %c0_28 = arith.constant 0 : index
      %25 = vector.load %arg4[%c1_26, %c0_27, %c0_28] : memref<9x64x128xbf16, #tpu.memory_space<vmem>>, vector<1x64x128xbf16>
      %26 = vector.shape_cast %25 : vector<1x64x128xbf16> to vector<64x128xbf16>
      %cst_29 = arith.constant dense<0.000000e+00> : vector<4x128xf32>
      %27 = tpu.matmul %24, %26, %cst_29 {dimension_numbers = #tpu.dot_dimension_numbers<[1], [0], [0], [1], [0, 0, 1, 1], [], []>} : vector<4x64xbf16>, vector<64x128xbf16>, vector<4x128xf32> -> vector<4x128xf32>
      %28 = arith.addf %20, %27 : vector<4x128xf32>
      %c0_i32_30 = arith.constant 0 : i32
      %29 = arith.addi %11, %c0_i32_30 : i32
      %c0_31 = arith.constant 0 : index
      %30 = arith.index_cast %29 : i32 to index
      %c1_32 = arith.constant 1 : index
      %c0_33 = arith.constant 0 : index
      %31 = vector.load %arg2[%c0_31, %30, %c1_32, %c0_33] : memref<1x10x5x64xbf16, #tpu.memory_space<vmem>>, vector<1x1x4x64xbf16>
      %32 = vector.shape_cast %31 : vector<1x1x4x64xbf16> to vector<4x64xbf16>
      %c2 = arith.constant 2 : index
      %c0_34 = arith.constant 0 : index
      %c0_35 = arith.constant 0 : index
      %33 = vector.load %arg4[%c2, %c0_34, %c0_35] : memref<9x64x128xbf16, #tpu.memory_space<vmem>>, vector<1x64x128xbf16>
      %34 = vector.shape_cast %33 : vector<1x64x128xbf16> to vector<64x128xbf16>
      %cst_36 = arith.constant dense<0.000000e+00> : vector<4x128xf32>
      %35 = tpu.matmul %32, %34, %cst_36 {dimension_numbers = #tpu.dot_dimension_numbers<[1], [0], [0], [1], [0, 0, 1, 1], [], []>} : vector<4x64xbf16>, vector<64x128xbf16>, vector<4x128xf32> -> vector<4x128xf32>
      %36 = arith.addf %28, %35 : vector<4x128xf32>
      %c1_i32_37 = arith.constant 1 : i32
      %37 = arith.addi %11, %c1_i32_37 : i32
      %c0_38 = arith.constant 0 : index
      %38 = arith.index_cast %37 : i32 to index
      %c0_39 = arith.constant 0 : index
      %c0_40 = arith.constant 0 : index
      %39 = vector.load %arg2[%c0_38, %38, %c0_39, %c0_40] : memref<1x10x5x64xbf16, #tpu.memory_space<vmem>>, vector<1x1x4x64xbf16>
      %40 = vector.shape_cast %39 : vector<1x1x4x64xbf16> to vector<4x64xbf16>
      %c3 = arith.constant 3 : index
      %c0_41 = arith.constant 0 : index
      %c0_42 = arith.constant 0 : index
      %41 = vector.load %arg4[%c3, %c0_41, %c0_42] : memref<9x64x128xbf16, #tpu.memory_space<vmem>>, vector<1x64x128xbf16>
      %42 = vector.shape_cast %41 : vector<1x64x128xbf16> to vector<64x128xbf16>
      %cst_43 = arith.constant dense<0.000000e+00> : vector<4x128xf32>
      %43 = tpu.matmul %40, %42, %cst_43 {dimension_numbers = #tpu.dot_dimension_numbers<[1], [0], [0], [1], [0, 0, 1, 1], [], []>} : vector<4x64xbf16>, vector<64x128xbf16>, vector<4x128xf32> -> vector<4x128xf32>
      %44 = arith.addf %36, %43 : vector<4x128xf32>
      %c1_i32_44 = arith.constant 1 : i32
      %45 = arith.addi %11, %c1_i32_44 : i32
      %c0_45 = arith.constant 0 : index
      %46 = arith.index_cast %45 : i32 to index
      %c0_46 = arith.constant 0 : index
      %c0_47 = arith.constant 0 : index
      %47 = vector.load %arg3[%c0_45, %46, %c0_46, %c0_47] : memref<1x10x5x64xbf16, #tpu.memory_space<vmem>>, vector<1x1x4x64xbf16>
      %48 = vector.shape_cast %47 : vector<1x1x4x64xbf16> to vector<4x64xbf16>
      %c4 = arith.constant 4 : index
      %c0_48 = arith.constant 0 : index
      %c0_49 = arith.constant 0 : index
      %49 = vector.load %arg4[%c4, %c0_48, %c0_49] : memref<9x64x128xbf16, #tpu.memory_space<vmem>>, vector<1x64x128xbf16>
      %50 = vector.shape_cast %49 : vector<1x64x128xbf16> to vector<64x128xbf16>
      %cst_50 = arith.constant dense<0.000000e+00> : vector<4x128xf32>
      %51 = tpu.matmul %48, %50, %cst_50 {dimension_numbers = #tpu.dot_dimension_numbers<[1], [0], [0], [1], [0, 0, 1, 1], [], []>} : vector<4x64xbf16>, vector<64x128xbf16>, vector<4x128xf32> -> vector<4x128xf32>
      %52 = arith.addf %44, %51 : vector<4x128xf32>
      %c1_i32_51 = arith.constant 1 : i32
      %53 = arith.addi %11, %c1_i32_51 : i32
      %c0_52 = arith.constant 0 : index
      %54 = arith.index_cast %53 : i32 to index
      %c1_53 = arith.constant 1 : index
      %c0_54 = arith.constant 0 : index
      %55 = vector.load %arg2[%c0_52, %54, %c1_53, %c0_54] : memref<1x10x5x64xbf16, #tpu.memory_space<vmem>>, vector<1x1x4x64xbf16>
      %56 = vector.shape_cast %55 : vector<1x1x4x64xbf16> to vector<4x64xbf16>
      %c5 = arith.constant 5 : index
      %c0_55 = arith.constant 0 : index
      %c0_56 = arith.constant 0 : index
      %57 = vector.load %arg4[%c5, %c0_55, %c0_56] : memref<9x64x128xbf16, #tpu.memory_space<vmem>>, vector<1x64x128xbf16>
      %58 = vector.shape_cast %57 : vector<1x64x128xbf16> to vector<64x128xbf16>
      %cst_57 = arith.constant dense<0.000000e+00> : vector<4x128xf32>
      %59 = tpu.matmul %56, %58, %cst_57 {dimension_numbers = #tpu.dot_dimension_numbers<[1], [0], [0], [1], [0, 0, 1, 1], [], []>} : vector<4x64xbf16>, vector<64x128xbf16>, vector<4x128xf32> -> vector<4x128xf32>
      %60 = arith.addf %52, %59 : vector<4x128xf32>
      %c2_i32_58 = arith.constant 2 : i32
      %61 = arith.addi %11, %c2_i32_58 : i32
      %c0_59 = arith.constant 0 : index
      %62 = arith.index_cast %61 : i32 to index
      %c0_60 = arith.constant 0 : index
      %c0_61 = arith.constant 0 : index
      %63 = vector.load %arg2[%c0_59, %62, %c0_60, %c0_61] : memref<1x10x5x64xbf16, #tpu.memory_space<vmem>>, vector<1x1x4x64xbf16>
      %64 = vector.shape_cast %63 : vector<1x1x4x64xbf16> to vector<4x64xbf16>
      %c6 = arith.constant 6 : index
      %c0_62 = arith.constant 0 : index
      %c0_63 = arith.constant 0 : index
      %65 = vector.load %arg4[%c6, %c0_62, %c0_63] : memref<9x64x128xbf16, #tpu.memory_space<vmem>>, vector<1x64x128xbf16>
      %66 = vector.shape_cast %65 : vector<1x64x128xbf16> to vector<64x128xbf16>
      %cst_64 = arith.constant dense<0.000000e+00> : vector<4x128xf32>
      %67 = tpu.matmul %64, %66, %cst_64 {dimension_numbers = #tpu.dot_dimension_numbers<[1], [0], [0], [1], [0, 0, 1, 1], [], []>} : vector<4x64xbf16>, vector<64x128xbf16>, vector<4x128xf32> -> vector<4x128xf32>
      %68 = arith.addf %60, %67 : vector<4x128xf32>
      %c2_i32_65 = arith.constant 2 : i32
      %69 = arith.addi %11, %c2_i32_65 : i32
      %c0_66 = arith.constant 0 : index
      %70 = arith.index_cast %69 : i32 to index
      %c0_67 = arith.constant 0 : index
      %c0_68 = arith.constant 0 : index
      %71 = vector.load %arg3[%c0_66, %70, %c0_67, %c0_68] : memref<1x10x5x64xbf16, #tpu.memory_space<vmem>>, vector<1x1x4x64xbf16>
      %72 = vector.shape_cast %71 : vector<1x1x4x64xbf16> to vector<4x64xbf16>
      %c7 = arith.constant 7 : index
      %c0_69 = arith.constant 0 : index
      %c0_70 = arith.constant 0 : index
      %73 = vector.load %arg4[%c7, %c0_69, %c0_70] : memref<9x64x128xbf16, #tpu.memory_space<vmem>>, vector<1x64x128xbf16>
      %74 = vector.shape_cast %73 : vector<1x64x128xbf16> to vector<64x128xbf16>
      %cst_71 = arith.constant dense<0.000000e+00> : vector<4x128xf32>
      %75 = tpu.matmul %72, %74, %cst_71 {dimension_numbers = #tpu.dot_dimension_numbers<[1], [0], [0], [1], [0, 0, 1, 1], [], []>} : vector<4x64xbf16>, vector<64x128xbf16>, vector<4x128xf32> -> vector<4x128xf32>
      %76 = arith.addf %68, %75 : vector<4x128xf32>
      %c2_i32_72 = arith.constant 2 : i32
      %77 = arith.addi %11, %c2_i32_72 : i32
      %c0_73 = arith.constant 0 : index
      %78 = arith.index_cast %77 : i32 to index
      %c1_74 = arith.constant 1 : index
      %c0_75 = arith.constant 0 : index
      %79 = vector.load %arg2[%c0_73, %78, %c1_74, %c0_75] : memref<1x10x5x64xbf16, #tpu.memory_space<vmem>>, vector<1x1x4x64xbf16>
      %80 = vector.shape_cast %79 : vector<1x1x4x64xbf16> to vector<4x64xbf16>
      %c8 = arith.constant 8 : index
      %c0_76 = arith.constant 0 : index
      %c0_77 = arith.constant 0 : index
      %81 = vector.load %arg4[%c8, %c0_76, %c0_77] : memref<9x64x128xbf16, #tpu.memory_space<vmem>>, vector<1x64x128xbf16>
      %82 = vector.shape_cast %81 : vector<1x64x128xbf16> to vector<64x128xbf16>
      %cst_78 = arith.constant dense<0.000000e+00> : vector<4x128xf32>
      %83 = tpu.matmul %80, %82, %cst_78 {dimension_numbers = #tpu.dot_dimension_numbers<[1], [0], [0], [1], [0, 0, 1, 1], [], []>} : vector<4x64xbf16>, vector<64x128xbf16>, vector<4x128xf32> -> vector<4x128xf32>
      %84 = arith.addf %76, %83 : vector<4x128xf32>
      %c0_79 = arith.constant 0 : index
      %85 = arith.index_cast %arg7 : i32 to index
      %c0_80 = arith.constant 0 : index
      %c0_81 = arith.constant 0 : index
      %86 = vector.load %arg5[%c0_79, %85, %c0_80, %c0_81] : memref<1x4x4x128xf32, #tpu.memory_space<vmem>>, vector<1x1x4x128xf32>
      %87 = vector.shape_cast %86 : vector<1x1x4x128xf32> to vector<4x128xf32>
      %88 = vector.shape_cast %84 : vector<4x128xf32> to vector<1x1x4x128xf32>
      tpu.vector_store %arg5[%c0_79, %85, %c0_80, %c0_81], %88 {strides = array<i32>} : memref<1x4x4x128xf32, #tpu.memory_space<vmem>>, vector<1x1x4x128xf32>,
    }
    %c4_i32_1 = arith.constant 4 : i32
    %c0 = arith.constant 0 : index
    %c0_2 = arith.constant 0 : index
    %c0_3 = arith.constant 0 : index
    %c0_4 = arith.constant 0 : index
    %2 = vector.load %arg5[%c0, %c0_2, %c0_3, %c0_4] : memref<1x4x4x128xf32, #tpu.memory_space<vmem>>, vector<1x4x4x128xf32>
    %cst = arith.constant dense<0.000000e+00> : vector<1x128xf32>
    %3 = vector.multi_reduction <add>, %2, %cst [1, 2] : vector<1x4x4x128xf32> to vector<1x128xf32>
    %4 = vector.shape_cast %3 : vector<1x128xf32> to vector<1x1x1x128xf32>
    %c0_5 = arith.constant 0 : index
    %c0_6 = arith.constant 0 : index
    %c0_7 = arith.constant 0 : index
    %c0_8 = arith.constant 0 : index
    %5 = vector.load %arg6[%c0_5, %c0_6, %c0_7, %c0_8] : memref<1x1x2x128xf32, #tpu.memory_space<vmem>>, vector<1x1x1x128xf32>
    tpu.vector_store %arg6[%c0_5, %c0_6, %c0_7, %c0_8], %4 {strides = array<i32>} : memref<1x1x2x128xf32, #tpu.memory_space<vmem>>, vector<1x1x1x128xf32>,
    %6 = arith.mulf %2, %2 : vector<1x4x4x128xf32>
    %cst_9 = arith.constant dense<0.000000e+00> : vector<1x128xf32>
    %7 = vector.multi_reduction <add>, %6, %cst_9 [1, 2] : vector<1x4x4x128xf32> to vector<1x128xf32>
    %8 = vector.shape_cast %7 : vector<1x128xf32> to vector<1x1x1x128xf32>
    %c0_10 = arith.constant 0 : index
    %c0_11 = arith.constant 0 : index
    %c1 = arith.constant 1 : index
    %c0_12 = arith.constant 0 : index
    %9 = vector.load %arg6[%c0_10, %c0_11, %c1, %c0_12] : memref<1x1x2x128xf32, #tpu.memory_space<vmem>>, vector<1x1x1x128xf32>
    tpu.vector_store %arg6[%c0_10, %c0_11, %c1, %c0_12], %8 {strides = array<i32>} : memref<1x1x2x128xf32, #tpu.memory_space<vmem>>, vector<1x1x1x128xf32>,
    return
  }
  func.func @transform_0(%arg0: i32, %arg1: i32) -> (i32, i32, i32, i32) {
    %c0_i32 = arith.constant 0 : i32
    %c0_i32_0 = arith.constant 0 : i32
    %c0_i32_1 = arith.constant 0 : i32
    %c0_i32_2 = arith.constant 0 : i32
    return %arg0, %c0_i32, %c0_i32_0, %c0_i32_1 : i32, i32, i32, i32
  }
  func.func @transform_1(%arg0: i32, %arg1: i32) -> (i32, i32, i32, i32) {
    %c0_i32 = arith.constant 0 : i32
    %c0_i32_0 = arith.constant 0 : i32
    %c0_i32_1 = arith.constant 0 : i32
    %c0_i32_2 = arith.constant 0 : i32
    return %arg0, %c0_i32, %c0_i32_0, %c0_i32_1 : i32, i32, i32, i32
  }
  func.func @transform_2(%arg0: i32, %arg1: i32) -> (i32, i32, i32) {
    %c0_i32 = arith.constant 0 : i32
    %c0_i32_0 = arith.constant 0 : i32
    %c0_i32_1 = arith.constant 0 : i32
    %c0_i32_2 = arith.constant 0 : i32
    return %c0_i32, %c0_i32_0, %c0_i32_1 : i32, i32, i32
  }
  func.func @transform_3(%arg0: i32, %arg1: i32) -> (i32, i32, i32, i32) {
    %c0_i32 = arith.constant 0 : i32
    %c0_i32_0 = arith.constant 0 : i32
    %c0_i32_1 = arith.constant 0 : i32
    return %arg0, %arg1, %c0_i32, %c0_i32_0 : i32, i32, i32, i32
  }
  func.func @transform_4(%arg0: i32, %arg1: i32) -> (i32, i32, i32, i32) {
    %c0_i32 = arith.constant 0 : i32
    %c0_i32_0 = arith.constant 0 : i32
    %c0_i32_1 = arith.constant 0 : i32
    return %arg0, %arg1, %c0_i32, %c0_i32_0 : i32, i32, i32, i32
  }
}

module attributes {stable_mosaic.version = 11 : i64} {
  func.func @_bn_relu_kernel(%arg0: i32, %arg1: i32, %arg2: memref<1x4x4x128xf32, #tpu.memory_space<vmem>>, %arg3: memref<2x128xf32, #tpu.memory_space<vmem>>, %arg4: memref<1x128xf32, #tpu.memory_space<vmem>>, %arg5: memref<1x128xf32, #tpu.memory_space<vmem>>, %arg6: memref<1x4x4x128xbf16, #tpu.memory_space<vmem>>) attributes {dimension_semantics = [#tpu.dimension_semantics<parallel>, #tpu.dimension_semantics<parallel>], iteration_bounds = array<i64: 2, 1>, scalar_prefetch = 0 : i64, scratch_operands = 0 : i64, tpu.core_type = #tpu.core_type<tc>, window_params = [{transform_indices = @transform_0, window_bounds = array<i64: 1, 4, 4, 128>}, {pipeline_mode = #tpu.pipeline_mode<synchronous>, transform_indices = @transform_1, window_bounds = array<i64: 2, 128>}, {pipeline_mode = #tpu.pipeline_mode<synchronous>, transform_indices = @transform_2, window_bounds = array<i64: 1, 128>}, {pipeline_mode = #tpu.pipeline_mode<synchronous>, transform_indices = @transform_3, window_bounds = array<i64: 1, 128>}, {transform_indices = @transform_4, window_bounds = array<i64: 1, 4, 4, 128>}]} {
    %c0 = arith.constant 0 : index
    %c0_0 = arith.constant 0 : index
    %0 = vector.load %arg3[%c0, %c0_0] : memref<2x128xf32, #tpu.memory_space<vmem>>, vector<2x128xf32>
    %1 = vector.extract_strided_slice %0 {offsets = [0, 0], sizes = [1, 128], strides = [1, 1]} : vector<2x128xf32> to vector<1x128xf32>
    %cst = arith.constant 3.125000e-02 : f32
    %2 = vector.broadcast %cst : f32 to vector<1x128xf32>
    %3 = arith.mulf %1, %2 : vector<1x128xf32>
    %4 = vector.extract_strided_slice %0 {offsets = [1, 0], sizes = [1, 128], strides = [1, 1]} : vector<2x128xf32> to vector<1x128xf32>
    %cst_1 = arith.constant 3.125000e-02 : f32
    %5 = vector.broadcast %cst_1 : f32 to vector<1x128xf32>
    %6 = arith.mulf %4, %5 : vector<1x128xf32>
    %7 = arith.mulf %3, %3 : vector<1x128xf32>
    %8 = arith.subf %6, %7 : vector<1x128xf32>
    %c0_2 = arith.constant 0 : index
    %c0_3 = arith.constant 0 : index
    %9 = vector.load %arg4[%c0_2, %c0_3] : memref<1x128xf32, #tpu.memory_space<vmem>>, vector<1x128xf32>
    %cst_4 = arith.constant 9.99999974E-6 : f32
    %10 = vector.broadcast %cst_4 : f32 to vector<1x128xf32>
    %11 = arith.addf %8, %10 : vector<1x128xf32>
    %12 = math.rsqrt %11 : vector<1x128xf32>
    %13 = arith.mulf %9, %12 : vector<1x128xf32>
    %c0_5 = arith.constant 0 : index
    %c0_6 = arith.constant 0 : index
    %14 = vector.load %arg5[%c0_5, %c0_6] : memref<1x128xf32, #tpu.memory_space<vmem>>, vector<1x128xf32>
    %15 = arith.mulf %3, %13 : vector<1x128xf32>
    %16 = arith.subf %14, %15 : vector<1x128xf32>
    %c0_7 = arith.constant 0 : index
    %c0_8 = arith.constant 0 : index
    %c0_9 = arith.constant 0 : index
    %c0_10 = arith.constant 0 : index
    %17 = vector.load %arg2[%c0_7, %c0_8, %c0_9, %c0_10] : memref<1x4x4x128xf32, #tpu.memory_space<vmem>>, vector<1x4x4x128xf32>
    %18 = vector.shape_cast %13 : vector<1x128xf32> to vector<1x1x1x128xf32>
    %19 = vector.broadcast %18 : vector<1x1x1x128xf32> to vector<1x4x4x128xf32>
    %20 = arith.mulf %17, %19 : vector<1x4x4x128xf32>
    %21 = vector.shape_cast %16 : vector<1x128xf32> to vector<1x1x1x128xf32>
    %22 = vector.broadcast %21 : vector<1x1x1x128xf32> to vector<1x4x4x128xf32>
    %23 = arith.addf %20, %22 : vector<1x4x4x128xf32>
    %cst_11 = arith.constant 0.000000e+00 : f32
    %24 = vector.broadcast %cst_11 : f32 to vector<1x4x4x128xf32>
    %25 = arith.maximumf %23, %24 : vector<1x4x4x128xf32>
    %26 = arith.truncf %25 : vector<1x4x4x128xf32> to vector<1x4x4x128xbf16>
    %c0_12 = arith.constant 0 : index
    %c0_13 = arith.constant 0 : index
    %c0_14 = arith.constant 0 : index
    %c0_15 = arith.constant 0 : index
    %27 = vector.load %arg6[%c0_12, %c0_13, %c0_14, %c0_15] : memref<1x4x4x128xbf16, #tpu.memory_space<vmem>>, vector<1x4x4x128xbf16>
    tpu.vector_store %arg6[%c0_12, %c0_13, %c0_14, %c0_15], %26 {strides = array<i32>} : memref<1x4x4x128xbf16, #tpu.memory_space<vmem>>, vector<1x4x4x128xbf16>,
    return
  }
  func.func @transform_0(%arg0: i32, %arg1: i32) -> (i32, i32, i32, i32) {
    %c0_i32 = arith.constant 0 : i32
    %c0_i32_0 = arith.constant 0 : i32
    %c0_i32_1 = arith.constant 0 : i32
    return %arg0, %arg1, %c0_i32, %c0_i32_0 : i32, i32, i32, i32
  }
  func.func @transform_1(%arg0: i32, %arg1: i32) -> (i32, i32) {
    %c0_i32 = arith.constant 0 : i32
    %c0_i32_0 = arith.constant 0 : i32
    %c0_i32_1 = arith.constant 0 : i32
    return %c0_i32, %c0_i32_0 : i32, i32
  }
  func.func @transform_2(%arg0: i32, %arg1: i32) -> (i32, i32) {
    %c0_i32 = arith.constant 0 : i32
    %c0_i32_0 = arith.constant 0 : i32
    %c0_i32_1 = arith.constant 0 : i32
    return %c0_i32, %c0_i32_0 : i32, i32
  }
  func.func @transform_3(%arg0: i32, %arg1: i32) -> (i32, i32) {
    %c0_i32 = arith.constant 0 : i32
    %c0_i32_0 = arith.constant 0 : i32
    %c0_i32_1 = arith.constant 0 : i32
    return %c0_i32, %c0_i32_0 : i32, i32
  }
  func.func @transform_4(%arg0: i32, %arg1: i32) -> (i32, i32, i32, i32) {
    %c0_i32 = arith.constant 0 : i32
    %c0_i32_0 = arith.constant 0 : i32
    %c0_i32_1 = arith.constant 0 : i32
    return %arg0, %arg1, %c0_i32, %c0_i32_0 : i32, i32, i32, i32
  }
}

module attributes {stable_mosaic.version = 11 : i64} {
  func.func @_conv_stats_kernel(%arg0: i32, %arg1: i32, %arg2: memref<1x6x3x128xbf16, #tpu.memory_space<vmem>>, %arg3: memref<1x6x3x128xbf16, #tpu.memory_space<vmem>>, %arg4: memref<9x128x256xbf16, #tpu.memory_space<vmem>>, %arg5: memref<1x2x2x256xf32, #tpu.memory_space<vmem>>, %arg6: memref<1x1x2x256xf32, #tpu.memory_space<vmem>>) attributes {dimension_semantics = [#tpu.dimension_semantics<parallel>, #tpu.dimension_semantics<parallel>], iteration_bounds = array<i64: 2, 1>, scalar_prefetch = 0 : i64, scratch_operands = 0 : i64, tpu.core_type = #tpu.core_type<tc>, window_params = [{transform_indices = @transform_0, window_bounds = array<i64: 1, 6, 3, 128>}, {transform_indices = @transform_1, window_bounds = array<i64: 1, 6, 3, 128>}, {pipeline_mode = #tpu.pipeline_mode<synchronous>, transform_indices = @transform_2, window_bounds = array<i64: 9, 128, 256>}, {transform_indices = @transform_3, window_bounds = array<i64: 1, 2, 2, 256>}, {transform_indices = @transform_4, window_bounds = array<i64: 1, 1, 2, 256>}]} {
    %c2_i32 = arith.constant 2 : i32
    %0 = arith.muli %arg1, %c2_i32 : i32
    %c0_i32 = arith.constant 0 : i32
    %c2_i32_0 = arith.constant 2 : i32
    %1 = arith.addi %c0_i32, %c2_i32_0 : i32
    %c1_i32 = arith.constant 1 : i32
    scf.for %arg7 = %c0_i32 to %1 step %c1_i32  : i32 {
      %10 = arith.addi %0, %arg7 : i32
      %c2_i32_13 = arith.constant 2 : i32
      %11 = arith.muli %c2_i32_13, %10 : i32
      %cst_14 = arith.constant 0.000000e+00 : f32
      %12 = vector.broadcast %cst_14 : f32 to vector<2x256xf32>
      %c0_i32_15 = arith.constant 0 : i32
      %13 = arith.addi %11, %c0_i32_15 : i32
      %c0_16 = arith.constant 0 : index
      %14 = arith.index_cast %13 : i32 to index
      %c0_17 = arith.constant 0 : index
      %c0_18 = arith.constant 0 : index
      %15 = vector.load %arg2[%c0_16, %14, %c0_17, %c0_18] : memref<1x6x3x128xbf16, #tpu.memory_space<vmem>>, vector<1x1x2x128xbf16>
      %16 = vector.shape_cast %15 : vector<1x1x2x128xbf16> to vector<2x128xbf16>
      %c0_19 = arith.constant 0 : index
      %c0_20 = arith.constant 0 : index
      %c0_21 = arith.constant 0 : index
      %17 = vector.load %arg4[%c0_19, %c0_20, %c0_21] : memref<9x128x256xbf16, #tpu.memory_space<vmem>>, vector<1x128x256xbf16>
      %18 = vector.shape_cast %17 : vector<1x128x256xbf16> to vector<128x256xbf16>
      %cst_22 = arith.constant dense<0.000000e+00> : vector<2x256xf32>
      %19 = tpu.matmul %16, %18, %cst_22 {dimension_numbers = #tpu.dot_dimension_numbers<[1], [0], [0], [1], [0, 0, 1, 1], [], []>} : vector<2x128xbf16>, vector<128x256xbf16>, vector<2x256xf32> -> vector<2x256xf32>
      %20 = arith.addf %12, %19 : vector<2x256xf32>
      %c0_i32_23 = arith.constant 0 : i32
      %21 = arith.addi %11, %c0_i32_23 : i32
      %c0_24 = arith.constant 0 : index
      %22 = arith.index_cast %21 : i32 to index
      %c0_25 = arith.constant 0 : index
      %c0_26 = arith.constant 0 : index
      %23 = vector.load %arg3[%c0_24, %22, %c0_25, %c0_26] : memref<1x6x3x128xbf16, #tpu.memory_space<vmem>>, vector<1x1x2x128xbf16>
      %24 = vector.shape_cast %23 : vector<1x1x2x128xbf16> to vector<2x128xbf16>
      %c1_27 = arith.constant 1 : index
      %c0_28 = arith.constant 0 : index
      %c0_29 = arith.constant 0 : index
      %25 = vector.load %arg4[%c1_27, %c0_28, %c0_29] : memref<9x128x256xbf16, #tpu.memory_space<vmem>>, vector<1x128x256xbf16>
      %26 = vector.shape_cast %25 : vector<1x128x256xbf16> to vector<128x256xbf16>
      %cst_30 = arith.constant dense<0.000000e+00> : vector<2x256xf32>
      %27 = tpu.matmul %24, %26, %cst_30 {dimension_numbers = #tpu.dot_dimension_numbers<[1], [0], [0], [1], [0, 0, 1, 1], [], []>} : vector<2x128xbf16>, vector<128x256xbf16>, vector<2x256xf32> -> vector<2x256xf32>
      %28 = arith.addf %20, %27 : vector<2x256xf32>
      %c0_i32_31 = arith.constant 0 : i32
      %29 = arith.addi %11, %c0_i32_31 : i32
      %c0_32 = arith.constant 0 : index
      %30 = arith.index_cast %29 : i32 to index
      %c1_33 = arith.constant 1 : index
      %c0_34 = arith.constant 0 : index
      %31 = vector.load %arg2[%c0_32, %30, %c1_33, %c0_34] : memref<1x6x3x128xbf16, #tpu.memory_space<vmem>>, vector<1x1x2x128xbf16>
      %32 = vector.shape_cast %31 : vector<1x1x2x128xbf16> to vector<2x128xbf16>
      %c2 = arith.constant 2 : index
      %c0_35 = arith.constant 0 : index
      %c0_36 = arith.constant 0 : index
      %33 = vector.load %arg4[%c2, %c0_35, %c0_36] : memref<9x128x256xbf16, #tpu.memory_space<vmem>>, vector<1x128x256xbf16>
      %34 = vector.shape_cast %33 : vector<1x128x256xbf16> to vector<128x256xbf16>
      %cst_37 = arith.constant dense<0.000000e+00> : vector<2x256xf32>
      %35 = tpu.matmul %32, %34, %cst_37 {dimension_numbers = #tpu.dot_dimension_numbers<[1], [0], [0], [1], [0, 0, 1, 1], [], []>} : vector<2x128xbf16>, vector<128x256xbf16>, vector<2x256xf32> -> vector<2x256xf32>
      %36 = arith.addf %28, %35 : vector<2x256xf32>
      %c1_i32_38 = arith.constant 1 : i32
      %37 = arith.addi %11, %c1_i32_38 : i32
      %c0_39 = arith.constant 0 : index
      %38 = arith.index_cast %37 : i32 to index
      %c0_40 = arith.constant 0 : index
      %c0_41 = arith.constant 0 : index
      %39 = vector.load %arg2[%c0_39, %38, %c0_40, %c0_41] : memref<1x6x3x128xbf16, #tpu.memory_space<vmem>>, vector<1x1x2x128xbf16>
      %40 = vector.shape_cast %39 : vector<1x1x2x128xbf16> to vector<2x128xbf16>
      %c3 = arith.constant 3 : index
      %c0_42 = arith.constant 0 : index
      %c0_43 = arith.constant 0 : index
      %41 = vector.load %arg4[%c3, %c0_42, %c0_43] : memref<9x128x256xbf16, #tpu.memory_space<vmem>>, vector<1x128x256xbf16>
      %42 = vector.shape_cast %41 : vector<1x128x256xbf16> to vector<128x256xbf16>
      %cst_44 = arith.constant dense<0.000000e+00> : vector<2x256xf32>
      %43 = tpu.matmul %40, %42, %cst_44 {dimension_numbers = #tpu.dot_dimension_numbers<[1], [0], [0], [1], [0, 0, 1, 1], [], []>} : vector<2x128xbf16>, vector<128x256xbf16>, vector<2x256xf32> -> vector<2x256xf32>
      %44 = arith.addf %36, %43 : vector<2x256xf32>
      %c1_i32_45 = arith.constant 1 : i32
      %45 = arith.addi %11, %c1_i32_45 : i32
      %c0_46 = arith.constant 0 : index
      %46 = arith.index_cast %45 : i32 to index
      %c0_47 = arith.constant 0 : index
      %c0_48 = arith.constant 0 : index
      %47 = vector.load %arg3[%c0_46, %46, %c0_47, %c0_48] : memref<1x6x3x128xbf16, #tpu.memory_space<vmem>>, vector<1x1x2x128xbf16>
      %48 = vector.shape_cast %47 : vector<1x1x2x128xbf16> to vector<2x128xbf16>
      %c4 = arith.constant 4 : index
      %c0_49 = arith.constant 0 : index
      %c0_50 = arith.constant 0 : index
      %49 = vector.load %arg4[%c4, %c0_49, %c0_50] : memref<9x128x256xbf16, #tpu.memory_space<vmem>>, vector<1x128x256xbf16>
      %50 = vector.shape_cast %49 : vector<1x128x256xbf16> to vector<128x256xbf16>
      %cst_51 = arith.constant dense<0.000000e+00> : vector<2x256xf32>
      %51 = tpu.matmul %48, %50, %cst_51 {dimension_numbers = #tpu.dot_dimension_numbers<[1], [0], [0], [1], [0, 0, 1, 1], [], []>} : vector<2x128xbf16>, vector<128x256xbf16>, vector<2x256xf32> -> vector<2x256xf32>
      %52 = arith.addf %44, %51 : vector<2x256xf32>
      %c1_i32_52 = arith.constant 1 : i32
      %53 = arith.addi %11, %c1_i32_52 : i32
      %c0_53 = arith.constant 0 : index
      %54 = arith.index_cast %53 : i32 to index
      %c1_54 = arith.constant 1 : index
      %c0_55 = arith.constant 0 : index
      %55 = vector.load %arg2[%c0_53, %54, %c1_54, %c0_55] : memref<1x6x3x128xbf16, #tpu.memory_space<vmem>>, vector<1x1x2x128xbf16>
      %56 = vector.shape_cast %55 : vector<1x1x2x128xbf16> to vector<2x128xbf16>
      %c5 = arith.constant 5 : index
      %c0_56 = arith.constant 0 : index
      %c0_57 = arith.constant 0 : index
      %57 = vector.load %arg4[%c5, %c0_56, %c0_57] : memref<9x128x256xbf16, #tpu.memory_space<vmem>>, vector<1x128x256xbf16>
      %58 = vector.shape_cast %57 : vector<1x128x256xbf16> to vector<128x256xbf16>
      %cst_58 = arith.constant dense<0.000000e+00> : vector<2x256xf32>
      %59 = tpu.matmul %56, %58, %cst_58 {dimension_numbers = #tpu.dot_dimension_numbers<[1], [0], [0], [1], [0, 0, 1, 1], [], []>} : vector<2x128xbf16>, vector<128x256xbf16>, vector<2x256xf32> -> vector<2x256xf32>
      %60 = arith.addf %52, %59 : vector<2x256xf32>
      %c2_i32_59 = arith.constant 2 : i32
      %61 = arith.addi %11, %c2_i32_59 : i32
      %c0_60 = arith.constant 0 : index
      %62 = arith.index_cast %61 : i32 to index
      %c0_61 = arith.constant 0 : index
      %c0_62 = arith.constant 0 : index
      %63 = vector.load %arg2[%c0_60, %62, %c0_61, %c0_62] : memref<1x6x3x128xbf16, #tpu.memory_space<vmem>>, vector<1x1x2x128xbf16>
      %64 = vector.shape_cast %63 : vector<1x1x2x128xbf16> to vector<2x128xbf16>
      %c6 = arith.constant 6 : index
      %c0_63 = arith.constant 0 : index
      %c0_64 = arith.constant 0 : index
      %65 = vector.load %arg4[%c6, %c0_63, %c0_64] : memref<9x128x256xbf16, #tpu.memory_space<vmem>>, vector<1x128x256xbf16>
      %66 = vector.shape_cast %65 : vector<1x128x256xbf16> to vector<128x256xbf16>
      %cst_65 = arith.constant dense<0.000000e+00> : vector<2x256xf32>
      %67 = tpu.matmul %64, %66, %cst_65 {dimension_numbers = #tpu.dot_dimension_numbers<[1], [0], [0], [1], [0, 0, 1, 1], [], []>} : vector<2x128xbf16>, vector<128x256xbf16>, vector<2x256xf32> -> vector<2x256xf32>
      %68 = arith.addf %60, %67 : vector<2x256xf32>
      %c2_i32_66 = arith.constant 2 : i32
      %69 = arith.addi %11, %c2_i32_66 : i32
      %c0_67 = arith.constant 0 : index
      %70 = arith.index_cast %69 : i32 to index
      %c0_68 = arith.constant 0 : index
      %c0_69 = arith.constant 0 : index
      %71 = vector.load %arg3[%c0_67, %70, %c0_68, %c0_69] : memref<1x6x3x128xbf16, #tpu.memory_space<vmem>>, vector<1x1x2x128xbf16>
      %72 = vector.shape_cast %71 : vector<1x1x2x128xbf16> to vector<2x128xbf16>
      %c7 = arith.constant 7 : index
      %c0_70 = arith.constant 0 : index
      %c0_71 = arith.constant 0 : index
      %73 = vector.load %arg4[%c7, %c0_70, %c0_71] : memref<9x128x256xbf16, #tpu.memory_space<vmem>>, vector<1x128x256xbf16>
      %74 = vector.shape_cast %73 : vector<1x128x256xbf16> to vector<128x256xbf16>
      %cst_72 = arith.constant dense<0.000000e+00> : vector<2x256xf32>
      %75 = tpu.matmul %72, %74, %cst_72 {dimension_numbers = #tpu.dot_dimension_numbers<[1], [0], [0], [1], [0, 0, 1, 1], [], []>} : vector<2x128xbf16>, vector<128x256xbf16>, vector<2x256xf32> -> vector<2x256xf32>
      %76 = arith.addf %68, %75 : vector<2x256xf32>
      %c2_i32_73 = arith.constant 2 : i32
      %77 = arith.addi %11, %c2_i32_73 : i32
      %c0_74 = arith.constant 0 : index
      %78 = arith.index_cast %77 : i32 to index
      %c1_75 = arith.constant 1 : index
      %c0_76 = arith.constant 0 : index
      %79 = vector.load %arg2[%c0_74, %78, %c1_75, %c0_76] : memref<1x6x3x128xbf16, #tpu.memory_space<vmem>>, vector<1x1x2x128xbf16>
      %80 = vector.shape_cast %79 : vector<1x1x2x128xbf16> to vector<2x128xbf16>
      %c8 = arith.constant 8 : index
      %c0_77 = arith.constant 0 : index
      %c0_78 = arith.constant 0 : index
      %81 = vector.load %arg4[%c8, %c0_77, %c0_78] : memref<9x128x256xbf16, #tpu.memory_space<vmem>>, vector<1x128x256xbf16>
      %82 = vector.shape_cast %81 : vector<1x128x256xbf16> to vector<128x256xbf16>
      %cst_79 = arith.constant dense<0.000000e+00> : vector<2x256xf32>
      %83 = tpu.matmul %80, %82, %cst_79 {dimension_numbers = #tpu.dot_dimension_numbers<[1], [0], [0], [1], [0, 0, 1, 1], [], []>} : vector<2x128xbf16>, vector<128x256xbf16>, vector<2x256xf32> -> vector<2x256xf32>
      %84 = arith.addf %76, %83 : vector<2x256xf32>
      %c0_80 = arith.constant 0 : index
      %85 = arith.index_cast %arg7 : i32 to index
      %c0_81 = arith.constant 0 : index
      %c0_82 = arith.constant 0 : index
      %86 = vector.load %arg5[%c0_80, %85, %c0_81, %c0_82] : memref<1x2x2x256xf32, #tpu.memory_space<vmem>>, vector<1x1x2x256xf32>
      %87 = vector.shape_cast %86 : vector<1x1x2x256xf32> to vector<2x256xf32>
      %88 = vector.shape_cast %84 : vector<2x256xf32> to vector<1x1x2x256xf32>
      tpu.vector_store %arg5[%c0_80, %85, %c0_81, %c0_82], %88 {strides = array<i32>} : memref<1x2x2x256xf32, #tpu.memory_space<vmem>>, vector<1x1x2x256xf32>,
    }
    %c2_i32_1 = arith.constant 2 : i32
    %c0 = arith.constant 0 : index
    %c0_2 = arith.constant 0 : index
    %c0_3 = arith.constant 0 : index
    %c0_4 = arith.constant 0 : index
    %2 = vector.load %arg5[%c0, %c0_2, %c0_3, %c0_4] : memref<1x2x2x256xf32, #tpu.memory_space<vmem>>, vector<1x2x2x256xf32>
    %cst = arith.constant dense<0.000000e+00> : vector<1x256xf32>
    %3 = vector.multi_reduction <add>, %2, %cst [1, 2] : vector<1x2x2x256xf32> to vector<1x256xf32>
    %4 = vector.shape_cast %3 : vector<1x256xf32> to vector<1x1x1x256xf32>
    %c0_5 = arith.constant 0 : index
    %c0_6 = arith.constant 0 : index
    %c0_7 = arith.constant 0 : index
    %c0_8 = arith.constant 0 : index
    %5 = vector.load %arg6[%c0_5, %c0_6, %c0_7, %c0_8] : memref<1x1x2x256xf32, #tpu.memory_space<vmem>>, vector<1x1x1x256xf32>
    tpu.vector_store %arg6[%c0_5, %c0_6, %c0_7, %c0_8], %4 {strides = array<i32>} : memref<1x1x2x256xf32, #tpu.memory_space<vmem>>, vector<1x1x1x256xf32>,
    %6 = arith.mulf %2, %2 : vector<1x2x2x256xf32>
    %cst_9 = arith.constant dense<0.000000e+00> : vector<1x256xf32>
    %7 = vector.multi_reduction <add>, %6, %cst_9 [1, 2] : vector<1x2x2x256xf32> to vector<1x256xf32>
    %8 = vector.shape_cast %7 : vector<1x256xf32> to vector<1x1x1x256xf32>
    %c0_10 = arith.constant 0 : index
    %c0_11 = arith.constant 0 : index
    %c1 = arith.constant 1 : index
    %c0_12 = arith.constant 0 : index
    %9 = vector.load %arg6[%c0_10, %c0_11, %c1, %c0_12] : memref<1x1x2x256xf32, #tpu.memory_space<vmem>>, vector<1x1x1x256xf32>
    tpu.vector_store %arg6[%c0_10, %c0_11, %c1, %c0_12], %8 {strides = array<i32>} : memref<1x1x2x256xf32, #tpu.memory_space<vmem>>, vector<1x1x1x256xf32>,
    return
  }
  func.func @transform_0(%arg0: i32, %arg1: i32) -> (i32, i32, i32, i32) {
    %c0_i32 = arith.constant 0 : i32
    %c0_i32_0 = arith.constant 0 : i32
    %c0_i32_1 = arith.constant 0 : i32
    %c0_i32_2 = arith.constant 0 : i32
    return %arg0, %c0_i32, %c0_i32_0, %c0_i32_1 : i32, i32, i32, i32
  }
  func.func @transform_1(%arg0: i32, %arg1: i32) -> (i32, i32, i32, i32) {
    %c0_i32 = arith.constant 0 : i32
    %c0_i32_0 = arith.constant 0 : i32
    %c0_i32_1 = arith.constant 0 : i32
    %c0_i32_2 = arith.constant 0 : i32
    return %arg0, %c0_i32, %c0_i32_0, %c0_i32_1 : i32, i32, i32, i32
  }
  func.func @transform_2(%arg0: i32, %arg1: i32) -> (i32, i32, i32) {
    %c0_i32 = arith.constant 0 : i32
    %c0_i32_0 = arith.constant 0 : i32
    %c0_i32_1 = arith.constant 0 : i32
    %c0_i32_2 = arith.constant 0 : i32
    return %c0_i32, %c0_i32_0, %c0_i32_1 : i32, i32, i32
  }
  func.func @transform_3(%arg0: i32, %arg1: i32) -> (i32, i32, i32, i32) {
    %c0_i32 = arith.constant 0 : i32
    %c0_i32_0 = arith.constant 0 : i32
    %c0_i32_1 = arith.constant 0 : i32
    return %arg0, %arg1, %c0_i32, %c0_i32_0 : i32, i32, i32, i32
  }
  func.func @transform_4(%arg0: i32, %arg1: i32) -> (i32, i32, i32, i32) {
    %c0_i32 = arith.constant 0 : i32
    %c0_i32_0 = arith.constant 0 : i32
    %c0_i32_1 = arith.constant 0 : i32
    return %arg0, %arg1, %c0_i32, %c0_i32_0 : i32, i32, i32, i32
  }
}

module attributes {stable_mosaic.version = 11 : i64} {
  func.func @_bn_relu_kernel(%arg0: i32, %arg1: i32, %arg2: memref<1x2x2x256xf32, #tpu.memory_space<vmem>>, %arg3: memref<2x256xf32, #tpu.memory_space<vmem>>, %arg4: memref<1x256xf32, #tpu.memory_space<vmem>>, %arg5: memref<1x256xf32, #tpu.memory_space<vmem>>, %arg6: memref<1x2x2x256xbf16, #tpu.memory_space<vmem>>) attributes {dimension_semantics = [#tpu.dimension_semantics<parallel>, #tpu.dimension_semantics<parallel>], iteration_bounds = array<i64: 2, 1>, scalar_prefetch = 0 : i64, scratch_operands = 0 : i64, tpu.core_type = #tpu.core_type<tc>, window_params = [{transform_indices = @transform_0, window_bounds = array<i64: 1, 2, 2, 256>}, {pipeline_mode = #tpu.pipeline_mode<synchronous>, transform_indices = @transform_1, window_bounds = array<i64: 2, 256>}, {pipeline_mode = #tpu.pipeline_mode<synchronous>, transform_indices = @transform_2, window_bounds = array<i64: 1, 256>}, {pipeline_mode = #tpu.pipeline_mode<synchronous>, transform_indices = @transform_3, window_bounds = array<i64: 1, 256>}, {transform_indices = @transform_4, window_bounds = array<i64: 1, 2, 2, 256>}]} {
    %c0 = arith.constant 0 : index
    %c0_0 = arith.constant 0 : index
    %0 = vector.load %arg3[%c0, %c0_0] : memref<2x256xf32, #tpu.memory_space<vmem>>, vector<2x256xf32>
    %1 = vector.extract_strided_slice %0 {offsets = [0, 0], sizes = [1, 256], strides = [1, 1]} : vector<2x256xf32> to vector<1x256xf32>
    %cst = arith.constant 1.250000e-01 : f32
    %2 = vector.broadcast %cst : f32 to vector<1x256xf32>
    %3 = arith.mulf %1, %2 : vector<1x256xf32>
    %4 = vector.extract_strided_slice %0 {offsets = [1, 0], sizes = [1, 256], strides = [1, 1]} : vector<2x256xf32> to vector<1x256xf32>
    %cst_1 = arith.constant 1.250000e-01 : f32
    %5 = vector.broadcast %cst_1 : f32 to vector<1x256xf32>
    %6 = arith.mulf %4, %5 : vector<1x256xf32>
    %7 = arith.mulf %3, %3 : vector<1x256xf32>
    %8 = arith.subf %6, %7 : vector<1x256xf32>
    %c0_2 = arith.constant 0 : index
    %c0_3 = arith.constant 0 : index
    %9 = vector.load %arg4[%c0_2, %c0_3] : memref<1x256xf32, #tpu.memory_space<vmem>>, vector<1x256xf32>
    %cst_4 = arith.constant 9.99999974E-6 : f32
    %10 = vector.broadcast %cst_4 : f32 to vector<1x256xf32>
    %11 = arith.addf %8, %10 : vector<1x256xf32>
    %12 = math.rsqrt %11 : vector<1x256xf32>
    %13 = arith.mulf %9, %12 : vector<1x256xf32>
    %c0_5 = arith.constant 0 : index
    %c0_6 = arith.constant 0 : index
    %14 = vector.load %arg5[%c0_5, %c0_6] : memref<1x256xf32, #tpu.memory_space<vmem>>, vector<1x256xf32>
    %15 = arith.mulf %3, %13 : vector<1x256xf32>
    %16 = arith.subf %14, %15 : vector<1x256xf32>
    %c0_7 = arith.constant 0 : index
    %c0_8 = arith.constant 0 : index
    %c0_9 = arith.constant 0 : index
    %c0_10 = arith.constant 0 : index
    %17 = vector.load %arg2[%c0_7, %c0_8, %c0_9, %c0_10] : memref<1x2x2x256xf32, #tpu.memory_space<vmem>>, vector<1x2x2x256xf32>
    %18 = vector.shape_cast %13 : vector<1x256xf32> to vector<1x1x1x256xf32>
    %19 = vector.broadcast %18 : vector<1x1x1x256xf32> to vector<1x2x2x256xf32>
    %20 = arith.mulf %17, %19 : vector<1x2x2x256xf32>
    %21 = vector.shape_cast %16 : vector<1x256xf32> to vector<1x1x1x256xf32>
    %22 = vector.broadcast %21 : vector<1x1x1x256xf32> to vector<1x2x2x256xf32>
    %23 = arith.addf %20, %22 : vector<1x2x2x256xf32>
    %cst_11 = arith.constant 0.000000e+00 : f32
    %24 = vector.broadcast %cst_11 : f32 to vector<1x2x2x256xf32>
    %25 = arith.maximumf %23, %24 : vector<1x2x2x256xf32>
    %26 = arith.truncf %25 : vector<1x2x2x256xf32> to vector<1x2x2x256xbf16>
    %c0_12 = arith.constant 0 : index
    %c0_13 = arith.constant 0 : index
    %c0_14 = arith.constant 0 : index
    %c0_15 = arith.constant 0 : index
    %27 = vector.load %arg6[%c0_12, %c0_13, %c0_14, %c0_15] : memref<1x2x2x256xbf16, #tpu.memory_space<vmem>>, vector<1x2x2x256xbf16>
    tpu.vector_store %arg6[%c0_12, %c0_13, %c0_14, %c0_15], %26 {strides = array<i32>} : memref<1x2x2x256xbf16, #tpu.memory_space<vmem>>, vector<1x2x2x256xbf16>,
    return
  }
  func.func @transform_0(%arg0: i32, %arg1: i32) -> (i32, i32, i32, i32) {
    %c0_i32 = arith.constant 0 : i32
    %c0_i32_0 = arith.constant 0 : i32
    %c0_i32_1 = arith.constant 0 : i32
    return %arg0, %arg1, %c0_i32, %c0_i32_0 : i32, i32, i32, i32
  }
  func.func @transform_1(%arg0: i32, %arg1: i32) -> (i32, i32) {
    %c0_i32 = arith.constant 0 : i32
    %c0_i32_0 = arith.constant 0 : i32
    %c0_i32_1 = arith.constant 0 : i32
    return %c0_i32, %c0_i32_0 : i32, i32
  }
  func.func @transform_2(%arg0: i32, %arg1: i32) -> (i32, i32) {
    %c0_i32 = arith.constant 0 : i32
    %c0_i32_0 = arith.constant 0 : i32
    %c0_i32_1 = arith.constant 0 : i32
    return %c0_i32, %c0_i32_0 : i32, i32
  }
  func.func @transform_3(%arg0: i32, %arg1: i32) -> (i32, i32) {
    %c0_i32 = arith.constant 0 : i32
    %c0_i32_0 = arith.constant 0 : i32
    %c0_i32_1 = arith.constant 0 : i32
    return %c0_i32, %c0_i32_0 : i32, i32
  }
  func.func @transform_4(%arg0: i32, %arg1: i32) -> (i32, i32, i32, i32) {
    %c0_i32 = arith.constant 0 : i32
    %c0_i32_0 = arith.constant 0 : i32
    %c0_i32_1 = arith.constant 0 : i32
    return %arg0, %arg1, %c0_i32, %c0_i32_0 : i32, i32, i32, i32
  }
}

module attributes {stable_mosaic.version = 11 : i64} {
  func.func @_fc_heads_kernel(%arg0: memref<2x1024xbf16, #tpu.memory_space<vmem>>, %arg1: memref<1024x16xbf16, #tpu.memory_space<vmem>>, %arg2: memref<1x16xf32, #tpu.memory_space<vmem>>, %arg3: memref<2x16xf32, #tpu.memory_space<vmem>>) attributes {dimension_semantics = [], scalar_prefetch = 0 : i64, scratch_operands = 0 : i64, tpu.core_type = #tpu.core_type<tc>} {
    %c0 = arith.constant 0 : index
    %c0_0 = arith.constant 0 : index
    %0 = vector.load %arg0[%c0, %c0_0] : memref<2x1024xbf16, #tpu.memory_space<vmem>>, vector<2x1024xbf16>
    %c0_1 = arith.constant 0 : index
    %c0_2 = arith.constant 0 : index
    %1 = vector.load %arg1[%c0_1, %c0_2] : memref<1024x16xbf16, #tpu.memory_space<vmem>>, vector<1024x16xbf16>
    %cst = arith.constant dense<0.000000e+00> : vector<2x16xf32>
    %2 = tpu.matmul %0, %1, %cst {dimension_numbers = #tpu.dot_dimension_numbers<[1], [0], [0], [1], [0, 0, 1, 1], [], []>} : vector<2x1024xbf16>, vector<1024x16xbf16>, vector<2x16xf32> -> vector<2x16xf32>
    %c0_3 = arith.constant 0 : index
    %c0_4 = arith.constant 0 : index
    %3 = vector.load %arg2[%c0_3, %c0_4] : memref<1x16xf32, #tpu.memory_space<vmem>>, vector<1x16xf32>
    %4 = vector.broadcast %3 : vector<1x16xf32> to vector<2x16xf32>
    %5 = arith.addf %2, %4 : vector<2x16xf32>
    %c0_5 = arith.constant 0 : index
    %c0_6 = arith.constant 0 : index
    %6 = vector.load %arg3[%c0_5, %c0_6] : memref<2x16xf32, #tpu.memory_space<vmem>>, vector<2x16xf32>
    tpu.vector_store %arg3[%c0_5, %c0_6], %5 {strides = array<i32>} : memref<2x16xf32, #tpu.memory_space<vmem>>, vector<2x16xf32>,
    return
  }
}

</mosaic_0001>

<llo_original>
// kernel: encoder_forward.10
$region0: #{encoder_forward.10}
  #allocation0 [shape = 'u32[]', space=smem, size = 0x4, offset = 0x4, fixed_abs, tag = 'smem constant byte address 0x4 - core index']
  #allocation1 [shape = 'u32[144,128]{1,0:T(1,128)}', space=vmem, size = 0x12000, scoped, tag = 'internal scratch']
  %s0 = inlined_call_operand.vmem [shape: f32[2,16,16,32], index: 0, kind: input, shape index: {}]
  %s1 = inlined_call_operand.vmem [shape: f32[2,32], index: 1, kind: input, shape index: {}]
  %s2 = inlined_call_operand.vmem [shape: f32[1,32], index: 2, kind: input, shape index: {}]
  %s3 = inlined_call_operand.vmem [shape: f32[1,32], index: 3, kind: input, shape index: {}]
  %s4 = inlined_call_operand.vmem [shape: bf16[2,16,16,32], index: 4, kind: output, shape index: {}]
  %s5 = sld [smem:[#allocation0]]
  $region49: #{encoder_forward.10} parent=0
    _
  %s7 = ssub.s32 1, %s5
  %s8 = scalar_select 0, %s7, %s5
  loop: start=0, step=1, limit=6
  $region2: #{encoder_forward.10} parent=0 // loop_pre_header
    _
  $region3: #{encoder_forward.10} parent=0 // loop_header
    %s10 = sphi 0, %s14
    %p11 = scmp.ge.s32.totalorder %s10, 6
    %s17 = sphi 0, %s29
    %s18 = sphi 0, %s25
    %s19 = sphi 0, %s17
    %s20 = sphi 0, %s18
    %s21 = sphi 0, %s19
    %s22 = sphi 0, %s20
    %s34 = sphi 0, %s36
    %s37 = sphi 0, %s34
    %s38 = sphi 0, %s37
    %s54 = sphi 0, %s38
    %s58 = sphi 0, %s58
    %s60 = sphi 0, %s58
    %s61 = sphi 0, %s60
    %s75 = sphi 0, %s61
    %s79 = sphi 0, %s79
    %s81 = sphi 0, %s79
    %s82 = sphi 0, %s81
    %s96 = sphi 0, %s82
    %s100 = sphi 0, %s100
    %s102 = sphi 0, %s100
    %s103 = sphi 0, %s102
    %s117 = sphi 0, %s103
    %s125 = sphi 0, %s127
    %s128 = sphi 0, %s125
    %s129 = sphi 0, %s128
    %s145 = sphi 0, %s129
  $region4: #{encoder_forward.10} parent=0 // loop_header_branch
    %13 = sbr.rel (%p11) target = $region8
  $region5: #{encoder_forward.10} parent=0 // loop_body
    %s15 = ssub.s32 %s10, 1
    %s16 = ssub.s32 %s10, 2
    %s23 = sadd.s32 1, %s18
    %p24 = scmp.ge.s32.totalorder %s23, 2
    %s25 = scalar_select %p24, 0, %s23
    %s26 = sadd.s32 1, %s17
    %s27 = scalar_select %p24, %s26, %s17
    %p28 = scmp.ge.s32.totalorder %s27, 2
    %s29 = scalar_select %p28, 0, %s27
    %s30 = ssub.s32 %s17, %s29
    %s31 = ssub.s32 %s18, %s25
    %s32 = sor.u32 %s30, %s31
    %p33 = scmp.eq.s32.totalorder %s32, 0
    %s35 = sadd.s32 %s34, 1
    %s36 = scalar_select %p33, %s34, %s35
    %p39 = pneg %p33
    %p40 = scmp.eq.s32.totalorder %s10, 3
    %p41 = por %p39, %p40
    %p42 = scmp.ne.s32.totalorder %s34, %s37
    %p43 = scmp.eq.s32.totalorder %s10, 0
    %p44 = por %p42, %p43
    %p45 = scmp.ne.s32.totalorder %s34, %s37
    %p46 = scmp.eq.s32.totalorder %s15, 3
    %p47 = por %p45, %p46
    %p48 = scmp.ne.s32.totalorder %s37, %s38
    %p49 = scmp.eq.s32.totalorder %s15, 0
    %p50 = por %p48, %p49
    %p51 = scmp.ne.s32.totalorder %s37, %s38
    %p52 = scmp.eq.s32.totalorder %s16, 3
    %p53 = por %p51, %p52
    %p55 = scmp.ne.s32.totalorder %s38, %s54
    %p56 = scmp.eq.s32.totalorder %s16, 0
    %p57 = por %p55, %p56
    %s59 = sadd.s32 %s58, 1
    %p62 = scmp.eq.s32.totalorder %s10, 3
    %p63 = scmp.ne.s32.totalorder %s58, %s60
    %p64 = scmp.eq.s32.totalorder %s10, 0
    %p65 = por %p63, %p64
    %p66 = scmp.ne.s32.totalorder %s58, %s60
    %p67 = scmp.eq.s32.totalorder %s15, 3
    %p68 = por %p66, %p67
    %p69 = scmp.ne.s32.totalorder %s60, %s61
    %p70 = scmp.eq.s32.totalorder %s15, 0
    %p71 = por %p69, %p70
    %p72 = scmp.ne.s32.totalorder %s60, %s61
    %p73 = scmp.eq.s32.totalorder %s16, 3
    %p74 = por %p72, %p73
    %p76 = scmp.ne.s32.totalorder %s61, %s75
    %p77 = scmp.eq.s32.totalorder %s16, 0
    %p78 = por %p76, %p77
    %s80 = sadd.s32 %s79, 1
    %p83 = scmp.eq.s32.totalorder %s10, 3
    %p84 = scmp.ne.s32.totalorder %s79, %s81
    %p85 = scmp.eq.s32.totalorder %s10, 0
    %p86 = por %p84, %p85
    %p87 = scmp.ne.s32.totalorder %s79, %s81
    %p88 = scmp.eq.s32.totalorder %s15, 3
    %p89 = por %p87, %p88
    %p90 = scmp.ne.s32.totalorder %s81, %s82
    %p91 = scmp.eq.s32.totalorder %s15, 0
    %p92 = por %p90, %p91
    %p93 = scmp.ne.s32.totalorder %s81, %s82
    %p94 = scmp.eq.s32.totalorder %s16, 3
    %p95 = por %p93, %p94
    %p97 = scmp.ne.s32.totalorder %s82, %s96
    %p98 = scmp.eq.s32.totalorder %s16, 0
    %p99 = por %p97, %p98
    %s101 = sadd.s32 %s100, 1
    %p104 = scmp.eq.s32.totalorder %s10, 3
    %p105 = scmp.ne.s32.totalorder %s100, %s102
    %p106 = scmp.eq.s32.totalorder %s10, 0
    %p107 = por %p105, %p106
    %p108 = scmp.ne.s32.totalorder %s100, %s102
    %p109 = scmp.eq.s32.totalorder %s15, 3
    %p110 = por %p108, %p109
    %p111 = scmp.ne.s32.totalorder %s102, %s103
    %p112 = scmp.eq.s32.totalorder %s15, 0
    %p113 = por %p111, %p112
    %p114 = scmp.ne.s32.totalorder %s102, %s103
    %p115 = scmp.eq.s32.totalorder %s16, 3
    %p116 = por %p114, %p115
    %p118 = scmp.ne.s32.totalorder %s103, %s117
    %p119 = scmp.eq.s32.totalorder %s16, 0
    %p120 = por %p118, %p119
    %s121 = ssub.s32 %s17, %s29
    %s122 = ssub.s32 %s18, %s25
    %s123 = sor.u32 %s121, %s122
    %p124 = scmp.eq.s32.totalorder %s123, 0
    %s126 = sadd.s32 %s125, 1
    %s127 = scalar_select %p124, %s125, %s126
    %p130 = pneg %p124
    %p131 = scmp.eq.s32.totalorder %s10, 3
    %p132 = por %p130, %p131
    %p133 = scmp.ne.s32.totalorder %s125, %s128
    %p134 = scmp.eq.s32.totalorder %s10, 0
    %p135 = por %p133, %p134
    %p136 = scmp.ne.s32.totalorder %s125, %s128
    %p137 = scmp.eq.s32.totalorder %s15, 3
    %p138 = por %p136, %p137
    %p139 = scmp.ne.s32.totalorder %s128, %s129
    %p140 = scmp.eq.s32.totalorder %s15, 0
    %p141 = por %p139, %p140
    %p142 = scmp.ne.s32.totalorder %s128, %s129
    %p143 = scmp.eq.s32.totalorder %s16, 3
    %p144 = por %p142, %p143
    %p146 = scmp.ne.s32.totalorder %s129, %s145
    %p147 = scmp.eq.s32.totalorder %s16, 0
    %p148 = por %p146, %p147
    %p149 = scmp.le.s32.totalorder 1, %s10
    %p150 = scmp.lt.s32.totalorder %s10, 5
    %p151 = pnand %p149, %p150
    %p152 = pneg %p151
    // Predicated region
    $region9: #{encoder_forward.10} parent=5 // pred_check
      _
    $region10: #{encoder_forward.10} parent=5 // pred_check_branch
      %154 = sbr.rel (%p151) target = $region12
    $region11: #{encoder_forward.10} parent=5 // pred_region
      %s155 = ssub.s32 %s10, 1
      // Predicated region
      $region13: #{encoder_forward.10} parent=11 // pred_check
        %p156 = pneg %p71
      $region14: #{encoder_forward.10} parent=11 // pred_check_branch
        %158 = sbr.rel (%p156) target = $region16
      $region15: #{encoder_forward.10} parent=11 // pred_region
        _
      $region16: #{encoder_forward.10} parent=11 // pred_fallthru
        _
      // Predicated region
      $region17: #{encoder_forward.10} parent=11 // pred_check
        %p159 = pneg %p92
      $region18: #{encoder_forward.10} parent=11 // pred_check_branch
        %161 = sbr.rel (%p159) target = $region20
      $region19: #{encoder_forward.10} parent=11 // pred_region
        _
      $region20: #{encoder_forward.10} parent=11 // pred_fallthru
        _
      // Predicated region
      $region21: #{encoder_forward.10} parent=11 // pred_check
        %p162 = pneg %p113
      $region22: #{encoder_forward.10} parent=11 // pred_check_branch
        %164 = sbr.rel (%p162) target = $region24
      $region23: #{encoder_forward.10} parent=11 // pred_region
        _
      $region24: #{encoder_forward.10} parent=11 // pred_fallthru
        _
    $region12: #{encoder_forward.10} parent=5 // pred_fallthru
      _
    %p165 = scmp.lt.s32.totalorder %s10, 4
    // Predicated region
    $region25: #{encoder_forward.10} parent=5 // pred_check
      %p166 = pneg %p165
    $region26: #{encoder_forward.10} parent=5 // pred_check_branch
      %168 = sbr.rel (%p166) target = $region28
    $region27: #{encoder_forward.10} parent=5 // pred_region
      // Predicated region
      $region29: #{encoder_forward.10} parent=27 // pred_check
        %p169 = pneg %p44
      $region30: #{encoder_forward.10} parent=27 // pred_check_branch
        %171 = sbr.rel (%p169) target = $region32
      $region31: #{encoder_forward.10} parent=27 // pred_region
        %s172 = smul.u32 8, %s18
        %p173 = scmp.lt.s32.totalorder %s17, 1
        %s174 = scalar_select %p173, %s17, 1
        %p175 = scmp.lt.s32.totalorder %s172, 15
        %s176 = scalar_select %p175, %s172, 15
        %s177 = smul.addr %s176, 2
        %s178 = smul.addr %s174, 32
        %s179 = sadd.s32 %s177, %s178
        %s180 = smul.addr %s179, 8
        %s181 = scalar_lea.vmem %s0, %s180
        %s182 = smul.u32 8, %s18
      $region32: #{encoder_forward.10} parent=27 // pred_fallthru
        _
    $region28: #{encoder_forward.10} parent=5 // pred_fallthru
      _
    %p183 = scmp.le.s32.totalorder 1, %s10
    %p184 = scmp.lt.s32.totalorder %s10, 5
    %p185 = pnand %p183, %p184
    %p186 = pneg %p185
    // Predicated region
    $region33: #{encoder_forward.10} parent=5 // pred_check
      _
    $region34: #{encoder_forward.10} parent=5 // pred_check_branch
      %188 = sbr.rel (%p185) target = $region36
    $region35: #{encoder_forward.10} parent=5 // pred_region
      %s189 = ssub.s32 %s10, 1
      %s190 = smul.u32 8, %s20
      %p191 = scmp.lt.s32.totalorder %s19, 1
      %s192 = scalar_select %p191, %s19, 1
      %p193 = scmp.lt.s32.totalorder %s190, 15
      %s194 = scalar_select %p193, %s190, 15
      %s195 = smul.addr %s194, 2
      %s196 = smul.addr %s192, 32
      %s197 = sadd.s32 %s195, %s196
      %s198 = smul.addr %s197, 8
      %s199 = scalar_lea.vmem %s0, %s198
      %p200 = pneg %p50
      %p201 = pneg %p47
      %p202 = pneg %p71
      %p203 = pneg %p68
      %p204 = pneg %p92
      %p205 = pneg %p89
      %p206 = pneg %p113
      %p207 = pneg %p110
      %p208 = pneg %p141
      %p209 = pneg %p138
      %s210 = smul.u32 8, %s20
      %p211 = scmp.lt.s32.totalorder %s19, 1
      %s212 = scalar_select %p211, %s19, 1
      %p213 = scmp.lt.s32.totalorder %s210, 15
      %s214 = scalar_select %p213, %s210, 15
      %s215 = smul.addr %s214, 2
      %s216 = smul.addr %s212, 32
      %s217 = sadd.s32 %s215, %s216
      %s218 = smul.addr %s217, 4
      %s219 = scalar_lea.vmem %s4, %s218
      %s220 = smul.u32 8, %s20
      %p221 = scmp.lt.s32.totalorder %s19, 1
      %s222 = scalar_select %p221, %s19, 1
      %p223 = scmp.lt.s32.totalorder %s220, 15
      %s224 = scalar_select %p223, %s220, 15
      %s225 = smul.addr %s224, 2
      %s226 = smul.addr %s222, 32
      %s227 = sadd.s32 %s225, %s226
      %s228 = smul.addr %s227, 8
      %s229 = scalar_lea.vmem %s0, %s228
      %s230 = smul.u32 8, %s20
      %s231 = smul.u32 8, %s20
      %p232 = scmp.lt.s32.totalorder %s19, 1
      %s233 = scalar_select %p232, %s19, 1
      %p234 = scmp.lt.s32.totalorder %s231, 15
      %s235 = scalar_select %p234, %s231, 15
      %s236 = smul.addr %s235, 2
      %s237 = smul.addr %s233, 32
      %s238 = sadd.s32 %s236, %s237
      %s239 = smul.addr %s238, 4
      %s240 = scalar_lea.vmem %s4, %s239
      %s241 = smul.u32 8, %s20
      %v242 = vld [vmem:[%s1] sm:$0x3]
      %v243 = vmul.f32 %v242, 0.001953125
      %v244 = vmul.f32 %v243, %v243
      %v246 = vrot.slane %v244, 7
      %v248 = vsub.f32 %v243, %v246
      %v249 = vld [vmem:[%s2] sm:$0x1]
      %v250 = vadd.f32 %v248, 1e-05
      %v251 = vrsqrt.pop %v250
      %v254 = vunpack.c.l.s4 1966171168
      %v255 = vunpack.c.0.s8 %v254
      %v256 = vlaneseq
      %v257 = vshrl.u32 %v256, 7
      %v258 = vsub.s32 %v255, %v257
      %v259 = vrot.slane %v251, %v258
      %v260 = vcombine.high %v259, %v259
      %v262 = vunpack.c.l.s4 1966171168
      %v263 = vunpack.c.0.s8 %v262
      %v264 = vlaneseq
      %v265 = vshrl.u32 %v264, 7
      %v266 = vsub.s32 %v263, %v265
      %v267 = vrot.slane %v260, %v266
      %v269 = vmul.f32 %v249, %v267
      %v270 = vld [vmem:[%s3] sm:$0x1]
      %v271 = vmul.f32 %v243, %v269
      %v272 = vsub.f32 %v270, %v271
      %v273 = vld [vmem:[%s229] sm:$0xff]
      %v274 = vld [vmem:[%s229 + $0x8] sm:$0xff]
      %v275 = vld [vmem:[%s229 + $0x10] sm:$0xff]
      %v276 = vld [vmem:[%s229 + $0x18] sm:$0xff]
      %v277 = vld [vmem:[%s229 + $0x20] sm:$0xff]
      %v278 = vld [vmem:[%s229 + $0x28] sm:$0xff]
      %v279 = vld [vmem:[%s229 + $0x30] sm:$0xff]
      %v280 = vld [vmem:[%s229 + $0x38] sm:$0xff]
      %v281 = vld [vmem:[%s229 + $0x40] sm:$0xff]
      %v282 = vld [vmem:[%s229 + $0x48] sm:$0xff]
      %v283 = vld [vmem:[%s229 + $0x50] sm:$0xff]
      %v284 = vld [vmem:[%s229 + $0x58] sm:$0xff]
      %v285 = vld [vmem:[%s229 + $0x60] sm:$0xff]
      %v286 = vld [vmem:[%s229 + $0x68] sm:$0xff]
      %v287 = vld [vmem:[%s229 + $0x70] sm:$0xff]
      %v288 = vld [vmem:[%s229 + $0x78] sm:$0xff]
      %v290 = vlaneseq
      %v291 = vshrl.u32 %v290, 7
      %v292 = vsub.s32 0, %v291
      %v293 = vrot.slane %v269, %v292
      %v295 = vmul.f32 %v273, %v293
      %v296 = vmul.f32 %v274, %v293
      %v297 = vmul.f32 %v275, %v293
      %v298 = vmul.f32 %v276, %v293
      %v299 = vmul.f32 %v277, %v293
      %v300 = vmul.f32 %v278, %v293
      %v301 = vmul.f32 %v279, %v293
      %v302 = vmul.f32 %v280, %v293
      %v303 = vmul.f32 %v281, %v293
      %v304 = vmul.f32 %v282, %v293
      %v305 = vmul.f32 %v283, %v293
      %v306 = vmul.f32 %v284, %v293
      %v307 = vmul.f32 %v285, %v293
      %v308 = vmul.f32 %v286, %v293
      %v309 = vmul.f32 %v287, %v293
      %v310 = vmul.f32 %v288, %v293
      %v312 = vlaneseq
      %v313 = vshrl.u32 %v312, 7
      %v314 = vsub.s32 0, %v313
      %v315 = vrot.slane %v272, %v314
      %v317 = vadd.f32 %v295, %v315
      %v318 = vadd.f32 %v296, %v315
      %v319 = vadd.f32 %v297, %v315
      %v320 = vadd.f32 %v298, %v315
      %v321 = vadd.f32 %v299, %v315
      %v322 = vadd.f32 %v300, %v315
      %v323 = vadd.f32 %v301, %v315
      %v324 = vadd.f32 %v302, %v315
      %v325 = vadd.f32 %v303, %v315
      %v326 = vadd.f32 %v304, %v315
      %v327 = vadd.f32 %v305, %v315
      %v328 = vadd.f32 %v306, %v315
      %v329 = vadd.f32 %v307, %v315
      %v330 = vadd.f32 %v308, %v315
      %v331 = vadd.f32 %v309, %v315
      %v332 = vadd.f32 %v310, %v315
      %v333 = vmax.f32 %v317, 0.0
      %v334 = vmax.f32 %v318, 0.0
      %v335 = vmax.f32 %v319, 0.0
      %v336 = vmax.f32 %v320, 0.0
      %v337 = vmax.f32 %v321, 0.0
      %v338 = vmax.f32 %v322, 0.0
      %v339 = vmax.f32 %v323, 0.0
      %v340 = vmax.f32 %v324, 0.0
      %v341 = vmax.f32 %v325, 0.0
      %v342 = vmax.f32 %v326, 0.0
      %v343 = vmax.f32 %v327, 0.0
      %v344 = vmax.f32 %v328, 0.0
      %v345 = vmax.f32 %v329, 0.0
      %v346 = vmax.f32 %v330, 0.0
      %v347 = vmax.f32 %v331, 0.0
      %v348 = vmax.f32 %v332, 0.0
      %v349 = vpack.c.bf16 %v334, %v333
      %v350 = vpack.c.bf16 %v336, %v335
      %v351 = vpack.c.bf16 %v338, %v337
      %v352 = vpack.c.bf16 %v340, %v339
      %v353 = vpack.c.bf16 %v342, %v341
      %v354 = vpack.c.bf16 %v344, %v343
      %v355 = vpack.c.bf16 %v346, %v345
      %v356 = vpack.c.bf16 %v348, %v347
      %v365 = vunpack.c.l.b16 %v349
      %v366 = vunpack.c.h.b16 %v349
      %v367 = vunpack.c.l.b16 %v350
      %v368 = vunpack.c.h.b16 %v350
      %v369 = vunpack.c.l.b16 %v351
      %v370 = vunpack.c.h.b16 %v351
      %v371 = vunpack.c.l.b16 %v352
      %v372 = vunpack.c.h.b16 %v352
      %v373 = vunpack.c.l.b16 %v353
      %v374 = vunpack.c.h.b16 %v353
      %v375 = vunpack.c.l.b16 %v354
      %v376 = vunpack.c.h.b16 %v354
      %v377 = vunpack.c.l.b16 %v355
      %v378 = vunpack.c.h.b16 %v355
      %v379 = vunpack.c.l.b16 %v356
      %v380 = vunpack.c.h.b16 %v356
      %v381 = vpack.c.b16 %v365, %v365
      %v382 = vpack.c.b16 %v366, %v366
      %v383 = vpack.c.b16 %v367, %v367
      %v384 = vpack.c.b16 %v368, %v368
      %v385 = vpack.c.b16 %v369, %v369
      %v386 = vpack.c.b16 %v370, %v370
      %v387 = vpack.c.b16 %v371, %v371
      %v388 = vpack.c.b16 %v372, %v372
      %v389 = vpack.c.b16 %v373, %v373
      %v390 = vpack.c.b16 %v374, %v374
      %v391 = vpack.c.b16 %v375, %v375
      %v392 = vpack.c.b16 %v376, %v376
      %v393 = vpack.c.b16 %v377, %v377
      %v394 = vpack.c.b16 %v378, %v378
      %v395 = vpack.c.b16 %v379, %v379
      %v396 = vpack.c.b16 %v380, %v380
      %vm413 = vcmask 257024
      %414 = vst.msk [vmem:[%s240] sm:$0xf] %vm413, %v381
      %415 = vst.msk [vmem:[%s240 + $0x4] sm:$0xf] %vm413, %v382
      %416 = vst.msk [vmem:[%s240 + $0x8] sm:$0xf] %vm413, %v383
      %417 = vst.msk [vmem:[%s240 + $0xc] sm:$0xf] %vm413, %v384
      %418 = vst.msk [vmem:[%s240 + $0x10] sm:$0xf] %vm413, %v385
      %419 = vst.msk [vmem:[%s240 + $0x14] sm:$0xf] %vm413, %v386
      %420 = vst.msk [vmem:[%s240 + $0x18] sm:$0xf] %vm413, %v387
      %421 = vst.msk [vmem:[%s240 + $0x1c] sm:$0xf] %vm413, %v388
      %422 = vst.msk [vmem:[%s240 + $0x20] sm:$0xf] %vm413, %v389
      %423 = vst.msk [vmem:[%s240 + $0x24] sm:$0xf] %vm413, %v390
      %424 = vst.msk [vmem:[%s240 + $0x28] sm:$0xf] %vm413, %v391
      %425 = vst.msk [vmem:[%s240 + $0x2c] sm:$0xf] %vm413, %v392
      %426 = vst.msk [vmem:[%s240 + $0x30] sm:$0xf] %vm413, %v393
      %427 = vst.msk [vmem:[%s240 + $0x34] sm:$0xf] %vm413, %v394
      %428 = vst.msk [vmem:[%s240 + $0x38] sm:$0xf] %vm413, %v395
      %429 = vst.msk [vmem:[%s240 + $0x3c] sm:$0xf] %vm413, %v396
      %s430 = smul.u32 8, %s20
      %p431 = scmp.lt.s32.totalorder %s19, 1
      %s432 = scalar_select %p431, %s19, 1
      %p433 = scmp.lt.s32.totalorder %s430, 15
      %s434 = scalar_select %p433, %s430, 15
      %s435 = smul.addr %s434, 2
      %s436 = smul.addr %s432, 32
      %s437 = sadd.s32 %s435, %s436
      %s438 = smul.addr %s437, 4
      %s439 = scalar_lea.vmem %s4, %s438
      // Predicated region
      $region37: #{encoder_forward.10} parent=35 // pred_check
        %p440 = pneg %p138
      $region38: #{encoder_forward.10} parent=35 // pred_check_branch
        %442 = sbr.rel (%p440) target = $region40
      $region39: #{encoder_forward.10} parent=35 // pred_region
        %s443 = smul.u32 8, %s20
      $region40: #{encoder_forward.10} parent=35 // pred_fallthru
        _
    $region36: #{encoder_forward.10} parent=5 // pred_fallthru
      _
    %p444 = scmp.le.s32.totalorder 2, %s10
    // Predicated region
    $region41: #{encoder_forward.10} parent=5 // pred_check
      %p445 = pneg %p444
    $region42: #{encoder_forward.10} parent=5 // pred_check_branch
      %447 = sbr.rel (%p445) target = $region44
    $region43: #{encoder_forward.10} parent=5 // pred_region
      %s448 = ssub.s32 %s10, 2
      // Predicated region
      $region45: #{encoder_forward.10} parent=43 // pred_check
        %p449 = pneg %p144
      $region46: #{encoder_forward.10} parent=43 // pred_check_branch
        %451 = sbr.rel (%p449) target = $region48
      $region47: #{encoder_forward.10} parent=43 // pred_region
        %s452 = smul.u32 8, %s22
        %p453 = scmp.lt.s32.totalorder %s21, 1
        %s454 = scalar_select %p453, %s21, 1
        %p455 = scmp.lt.s32.totalorder %s452, 15
        %s456 = scalar_select %p455, %s452, 15
        %s457 = smul.addr %s456, 2
        %s458 = smul.addr %s454, 32
        %s459 = sadd.s32 %s457, %s458
        %s460 = smul.addr %s459, 4
        %s461 = scalar_lea.vmem %s4, %s460
      $region48: #{encoder_forward.10} parent=43 // pred_fallthru
        _
    $region44: #{encoder_forward.10} parent=5 // pred_fallthru
      _
  $region6: #{encoder_forward.10} parent=0 // loop_footer
    %s14 = sadd.s32 1, %s10
  $region7: #{encoder_forward.10} parent=0 // loop_footer_branch
    %9 = sbr.rel target = $region3
  $region8: #{encoder_forward.10} parent=0 // loop_exit
    _

// kernel: encoder_forward.9
$region0: #{encoder_forward.9}
  #allocation0 [shape = 'u32[]', space=smem, size = 0x4, offset = 0x4, fixed_abs, tag = 'smem constant byte address 0x4 - core index']
  #allocation1 [shape = 'u32[144,128]{1,0:T(1,128)}', space=vmem, size = 0x12000, scoped, tag = 'internal scratch']
  %s0 = inlined_call_operand.vmem [shape: bf16[2,18,18,3], index: 0, kind: input, shape index: {}]
  %s1 = inlined_call_operand.vmem [shape: bf16[9,3,32], index: 1, kind: input, shape index: {}]
  %s2 = inlined_call_operand.vmem [shape: f32[2,16,16,32], index: 2, kind: output, shape index: {0}]
  %s3 = inlined_call_operand.vmem [shape: f32[2,2,2,32], index: 3, kind: output, shape index: {1}]
  %4 = xla_tuple %s2, %s3
  %s5 = sld [smem:[#allocation0]]
  $region56: #{encoder_forward.9} parent=0
    _
  %s7 = ssub.s32 1, %s5
  %s8 = scalar_select 0, %s7, %s5
  loop: start=0, step=1, limit=6
  $region2: #{encoder_forward.9} parent=0 // loop_pre_header
    _
  $region3: #{encoder_forward.9} parent=0 // loop_header
    %s10 = sphi 0, %s14
    %p11 = scmp.ge.s32.totalorder %s10, 6
    %s17 = sphi 0, %s29
    %s18 = sphi 0, %s25
    %s19 = sphi 0, %s17
    %s20 = sphi 0, %s18
    %s21 = sphi 0, %s19
    %s22 = sphi 0, %s20
    %s32 = sphi 0, %s34
    %s35 = sphi 0, %s32
    %s36 = sphi 0, %s35
    %s52 = sphi 0, %s36
    %s56 = sphi 0, %s56
    %s58 = sphi 0, %s56
    %s59 = sphi 0, %s58
    %s73 = sphi 0, %s59
    %s81 = sphi 0, %s83
    %s84 = sphi 0, %s81
    %s85 = sphi 0, %s84
    %s101 = sphi 0, %s85
    %s109 = sphi 0, %s111
    %s112 = sphi 0, %s109
    %s113 = sphi 0, %s112
    %s129 = sphi 0, %s113
  $region4: #{encoder_forward.9} parent=0 // loop_header_branch
    %13 = sbr.rel (%p11) target = $region8
  $region5: #{encoder_forward.9} parent=0 // loop_body
    %s15 = ssub.s32 %s10, 1
    %s16 = ssub.s32 %s10, 2
    %s23 = sadd.s32 1, %s18
    %p24 = scmp.ge.s32.totalorder %s23, 2
    %s25 = scalar_select %p24, 0, %s23
    %s26 = sadd.s32 1, %s17
    %s27 = scalar_select %p24, %s26, %s17
    %p28 = scmp.ge.s32.totalorder %s27, 2
    %s29 = scalar_select %p28, 0, %s27
    %s30 = ssub.s32 %s17, %s29
    %p31 = scmp.eq.s32.totalorder %s30, 0
    %s33 = sadd.s32 %s32, 1
    %s34 = scalar_select %p31, %s32, %s33
    %p37 = pneg %p31
    %p38 = scmp.eq.s32.totalorder %s10, 3
    %p39 = por %p37, %p38
    %p40 = scmp.ne.s32.totalorder %s32, %s35
    %p41 = scmp.eq.s32.totalorder %s10, 0
    %p42 = por %p40, %p41
    %p43 = scmp.ne.s32.totalorder %s32, %s35
    %p44 = scmp.eq.s32.totalorder %s15, 3
    %p45 = por %p43, %p44
    %p46 = scmp.ne.s32.totalorder %s35, %s36
    %p47 = scmp.eq.s32.totalorder %s15, 0
    %p48 = por %p46, %p47
    %p49 = scmp.ne.s32.totalorder %s35, %s36
    %p50 = scmp.eq.s32.totalorder %s16, 3
    %p51 = por %p49, %p50
    %p53 = scmp.ne.s32.totalorder %s36, %s52
    %p54 = scmp.eq.s32.totalorder %s16, 0
    %p55 = por %p53, %p54
    %s57 = sadd.s32 %s56, 1
    %p60 = scmp.eq.s32.totalorder %s10, 3
    %p61 = scmp.ne.s32.totalorder %s56, %s58
    %p62 = scmp.eq.s32.totalorder %s10, 0
    %p63 = por %p61, %p62
    %p64 = scmp.ne.s32.totalorder %s56, %s58
    %p65 = scmp.eq.s32.totalorder %s15, 3
    %p66 = por %p64, %p65
    %p67 = scmp.ne.s32.totalorder %s58, %s59
    %p68 = scmp.eq.s32.totalorder %s15, 0
    %p69 = por %p67, %p68
    %p70 = scmp.ne.s32.totalorder %s58, %s59
    %p71 = scmp.eq.s32.totalorder %s16, 3
    %p72 = por %p70, %p71
    %p74 = scmp.ne.s32.totalorder %s59, %s73
    %p75 = scmp.eq.s32.totalorder %s16, 0
    %p76 = por %p74, %p75
    %s77 = ssub.s32 %s17, %s29
    %s78 = ssub.s32 %s18, %s25
    %s79 = sor.u32 %s77, %s78
    %p80 = scmp.eq.s32.totalorder %s79, 0
    %s82 = sadd.s32 %s81, 1
    %s83 = scalar_select %p80, %s81, %s82
    %p86 = pneg %p80
    %p87 = scmp.eq.s32.totalorder %s10, 3
    %p88 = por %p86, %p87
    %p89 = scmp.ne.s32.totalorder %s81, %s84
    %p90 = scmp.eq.s32.totalorder %s10, 0
    %p91 = por %p89, %p90
    %p92 = scmp.ne.s32.totalorder %s81, %s84
    %p93 = scmp.eq.s32.totalorder %s15, 3
    %p94 = por %p92, %p93
    %p95 = scmp.ne.s32.totalorder %s84, %s85
    %p96 = scmp.eq.s32.totalorder %s15, 0
    %p97 = por %p95, %p96
    %p98 = scmp.ne.s32.totalorder %s84, %s85
    %p99 = scmp.eq.s32.totalorder %s16, 3
    %p100 = por %p98, %p99
    %p102 = scmp.ne.s32.totalorder %s85, %s101
    %p103 = scmp.eq.s32.totalorder %s16, 0
    %p104 = por %p102, %p103
    %s105 = ssub.s32 %s17, %s29
    %s106 = ssub.s32 %s18, %s25
    %s107 = sor.u32 %s105, %s106
    %p108 = scmp.eq.s32.totalorder %s107, 0
    %s110 = sadd.s32 %s109, 1
    %s111 = scalar_select %p108, %s109, %s110
    %p114 = pneg %p108
    %p115 = scmp.eq.s32.totalorder %s10, 3
    %p116 = por %p114, %p115
    %p117 = scmp.ne.s32.totalorder %s109, %s112
    %p118 = scmp.eq.s32.totalorder %s10, 0
    %p119 = por %p117, %p118
    %p120 = scmp.ne.s32.totalorder %s109, %s112
    %p121 = scmp.eq.s32.totalorder %s15, 3
    %p122 = por %p120, %p121
    %p123 = scmp.ne.s32.totalorder %s112, %s113
    %p124 = scmp.eq.s32.totalorder %s15, 0
    %p125 = por %p123, %p124
    %p126 = scmp.ne.s32.totalorder %s112, %s113
    %p127 = scmp.eq.s32.totalorder %s16, 3
    %p128 = por %p126, %p127
    %p130 = scmp.ne.s32.totalorder %s113, %s129
    %p131 = scmp.eq.s32.totalorder %s16, 0
    %p132 = por %p130, %p131
    %p133 = scmp.le.s32.totalorder 1, %s10
    %p134 = scmp.lt.s32.totalorder %s10, 5
    %p135 = pnand %p133, %p134
    %p136 = pneg %p135
    // Predicated region
    $region9: #{encoder_forward.9} parent=5 // pred_check
      _
    $region10: #{encoder_forward.9} parent=5 // pred_check_branch
      %138 = sbr.rel (%p135) target = $region12
    $region11: #{encoder_forward.9} parent=5 // pred_region
      %s139 = ssub.s32 %s10, 1
      // Predicated region
      $region13: #{encoder_forward.9} parent=11 // pred_check
        %p140 = pneg %p69
      $region14: #{encoder_forward.9} parent=11 // pred_check_branch
        %142 = sbr.rel (%p140) target = $region16
      $region15: #{encoder_forward.9} parent=11 // pred_region
        _
      $region16: #{encoder_forward.9} parent=11 // pred_fallthru
        _
    $region12: #{encoder_forward.9} parent=5 // pred_fallthru
      _
    %p143 = scmp.lt.s32.totalorder %s10, 4
    // Predicated region
    $region17: #{encoder_forward.9} parent=5 // pred_check
      %p144 = pneg %p143
    $region18: #{encoder_forward.9} parent=5 // pred_check_branch
      %146 = sbr.rel (%p144) target = $region20
    $region19: #{encoder_forward.9} parent=5 // pred_region
      // Predicated region
      $region21: #{encoder_forward.9} parent=19 // pred_check
        %p147 = pneg %p42
      $region22: #{encoder_forward.9} parent=19 // pred_check_branch
        %149 = sbr.rel (%p147) target = $region24
      $region23: #{encoder_forward.9} parent=19 // pred_region
        %p150 = scmp.lt.s32.totalorder %s17, 1
        %s151 = scalar_select %p150, %s17, 1
        %s152 = smul.addr %s151, 54
        %s153 = smul.addr %s152, 4
        %s154 = scalar_lea.vmem %s0, %s153
      $region24: #{encoder_forward.9} parent=19 // pred_fallthru
        _
    $region20: #{encoder_forward.9} parent=5 // pred_fallthru
      _
    %p155 = scmp.le.s32.totalorder 1, %s10
    %p156 = scmp.lt.s32.totalorder %s10, 5
    %p157 = pnand %p155, %p156
    %p158 = pneg %p157
    // Predicated region
    $region25: #{encoder_forward.9} parent=5 // pred_check
      _
    $region26: #{encoder_forward.9} parent=5 // pred_check_branch
      %160 = sbr.rel (%p157) target = $region28
    $region27: #{encoder_forward.9} parent=5 // pred_region
      %s161 = ssub.s32 %s10, 1
      %p162 = scmp.lt.s32.totalorder %s19, 1
      %s163 = scalar_select %p162, %s19, 1
      %s164 = smul.addr %s163, 54
      %s165 = smul.addr %s164, 4
      %s166 = scalar_lea.vmem %s0, %s165
      %p167 = pneg %p48
      %p168 = pneg %p45
      %p169 = pneg %p69
      %p170 = pneg %p66
      %p171 = pneg %p97
      %p172 = pneg %p94
      %s173 = smul.u32 8, %s20
      %p174 = scmp.lt.s32.totalorder %s19, 1
      %s175 = scalar_select %p174, %s19, 1
      %p176 = scmp.lt.s32.totalorder %s173, 15
      %s177 = scalar_select %p176, %s173, 15
      %s178 = smul.addr %s177, 2
      %s179 = smul.addr %s175, 32
      %s180 = sadd.s32 %s178, %s179
      %s181 = smul.addr %s180, 8
      %s182 = scalar_lea.vmem %s2, %s181
      %p183 = pneg %p125
      %p184 = pneg %p122
      %p185 = scmp.lt.s32.totalorder %s19, 1
      %s186 = scalar_select %p185, %s19, 1
      %p187 = scmp.lt.s32.totalorder %s20, 1
      %s188 = scalar_select %p187, %s20, 1
      %s189 = smul.addr %s186, 2
      %s190 = sadd.s32 %s188, %s189
      %s191 = smul.addr %s190, 2
      %s192 = scalar_lea.vmem %s3, %s191
      %p193 = scmp.lt.s32.totalorder %s19, 1
      %s194 = scalar_select %p193, %s19, 1
      %s195 = smul.addr %s194, 54
      %s196 = smul.addr %s195, 4
      %s197 = scalar_lea.vmem %s0, %s196
      %s198 = smul.u32 8, %s20
      %p199 = scmp.lt.s32.totalorder %s19, 1
      %s200 = scalar_select %p199, %s19, 1
      %p201 = scmp.lt.s32.totalorder %s198, 15
      %s202 = scalar_select %p201, %s198, 15
      %s203 = smul.addr %s202, 2
      %s204 = smul.addr %s200, 32
      %s205 = sadd.s32 %s203, %s204
      %s206 = smul.addr %s205, 8
      %s207 = scalar_lea.vmem %s2, %s206
      %s208 = smul.u32 8, %s20
      %p209 = scmp.lt.s32.totalorder %s19, 1
      %s210 = scalar_select %p209, %s19, 1
      %p211 = scmp.lt.s32.totalorder %s20, 1
      %s212 = scalar_select %p211, %s20, 1
      %s213 = smul.addr %s210, 2
      %s214 = sadd.s32 %s212, %s213
      %s215 = smul.addr %s214, 2
      %s216 = scalar_lea.vmem %s3, %s215
      %s218 = smul.u32 %s20, 8
      loop: start=0, step=1, limit=8
      $region29: #{encoder_forward.9} parent=27 // loop_pre_header
        _
      $region30: #{encoder_forward.9} parent=27 // loop_header
        %s220 = sphi 0, %s224
        %p221 = scmp.ge.s32.totalorder %s220, 8
      $region31: #{encoder_forward.9} parent=27 // loop_header_branch
        %223 = sbr.rel (%p221) target = $region35
      $region32: #{encoder_forward.9} parent=27 // loop_body
        %s225 = sadd.s32 %s218, %s220
        %s226 = smul.u32 %s225, 3
        %s227 = smul.addr %s226, 4
        %s228 = scalar_lea.vmem %s197, %s227
        %v229 = vld [vmem:[%s228] sm:$0xf]
        %v230 = vld [vmem:[%s228 + $0x4] sm:$0xf]
        %v231 = vld [vmem:[%s1] sm:$0x3]
        %v232 = vld [vmem:[%s228 + $0x8] sm:$0x1]
        %s233 = scalar_lea.vmem %s1, 2
        %v234 = vld [vmem:[%s233] sm:$0x3]
        %v238 = vunpack.c.l.b16 %v229
        %v239 = vunpack.c.l.b16 %v230
        %v240 = vunpack.c.l.b16 %v232
        %v241 = vpack.c.b16 %v239, %v238
        %v242 = vpack.c.b16 %v240, %v240
        %vm243 = vsmask.f32 7424
        %v245 = vshrl.u32 %v241, 16
        %v247 = vshll.u32 %v241, 16
        %v249 = vrot.slane %v247, 1
        %v250 = vor.u32 %v245, %v249
        %v252 = vshll.u32 %v242, 16
        %v254 = vrot.slane %v252, 1
        %v255 = vsel %vm243, %v250, %v254
        %vm256 = vcmask 23552
        %v258 = vsel %vm256, %v255, 0
        %vm260 = vcmask 1040384
        %vm261 = vcmask 1041408
        %v262 = vsel %vm260, 4294967295, 65535
        %v263 = vsel %vm261, %v262, 0
        %v265 = vand.u32 %v234, %v263
        %267 = vmatprep.subr.bf16.mxu0 0
        %268 = vmatpush1.bf16.msra.mxu0 %v265
        %269 = vmatprep.subr.bf16.mxu0 0
        %270 = vmatpush1.bf16.msra.mxu0 0
        %271 = vmatprep.subr.bf16.mxu0 0
        %272 = vmatpush1.bf16.msra.mxu0 0
        %273 = vmatprep.subr.bf16.mxu0 0
        %274 = vmatpush1.bf16.msra.mxu0 0
        %275 = vmatprep.subr.bf16.mxu0 0
        %276 = vmatpush1.bf16.msra.mxu0 0
        %277 = vmatprep.subr.bf16.mxu0 0
        %278 = vmatpush1.bf16.msra.mxu0 0
        %279 = vmatprep.subr.bf16.mxu0 0
        %280 = vmatpush1.bf16.msra.mxu0 0
        %281 = vmatprep.subr.bf16.mxu0 0
        %282 = vmatpush1.bf16.msra.mxu0 0
        %283 = vmatprep.subr.bf16.mxu0 0
        %284 = vmatpush1.bf16.msra.mxu0 0
        %285 = vmatprep.subr.bf16.mxu0 0
        %286 = vmatpush1.bf16.msra.mxu0 0
        %287 = vmatprep.subr.bf16.mxu0 0
        %288 = vmatpush1.bf16.msra.mxu0 0
        %289 = vmatprep.subr.bf16.mxu0 0
        %290 = vmatpush1.bf16.msra.mxu0 0
        %291 = vmatprep.subr.bf16.mxu0 0
        %292 = vmatpush1.bf16.msra.mxu0 0
        %293 = vmatprep.subr.bf16.mxu0 0
        %294 = vmatpush1.bf16.msra.mxu0 0
        %295 = vmatprep.subr.bf16.mxu0 0
        %296 = vmatpush1.bf16.msra.mxu0 0
        %297 = vmatprep.subr.bf16.mxu0 0
        %298 = vmatpush1.bf16.msra.mxu0 0
        %299 = vmatprep.mubr.bf16.mxu0 0
        %300 = vmatmul.mubr.bf16.gmra.mrb[0].mxu0 %v258
        %v301 = vpop.f32.mrb[0].mxu0
        %v302 = vadd.f32 0.0, %v301
        %v303 = vpop.f32.mrb[0].mxu0
        %v304 = vpop.f32.mrb[0].mxu0
        %v305 = vadd.f32 0.0, %v304
        %v306 = vpop.f32.mrb[0].mxu0
        %307 = vdwg.mxu0
        %v308 = vsel %vm256, %v241, 0
        %v311 = vand.u32 %v231, %v263
        %313 = vmatprep.subr.bf16.mxu0 0
        %314 = vmatpush1.bf16.msra.mxu0 %v311
        %315 = vmatprep.subr.bf16.mxu0 0
        %316 = vmatpush1.bf16.msra.mxu0 0
        %317 = vmatprep.subr.bf16.mxu0 0
        %318 = vmatpush1.bf16.msra.mxu0 0
        %319 = vmatprep.subr.bf16.mxu0 0
        %320 = vmatpush1.bf16.msra.mxu0 0
        %321 = vmatprep.subr.bf16.mxu0 0
        %322 = vmatpush1.bf16.msra.mxu0 0
        %323 = vmatprep.subr.bf16.mxu0 0
        %324 = vmatpush1.bf16.msra.mxu0 0
        %325 = vmatprep.subr.bf16.mxu0 0
        %326 = vmatpush1.bf16.msra.mxu0 0
        %327 = vmatprep.subr.bf16.mxu0 0
        %328 = vmatpush1.bf16.msra.mxu0 0
        %329 = vmatprep.subr.bf16.mxu0 0
        %330 = vmatpush1.bf16.msra.mxu0 0
        %331 = vmatprep.subr.bf16.mxu0 0
        %332 = vmatpush1.bf16.msra.mxu0 0
        %333 = vmatprep.subr.bf16.mxu0 0
        %334 = vmatpush1.bf16.msra.mxu0 0
        %335 = vmatprep.subr.bf16.mxu0 0
        %336 = vmatpush1.bf16.msra.mxu0 0
        %337 = vmatprep.subr.bf16.mxu0 0
        %338 = vmatpush1.bf16.msra.mxu0 0
        %339 = vmatprep.subr.bf16.mxu0 0
        %340 = vmatpush1.bf16.msra.mxu0 0
        %341 = vmatprep.subr.bf16.mxu0 0
        %342 = vmatpush1.bf16.msra.mxu0 0
        %343 = vmatprep.subr.bf16.mxu0 0
        %344 = vmatpush1.bf16.msra.mxu0 0
        %345 = vmatprep.mubr.bf16.mxu0 0
        %346 = vmatmul.mubr.bf16.gmra.mrb[0].mxu0 %v308
        %v347 = vpop.f32.mrb[0].mxu0
        %v348 = vadd.f32 %v302, %v347
        %v349 = vpop.f32.mrb[0].mxu0
        %v350 = vpop.f32.mrb[0].mxu0
        %v351 = vadd.f32 %v305, %v350
        %v352 = vpop.f32.mrb[0].mxu0
        %353 = vdwg.mxu0
        %v354 = vld [vmem:[%s228] sm:$0xe]
        %s355 = scalar_lea.vmem %s1, 4
        %v356 = vld [vmem:[%s355] sm:$0x3]
        %v358 = vunpack.c.l.b16 %v354
        %v359 = vpack.c.b16 %v239, %v358
        %vm360 = vcmask 1046528
        %v361 = vrot.slane %v359, 1
        %v362 = vrot.slane %v242, 1
        %v363 = vsel %vm360, %v361, %v362
        %v365 = vsel %vm256, %v363, 0
        %v368 = vand.u32 %v356, %v263
        %370 = vmatprep.subr.bf16.mxu0 0
        %371 = vmatpush1.bf16.msra.mxu0 %v368
        %372 = vmatprep.subr.bf16.mxu0 0
        %373 = vmatpush1.bf16.msra.mxu0 0
        %374 = vmatprep.subr.bf16.mxu0 0
        %375 = vmatpush1.bf16.msra.mxu0 0
        %376 = vmatprep.subr.bf16.mxu0 0
        %377 = vmatpush1.bf16.msra.mxu0 0
        %378 = vmatprep.subr.bf16.mxu0 0
        %379 = vmatpush1.bf16.msra.mxu0 0
        %380 = vmatprep.subr.bf16.mxu0 0
        %381 = vmatpush1.bf16.msra.mxu0 0
        %382 = vmatprep.subr.bf16.mxu0 0
        %383 = vmatpush1.bf16.msra.mxu0 0
        %384 = vmatprep.subr.bf16.mxu0 0
        %385 = vmatpush1.bf16.msra.mxu0 0
        %386 = vmatprep.subr.bf16.mxu0 0
        %387 = vmatpush1.bf16.msra.mxu0 0
        %388 = vmatprep.subr.bf16.mxu0 0
        %389 = vmatpush1.bf16.msra.mxu0 0
        %390 = vmatprep.subr.bf16.mxu0 0
        %391 = vmatpush1.bf16.msra.mxu0 0
        %392 = vmatprep.subr.bf16.mxu0 0
        %393 = vmatpush1.bf16.msra.mxu0 0
        %394 = vmatprep.subr.bf16.mxu0 0
        %395 = vmatpush1.bf16.msra.mxu0 0
        %396 = vmatprep.subr.bf16.mxu0 0
        %397 = vmatpush1.bf16.msra.mxu0 0
        %398 = vmatprep.subr.bf16.mxu0 0
        %399 = vmatpush1.bf16.msra.mxu0 0
        %400 = vmatprep.subr.bf16.mxu0 0
        %401 = vmatpush1.bf16.msra.mxu0 0
        %402 = vmatprep.mubr.bf16.mxu0 0
        %403 = vmatmul.mubr.bf16.gmra.mrb[0].mxu0 %v365
        %v404 = vpop.f32.mrb[0].mxu0
        %v405 = vadd.f32 0.0, %v404
        %v406 = vpop.f32.mrb[0].mxu0
        %v407 = vpop.f32.mrb[0].mxu0
        %v408 = vadd.f32 0.0, %v407
        %v409 = vpop.f32.mrb[0].mxu0
        %410 = vdwg.mxu0
        %v411 = vadd.f32 %v348, %v405
        %v412 = vadd.f32 %v351, %v408
        %s413 = sadd.s32 %s225, 1
        %s414 = smul.u32 %s413, 3
        %s415 = smul.addr %s414, 4
        %s416 = scalar_lea.vmem %s197, %s415
        %v417 = vld [vmem:[%s416] sm:$0xf]
        %v418 = vld [vmem:[%s416 + $0x4] sm:$0xf]
        %s419 = scalar_lea.vmem %s1, 6
        %v420 = vld [vmem:[%s419] sm:$0x3]
        %v423 = vunpack.c.l.b16 %v417
        %v424 = vunpack.c.l.b16 %v418
        %v425 = vpack.c.b16 %v424, %v423
        %v427 = vsel %vm256, %v425, 0
        %v430 = vand.u32 %v420, %v263
        %432 = vmatprep.subr.bf16.mxu0 0
        %433 = vmatpush1.bf16.msra.mxu0 %v430
        %434 = vmatprep.subr.bf16.mxu0 0
        %435 = vmatpush1.bf16.msra.mxu0 0
        %436 = vmatprep.subr.bf16.mxu0 0
        %437 = vmatpush1.bf16.msra.mxu0 0
        %438 = vmatprep.subr.bf16.mxu0 0
        %439 = vmatpush1.bf16.msra.mxu0 0
        %440 = vmatprep.subr.bf16.mxu0 0
        %441 = vmatpush1.bf16.msra.mxu0 0
        %442 = vmatprep.subr.bf16.mxu0 0
        %443 = vmatpush1.bf16.msra.mxu0 0
        %444 = vmatprep.subr.bf16.mxu0 0
        %445 = vmatpush1.bf16.msra.mxu0 0
        %446 = vmatprep.subr.bf16.mxu0 0
        %447 = vmatpush1.bf16.msra.mxu0 0
        %448 = vmatprep.subr.bf16.mxu0 0
        %449 = vmatpush1.bf16.msra.mxu0 0
        %450 = vmatprep.subr.bf16.mxu0 0
        %451 = vmatpush1.bf16.msra.mxu0 0
        %452 = vmatprep.subr.bf16.mxu0 0
        %453 = vmatpush1.bf16.msra.mxu0 0
        %454 = vmatprep.subr.bf16.mxu0 0
        %455 = vmatpush1.bf16.msra.mxu0 0
        %456 = vmatprep.subr.bf16.mxu0 0
        %457 = vmatpush1.bf16.msra.mxu0 0
        %458 = vmatprep.subr.bf16.mxu0 0
        %459 = vmatpush1.bf16.msra.mxu0 0
        %460 = vmatprep.subr.bf16.mxu0 0
        %461 = vmatpush1.bf16.msra.mxu0 0
        %462 = vmatprep.subr.bf16.mxu0 0
        %463 = vmatpush1.bf16.msra.mxu0 0
        %464 = vmatprep.mubr.bf16.mxu0 0
        %465 = vmatmul.mubr.bf16.gmra.mrb[0].mxu0 %v427
        %v466 = vpop.f32.mrb[0].mxu0
        %v467 = vadd.f32 0.0, %v466
        %v468 = vpop.f32.mrb[0].mxu0
        %v469 = vpop.f32.mrb[0].mxu0
        %v470 = vadd.f32 0.0, %v469
        %v471 = vpop.f32.mrb[0].mxu0
        %472 = vdwg.mxu0
        %v473 = vadd.f32 %v411, %v467
        %v474 = vadd.f32 %v412, %v470
        %v475 = vld [vmem:[%s416] sm:$0xf]
        %v476 = vld [vmem:[%s416 + $0x4] sm:$0xf]
        %v477 = vld [vmem:[%s416 + $0x8] sm:$0x1]
        %s478 = scalar_lea.vmem %s1, 8
        %v479 = vld [vmem:[%s478] sm:$0x3]
        %v483 = vunpack.c.l.b16 %v475
        %v484 = vunpack.c.l.b16 %v476
        %v485 = vunpack.c.l.b16 %v477
        %v486 = vpack.c.b16 %v484, %v483
        %v487 = vpack.c.b16 %v485, %v485
        %v489 = vshrl.u32 %v486, 16
        %v491 = vshll.u32 %v486, 16
        %v493 = vrot.slane %v491, 1
        %v494 = vor.u32 %v489, %v493
        %v496 = vshll.u32 %v487, 16
        %v498 = vrot.slane %v496, 1
        %v499 = vsel %vm243, %v494, %v498
        %v501 = vsel %vm256, %v499, 0
        %v504 = vand.u32 %v479, %v263
        %506 = vmatprep.subr.bf16.mxu0 0
        %507 = vmatpush1.bf16.msra.mxu0 %v504
        %508 = vmatprep.subr.bf16.mxu0 0
        %509 = vmatpush1.bf16.msra.mxu0 0
        %510 = vmatprep.subr.bf16.mxu0 0
        %511 = vmatpush1.bf16.msra.mxu0 0
        %512 = vmatprep.subr.bf16.mxu0 0
        %513 = vmatpush1.bf16.msra.mxu0 0
        %514 = vmatprep.subr.bf16.mxu0 0
        %515 = vmatpush1.bf16.msra.mxu0 0
        %516 = vmatprep.subr.bf16.mxu0 0
        %517 = vmatpush1.bf16.msra.mxu0 0
        %518 = vmatprep.subr.bf16.mxu0 0
        %519 = vmatpush1.bf16.msra.mxu0 0
        %520 = vmatprep.subr.bf16.mxu0 0
        %521 = vmatpush1.bf16.msra.mxu0 0
        %522 = vmatprep.subr.bf16.mxu0 0
        %523 = vmatpush1.bf16.msra.mxu0 0
        %524 = vmatprep.subr.bf16.mxu0 0
        %525 = vmatpush1.bf16.msra.mxu0 0
        %526 = vmatprep.subr.bf16.mxu0 0
        %527 = vmatpush1.bf16.msra.mxu0 0
        %528 = vmatprep.subr.bf16.mxu0 0
        %529 = vmatpush1.bf16.msra.mxu0 0
        %530 = vmatprep.subr.bf16.mxu0 0
        %531 = vmatpush1.bf16.msra.mxu0 0
        %532 = vmatprep.subr.bf16.mxu0 0
        %533 = vmatpush1.bf16.msra.mxu0 0
        %534 = vmatprep.subr.bf16.mxu0 0
        %535 = vmatpush1.bf16.msra.mxu0 0
        %536 = vmatprep.subr.bf16.mxu0 0
        %537 = vmatpush1.bf16.msra.mxu0 0
        %538 = vmatprep.mubr.bf16.mxu0 0
        %539 = vmatmul.mubr.bf16.gmra.mrb[0].mxu0 %v501
        %v540 = vpop.f32.mrb[0].mxu0
        %v541 = vadd.f32 0.0, %v540
        %v542 = vpop.f32.mrb[0].mxu0
        %v543 = vpop.f32.mrb[0].mxu0
        %v544 = vadd.f32 0.0, %v543
        %v545 = vpop.f32.mrb[0].mxu0
        %546 = vdwg.mxu0
        %v547 = vadd.f32 %v473, %v541
        %v548 = vadd.f32 %v474, %v544
        %v549 = vld [vmem:[%s416] sm:$0xe]
        %s550 = scalar_lea.vmem %s1, 10
        %v551 = vld [vmem:[%s550] sm:$0x3]
        %v553 = vunpack.c.l.b16 %v549
        %v554 = vpack.c.b16 %v484, %v553
        %v555 = vrot.slane %v554, 1
        %v556 = vrot.slane %v487, 1
        %v557 = vsel %vm360, %v555, %v556
        %v559 = vsel %vm256, %v557, 0
        %v562 = vand.u32 %v551, %v263
        %564 = vmatprep.subr.bf16.mxu0 0
        %565 = vmatpush1.bf16.msra.mxu0 %v562
        %566 = vmatprep.subr.bf16.mxu0 0
        %567 = vmatpush1.bf16.msra.mxu0 0
        %568 = vmatprep.subr.bf16.mxu0 0
        %569 = vmatpush1.bf16.msra.mxu0 0
        %570 = vmatprep.subr.bf16.mxu0 0
        %571 = vmatpush1.bf16.msra.mxu0 0
        %572 = vmatprep.subr.bf16.mxu0 0
        %573 = vmatpush1.bf16.msra.mxu0 0
        %574 = vmatprep.subr.bf16.mxu0 0
        %575 = vmatpush1.bf16.msra.mxu0 0
        %576 = vmatprep.subr.bf16.mxu0 0
        %577 = vmatpush1.bf16.msra.mxu0 0
        %578 = vmatprep.subr.bf16.mxu0 0
        %579 = vmatpush1.bf16.msra.mxu0 0
        %580 = vmatprep.subr.bf16.mxu0 0
        %581 = vmatpush1.bf16.msra.mxu0 0
        %582 = vmatprep.subr.bf16.mxu0 0
        %583 = vmatpush1.bf16.msra.mxu0 0
        %584 = vmatprep.subr.bf16.mxu0 0
        %585 = vmatpush1.bf16.msra.mxu0 0
        %586 = vmatprep.subr.bf16.mxu0 0
        %587 = vmatpush1.bf16.msra.mxu0 0
        %588 = vmatprep.subr.bf16.mxu0 0
        %589 = vmatpush1.bf16.msra.mxu0 0
        %590 = vmatprep.subr.bf16.mxu0 0
        %591 = vmatpush1.bf16.msra.mxu0 0
        %592 = vmatprep.subr.bf16.mxu0 0
        %593 = vmatpush1.bf16.msra.mxu0 0
        %594 = vmatprep.subr.bf16.mxu0 0
        %595 = vmatpush1.bf16.msra.mxu0 0
        %596 = vmatprep.mubr.bf16.mxu0 0
        %597 = vmatmul.mubr.bf16.gmra.mrb[0].mxu0 %v559
        %v598 = vpop.f32.mrb[0].mxu0
        %v599 = vadd.f32 0.0, %v598
        %v600 = vpop.f32.mrb[0].mxu0
        %v601 = vpop.f32.mrb[0].mxu0
        %v602 = vadd.f32 0.0, %v601
        %v603 = vpop.f32.mrb[0].mxu0
        %604 = vdwg.mxu0
        %v605 = vadd.f32 %v547, %v599
        %v606 = vadd.f32 %v548, %v602
        %s607 = sadd.s32 %s225, 2
        %s608 = smul.u32 %s607, 3
        %s609 = smul.addr %s608, 4
        %s610 = scalar_lea.vmem %s197, %s609
        %v611 = vld [vmem:[%s610] sm:$0xf]
        %v612 = vld [vmem:[%s610 + $0x4] sm:$0xf]
        %s613 = scalar_lea.vmem %s1, 12
        %v614 = vld [vmem:[%s613] sm:$0x3]
        %v617 = vunpack.c.l.b16 %v611
        %v618 = vunpack.c.l.b16 %v612
        %v619 = vpack.c.b16 %v618, %v617
        %v621 = vsel %vm256, %v619, 0
        %v624 = vand.u32 %v614, %v263
        %626 = vmatprep.subr.bf16.mxu0 0
        %627 = vmatpush1.bf16.msra.mxu0 %v624
        %628 = vmatprep.subr.bf16.mxu0 0
        %629 = vmatpush1.bf16.msra.mxu0 0
        %630 = vmatprep.subr.bf16.mxu0 0
        %631 = vmatpush1.bf16.msra.mxu0 0
        %632 = vmatprep.subr.bf16.mxu0 0
        %633 = vmatpush1.bf16.msra.mxu0 0
        %634 = vmatprep.subr.bf16.mxu0 0
        %635 = vmatpush1.bf16.msra.mxu0 0
        %636 = vmatprep.subr.bf16.mxu0 0
        %637 = vmatpush1.bf16.msra.mxu0 0
        %638 = vmatprep.subr.bf16.mxu0 0
        %639 = vmatpush1.bf16.msra.mxu0 0
        %640 = vmatprep.subr.bf16.mxu0 0
        %641 = vmatpush1.bf16.msra.mxu0 0
        %642 = vmatprep.subr.bf16.mxu0 0
        %643 = vmatpush1.bf16.msra.mxu0 0
        %644 = vmatprep.subr.bf16.mxu0 0
        %645 = vmatpush1.bf16.msra.mxu0 0
        %646 = vmatprep.subr.bf16.mxu0 0
        %647 = vmatpush1.bf16.msra.mxu0 0
        %648 = vmatprep.subr.bf16.mxu0 0
        %649 = vmatpush1.bf16.msra.mxu0 0
        %650 = vmatprep.subr.bf16.mxu0 0
        %651 = vmatpush1.bf16.msra.mxu0 0
        %652 = vmatprep.subr.bf16.mxu0 0
        %653 = vmatpush1.bf16.msra.mxu0 0
        %654 = vmatprep.subr.bf16.mxu0 0
        %655 = vmatpush1.bf16.msra.mxu0 0
        %656 = vmatprep.subr.bf16.mxu0 0
        %657 = vmatpush1.bf16.msra.mxu0 0
        %658 = vmatprep.mubr.bf16.mxu0 0
        %659 = vmatmul.mubr.bf16.gmra.mrb[0].mxu0 %v621
        %v660 = vpop.f32.mrb[0].mxu0
        %v661 = vadd.f32 0.0, %v660
        %v662 = vpop.f32.mrb[0].mxu0
        %v663 = vpop.f32.mrb[0].mxu0
        %v664 = vadd.f32 0.0, %v663
        %v665 = vpop.f32.mrb[0].mxu0
        %666 = vdwg.mxu0
        %v667 = vadd.f32 %v605, %v661
        %v668 = vadd.f32 %v606, %v664
        %v669 = vld [vmem:[%s610] sm:$0xf]
        %v670 = vld [vmem:[%s610 + $0x4] sm:$0xf]
        %v671 = vld [vmem:[%s610 + $0x8] sm:$0x1]
        %s672 = scalar_lea.vmem %s1, 14
        %v673 = vld [vmem:[%s672] sm:$0x3]
        %v677 = vunpack.c.l.b16 %v669
        %v678 = vunpack.c.l.b16 %v670
        %v679 = vunpack.c.l.b16 %v671
        %v680 = vpack.c.b16 %v678, %v677
        %v681 = vpack.c.b16 %v679, %v679
        %v683 = vshrl.u32 %v680, 16
        %v685 = vshll.u32 %v680, 16
        %v687 = vrot.slane %v685, 1
        %v688 = vor.u32 %v683, %v687
        %v690 = vshll.u32 %v681, 16
        %v692 = vrot.slane %v690, 1
        %v693 = vsel %vm243, %v688, %v692
        %v695 = vsel %vm256, %v693, 0
        %v698 = vand.u32 %v673, %v263
        %700 = vmatprep.subr.bf16.mxu0 0
        %701 = vmatpush1.bf16.msra.mxu0 %v698
        %702 = vmatprep.subr.bf16.mxu0 0
        %703 = vmatpush1.bf16.msra.mxu0 0
        %704 = vmatprep.subr.bf16.mxu0 0
        %705 = vmatpush1.bf16.msra.mxu0 0
        %706 = vmatprep.subr.bf16.mxu0 0
        %707 = vmatpush1.bf16.msra.mxu0 0
        %708 = vmatprep.subr.bf16.mxu0 0
        %709 = vmatpush1.bf16.msra.mxu0 0
        %710 = vmatprep.subr.bf16.mxu0 0
        %711 = vmatpush1.bf16.msra.mxu0 0
        %712 = vmatprep.subr.bf16.mxu0 0
        %713 = vmatpush1.bf16.msra.mxu0 0
        %714 = vmatprep.subr.bf16.mxu0 0
        %715 = vmatpush1.bf16.msra.mxu0 0
        %716 = vmatprep.subr.bf16.mxu0 0
        %717 = vmatpush1.bf16.msra.mxu0 0
        %718 = vmatprep.subr.bf16.mxu0 0
        %719 = vmatpush1.bf16.msra.mxu0 0
        %720 = vmatprep.subr.bf16.mxu0 0
        %721 = vmatpush1.bf16.msra.mxu0 0
        %722 = vmatprep.subr.bf16.mxu0 0
        %723 = vmatpush1.bf16.msra.mxu0 0
        %724 = vmatprep.subr.bf16.mxu0 0
        %725 = vmatpush1.bf16.msra.mxu0 0
        %726 = vmatprep.subr.bf16.mxu0 0
        %727 = vmatpush1.bf16.msra.mxu0 0
        %728 = vmatprep.subr.bf16.mxu0 0
        %729 = vmatpush1.bf16.msra.mxu0 0
        %730 = vmatprep.subr.bf16.mxu0 0
        %731 = vmatpush1.bf16.msra.mxu0 0
        %732 = vmatprep.mubr.bf16.mxu0 0
        %733 = vmatmul.mubr.bf16.gmra.mrb[0].mxu0 %v695
        %v734 = vpop.f32.mrb[0].mxu0
        %v735 = vadd.f32 0.0, %v734
        %v736 = vpop.f32.mrb[0].mxu0
        %v737 = vpop.f32.mrb[0].mxu0
        %v738 = vadd.f32 0.0, %v737
        %v739 = vpop.f32.mrb[0].mxu0
        %740 = vdwg.mxu0
        %v741 = vadd.f32 %v667, %v735
        %v742 = vadd.f32 %v668, %v738
        %v743 = vld [vmem:[%s610] sm:$0xe]
        %s744 = scalar_lea.vmem %s1, 16
        %v745 = vld [vmem:[%s744] sm:$0x3]
        %v747 = vunpack.c.l.b16 %v743
        %v748 = vpack.c.b16 %v678, %v747
        %v749 = vrot.slane %v748, 1
        %v750 = vrot.slane %v681, 1
        %v751 = vsel %vm360, %v749, %v750
        %v753 = vsel %vm256, %v751, 0
        %v756 = vand.u32 %v745, %v263
        %758 = vmatprep.subr.bf16.mxu0 0
        %759 = vmatpush1.bf16.msra.mxu0 %v756
        %760 = vmatprep.subr.bf16.mxu0 0
        %761 = vmatpush1.bf16.msra.mxu0 0
        %762 = vmatprep.subr.bf16.mxu0 0
        %763 = vmatpush1.bf16.msra.mxu0 0
        %764 = vmatprep.subr.bf16.mxu0 0
        %765 = vmatpush1.bf16.msra.mxu0 0
        %766 = vmatprep.subr.bf16.mxu0 0
        %767 = vmatpush1.bf16.msra.mxu0 0
        %768 = vmatprep.subr.bf16.mxu0 0
        %769 = vmatpush1.bf16.msra.mxu0 0
        %770 = vmatprep.subr.bf16.mxu0 0
        %771 = vmatpush1.bf16.msra.mxu0 0
        %772 = vmatprep.subr.bf16.mxu0 0
        %773 = vmatpush1.bf16.msra.mxu0 0
        %774 = vmatprep.subr.bf16.mxu0 0
        %775 = vmatpush1.bf16.msra.mxu0 0
        %776 = vmatprep.subr.bf16.mxu0 0
        %777 = vmatpush1.bf16.msra.mxu0 0
        %778 = vmatprep.subr.bf16.mxu0 0
        %779 = vmatpush1.bf16.msra.mxu0 0
        %780 = vmatprep.subr.bf16.mxu0 0
        %781 = vmatpush1.bf16.msra.mxu0 0
        %782 = vmatprep.subr.bf16.mxu0 0
        %783 = vmatpush1.bf16.msra.mxu0 0
        %784 = vmatprep.subr.bf16.mxu0 0
        %785 = vmatpush1.bf16.msra.mxu0 0
        %786 = vmatprep.subr.bf16.mxu0 0
        %787 = vmatpush1.bf16.msra.mxu0 0
        %788 = vmatprep.subr.bf16.mxu0 0
        %789 = vmatpush1.bf16.msra.mxu0 0
        %790 = vmatprep.mubr.bf16.mxu0 0
        %791 = vmatmul.mubr.bf16.gmra.mrb[0].mxu0 %v753
        %v792 = vpop.f32.mrb[0].mxu0
        %v793 = vadd.f32 0.0, %v792
        %v794 = vpop.f32.mrb[0].mxu0
        %v795 = vpop.f32.mrb[0].mxu0
        %v796 = vadd.f32 0.0, %v795
        %v797 = vpop.f32.mrb[0].mxu0
        %798 = vdwg.mxu0
        %v799 = vadd.f32 %v741, %v793
        %v800 = vadd.f32 %v742, %v796
        %s801 = smul.u32 %s220, 16
        %s802 = scalar_lea.vmem %s207, %s801
        %vm803 = vcmask 261120
        %804 = vst.msk [vmem:[%s802] sm:$0xff] %vm803, %v799
        %805 = vst.msk [vmem:[%s802 + $0x8] sm:$0xff] %vm803, %v800
      $region33: #{encoder_forward.9} parent=27 // loop_footer
        %s224 = sadd.s32 1, %s220
      $region34: #{encoder_forward.9} parent=27 // loop_footer_branch
        %219 = sbr.rel target = $region30
      $region35: #{encoder_forward.9} parent=27 // loop_exit
        _
      %v806 = vld [vmem:[%s207] sm:$0xff]
      %v807 = vld [vmem:[%s207 + $0x8] sm:$0xff]
      %v808 = vld [vmem:[%s207 + $0x10] sm:$0xff]
      %v809 = vld [vmem:[%s207 + $0x18] sm:$0xff]
      %v810 = vld [vmem:[%s207 + $0x20] sm:$0xff]
      %v811 = vld [vmem:[%s207 + $0x28] sm:$0xff]
      %v812 = vld [vmem:[%s207 + $0x30] sm:$0xff]
      %v813 = vld [vmem:[%s207 + $0x38] sm:$0xff]
      %v814 = vld [vmem:[%s207 + $0x40] sm:$0xff]
      %v815 = vld [vmem:[%s207 + $0x48] sm:$0xff]
      %v816 = vld [vmem:[%s207 + $0x50] sm:$0xff]
      %v817 = vld [vmem:[%s207 + $0x58] sm:$0xff]
      %v818 = vld [vmem:[%s207 + $0x60] sm:$0xff]
      %v819 = vld [vmem:[%s207 + $0x68] sm:$0xff]
      %v820 = vld [vmem:[%s207 + $0x70] sm:$0xff]
      %v821 = vld [vmem:[%s207 + $0x78] sm:$0xff]
      %vm822 = vcmask 261120
      %v823 = vsel %vm822, %v806, 0.0
      %v824 = vsel %vm822, %v807, 0.0
      %v825 = vadd.f32 %v823, %v824
      %v826 = vsel %vm822, %v808, 0.0
      %v827 = vadd.f32 %v825, %v826
      %v828 = vsel %vm822, %v809, 0.0
      %v829 = vadd.f32 %v827, %v828
      %v830 = vsel %vm822, %v810, 0.0
      %v831 = vadd.f32 %v829, %v830
      %v832 = vsel %vm822, %v811, 0.0
      %v833 = vadd.f32 %v831, %v832
      %v834 = vsel %vm822, %v812, 0.0
      %v835 = vadd.f32 %v833, %v834
      %v836 = vsel %vm822, %v813, 0.0
      %v837 = vadd.f32 %v835, %v836
      %v838 = vsel %vm822, %v814, 0.0
      %v839 = vadd.f32 %v837, %v838
      %v840 = vsel %vm822, %v815, 0.0
      %v841 = vadd.f32 %v839, %v840
      %v842 = vsel %vm822, %v816, 0.0
      %v843 = vadd.f32 %v841, %v842
      %v844 = vsel %vm822, %v817, 0.0
      %v845 = vadd.f32 %v843, %v844
      %v846 = vsel %vm822, %v818, 0.0
      %v847 = vadd.f32 %v845, %v846
      %v848 = vsel %vm822, %v819, 0.0
      %v849 = vadd.f32 %v847, %v848
      %v850 = vsel %vm822, %v820, 0.0
      %v851 = vadd.f32 %v849, %v850
      %v852 = vsel %vm822, %v821, 0.0
      %v853 = vadd.f32 %v851, %v852
      %v854 = vrot.slane %v853, 4
      %v855 = vadd.f32 %v853, %v854
      %v856 = vrot.slane %v855, 2
      %v857 = vadd.f32 %v855, %v856
      %v858 = vrot.slane %v857, 1
      %v859 = vadd.f32 %v857, %v858
      %vm860 = vcmask 253952
      %861 = vst.msk [vmem:[%s216] sm:$0x1] %vm860, %v859
      %v862 = vmul.f32 %v806, %v806
      %v863 = vmul.f32 %v807, %v807
      %v864 = vmul.f32 %v808, %v808
      %v865 = vmul.f32 %v809, %v809
      %v866 = vmul.f32 %v810, %v810
      %v867 = vmul.f32 %v811, %v811
      %v868 = vmul.f32 %v812, %v812
      %v869 = vmul.f32 %v813, %v813
      %v870 = vmul.f32 %v814, %v814
      %v871 = vmul.f32 %v815, %v815
      %v872 = vmul.f32 %v816, %v816
      %v873 = vmul.f32 %v817, %v817
      %v874 = vmul.f32 %v818, %v818
      %v875 = vmul.f32 %v819, %v819
      %v876 = vmul.f32 %v820, %v820
      %v877 = vmul.f32 %v821, %v821
      %v878 = vsel %vm822, %v862, 0.0
      %v879 = vsel %vm822, %v863, 0.0
      %v880 = vadd.f32 %v878, %v879
      %v881 = vsel %vm822, %v864, 0.0
      %v882 = vadd.f32 %v880, %v881
      %v883 = vsel %vm822, %v865, 0.0
      %v884 = vadd.f32 %v882, %v883
      %v885 = vsel %vm822, %v866, 0.0
      %v886 = vadd.f32 %v884, %v885
      %v887 = vsel %vm822, %v867, 0.0
      %v888 = vadd.f32 %v886, %v887
      %v889 = vsel %vm822, %v868, 0.0
      %v890 = vadd.f32 %v888, %v889
      %v891 = vsel %vm822, %v869, 0.0
      %v892 = vadd.f32 %v890, %v891
      %v893 = vsel %vm822, %v870, 0.0
      %v894 = vadd.f32 %v892, %v893
      %v895 = vsel %vm822, %v871, 0.0
      %v896 = vadd.f32 %v894, %v895
      %v897 = vsel %vm822, %v872, 0.0
      %v898 = vadd.f32 %v896, %v897
      %v899 = vsel %vm822, %v873, 0.0
      %v900 = vadd.f32 %v898, %v899
      %v901 = vsel %vm822, %v874, 0.0
      %v902 = vadd.f32 %v900, %v901
      %v903 = vsel %vm822, %v875, 0.0
      %v904 = vadd.f32 %v902, %v903
      %v905 = vsel %vm822, %v876, 0.0
      %v906 = vadd.f32 %v904, %v905
      %v907 = vsel %vm822, %v877, 0.0
      %v908 = vadd.f32 %v906, %v907
      %v909 = vrot.slane %v908, 4
      %v910 = vadd.f32 %v908, %v909
      %v911 = vrot.slane %v910, 2
      %v912 = vadd.f32 %v910, %v911
      %v913 = vrot.slane %v912, 1
      %v914 = vadd.f32 %v912, %v913
      %915 = vst.msk [vmem:[%s216 + $0x1] sm:$0x1] %vm860, %v914
      %s916 = smul.u32 8, %s20
      %p917 = scmp.lt.s32.totalorder %s19, 1
      %s918 = scalar_select %p917, %s19, 1
      %p919 = scmp.lt.s32.totalorder %s916, 15
      %s920 = scalar_select %p919, %s916, 15
      %s921 = smul.addr %s920, 2
      %s922 = smul.addr %s918, 32
      %s923 = sadd.s32 %s921, %s922
      %s924 = smul.addr %s923, 8
      %s925 = scalar_lea.vmem %s2, %s924
      %p926 = scmp.lt.s32.totalorder %s19, 1
      %s927 = scalar_select %p926, %s19, 1
      %p928 = scmp.lt.s32.totalorder %s20, 1
      %s929 = scalar_select %p928, %s20, 1
      %s930 = smul.addr %s927, 2
      %s931 = sadd.s32 %s929, %s930
      %s932 = smul.addr %s931, 2
      %s933 = scalar_lea.vmem %s3, %s932
      // Predicated region
      $region36: #{encoder_forward.9} parent=27 // pred_check
        %p934 = pneg %p94
      $region37: #{encoder_forward.9} parent=27 // pred_check_branch
        %936 = sbr.rel (%p934) target = $region39
      $region38: #{encoder_forward.9} parent=27 // pred_region
        %s937 = smul.u32 8, %s20
      $region39: #{encoder_forward.9} parent=27 // pred_fallthru
        _
      // Predicated region
      $region40: #{encoder_forward.9} parent=27 // pred_check
        %p938 = pneg %p122
      $region41: #{encoder_forward.9} parent=27 // pred_check_branch
        %940 = sbr.rel (%p938) target = $region43
      $region42: #{encoder_forward.9} parent=27 // pred_region
        _
      $region43: #{encoder_forward.9} parent=27 // pred_fallthru
        _
    $region28: #{encoder_forward.9} parent=5 // pred_fallthru
      _
    %p941 = scmp.le.s32.totalorder 2, %s10
    // Predicated region
    $region44: #{encoder_forward.9} parent=5 // pred_check
      %p942 = pneg %p941
    $region45: #{encoder_forward.9} parent=5 // pred_check_branch
      %944 = sbr.rel (%p942) target = $region47
    $region46: #{encoder_forward.9} parent=5 // pred_region
      %s945 = ssub.s32 %s10, 2
      // Predicated region
      $region48: #{encoder_forward.9} parent=46 // pred_check
        %p946 = pneg %p100
      $region49: #{encoder_forward.9} parent=46 // pred_check_branch
        %948 = sbr.rel (%p946) target = $region51
      $region50: #{encoder_forward.9} parent=46 // pred_region
        %s949 = smul.u32 8, %s22
        %p950 = scmp.lt.s32.totalorder %s21, 1
        %s951 = scalar_select %p950, %s21, 1
        %p952 = scmp.lt.s32.totalorder %s949, 15
        %s953 = scalar_select %p952, %s949, 15
        %s954 = smul.addr %s953, 2
        %s955 = smul.addr %s951, 32
        %s956 = sadd.s32 %s954, %s955
        %s957 = smul.addr %s956, 8
        %s958 = scalar_lea.vmem %s2, %s957
      $region51: #{encoder_forward.9} parent=46 // pred_fallthru
        _
      // Predicated region
      $region52: #{encoder_forward.9} parent=46 // pred_check
        %p959 = pneg %p128
      $region53: #{encoder_forward.9} parent=46 // pred_check_branch
        %961 = sbr.rel (%p959) target = $region55
      $region54: #{encoder_forward.9} parent=46 // pred_region
        %p962 = scmp.lt.s32.totalorder %s21, 1
        %s963 = scalar_select %p962, %s21, 1
        %p964 = scmp.lt.s32.totalorder %s22, 1
        %s965 = scalar_select %p964, %s22, 1
        %s966 = smul.addr %s963, 2
        %s967 = sadd.s32 %s965, %s966
        %s968 = smul.addr %s967, 2
        %s969 = scalar_lea.vmem %s3, %s968
      $region55: #{encoder_forward.9} parent=46 // pred_fallthru
        _
    $region47: #{encoder_forward.9} parent=5 // pred_fallthru
      _
  $region6: #{encoder_forward.9} parent=0 // loop_footer
    %s14 = sadd.s32 1, %s10
  $region7: #{encoder_forward.9} parent=0 // loop_footer_branch
    %9 = sbr.rel target = $region3
  $region8: #{encoder_forward.9} parent=0 // loop_exit
    _

// kernel: encoder_forward.12
$region0: #{encoder_forward.12}
  #allocation0 [shape = 'u32[]', space=smem, size = 0x4, offset = 0x4, fixed_abs, tag = 'smem constant byte address 0x4 - core index']
  #allocation1 [shape = 'u32[144,128]{1,0:T(1,128)}', space=vmem, size = 0x12000, scoped, tag = 'internal scratch']
  %s0 = inlined_call_operand.vmem [shape: f32[2,8,8,64], index: 0, kind: input, shape index: {}]
  %s1 = inlined_call_operand.vmem [shape: f32[2,64], index: 1, kind: input, shape index: {}]
  %s2 = inlined_call_operand.vmem [shape: f32[1,64], index: 2, kind: input, shape index: {}]
  %s3 = inlined_call_operand.vmem [shape: f32[1,64], index: 3, kind: input, shape index: {}]
  %s4 = inlined_call_operand.vmem [shape: bf16[2,8,8,64], index: 4, kind: output, shape index: {}]
  %s5 = sld [smem:[#allocation0]]
  $region49: #{encoder_forward.12} parent=0
    _
  %s7 = ssub.s32 1, %s5
  %s8 = scalar_select 0, %s7, %s5
  loop: start=0, step=1, limit=4
  $region2: #{encoder_forward.12} parent=0 // loop_pre_header
    _
  $region3: #{encoder_forward.12} parent=0 // loop_header
    %s10 = sphi 0, %s14
    %p11 = scmp.ge.s32.totalorder %s10, 4
    %s17 = sphi 0, %s29
    %s18 = sphi 0, %s25
    %s19 = sphi 0, %s17
    %s20 = sphi 0, %s18
    %s21 = sphi 0, %s19
    %s22 = sphi 0, %s20
    %s34 = sphi 0, %s36
    %s37 = sphi 0, %s34
    %s38 = sphi 0, %s37
    %s54 = sphi 0, %s38
    %s58 = sphi 0, %s58
    %s60 = sphi 0, %s58
    %s61 = sphi 0, %s60
    %s75 = sphi 0, %s61
    %s79 = sphi 0, %s79
    %s81 = sphi 0, %s79
    %s82 = sphi 0, %s81
    %s96 = sphi 0, %s82
    %s100 = sphi 0, %s100
    %s102 = sphi 0, %s100
    %s103 = sphi 0, %s102
    %s117 = sphi 0, %s103
    %s125 = sphi 0, %s127
    %s128 = sphi 0, %s125
    %s129 = sphi 0, %s128
    %s145 = sphi 0, %s129
  $region4: #{encoder_forward.12} parent=0 // loop_header_branch
    %13 = sbr.rel (%p11) target = $region8
  $region5: #{encoder_forward.12} parent=0 // loop_body
    %s15 = ssub.s32 %s10, 1
    %s16 = ssub.s32 %s10, 2
    %s23 = sadd.s32 1, %s18
    %p24 = scmp.ge.s32.totalorder %s23, 1
    %s25 = scalar_select %p24, 0, %s23
    %s26 = sadd.s32 1, %s17
    %s27 = scalar_select %p24, %s26, %s17
    %p28 = scmp.ge.s32.totalorder %s27, 2
    %s29 = scalar_select %p28, 0, %s27
    %s30 = ssub.s32 %s17, %s29
    %s31 = ssub.s32 %s18, %s25
    %s32 = sor.u32 %s30, %s31
    %p33 = scmp.eq.s32.totalorder %s32, 0
    %s35 = sadd.s32 %s34, 1
    %s36 = scalar_select %p33, %s34, %s35
    %p39 = pneg %p33
    %p40 = scmp.eq.s32.totalorder %s10, 1
    %p41 = por %p39, %p40
    %p42 = scmp.ne.s32.totalorder %s34, %s37
    %p43 = scmp.eq.s32.totalorder %s10, 0
    %p44 = por %p42, %p43
    %p45 = scmp.ne.s32.totalorder %s34, %s37
    %p46 = scmp.eq.s32.totalorder %s15, 1
    %p47 = por %p45, %p46
    %p48 = scmp.ne.s32.totalorder %s37, %s38
    %p49 = scmp.eq.s32.totalorder %s15, 0
    %p50 = por %p48, %p49
    %p51 = scmp.ne.s32.totalorder %s37, %s38
    %p52 = scmp.eq.s32.totalorder %s16, 1
    %p53 = por %p51, %p52
    %p55 = scmp.ne.s32.totalorder %s38, %s54
    %p56 = scmp.eq.s32.totalorder %s16, 0
    %p57 = por %p55, %p56
    %s59 = sadd.s32 %s58, 1
    %p62 = scmp.eq.s32.totalorder %s10, 1
    %p63 = scmp.ne.s32.totalorder %s58, %s60
    %p64 = scmp.eq.s32.totalorder %s10, 0
    %p65 = por %p63, %p64
    %p66 = scmp.ne.s32.totalorder %s58, %s60
    %p67 = scmp.eq.s32.totalorder %s15, 1
    %p68 = por %p66, %p67
    %p69 = scmp.ne.s32.totalorder %s60, %s61
    %p70 = scmp.eq.s32.totalorder %s15, 0
    %p71 = por %p69, %p70
    %p72 = scmp.ne.s32.totalorder %s60, %s61
    %p73 = scmp.eq.s32.totalorder %s16, 1
    %p74 = por %p72, %p73
    %p76 = scmp.ne.s32.totalorder %s61, %s75
    %p77 = scmp.eq.s32.totalorder %s16, 0
    %p78 = por %p76, %p77
    %s80 = sadd.s32 %s79, 1
    %p83 = scmp.eq.s32.totalorder %s10, 1
    %p84 = scmp.ne.s32.totalorder %s79, %s81
    %p85 = scmp.eq.s32.totalorder %s10, 0
    %p86 = por %p84, %p85
    %p87 = scmp.ne.s32.totalorder %s79, %s81
    %p88 = scmp.eq.s32.totalorder %s15, 1
    %p89 = por %p87, %p88
    %p90 = scmp.ne.s32.totalorder %s81, %s82
    %p91 = scmp.eq.s32.totalorder %s15, 0
    %p92 = por %p90, %p91
    %p93 = scmp.ne.s32.totalorder %s81, %s82
    %p94 = scmp.eq.s32.totalorder %s16, 1
    %p95 = por %p93, %p94
    %p97 = scmp.ne.s32.totalorder %s82, %s96
    %p98 = scmp.eq.s32.totalorder %s16, 0
    %p99 = por %p97, %p98
    %s101 = sadd.s32 %s100, 1
    %p104 = scmp.eq.s32.totalorder %s10, 1
    %p105 = scmp.ne.s32.totalorder %s100, %s102
    %p106 = scmp.eq.s32.totalorder %s10, 0
    %p107 = por %p105, %p106
    %p108 = scmp.ne.s32.totalorder %s100, %s102
    %p109 = scmp.eq.s32.totalorder %s15, 1
    %p110 = por %p108, %p109
    %p111 = scmp.ne.s32.totalorder %s102, %s103
    %p112 = scmp.eq.s32.totalorder %s15, 0
    %p113 = por %p111, %p112
    %p114 = scmp.ne.s32.totalorder %s102, %s103
    %p115 = scmp.eq.s32.totalorder %s16, 1
    %p116 = por %p114, %p115
    %p118 = scmp.ne.s32.totalorder %s103, %s117
    %p119 = scmp.eq.s32.totalorder %s16, 0
    %p120 = por %p118, %p119
    %s121 = ssub.s32 %s17, %s29
    %s122 = ssub.s32 %s18, %s25
    %s123 = sor.u32 %s121, %s122
    %p124 = scmp.eq.s32.totalorder %s123, 0
    %s126 = sadd.s32 %s125, 1
    %s127 = scalar_select %p124, %s125, %s126
    %p130 = pneg %p124
    %p131 = scmp.eq.s32.totalorder %s10, 1
    %p132 = por %p130, %p131
    %p133 = scmp.ne.s32.totalorder %s125, %s128
    %p134 = scmp.eq.s32.totalorder %s10, 0
    %p135 = por %p133, %p134
    %p136 = scmp.ne.s32.totalorder %s125, %s128
    %p137 = scmp.eq.s32.totalorder %s15, 1
    %p138 = por %p136, %p137
    %p139 = scmp.ne.s32.totalorder %s128, %s129
    %p140 = scmp.eq.s32.totalorder %s15, 0
    %p141 = por %p139, %p140
    %p142 = scmp.ne.s32.totalorder %s128, %s129
    %p143 = scmp.eq.s32.totalorder %s16, 1
    %p144 = por %p142, %p143
    %p146 = scmp.ne.s32.totalorder %s129, %s145
    %p147 = scmp.eq.s32.totalorder %s16, 0
    %p148 = por %p146, %p147
    %p149 = scmp.le.s32.totalorder 1, %s10
    %p150 = scmp.lt.s32.totalorder %s10, 3
    %p151 = pnand %p149, %p150
    %p152 = pneg %p151
    // Predicated region
    $region9: #{encoder_forward.12} parent=5 // pred_check
      _
    $region10: #{encoder_forward.12} parent=5 // pred_check_branch
      %154 = sbr.rel (%p151) target = $region12
    $region11: #{encoder_forward.12} parent=5 // pred_region
      %s155 = ssub.s32 %s10, 1
      // Predicated region
      $region13: #{encoder_forward.12} parent=11 // pred_check
        %p156 = pneg %p71
      $region14: #{encoder_forward.12} parent=11 // pred_check_branch
        %158 = sbr.rel (%p156) target = $region16
      $region15: #{encoder_forward.12} parent=11 // pred_region
        _
      $region16: #{encoder_forward.12} parent=11 // pred_fallthru
        _
      // Predicated region
      $region17: #{encoder_forward.12} parent=11 // pred_check
        %p159 = pneg %p92
      $region18: #{encoder_forward.12} parent=11 // pred_check_branch
        %161 = sbr.rel (%p159) target = $region20
      $region19: #{encoder_forward.12} parent=11 // pred_region
        _
      $region20: #{encoder_forward.12} parent=11 // pred_fallthru
        _
      // Predicated region
      $region21: #{encoder_forward.12} parent=11 // pred_check
        %p162 = pneg %p113
      $region22: #{encoder_forward.12} parent=11 // pred_check_branch
        %164 = sbr.rel (%p162) target = $region24
      $region23: #{encoder_forward.12} parent=11 // pred_region
        _
      $region24: #{encoder_forward.12} parent=11 // pred_fallthru
        _
    $region12: #{encoder_forward.12} parent=5 // pred_fallthru
      _
    %p165 = scmp.lt.s32.totalorder %s10, 2
    // Predicated region
    $region25: #{encoder_forward.12} parent=5 // pred_check
      %p166 = pneg %p165
    $region26: #{encoder_forward.12} parent=5 // pred_check_branch
      %168 = sbr.rel (%p166) target = $region28
    $region27: #{encoder_forward.12} parent=5 // pred_region
      // Predicated region
      $region29: #{encoder_forward.12} parent=27 // pred_check
        %p169 = pneg %p44
      $region30: #{encoder_forward.12} parent=27 // pred_check_branch
        %171 = sbr.rel (%p169) target = $region32
      $region31: #{encoder_forward.12} parent=27 // pred_region
        %s172 = smul.u32 8, %s18
        %p173 = scmp.lt.s32.totalorder %s17, 1
        %s174 = scalar_select %p173, %s17, 1
        %p175 = scmp.lt.s32.totalorder %s172, 7
        %s176 = scalar_select %p175, %s172, 7
        %s177 = smul.addr %s174, 8
        %s178 = sadd.s32 %s176, %s177
        %s179 = smul.addr %s178, 8
        %s180 = scalar_lea.vmem %s0, %s179
        %s181 = smul.u32 8, %s18
      $region32: #{encoder_forward.12} parent=27 // pred_fallthru
        _
    $region28: #{encoder_forward.12} parent=5 // pred_fallthru
      _
    %p182 = scmp.le.s32.totalorder 1, %s10
    %p183 = scmp.lt.s32.totalorder %s10, 3
    %p184 = pnand %p182, %p183
    %p185 = pneg %p184
    // Predicated region
    $region33: #{encoder_forward.12} parent=5 // pred_check
      _
    $region34: #{encoder_forward.12} parent=5 // pred_check_branch
      %187 = sbr.rel (%p184) target = $region36
    $region35: #{encoder_forward.12} parent=5 // pred_region
      %s188 = ssub.s32 %s10, 1
      %s189 = smul.u32 8, %s20
      %p190 = scmp.lt.s32.totalorder %s19, 1
      %s191 = scalar_select %p190, %s19, 1
      %p192 = scmp.lt.s32.totalorder %s189, 7
      %s193 = scalar_select %p192, %s189, 7
      %s194 = smul.addr %s191, 8
      %s195 = sadd.s32 %s193, %s194
      %s196 = smul.addr %s195, 8
      %s197 = scalar_lea.vmem %s0, %s196
      %p198 = pneg %p50
      %p199 = pneg %p47
      %p200 = pneg %p71
      %p201 = pneg %p68
      %p202 = pneg %p92
      %p203 = pneg %p89
      %p204 = pneg %p113
      %p205 = pneg %p110
      %p206 = pneg %p141
      %p207 = pneg %p138
      %s208 = smul.u32 8, %s20
      %p209 = scmp.lt.s32.totalorder %s19, 1
      %s210 = scalar_select %p209, %s19, 1
      %p211 = scmp.lt.s32.totalorder %s208, 7
      %s212 = scalar_select %p211, %s208, 7
      %s213 = smul.addr %s210, 8
      %s214 = sadd.s32 %s212, %s213
      %s215 = smul.addr %s214, 4
      %s216 = scalar_lea.vmem %s4, %s215
      %s217 = smul.u32 8, %s20
      %p218 = scmp.lt.s32.totalorder %s19, 1
      %s219 = scalar_select %p218, %s19, 1
      %p220 = scmp.lt.s32.totalorder %s217, 7
      %s221 = scalar_select %p220, %s217, 7
      %s222 = smul.addr %s219, 8
      %s223 = sadd.s32 %s221, %s222
      %s224 = smul.addr %s223, 8
      %s225 = scalar_lea.vmem %s0, %s224
      %s226 = smul.u32 8, %s20
      %s227 = smul.u32 8, %s20
      %p228 = scmp.lt.s32.totalorder %s19, 1
      %s229 = scalar_select %p228, %s19, 1
      %p230 = scmp.lt.s32.totalorder %s227, 7
      %s231 = scalar_select %p230, %s227, 7
      %s232 = smul.addr %s229, 8
      %s233 = sadd.s32 %s231, %s232
      %s234 = smul.addr %s233, 4
      %s235 = scalar_lea.vmem %s4, %s234
      %s236 = smul.u32 8, %s20
      %v237 = vld [vmem:[%s1] sm:$0x3]
      %v238 = vmul.f32 %v237, 0.0078125
      %v239 = vmul.f32 %v238, %v238
      %v241 = vrot.slane %v239, 7
      %v243 = vsub.f32 %v238, %v241
      %v244 = vld [vmem:[%s2] sm:$0x1]
      %v245 = vadd.f32 %v243, 1e-05
      %v246 = vrsqrt.pop %v245
      %v249 = vunpack.c.l.s4 1966171168
      %v250 = vunpack.c.0.s8 %v249
      %v251 = vlaneseq
      %v252 = vshrl.u32 %v251, 7
      %v253 = vsub.s32 %v250, %v252
      %v254 = vrot.slane %v246, %v253
      %v255 = vcombine.high %v254, %v254
      %v257 = vunpack.c.l.s4 1966171168
      %v258 = vunpack.c.0.s8 %v257
      %v259 = vlaneseq
      %v260 = vshrl.u32 %v259, 7
      %v261 = vsub.s32 %v258, %v260
      %v262 = vrot.slane %v255, %v261
      %v264 = vmul.f32 %v244, %v262
      %v265 = vld [vmem:[%s3] sm:$0x1]
      %v266 = vmul.f32 %v238, %v264
      %v267 = vsub.f32 %v265, %v266
      %v268 = vld [vmem:[%s225] sm:$0xff]
      %v269 = vld [vmem:[%s225 + $0x8] sm:$0xff]
      %v270 = vld [vmem:[%s225 + $0x10] sm:$0xff]
      %v271 = vld [vmem:[%s225 + $0x18] sm:$0xff]
      %v272 = vld [vmem:[%s225 + $0x20] sm:$0xff]
      %v273 = vld [vmem:[%s225 + $0x28] sm:$0xff]
      %v274 = vld [vmem:[%s225 + $0x30] sm:$0xff]
      %v275 = vld [vmem:[%s225 + $0x38] sm:$0xff]
      %v277 = vlaneseq
      %v278 = vshrl.u32 %v277, 7
      %v279 = vsub.s32 0, %v278
      %v280 = vrot.slane %v264, %v279
      %v282 = vmul.f32 %v268, %v280
      %v283 = vmul.f32 %v269, %v280
      %v284 = vmul.f32 %v270, %v280
      %v285 = vmul.f32 %v271, %v280
      %v286 = vmul.f32 %v272, %v280
      %v287 = vmul.f32 %v273, %v280
      %v288 = vmul.f32 %v274, %v280
      %v289 = vmul.f32 %v275, %v280
      %v291 = vlaneseq
      %v292 = vshrl.u32 %v291, 7
      %v293 = vsub.s32 0, %v292
      %v294 = vrot.slane %v267, %v293
      %v296 = vadd.f32 %v282, %v294
      %v297 = vadd.f32 %v283, %v294
      %v298 = vadd.f32 %v284, %v294
      %v299 = vadd.f32 %v285, %v294
      %v300 = vadd.f32 %v286, %v294
      %v301 = vadd.f32 %v287, %v294
      %v302 = vadd.f32 %v288, %v294
      %v303 = vadd.f32 %v289, %v294
      %v304 = vmax.f32 %v296, 0.0
      %v305 = vmax.f32 %v297, 0.0
      %v306 = vmax.f32 %v298, 0.0
      %v307 = vmax.f32 %v299, 0.0
      %v308 = vmax.f32 %v300, 0.0
      %v309 = vmax.f32 %v301, 0.0
      %v310 = vmax.f32 %v302, 0.0
      %v311 = vmax.f32 %v303, 0.0
      %v312 = vpack.c.bf16 %v304, %v304
      %v313 = vpack.c.bf16 %v305, %v305
      %v314 = vpack.c.bf16 %v306, %v306
      %v315 = vpack.c.bf16 %v307, %v307
      %v316 = vpack.c.bf16 %v308, %v308
      %v317 = vpack.c.bf16 %v309, %v309
      %v318 = vpack.c.bf16 %v310, %v310
      %v319 = vpack.c.bf16 %v311, %v311
      %vm320 = vcmask 519168
      %321 = vst.msk [vmem:[%s235] sm:$0xf] %vm320, %v312
      %322 = vst.msk [vmem:[%s235 + $0x4] sm:$0xf] %vm320, %v313
      %323 = vst.msk [vmem:[%s235 + $0x8] sm:$0xf] %vm320, %v314
      %324 = vst.msk [vmem:[%s235 + $0xc] sm:$0xf] %vm320, %v315
      %325 = vst.msk [vmem:[%s235 + $0x10] sm:$0xf] %vm320, %v316
      %326 = vst.msk [vmem:[%s235 + $0x14] sm:$0xf] %vm320, %v317
      %327 = vst.msk [vmem:[%s235 + $0x18] sm:$0xf] %vm320, %v318
      %328 = vst.msk [vmem:[%s235 + $0x1c] sm:$0xf] %vm320, %v319
      %s329 = smul.u32 8, %s20
      %p330 = scmp.lt.s32.totalorder %s19, 1
      %s331 = scalar_select %p330, %s19, 1
      %p332 = scmp.lt.s32.totalorder %s329, 7
      %s333 = scalar_select %p332, %s329, 7
      %s334 = smul.addr %s331, 8
      %s335 = sadd.s32 %s333, %s334
      %s336 = smul.addr %s335, 4
      %s337 = scalar_lea.vmem %s4, %s336
      // Predicated region
      $region37: #{encoder_forward.12} parent=35 // pred_check
        %p338 = pneg %p138
      $region38: #{encoder_forward.12} parent=35 // pred_check_branch
        %340 = sbr.rel (%p338) target = $region40
      $region39: #{encoder_forward.12} parent=35 // pred_region
        %s341 = smul.u32 8, %s20
      $region40: #{encoder_forward.12} parent=35 // pred_fallthru
        _
    $region36: #{encoder_forward.12} parent=5 // pred_fallthru
      _
    %p342 = scmp.le.s32.totalorder 2, %s10
    // Predicated region
    $region41: #{encoder_forward.12} parent=5 // pred_check
      %p343 = pneg %p342
    $region42: #{encoder_forward.12} parent=5 // pred_check_branch
      %345 = sbr.rel (%p343) target = $region44
    $region43: #{encoder_forward.12} parent=5 // pred_region
      %s346 = ssub.s32 %s10, 2
      // Predicated region
      $region45: #{encoder_forward.12} parent=43 // pred_check
        %p347 = pneg %p144
      $region46: #{encoder_forward.12} parent=43 // pred_check_branch
        %349 = sbr.rel (%p347) target = $region48
      $region47: #{encoder_forward.12} parent=43 // pred_region
        %s350 = smul.u32 8, %s22
        %p351 = scmp.lt.s32.totalorder %s21, 1
        %s352 = scalar_select %p351, %s21, 1
        %p353 = scmp.lt.s32.totalorder %s350, 7
        %s354 = scalar_select %p353, %s350, 7
        %s355 = smul.addr %s352, 8
        %s356 = sadd.s32 %s354, %s355
        %s357 = smul.addr %s356, 4
        %s358 = scalar_lea.vmem %s4, %s357
      $region48: #{encoder_forward.12} parent=43 // pred_fallthru
        _
    $region44: #{encoder_forward.12} parent=5 // pred_fallthru
      _
  $region6: #{encoder_forward.12} parent=0 // loop_footer
    %s14 = sadd.s32 1, %s10
  $region7: #{encoder_forward.12} parent=0 // loop_footer_branch
    %9 = sbr.rel target = $region3
  $region8: #{encoder_forward.12} parent=0 // loop_exit
    _

// kernel: encoder_forward.11
$region0: #{encoder_forward.11}
  #allocation0 [shape = 'u32[]', space=smem, size = 0x4, offset = 0x4, fixed_abs, tag = 'smem constant byte address 0x4 - core index']
  #allocation1 [shape = 'u32[144,128]{1,0:T(1,128)}', space=vmem, size = 0x12000, scoped, tag = 'internal scratch']
  %s0 = inlined_call_operand.vmem [shape: bf16[2,18,9,32], index: 0, kind: input, shape index: {}]
  %s1 = inlined_call_operand.vmem [shape: bf16[2,18,9,32], index: 1, kind: input, shape index: {}]
  %s2 = inlined_call_operand.vmem [shape: bf16[9,32,64], index: 2, kind: input, shape index: {}]
  %s3 = inlined_call_operand.vmem [shape: f32[2,8,8,64], index: 3, kind: output, shape index: {0}]
  %s4 = inlined_call_operand.vmem [shape: f32[2,1,2,64], index: 4, kind: output, shape index: {1}]
  %5 = xla_tuple %s3, %s4
  %s6 = sld [smem:[#allocation0]]
  $region60: #{encoder_forward.11} parent=0
    _
  %s8 = ssub.s32 1, %s6
  %s9 = scalar_select 0, %s8, %s6
  loop: start=0, step=1, limit=4
  $region2: #{encoder_forward.11} parent=0 // loop_pre_header
    _
  $region3: #{encoder_forward.11} parent=0 // loop_header
    %s11 = sphi 0, %s15
    %p12 = scmp.ge.s32.totalorder %s11, 4
    %s18 = sphi 0, %s30
    %s19 = sphi 0, %s26
    %s20 = sphi 0, %s18
    %s21 = sphi 0, %s19
    %s22 = sphi 0, %s20
    %s23 = sphi 0, %s21
    %s33 = sphi 0, %s35
    %s36 = sphi 0, %s33
    %s37 = sphi 0, %s36
    %s53 = sphi 0, %s37
    %s59 = sphi 0, %s61
    %s62 = sphi 0, %s59
    %s63 = sphi 0, %s62
    %s79 = sphi 0, %s63
    %s83 = sphi 0, %s83
    %s85 = sphi 0, %s83
    %s86 = sphi 0, %s85
    %s100 = sphi 0, %s86
    %s108 = sphi 0, %s110
    %s111 = sphi 0, %s108
    %s112 = sphi 0, %s111
    %s128 = sphi 0, %s112
    %s136 = sphi 0, %s138
    %s139 = sphi 0, %s136
    %s140 = sphi 0, %s139
    %s156 = sphi 0, %s140
  $region4: #{encoder_forward.11} parent=0 // loop_header_branch
    %14 = sbr.rel (%p12) target = $region8
  $region5: #{encoder_forward.11} parent=0 // loop_body
    %s16 = ssub.s32 %s11, 1
    %s17 = ssub.s32 %s11, 2
    %s24 = sadd.s32 1, %s19
    %p25 = scmp.ge.s32.totalorder %s24, 1
    %s26 = scalar_select %p25, 0, %s24
    %s27 = sadd.s32 1, %s18
    %s28 = scalar_select %p25, %s27, %s18
    %p29 = scmp.ge.s32.totalorder %s28, 2
    %s30 = scalar_select %p29, 0, %s28
    %s31 = ssub.s32 %s18, %s30
    %p32 = scmp.eq.s32.totalorder %s31, 0
    %s34 = sadd.s32 %s33, 1
    %s35 = scalar_select %p32, %s33, %s34
    %p38 = pneg %p32
    %p39 = scmp.eq.s32.totalorder %s11, 1
    %p40 = por %p38, %p39
    %p41 = scmp.ne.s32.totalorder %s33, %s36
    %p42 = scmp.eq.s32.totalorder %s11, 0
    %p43 = por %p41, %p42
    %p44 = scmp.ne.s32.totalorder %s33, %s36
    %p45 = scmp.eq.s32.totalorder %s16, 1
    %p46 = por %p44, %p45
    %p47 = scmp.ne.s32.totalorder %s36, %s37
    %p48 = scmp.eq.s32.totalorder %s16, 0
    %p49 = por %p47, %p48
    %p50 = scmp.ne.s32.totalorder %s36, %s37
    %p51 = scmp.eq.s32.totalorder %s17, 1
    %p52 = por %p50, %p51
    %p54 = scmp.ne.s32.totalorder %s37, %s53
    %p55 = scmp.eq.s32.totalorder %s17, 0
    %p56 = por %p54, %p55
    %s57 = ssub.s32 %s18, %s30
    %p58 = scmp.eq.s32.totalorder %s57, 0
    %s60 = sadd.s32 %s59, 1
    %s61 = scalar_select %p58, %s59, %s60
    %p64 = pneg %p58
    %p65 = scmp.eq.s32.totalorder %s11, 1
    %p66 = por %p64, %p65
    %p67 = scmp.ne.s32.totalorder %s59, %s62
    %p68 = scmp.eq.s32.totalorder %s11, 0
    %p69 = por %p67, %p68
    %p70 = scmp.ne.s32.totalorder %s59, %s62
    %p71 = scmp.eq.s32.totalorder %s16, 1
    %p72 = por %p70, %p71
    %p73 = scmp.ne.s32.totalorder %s62, %s63
    %p74 = scmp.eq.s32.totalorder %s16, 0
    %p75 = por %p73, %p74
    %p76 = scmp.ne.s32.totalorder %s62, %s63
    %p77 = scmp.eq.s32.totalorder %s17, 1
    %p78 = por %p76, %p77
    %p80 = scmp.ne.s32.totalorder %s63, %s79
    %p81 = scmp.eq.s32.totalorder %s17, 0
    %p82 = por %p80, %p81
    %s84 = sadd.s32 %s83, 1
    %p87 = scmp.eq.s32.totalorder %s11, 1
    %p88 = scmp.ne.s32.totalorder %s83, %s85
    %p89 = scmp.eq.s32.totalorder %s11, 0
    %p90 = por %p88, %p89
    %p91 = scmp.ne.s32.totalorder %s83, %s85
    %p92 = scmp.eq.s32.totalorder %s16, 1
    %p93 = por %p91, %p92
    %p94 = scmp.ne.s32.totalorder %s85, %s86
    %p95 = scmp.eq.s32.totalorder %s16, 0
    %p96 = por %p94, %p95
    %p97 = scmp.ne.s32.totalorder %s85, %s86
    %p98 = scmp.eq.s32.totalorder %s17, 1
    %p99 = por %p97, %p98
    %p101 = scmp.ne.s32.totalorder %s86, %s100
    %p102 = scmp.eq.s32.totalorder %s17, 0
    %p103 = por %p101, %p102
    %s104 = ssub.s32 %s18, %s30
    %s105 = ssub.s32 %s19, %s26
    %s106 = sor.u32 %s104, %s105
    %p107 = scmp.eq.s32.totalorder %s106, 0
    %s109 = sadd.s32 %s108, 1
    %s110 = scalar_select %p107, %s108, %s109
    %p113 = pneg %p107
    %p114 = scmp.eq.s32.totalorder %s11, 1
    %p115 = por %p113, %p114
    %p116 = scmp.ne.s32.totalorder %s108, %s111
    %p117 = scmp.eq.s32.totalorder %s11, 0
    %p118 = por %p116, %p117
    %p119 = scmp.ne.s32.totalorder %s108, %s111
    %p120 = scmp.eq.s32.totalorder %s16, 1
    %p121 = por %p119, %p120
    %p122 = scmp.ne.s32.totalorder %s111, %s112
    %p123 = scmp.eq.s32.totalorder %s16, 0
    %p124 = por %p122, %p123
    %p125 = scmp.ne.s32.totalorder %s111, %s112
    %p126 = scmp.eq.s32.totalorder %s17, 1
    %p127 = por %p125, %p126
    %p129 = scmp.ne.s32.totalorder %s112, %s128
    %p130 = scmp.eq.s32.totalorder %s17, 0
    %p131 = por %p129, %p130
    %s132 = ssub.s32 %s18, %s30
    %s133 = ssub.s32 %s19, %s26
    %s134 = sor.u32 %s132, %s133
    %p135 = scmp.eq.s32.totalorder %s134, 0
    %s137 = sadd.s32 %s136, 1
    %s138 = scalar_select %p135, %s136, %s137
    %p141 = pneg %p135
    %p142 = scmp.eq.s32.totalorder %s11, 1
    %p143 = por %p141, %p142
    %p144 = scmp.ne.s32.totalorder %s136, %s139
    %p145 = scmp.eq.s32.totalorder %s11, 0
    %p146 = por %p144, %p145
    %p147 = scmp.ne.s32.totalorder %s136, %s139
    %p148 = scmp.eq.s32.totalorder %s16, 1
    %p149 = por %p147, %p148
    %p150 = scmp.ne.s32.totalorder %s139, %s140
    %p151 = scmp.eq.s32.totalorder %s16, 0
    %p152 = por %p150, %p151
    %p153 = scmp.ne.s32.totalorder %s139, %s140
    %p154 = scmp.eq.s32.totalorder %s17, 1
    %p155 = por %p153, %p154
    %p157 = scmp.ne.s32.totalorder %s140, %s156
    %p158 = scmp.eq.s32.totalorder %s17, 0
    %p159 = por %p157, %p158
    %p160 = scmp.le.s32.totalorder 1, %s11
    %p161 = scmp.lt.s32.totalorder %s11, 3
    %p162 = pnand %p160, %p161
    %p163 = pneg %p162
    // Predicated region
    $region9: #{encoder_forward.11} parent=5 // pred_check
      _
    $region10: #{encoder_forward.11} parent=5 // pred_check_branch
      %165 = sbr.rel (%p162) target = $region12
    $region11: #{encoder_forward.11} parent=5 // pred_region
      %s166 = ssub.s32 %s11, 1
      // Predicated region
      $region13: #{encoder_forward.11} parent=11 // pred_check
        %p167 = pneg %p96
      $region14: #{encoder_forward.11} parent=11 // pred_check_branch
        %169 = sbr.rel (%p167) target = $region16
      $region15: #{encoder_forward.11} parent=11 // pred_region
        _
      $region16: #{encoder_forward.11} parent=11 // pred_fallthru
        _
    $region12: #{encoder_forward.11} parent=5 // pred_fallthru
      _
    %p170 = scmp.lt.s32.totalorder %s11, 2
    // Predicated region
    $region17: #{encoder_forward.11} parent=5 // pred_check
      %p171 = pneg %p170
    $region18: #{encoder_forward.11} parent=5 // pred_check_branch
      %173 = sbr.rel (%p171) target = $region20
    $region19: #{encoder_forward.11} parent=5 // pred_region
      // Predicated region
      $region21: #{encoder_forward.11} parent=19 // pred_check
        %p174 = pneg %p43
      $region22: #{encoder_forward.11} parent=19 // pred_check_branch
        %176 = sbr.rel (%p174) target = $region24
      $region23: #{encoder_forward.11} parent=19 // pred_region
        %p177 = scmp.lt.s32.totalorder %s18, 1
        %s178 = scalar_select %p177, %s18, 1
        %s179 = smul.addr %s178, 36
        %s180 = smul.addr %s179, 4
        %s181 = scalar_lea.vmem %s0, %s180
      $region24: #{encoder_forward.11} parent=19 // pred_fallthru
        _
      // Predicated region
      $region25: #{encoder_forward.11} parent=19 // pred_check
        %p182 = pneg %p69
      $region26: #{encoder_forward.11} parent=19 // pred_check_branch
        %184 = sbr.rel (%p182) target = $region28
      $region27: #{encoder_forward.11} parent=19 // pred_region
        %p185 = scmp.lt.s32.totalorder %s18, 1
        %s186 = scalar_select %p185, %s18, 1
        %s187 = smul.addr %s186, 36
        %s188 = smul.addr %s187, 4
        %s189 = scalar_lea.vmem %s1, %s188
      $region28: #{encoder_forward.11} parent=19 // pred_fallthru
        _
    $region20: #{encoder_forward.11} parent=5 // pred_fallthru
      _
    %p190 = scmp.le.s32.totalorder 1, %s11
    %p191 = scmp.lt.s32.totalorder %s11, 3
    %p192 = pnand %p190, %p191
    %p193 = pneg %p192
    // Predicated region
    $region29: #{encoder_forward.11} parent=5 // pred_check
      _
    $region30: #{encoder_forward.11} parent=5 // pred_check_branch
      %195 = sbr.rel (%p192) target = $region32
    $region31: #{encoder_forward.11} parent=5 // pred_region
      %s196 = ssub.s32 %s11, 1
      %p197 = scmp.lt.s32.totalorder %s20, 1
      %s198 = scalar_select %p197, %s20, 1
      %s199 = smul.addr %s198, 36
      %s200 = smul.addr %s199, 4
      %s201 = scalar_lea.vmem %s0, %s200
      %p202 = pneg %p49
      %p203 = pneg %p46
      %p204 = scmp.lt.s32.totalorder %s20, 1
      %s205 = scalar_select %p204, %s20, 1
      %s206 = smul.addr %s205, 36
      %s207 = smul.addr %s206, 4
      %s208 = scalar_lea.vmem %s1, %s207
      %p209 = pneg %p75
      %p210 = pneg %p72
      %p211 = pneg %p96
      %p212 = pneg %p93
      %p213 = pneg %p124
      %p214 = pneg %p121
      %s215 = smul.u32 8, %s21
      %p216 = scmp.lt.s32.totalorder %s20, 1
      %s217 = scalar_select %p216, %s20, 1
      %p218 = scmp.lt.s32.totalorder %s215, 7
      %s219 = scalar_select %p218, %s215, 7
      %s220 = smul.addr %s217, 8
      %s221 = sadd.s32 %s219, %s220
      %s222 = smul.addr %s221, 8
      %s223 = scalar_lea.vmem %s3, %s222
      %p224 = pneg %p152
      %p225 = pneg %p149
      %p226 = scmp.lt.s32.totalorder %s20, 1
      %s227 = scalar_select %p226, %s20, 1
      %p228 = scmp.lt.s32.totalorder %s21, 0
      %s229 = scalar_select %p228, %s21, 0
      %s230 = sadd.s32 %s229, %s227
      %s231 = smul.addr %s230, 2
      %s232 = scalar_lea.vmem %s4, %s231
      %p233 = scmp.lt.s32.totalorder %s20, 1
      %s234 = scalar_select %p233, %s20, 1
      %s235 = smul.addr %s234, 36
      %s236 = smul.addr %s235, 4
      %s237 = scalar_lea.vmem %s0, %s236
      %p238 = scmp.lt.s32.totalorder %s20, 1
      %s239 = scalar_select %p238, %s20, 1
      %s240 = smul.addr %s239, 36
      %s241 = smul.addr %s240, 4
      %s242 = scalar_lea.vmem %s1, %s241
      %s243 = smul.u32 8, %s21
      %p244 = scmp.lt.s32.totalorder %s20, 1
      %s245 = scalar_select %p244, %s20, 1
      %p246 = scmp.lt.s32.totalorder %s243, 7
      %s247 = scalar_select %p246, %s243, 7
      %s248 = smul.addr %s245, 8
      %s249 = sadd.s32 %s247, %s248
      %s250 = smul.addr %s249, 8
      %s251 = scalar_lea.vmem %s3, %s250
      %s252 = smul.u32 8, %s21
      %p253 = scmp.lt.s32.totalorder %s20, 1
      %s254 = scalar_select %p253, %s20, 1
      %p255 = scmp.lt.s32.totalorder %s21, 0
      %s256 = scalar_select %p255, %s21, 0
      %s257 = sadd.s32 %s256, %s254
      %s258 = smul.addr %s257, 2
      %s259 = scalar_lea.vmem %s4, %s258
      %s261 = smul.u32 %s21, 8
      loop: start=0, step=1, limit=8
      $region33: #{encoder_forward.11} parent=31 // loop_pre_header
        _
      $region34: #{encoder_forward.11} parent=31 // loop_header
        %s263 = sphi 0, %s267
        %p264 = scmp.ge.s32.totalorder %s263, 8
      $region35: #{encoder_forward.11} parent=31 // loop_header_branch
        %266 = sbr.rel (%p264) target = $region39
      $region36: #{encoder_forward.11} parent=31 // loop_body
        %s268 = sadd.s32 %s261, %s263
        %s269 = smul.u32 %s268, 2
        %s270 = smul.u32 %s269, 2
        %s271 = smul.addr %s270, 4
        %s272 = scalar_lea.vmem %s237, %s271
        %v273 = vld [vmem:[%s272] sm:$0xf]
        %v274 = vld [vmem:[%s2] sm:$0xf]
        %v275 = vld [vmem:[%s2 + $0x4] sm:$0xf]
        %v276 = vld [vmem:[%s2 + $0x8] sm:$0xf]
        %v277 = vld [vmem:[%s2 + $0xc] sm:$0xf]
        %s278 = smul.addr %s270, 4
        %s279 = scalar_lea.vmem %s242, %s278
        %v280 = vld [vmem:[%s279] sm:$0xf]
        %s281 = scalar_lea.vmem %s2, 16
        %v282 = vld [vmem:[%s281] sm:$0xf]
        %v283 = vld [vmem:[%s281 + $0x4] sm:$0xf]
        %v284 = vld [vmem:[%s281 + $0x8] sm:$0xf]
        %v285 = vld [vmem:[%s281 + $0xc] sm:$0xf]
        %v290 = vunpack.c.l.b16 %v282
        %v291 = vunpack.c.l.b16 %v283
        %v292 = vunpack.c.l.b16 %v284
        %v293 = vunpack.c.l.b16 %v285
        %v294 = vpack.c.b16 %v291, %v290
        %v295 = vpack.c.b16 %v293, %v292
        %vm298 = vcmask 261120
        %v300 = vsel %vm298, %v280, 0
        %302 = vmatprep.subr.bf16.mxu0 0
        %303 = vmatpush1.bf16.msra.mxu0 %v294
        %304 = vmatprep.subr.bf16.mxu0 0
        %305 = vmatpush1.bf16.msra.mxu0 %v295
        %306 = vmatprep.subr.bf16.mxu0 0
        %307 = vmatpush1.bf16.msra.mxu0 0
        %308 = vmatprep.subr.bf16.mxu0 0
        %309 = vmatpush1.bf16.msra.mxu0 0
        %310 = vmatprep.subr.bf16.mxu0 0
        %311 = vmatpush1.bf16.msra.mxu0 0
        %312 = vmatprep.subr.bf16.mxu0 0
        %313 = vmatpush1.bf16.msra.mxu0 0
        %314 = vmatprep.subr.bf16.mxu0 0
        %315 = vmatpush1.bf16.msra.mxu0 0
        %316 = vmatprep.subr.bf16.mxu0 0
        %317 = vmatpush1.bf16.msra.mxu0 0
        %318 = vmatprep.subr.bf16.mxu0 0
        %319 = vmatpush1.bf16.msra.mxu0 0
        %320 = vmatprep.subr.bf16.mxu0 0
        %321 = vmatpush1.bf16.msra.mxu0 0
        %322 = vmatprep.subr.bf16.mxu0 0
        %323 = vmatpush1.bf16.msra.mxu0 0
        %324 = vmatprep.subr.bf16.mxu0 0
        %325 = vmatpush1.bf16.msra.mxu0 0
        %326 = vmatprep.subr.bf16.mxu0 0
        %327 = vmatpush1.bf16.msra.mxu0 0
        %328 = vmatprep.subr.bf16.mxu0 0
        %329 = vmatpush1.bf16.msra.mxu0 0
        %330 = vmatprep.subr.bf16.mxu0 0
        %331 = vmatpush1.bf16.msra.mxu0 0
        %332 = vmatprep.subr.bf16.mxu0 0
        %333 = vmatpush1.bf16.msra.mxu0 0
        %334 = vmatprep.mubr.bf16.mxu0 0
        %335 = vmatmul.mubr.bf16.gmra.mrb[0].mxu0 %v300
        %v336 = vpop.f32.mrb[0].mxu0
        %v337 = vadd.f32 0.0, %v336
        %v338 = vpop.f32.mrb[0].mxu0
        %v339 = vpop.f32.mrb[0].mxu0
        %v340 = vpop.f32.mrb[0].mxu0
        %341 = vdwg.mxu0
        %v346 = vunpack.c.l.b16 %v274
        %v347 = vunpack.c.l.b16 %v275
        %v348 = vunpack.c.l.b16 %v276
        %v349 = vunpack.c.l.b16 %v277
        %v350 = vpack.c.b16 %v347, %v346
        %v351 = vpack.c.b16 %v349, %v348
        %v355 = vsel %vm298, %v273, 0
        %357 = vmatprep.subr.bf16.mxu0 0
        %358 = vmatpush1.bf16.msra.mxu0 %v350
        %359 = vmatprep.subr.bf16.mxu0 0
        %360 = vmatpush1.bf16.msra.mxu0 %v351
        %361 = vmatprep.subr.bf16.mxu0 0
        %362 = vmatpush1.bf16.msra.mxu0 0
        %363 = vmatprep.subr.bf16.mxu0 0
        %364 = vmatpush1.bf16.msra.mxu0 0
        %365 = vmatprep.subr.bf16.mxu0 0
        %366 = vmatpush1.bf16.msra.mxu0 0
        %367 = vmatprep.subr.bf16.mxu0 0
        %368 = vmatpush1.bf16.msra.mxu0 0
        %369 = vmatprep.subr.bf16.mxu0 0
        %370 = vmatpush1.bf16.msra.mxu0 0
        %371 = vmatprep.subr.bf16.mxu0 0
        %372 = vmatpush1.bf16.msra.mxu0 0
        %373 = vmatprep.subr.bf16.mxu0 0
        %374 = vmatpush1.bf16.msra.mxu0 0
        %375 = vmatprep.subr.bf16.mxu0 0
        %376 = vmatpush1.bf16.msra.mxu0 0
        %377 = vmatprep.subr.bf16.mxu0 0
        %378 = vmatpush1.bf16.msra.mxu0 0
        %379 = vmatprep.subr.bf16.mxu0 0
        %380 = vmatpush1.bf16.msra.mxu0 0
        %381 = vmatprep.subr.bf16.mxu0 0
        %382 = vmatpush1.bf16.msra.mxu0 0
        %383 = vmatprep.subr.bf16.mxu0 0
        %384 = vmatpush1.bf16.msra.mxu0 0
        %385 = vmatprep.subr.bf16.mxu0 0
        %386 = vmatpush1.bf16.msra.mxu0 0
        %387 = vmatprep.subr.bf16.mxu0 0
        %388 = vmatpush1.bf16.msra.mxu0 0
        %389 = vmatprep.mubr.bf16.mxu0 0
        %390 = vmatmul.mubr.bf16.gmra.mrb[0].mxu0 %v355
        %v391 = vpop.f32.mrb[0].mxu0
        %v392 = vadd.f32 %v337, %v391
        %v393 = vpop.f32.mrb[0].mxu0
        %v394 = vpop.f32.mrb[0].mxu0
        %v395 = vpop.f32.mrb[0].mxu0
        %396 = vdwg.mxu0
        %v397 = vld [vmem:[%s272] sm:$0xf]
        %v398 = vld [vmem:[%s272 + $0x4] sm:$0x1]
        %s399 = scalar_lea.vmem %s2, 32
        %v400 = vld [vmem:[%s399] sm:$0xf]
        %v401 = vld [vmem:[%s399 + $0x4] sm:$0xf]
        %v402 = vld [vmem:[%s399 + $0x8] sm:$0xf]
        %v403 = vld [vmem:[%s399 + $0xc] sm:$0xf]
        %v406 = vunpack.c.l.b16 %v397
        %v407 = vunpack.c.l.b16 %v398
        %v408 = vpack.c.b16 %v407, %v406
        %v410 = vshrl.u32 %v408, 16
        %v412 = vshll.u32 %v408, 16
        %v414 = vrot.slane %v412, 1
        %v415 = vor.u32 %v410, %v414
        %v420 = vunpack.c.l.b16 %v400
        %v421 = vunpack.c.l.b16 %v401
        %v422 = vunpack.c.l.b16 %v402
        %v423 = vunpack.c.l.b16 %v403
        %v424 = vpack.c.b16 %v421, %v420
        %v425 = vpack.c.b16 %v423, %v422
        %v429 = vsel %vm298, %v415, 0
        %431 = vmatprep.subr.bf16.mxu0 0
        %432 = vmatpush1.bf16.msra.mxu0 %v424
        %433 = vmatprep.subr.bf16.mxu0 0
        %434 = vmatpush1.bf16.msra.mxu0 %v425
        %435 = vmatprep.subr.bf16.mxu0 0
        %436 = vmatpush1.bf16.msra.mxu0 0
        %437 = vmatprep.subr.bf16.mxu0 0
        %438 = vmatpush1.bf16.msra.mxu0 0
        %439 = vmatprep.subr.bf16.mxu0 0
        %440 = vmatpush1.bf16.msra.mxu0 0
        %441 = vmatprep.subr.bf16.mxu0 0
        %442 = vmatpush1.bf16.msra.mxu0 0
        %443 = vmatprep.subr.bf16.mxu0 0
        %444 = vmatpush1.bf16.msra.mxu0 0
        %445 = vmatprep.subr.bf16.mxu0 0
        %446 = vmatpush1.bf16.msra.mxu0 0
        %447 = vmatprep.subr.bf16.mxu0 0
        %448 = vmatpush1.bf16.msra.mxu0 0
        %449 = vmatprep.subr.bf16.mxu0 0
        %450 = vmatpush1.bf16.msra.mxu0 0
        %451 = vmatprep.subr.bf16.mxu0 0
        %452 = vmatpush1.bf16.msra.mxu0 0
        %453 = vmatprep.subr.bf16.mxu0 0
        %454 = vmatpush1.bf16.msra.mxu0 0
        %455 = vmatprep.subr.bf16.mxu0 0
        %456 = vmatpush1.bf16.msra.mxu0 0
        %457 = vmatprep.subr.bf16.mxu0 0
        %458 = vmatpush1.bf16.msra.mxu0 0
        %459 = vmatprep.subr.bf16.mxu0 0
        %460 = vmatpush1.bf16.msra.mxu0 0
        %461 = vmatprep.subr.bf16.mxu0 0
        %462 = vmatpush1.bf16.msra.mxu0 0
        %463 = vmatprep.mubr.bf16.mxu0 0
        %464 = vmatmul.mubr.bf16.gmra.mrb[0].mxu0 %v429
        %v465 = vpop.f32.mrb[0].mxu0
        %v466 = vadd.f32 0.0, %v465
        %v467 = vpop.f32.mrb[0].mxu0
        %v468 = vpop.f32.mrb[0].mxu0
        %v469 = vpop.f32.mrb[0].mxu0
        %470 = vdwg.mxu0
        %v471 = vadd.f32 %v392, %v466
        %s472 = sadd.s32 %s269, 1
        %s473 = smul.u32 %s472, 2
        %s474 = smul.addr %s473, 4
        %s475 = scalar_lea.vmem %s237, %s474
        %v476 = vld [vmem:[%s475] sm:$0xf]
        %s477 = scalar_lea.vmem %s2, 48
        %v478 = vld [vmem:[%s477] sm:$0xf]
        %v479 = vld [vmem:[%s477 + $0x4] sm:$0xf]
        %v480 = vld [vmem:[%s477 + $0x8] sm:$0xf]
        %v481 = vld [vmem:[%s477 + $0xc] sm:$0xf]
        %v486 = vunpack.c.l.b16 %v478
        %v487 = vunpack.c.l.b16 %v479
        %v488 = vunpack.c.l.b16 %v480
        %v489 = vunpack.c.l.b16 %v481
        %v490 = vpack.c.b16 %v487, %v486
        %v491 = vpack.c.b16 %v489, %v488
        %v495 = vsel %vm298, %v476, 0
        %497 = vmatprep.subr.bf16.mxu0 0
        %498 = vmatpush1.bf16.msra.mxu0 %v490
        %499 = vmatprep.subr.bf16.mxu0 0
        %500 = vmatpush1.bf16.msra.mxu0 %v491
        %501 = vmatprep.subr.bf16.mxu0 0
        %502 = vmatpush1.bf16.msra.mxu0 0
        %503 = vmatprep.subr.bf16.mxu0 0
        %504 = vmatpush1.bf16.msra.mxu0 0
        %505 = vmatprep.subr.bf16.mxu0 0
        %506 = vmatpush1.bf16.msra.mxu0 0
        %507 = vmatprep.subr.bf16.mxu0 0
        %508 = vmatpush1.bf16.msra.mxu0 0
        %509 = vmatprep.subr.bf16.mxu0 0
        %510 = vmatpush1.bf16.msra.mxu0 0
        %511 = vmatprep.subr.bf16.mxu0 0
        %512 = vmatpush1.bf16.msra.mxu0 0
        %513 = vmatprep.subr.bf16.mxu0 0
        %514 = vmatpush1.bf16.msra.mxu0 0
        %515 = vmatprep.subr.bf16.mxu0 0
        %516 = vmatpush1.bf16.msra.mxu0 0
        %517 = vmatprep.subr.bf16.mxu0 0
        %518 = vmatpush1.bf16.msra.mxu0 0
        %519 = vmatprep.subr.bf16.mxu0 0
        %520 = vmatpush1.bf16.msra.mxu0 0
        %521 = vmatprep.subr.bf16.mxu0 0
        %522 = vmatpush1.bf16.msra.mxu0 0
        %523 = vmatprep.subr.bf16.mxu0 0
        %524 = vmatpush1.bf16.msra.mxu0 0
        %525 = vmatprep.subr.bf16.mxu0 0
        %526 = vmatpush1.bf16.msra.mxu0 0
        %527 = vmatprep.subr.bf16.mxu0 0
        %528 = vmatpush1.bf16.msra.mxu0 0
        %529 = vmatprep.mubr.bf16.mxu0 0
        %530 = vmatmul.mubr.bf16.gmra.mrb[0].mxu0 %v495
        %v531 = vpop.f32.mrb[0].mxu0
        %v532 = vadd.f32 0.0, %v531
        %v533 = vpop.f32.mrb[0].mxu0
        %v534 = vpop.f32.mrb[0].mxu0
        %v535 = vpop.f32.mrb[0].mxu0
        %536 = vdwg.mxu0
        %v537 = vadd.f32 %v471, %v532
        %s538 = smul.addr %s473, 4
        %s539 = scalar_lea.vmem %s242, %s538
        %v540 = vld [vmem:[%s539] sm:$0xf]
        %s541 = scalar_lea.vmem %s2, 64
        %v542 = vld [vmem:[%s541] sm:$0xf]
        %v543 = vld [vmem:[%s541 + $0x4] sm:$0xf]
        %v544 = vld [vmem:[%s541 + $0x8] sm:$0xf]
        %v545 = vld [vmem:[%s541 + $0xc] sm:$0xf]
        %v550 = vunpack.c.l.b16 %v542
        %v551 = vunpack.c.l.b16 %v543
        %v552 = vunpack.c.l.b16 %v544
        %v553 = vunpack.c.l.b16 %v545
        %v554 = vpack.c.b16 %v551, %v550
        %v555 = vpack.c.b16 %v553, %v552
        %v559 = vsel %vm298, %v540, 0
        %561 = vmatprep.subr.bf16.mxu0 0
        %562 = vmatpush1.bf16.msra.mxu0 %v554
        %563 = vmatprep.subr.bf16.mxu0 0
        %564 = vmatpush1.bf16.msra.mxu0 %v555
        %565 = vmatprep.subr.bf16.mxu0 0
        %566 = vmatpush1.bf16.msra.mxu0 0
        %567 = vmatprep.subr.bf16.mxu0 0
        %568 = vmatpush1.bf16.msra.mxu0 0
        %569 = vmatprep.subr.bf16.mxu0 0
        %570 = vmatpush1.bf16.msra.mxu0 0
        %571 = vmatprep.subr.bf16.mxu0 0
        %572 = vmatpush1.bf16.msra.mxu0 0
        %573 = vmatprep.subr.bf16.mxu0 0
        %574 = vmatpush1.bf16.msra.mxu0 0
        %575 = vmatprep.subr.bf16.mxu0 0
        %576 = vmatpush1.bf16.msra.mxu0 0
        %577 = vmatprep.subr.bf16.mxu0 0
        %578 = vmatpush1.bf16.msra.mxu0 0
        %579 = vmatprep.subr.bf16.mxu0 0
        %580 = vmatpush1.bf16.msra.mxu0 0
        %581 = vmatprep.subr.bf16.mxu0 0
        %582 = vmatpush1.bf16.msra.mxu0 0
        %583 = vmatprep.subr.bf16.mxu0 0
        %584 = vmatpush1.bf16.msra.mxu0 0
        %585 = vmatprep.subr.bf16.mxu0 0
        %586 = vmatpush1.bf16.msra.mxu0 0
        %587 = vmatprep.subr.bf16.mxu0 0
        %588 = vmatpush1.bf16.msra.mxu0 0
        %589 = vmatprep.subr.bf16.mxu0 0
        %590 = vmatpush1.bf16.msra.mxu0 0
        %591 = vmatprep.subr.bf16.mxu0 0
        %592 = vmatpush1.bf16.msra.mxu0 0
        %593 = vmatprep.mubr.bf16.mxu0 0
        %594 = vmatmul.mubr.bf16.gmra.mrb[0].mxu0 %v559
        %v595 = vpop.f32.mrb[0].mxu0
        %v596 = vadd.f32 0.0, %v595
        %v597 = vpop.f32.mrb[0].mxu0
        %v598 = vpop.f32.mrb[0].mxu0
        %v599 = vpop.f32.mrb[0].mxu0
        %600 = vdwg.mxu0
        %v601 = vadd.f32 %v537, %v596
        %v602 = vld [vmem:[%s475] sm:$0xf]
        %v603 = vld [vmem:[%s475 + $0x4] sm:$0x1]
        %s604 = scalar_lea.vmem %s2, 80
        %v605 = vld [vmem:[%s604] sm:$0xf]
        %v606 = vld [vmem:[%s604 + $0x4] sm:$0xf]
        %v607 = vld [vmem:[%s604 + $0x8] sm:$0xf]
        %v608 = vld [vmem:[%s604 + $0xc] sm:$0xf]
        %v611 = vunpack.c.l.b16 %v602
        %v612 = vunpack.c.l.b16 %v603
        %v613 = vpack.c.b16 %v612, %v611
        %v615 = vshrl.u32 %v613, 16
        %v617 = vshll.u32 %v613, 16
        %v619 = vrot.slane %v617, 1
        %v620 = vor.u32 %v615, %v619
        %v625 = vunpack.c.l.b16 %v605
        %v626 = vunpack.c.l.b16 %v606
        %v627 = vunpack.c.l.b16 %v607
        %v628 = vunpack.c.l.b16 %v608
        %v629 = vpack.c.b16 %v626, %v625
        %v630 = vpack.c.b16 %v628, %v627
        %v634 = vsel %vm298, %v620, 0
        %636 = vmatprep.subr.bf16.mxu0 0
        %637 = vmatpush1.bf16.msra.mxu0 %v629
        %638 = vmatprep.subr.bf16.mxu0 0
        %639 = vmatpush1.bf16.msra.mxu0 %v630
        %640 = vmatprep.subr.bf16.mxu0 0
        %641 = vmatpush1.bf16.msra.mxu0 0
        %642 = vmatprep.subr.bf16.mxu0 0
        %643 = vmatpush1.bf16.msra.mxu0 0
        %644 = vmatprep.subr.bf16.mxu0 0
        %645 = vmatpush1.bf16.msra.mxu0 0
        %646 = vmatprep.subr.bf16.mxu0 0
        %647 = vmatpush1.bf16.msra.mxu0 0
        %648 = vmatprep.subr.bf16.mxu0 0
        %649 = vmatpush1.bf16.msra.mxu0 0
        %650 = vmatprep.subr.bf16.mxu0 0
        %651 = vmatpush1.bf16.msra.mxu0 0
        %652 = vmatprep.subr.bf16.mxu0 0
        %653 = vmatpush1.bf16.msra.mxu0 0
        %654 = vmatprep.subr.bf16.mxu0 0
        %655 = vmatpush1.bf16.msra.mxu0 0
        %656 = vmatprep.subr.bf16.mxu0 0
        %657 = vmatpush1.bf16.msra.mxu0 0
        %658 = vmatprep.subr.bf16.mxu0 0
        %659 = vmatpush1.bf16.msra.mxu0 0
        %660 = vmatprep.subr.bf16.mxu0 0
        %661 = vmatpush1.bf16.msra.mxu0 0
        %662 = vmatprep.subr.bf16.mxu0 0
        %663 = vmatpush1.bf16.msra.mxu0 0
        %664 = vmatprep.subr.bf16.mxu0 0
        %665 = vmatpush1.bf16.msra.mxu0 0
        %666 = vmatprep.subr.bf16.mxu0 0
        %667 = vmatpush1.bf16.msra.mxu0 0
        %668 = vmatprep.mubr.bf16.mxu0 0
        %669 = vmatmul.mubr.bf16.gmra.mrb[0].mxu0 %v634
        %v670 = vpop.f32.mrb[0].mxu0
        %v671 = vadd.f32 0.0, %v670
        %v672 = vpop.f32.mrb[0].mxu0
        %v673 = vpop.f32.mrb[0].mxu0
        %v674 = vpop.f32.mrb[0].mxu0
        %675 = vdwg.mxu0
        %v676 = vadd.f32 %v601, %v671
        %s677 = sadd.s32 %s269, 2
        %s678 = smul.u32 %s677, 2
        %s679 = smul.addr %s678, 4
        %s680 = scalar_lea.vmem %s237, %s679
        %v681 = vld [vmem:[%s680] sm:$0xf]
        %s682 = scalar_lea.vmem %s2, 96
        %v683 = vld [vmem:[%s682] sm:$0xf]
        %v684 = vld [vmem:[%s682 + $0x4] sm:$0xf]
        %v685 = vld [vmem:[%s682 + $0x8] sm:$0xf]
        %v686 = vld [vmem:[%s682 + $0xc] sm:$0xf]
        %v691 = vunpack.c.l.b16 %v683
        %v692 = vunpack.c.l.b16 %v684
        %v693 = vunpack.c.l.b16 %v685
        %v694 = vunpack.c.l.b16 %v686
        %v695 = vpack.c.b16 %v692, %v691
        %v696 = vpack.c.b16 %v694, %v693
        %v700 = vsel %vm298, %v681, 0
        %702 = vmatprep.subr.bf16.mxu0 0
        %703 = vmatpush1.bf16.msra.mxu0 %v695
        %704 = vmatprep.subr.bf16.mxu0 0
        %705 = vmatpush1.bf16.msra.mxu0 %v696
        %706 = vmatprep.subr.bf16.mxu0 0
        %707 = vmatpush1.bf16.msra.mxu0 0
        %708 = vmatprep.subr.bf16.mxu0 0
        %709 = vmatpush1.bf16.msra.mxu0 0
        %710 = vmatprep.subr.bf16.mxu0 0
        %711 = vmatpush1.bf16.msra.mxu0 0
        %712 = vmatprep.subr.bf16.mxu0 0
        %713 = vmatpush1.bf16.msra.mxu0 0
        %714 = vmatprep.subr.bf16.mxu0 0
        %715 = vmatpush1.bf16.msra.mxu0 0
        %716 = vmatprep.subr.bf16.mxu0 0
        %717 = vmatpush1.bf16.msra.mxu0 0
        %718 = vmatprep.subr.bf16.mxu0 0
        %719 = vmatpush1.bf16.msra.mxu0 0
        %720 = vmatprep.subr.bf16.mxu0 0
        %721 = vmatpush1.bf16.msra.mxu0 0
        %722 = vmatprep.subr.bf16.mxu0 0
        %723 = vmatpush1.bf16.msra.mxu0 0
        %724 = vmatprep.subr.bf16.mxu0 0
        %725 = vmatpush1.bf16.msra.mxu0 0
        %726 = vmatprep.subr.bf16.mxu0 0
        %727 = vmatpush1.bf16.msra.mxu0 0
        %728 = vmatprep.subr.bf16.mxu0 0
        %729 = vmatpush1.bf16.msra.mxu0 0
        %730 = vmatprep.subr.bf16.mxu0 0
        %731 = vmatpush1.bf16.msra.mxu0 0
        %732 = vmatprep.subr.bf16.mxu0 0
        %733 = vmatpush1.bf16.msra.mxu0 0
        %734 = vmatprep.mubr.bf16.mxu0 0
        %735 = vmatmul.mubr.bf16.gmra.mrb[0].mxu0 %v700
        %v736 = vpop.f32.mrb[0].mxu0
        %v737 = vadd.f32 0.0, %v736
        %v738 = vpop.f32.mrb[0].mxu0
        %v739 = vpop.f32.mrb[0].mxu0
        %v740 = vpop.f32.mrb[0].mxu0
        %741 = vdwg.mxu0
        %v742 = vadd.f32 %v676, %v737
        %s743 = smul.addr %s678, 4
        %s744 = scalar_lea.vmem %s242, %s743
        %v745 = vld [vmem:[%s744] sm:$0xf]
        %s746 = scalar_lea.vmem %s2, 112
        %v747 = vld [vmem:[%s746] sm:$0xf]
        %v748 = vld [vmem:[%s746 + $0x4] sm:$0xf]
        %v749 = vld [vmem:[%s746 + $0x8] sm:$0xf]
        %v750 = vld [vmem:[%s746 + $0xc] sm:$0xf]
        %v755 = vunpack.c.l.b16 %v747
        %v756 = vunpack.c.l.b16 %v748
        %v757 = vunpack.c.l.b16 %v749
        %v758 = vunpack.c.l.b16 %v750
        %v759 = vpack.c.b16 %v756, %v755
        %v760 = vpack.c.b16 %v758, %v757
        %v764 = vsel %vm298, %v745, 0
        %766 = vmatprep.subr.bf16.mxu0 0
        %767 = vmatpush1.bf16.msra.mxu0 %v759
        %768 = vmatprep.subr.bf16.mxu0 0
        %769 = vmatpush1.bf16.msra.mxu0 %v760
        %770 = vmatprep.subr.bf16.mxu0 0
        %771 = vmatpush1.bf16.msra.mxu0 0
        %772 = vmatprep.subr.bf16.mxu0 0
        %773 = vmatpush1.bf16.msra.mxu0 0
        %774 = vmatprep.subr.bf16.mxu0 0
        %775 = vmatpush1.bf16.msra.mxu0 0
        %776 = vmatprep.subr.bf16.mxu0 0
        %777 = vmatpush1.bf16.msra.mxu0 0
        %778 = vmatprep.subr.bf16.mxu0 0
        %779 = vmatpush1.bf16.msra.mxu0 0
        %780 = vmatprep.subr.bf16.mxu0 0
        %781 = vmatpush1.bf16.msra.mxu0 0
        %782 = vmatprep.subr.bf16.mxu0 0
        %783 = vmatpush1.bf16.msra.mxu0 0
        %784 = vmatprep.subr.bf16.mxu0 0
        %785 = vmatpush1.bf16.msra.mxu0 0
        %786 = vmatprep.subr.bf16.mxu0 0
        %787 = vmatpush1.bf16.msra.mxu0 0
        %788 = vmatprep.subr.bf16.mxu0 0
        %789 = vmatpush1.bf16.msra.mxu0 0
        %790 = vmatprep.subr.bf16.mxu0 0
        %791 = vmatpush1.bf16.msra.mxu0 0
        %792 = vmatprep.subr.bf16.mxu0 0
        %793 = vmatpush1.bf16.msra.mxu0 0
        %794 = vmatprep.subr.bf16.mxu0 0
        %795 = vmatpush1.bf16.msra.mxu0 0
        %796 = vmatprep.subr.bf16.mxu0 0
        %797 = vmatpush1.bf16.msra.mxu0 0
        %798 = vmatprep.mubr.bf16.mxu0 0
        %799 = vmatmul.mubr.bf16.gmra.mrb[0].mxu0 %v764
        %v800 = vpop.f32.mrb[0].mxu0
        %v801 = vadd.f32 0.0, %v800
        %v802 = vpop.f32.mrb[0].mxu0
        %v803 = vpop.f32.mrb[0].mxu0
        %v804 = vpop.f32.mrb[0].mxu0
        %805 = vdwg.mxu0
        %v806 = vadd.f32 %v742, %v801
        %v807 = vld [vmem:[%s680] sm:$0xf]
        %v808 = vld [vmem:[%s680 + $0x4] sm:$0x1]
        %s809 = scalar_lea.vmem %s2, 128
        %v810 = vld [vmem:[%s809] sm:$0xf]
        %v811 = vld [vmem:[%s809 + $0x4] sm:$0xf]
        %v812 = vld [vmem:[%s809 + $0x8] sm:$0xf]
        %v813 = vld [vmem:[%s809 + $0xc] sm:$0xf]
        %v816 = vunpack.c.l.b16 %v807
        %v817 = vunpack.c.l.b16 %v808
        %v818 = vpack.c.b16 %v817, %v816
        %v820 = vshrl.u32 %v818, 16
        %v822 = vshll.u32 %v818, 16
        %v824 = vrot.slane %v822, 1
        %v825 = vor.u32 %v820, %v824
        %v830 = vunpack.c.l.b16 %v810
        %v831 = vunpack.c.l.b16 %v811
        %v832 = vunpack.c.l.b16 %v812
        %v833 = vunpack.c.l.b16 %v813
        %v834 = vpack.c.b16 %v831, %v830
        %v835 = vpack.c.b16 %v833, %v832
        %v839 = vsel %vm298, %v825, 0
        %841 = vmatprep.subr.bf16.mxu0 0
        %842 = vmatpush1.bf16.msra.mxu0 %v834
        %843 = vmatprep.subr.bf16.mxu0 0
        %844 = vmatpush1.bf16.msra.mxu0 %v835
        %845 = vmatprep.subr.bf16.mxu0 0
        %846 = vmatpush1.bf16.msra.mxu0 0
        %847 = vmatprep.subr.bf16.mxu0 0
        %848 = vmatpush1.bf16.msra.mxu0 0
        %849 = vmatprep.subr.bf16.mxu0 0
        %850 = vmatpush1.bf16.msra.mxu0 0
        %851 = vmatprep.subr.bf16.mxu0 0
        %852 = vmatpush1.bf16.msra.mxu0 0
        %853 = vmatprep.subr.bf16.mxu0 0
        %854 = vmatpush1.bf16.msra.mxu0 0
        %855 = vmatprep.subr.bf16.mxu0 0
        %856 = vmatpush1.bf16.msra.mxu0 0
        %857 = vmatprep.subr.bf16.mxu0 0
        %858 = vmatpush1.bf16.msra.mxu0 0
        %859 = vmatprep.subr.bf16.mxu0 0
        %860 = vmatpush1.bf16.msra.mxu0 0
        %861 = vmatprep.subr.bf16.mxu0 0
        %862 = vmatpush1.bf16.msra.mxu0 0
        %863 = vmatprep.subr.bf16.mxu0 0
        %864 = vmatpush1.bf16.msra.mxu0 0
        %865 = vmatprep.subr.bf16.mxu0 0
        %866 = vmatpush1.bf16.msra.mxu0 0
        %867 = vmatprep.subr.bf16.mxu0 0
        %868 = vmatpush1.bf16.msra.mxu0 0
        %869 = vmatprep.subr.bf16.mxu0 0
        %870 = vmatpush1.bf16.msra.mxu0 0
        %871 = vmatprep.subr.bf16.mxu0 0
        %872 = vmatpush1.bf16.msra.mxu0 0
        %873 = vmatprep.mubr.bf16.mxu0 0
        %874 = vmatmul.mubr.bf16.gmra.mrb[0].mxu0 %v839
        %v875 = vpop.f32.mrb[0].mxu0
        %v876 = vadd.f32 0.0, %v875
        %v877 = vpop.f32.mrb[0].mxu0
        %v878 = vpop.f32.mrb[0].mxu0
        %v879 = vpop.f32.mrb[0].mxu0
        %880 = vdwg.mxu0
        %v881 = vadd.f32 %v806, %v876
        %s882 = smul.u32 %s263, 8
        %s883 = scalar_lea.vmem %s251, %s882
        %vm884 = vcmask 523264
        %885 = vst.msk [vmem:[%s883] sm:$0xff] %vm884, %v881
      $region37: #{encoder_forward.11} parent=31 // loop_footer
        %s267 = sadd.s32 1, %s263
      $region38: #{encoder_forward.11} parent=31 // loop_footer_branch
        %262 = sbr.rel target = $region34
      $region39: #{encoder_forward.11} parent=31 // loop_exit
        _
      %v886 = vld [vmem:[%s251] sm:$0xff]
      %v887 = vld [vmem:[%s251 + $0x8] sm:$0xff]
      %v888 = vld [vmem:[%s251 + $0x10] sm:$0xff]
      %v889 = vld [vmem:[%s251 + $0x18] sm:$0xff]
      %v890 = vld [vmem:[%s251 + $0x20] sm:$0xff]
      %v891 = vld [vmem:[%s251 + $0x28] sm:$0xff]
      %v892 = vld [vmem:[%s251 + $0x30] sm:$0xff]
      %v893 = vld [vmem:[%s251 + $0x38] sm:$0xff]
      %vm894 = vcmask 523264
      %v895 = vsel %vm894, %v886, 0.0
      %v896 = vsel %vm894, %v887, 0.0
      %v897 = vadd.f32 %v895, %v896
      %v898 = vsel %vm894, %v888, 0.0
      %v899 = vadd.f32 %v897, %v898
      %v900 = vsel %vm894, %v889, 0.0
      %v901 = vadd.f32 %v899, %v900
      %v902 = vsel %vm894, %v890, 0.0
      %v903 = vadd.f32 %v901, %v902
      %v904 = vsel %vm894, %v891, 0.0
      %v905 = vadd.f32 %v903, %v904
      %v906 = vsel %vm894, %v892, 0.0
      %v907 = vadd.f32 %v905, %v906
      %v908 = vsel %vm894, %v893, 0.0
      %v909 = vadd.f32 %v907, %v908
      %v910 = vrot.slane %v909, 4
      %v911 = vadd.f32 %v909, %v910
      %v912 = vrot.slane %v911, 2
      %v913 = vadd.f32 %v911, %v912
      %v914 = vrot.slane %v913, 1
      %v915 = vadd.f32 %v913, %v914
      %vm916 = vcmask 516096
      %917 = vst.msk [vmem:[%s259] sm:$0x1] %vm916, %v915
      %v918 = vmul.f32 %v886, %v886
      %v919 = vmul.f32 %v887, %v887
      %v920 = vmul.f32 %v888, %v888
      %v921 = vmul.f32 %v889, %v889
      %v922 = vmul.f32 %v890, %v890
      %v923 = vmul.f32 %v891, %v891
      %v924 = vmul.f32 %v892, %v892
      %v925 = vmul.f32 %v893, %v893
      %v926 = vsel %vm894, %v918, 0.0
      %v927 = vsel %vm894, %v919, 0.0
      %v928 = vadd.f32 %v926, %v927
      %v929 = vsel %vm894, %v920, 0.0
      %v930 = vadd.f32 %v928, %v929
      %v931 = vsel %vm894, %v921, 0.0
      %v932 = vadd.f32 %v930, %v931
      %v933 = vsel %vm894, %v922, 0.0
      %v934 = vadd.f32 %v932, %v933
      %v935 = vsel %vm894, %v923, 0.0
      %v936 = vadd.f32 %v934, %v935
      %v937 = vsel %vm894, %v924, 0.0
      %v938 = vadd.f32 %v936, %v937
      %v939 = vsel %vm894, %v925, 0.0
      %v940 = vadd.f32 %v938, %v939
      %v941 = vrot.slane %v940, 4
      %v942 = vadd.f32 %v940, %v941
      %v943 = vrot.slane %v942, 2
      %v944 = vadd.f32 %v942, %v943
      %v945 = vrot.slane %v944, 1
      %v946 = vadd.f32 %v944, %v945
      %947 = vst.msk [vmem:[%s259 + $0x1] sm:$0x1] %vm916, %v946
      %s948 = smul.u32 8, %s21
      %p949 = scmp.lt.s32.totalorder %s20, 1
      %s950 = scalar_select %p949, %s20, 1
      %p951 = scmp.lt.s32.totalorder %s948, 7
      %s952 = scalar_select %p951, %s948, 7
      %s953 = smul.addr %s950, 8
      %s954 = sadd.s32 %s952, %s953
      %s955 = smul.addr %s954, 8
      %s956 = scalar_lea.vmem %s3, %s955
      %p957 = scmp.lt.s32.totalorder %s20, 1
      %s958 = scalar_select %p957, %s20, 1
      %p959 = scmp.lt.s32.totalorder %s21, 0
      %s960 = scalar_select %p959, %s21, 0
      %s961 = sadd.s32 %s960, %s958
      %s962 = smul.addr %s961, 2
      %s963 = scalar_lea.vmem %s4, %s962
      // Predicated region
      $region40: #{encoder_forward.11} parent=31 // pred_check
        %p964 = pneg %p121
      $region41: #{encoder_forward.11} parent=31 // pred_check_branch
        %966 = sbr.rel (%p964) target = $region43
      $region42: #{encoder_forward.11} parent=31 // pred_region
        %s967 = smul.u32 8, %s21
      $region43: #{encoder_forward.11} parent=31 // pred_fallthru
        _
      // Predicated region
      $region44: #{encoder_forward.11} parent=31 // pred_check
        %p968 = pneg %p149
      $region45: #{encoder_forward.11} parent=31 // pred_check_branch
        %970 = sbr.rel (%p968) target = $region47
      $region46: #{encoder_forward.11} parent=31 // pred_region
        _
      $region47: #{encoder_forward.11} parent=31 // pred_fallthru
        _
    $region32: #{encoder_forward.11} parent=5 // pred_fallthru
      _
    %p971 = scmp.le.s32.totalorder 2, %s11
    // Predicated region
    $region48: #{encoder_forward.11} parent=5 // pred_check
      %p972 = pneg %p971
    $region49: #{encoder_forward.11} parent=5 // pred_check_branch
      %974 = sbr.rel (%p972) target = $region51
    $region50: #{encoder_forward.11} parent=5 // pred_region
      %s975 = ssub.s32 %s11, 2
      // Predicated region
      $region52: #{encoder_forward.11} parent=50 // pred_check
        %p976 = pneg %p127
      $region53: #{encoder_forward.11} parent=50 // pred_check_branch
        %978 = sbr.rel (%p976) target = $region55
      $region54: #{encoder_forward.11} parent=50 // pred_region
        %s979 = smul.u32 8, %s23
        %p980 = scmp.lt.s32.totalorder %s22, 1
        %s981 = scalar_select %p980, %s22, 1
        %p982 = scmp.lt.s32.totalorder %s979, 7
        %s983 = scalar_select %p982, %s979, 7
        %s984 = smul.addr %s981, 8
        %s985 = sadd.s32 %s983, %s984
        %s986 = smul.addr %s985, 8
        %s987 = scalar_lea.vmem %s3, %s986
      $region55: #{encoder_forward.11} parent=50 // pred_fallthru
        _
      // Predicated region
      $region56: #{encoder_forward.11} parent=50 // pred_check
        %p988 = pneg %p155
      $region57: #{encoder_forward.11} parent=50 // pred_check_branch
        %990 = sbr.rel (%p988) target = $region59
      $region58: #{encoder_forward.11} parent=50 // pred_region
        %p991 = scmp.lt.s32.totalorder %s22, 1
        %s992 = scalar_select %p991, %s22, 1
        %p993 = scmp.lt.s32.totalorder %s23, 0
        %s994 = scalar_select %p993, %s23, 0
        %s995 = sadd.s32 %s994, %s992
        %s996 = smul.addr %s995, 2
        %s997 = scalar_lea.vmem %s4, %s996
      $region59: #{encoder_forward.11} parent=50 // pred_fallthru
        _
    $region51: #{encoder_forward.11} parent=5 // pred_fallthru
      _
  $region6: #{encoder_forward.11} parent=0 // loop_footer
    %s15 = sadd.s32 1, %s11
  $region7: #{encoder_forward.11} parent=0 // loop_footer_branch
    %10 = sbr.rel target = $region3
  $region8: #{encoder_forward.11} parent=0 // loop_exit
    _

// kernel: encoder_forward.14
$region0: #{encoder_forward.14}
  #allocation0 [shape = 'u32[]', space=smem, size = 0x4, offset = 0x4, fixed_abs, tag = 'smem constant byte address 0x4 - core index']
  #allocation1 [shape = 'u32[144,128]{1,0:T(1,128)}', space=vmem, size = 0x12000, scoped, tag = 'internal scratch']
  %s0 = inlined_call_operand.vmem [shape: f32[2,4,4,128], index: 0, kind: input, shape index: {}]
  %s1 = inlined_call_operand.vmem [shape: f32[2,128], index: 1, kind: input, shape index: {}]
  %s2 = inlined_call_operand.vmem [shape: f32[1,128], index: 2, kind: input, shape index: {}]
  %s3 = inlined_call_operand.vmem [shape: f32[1,128], index: 3, kind: input, shape index: {}]
  %s4 = inlined_call_operand.vmem [shape: bf16[2,4,4,128], index: 4, kind: output, shape index: {}]
  %s5 = sld [smem:[#allocation0]]
  $region49: #{encoder_forward.14} parent=0
    _
  %s7 = ssub.s32 1, %s5
  %s8 = scalar_select 0, %s7, %s5
  loop: start=0, step=1, limit=4
  $region2: #{encoder_forward.14} parent=0 // loop_pre_header
    _
  $region3: #{encoder_forward.14} parent=0 // loop_header
    %s10 = sphi 0, %s14
    %p11 = scmp.ge.s32.totalorder %s10, 4
    %s17 = sphi 0, %s29
    %s18 = sphi 0, %s25
    %s19 = sphi 0, %s17
    %s20 = sphi 0, %s18
    %s21 = sphi 0, %s19
    %s22 = sphi 0, %s20
    %s34 = sphi 0, %s36
    %s37 = sphi 0, %s34
    %s38 = sphi 0, %s37
    %s54 = sphi 0, %s38
    %s58 = sphi 0, %s58
    %s60 = sphi 0, %s58
    %s61 = sphi 0, %s60
    %s75 = sphi 0, %s61
    %s79 = sphi 0, %s79
    %s81 = sphi 0, %s79
    %s82 = sphi 0, %s81
    %s96 = sphi 0, %s82
    %s100 = sphi 0, %s100
    %s102 = sphi 0, %s100
    %s103 = sphi 0, %s102
    %s117 = sphi 0, %s103
    %s125 = sphi 0, %s127
    %s128 = sphi 0, %s125
    %s129 = sphi 0, %s128
    %s145 = sphi 0, %s129
  $region4: #{encoder_forward.14} parent=0 // loop_header_branch
    %13 = sbr.rel (%p11) target = $region8
  $region5: #{encoder_forward.14} parent=0 // loop_body
    %s15 = ssub.s32 %s10, 1
    %s16 = ssub.s32 %s10, 2
    %s23 = sadd.s32 1, %s18
    %p24 = scmp.ge.s32.totalorder %s23, 1
    %s25 = scalar_select %p24, 0, %s23
    %s26 = sadd.s32 1, %s17
    %s27 = scalar_select %p24, %s26, %s17
    %p28 = scmp.ge.s32.totalorder %s27, 2
    %s29 = scalar_select %p28, 0, %s27
    %s30 = ssub.s32 %s17, %s29
    %s31 = ssub.s32 %s18, %s25
    %s32 = sor.u32 %s30, %s31
    %p33 = scmp.eq.s32.totalorder %s32, 0
    %s35 = sadd.s32 %s34, 1
    %s36 = scalar_select %p33, %s34, %s35
    %p39 = pneg %p33
    %p40 = scmp.eq.s32.totalorder %s10, 1
    %p41 = por %p39, %p40
    %p42 = scmp.ne.s32.totalorder %s34, %s37
    %p43 = scmp.eq.s32.totalorder %s10, 0
    %p44 = por %p42, %p43
    %p45 = scmp.ne.s32.totalorder %s34, %s37
    %p46 = scmp.eq.s32.totalorder %s15, 1
    %p47 = por %p45, %p46
    %p48 = scmp.ne.s32.totalorder %s37, %s38
    %p49 = scmp.eq.s32.totalorder %s15, 0
    %p50 = por %p48, %p49
    %p51 = scmp.ne.s32.totalorder %s37, %s38
    %p52 = scmp.eq.s32.totalorder %s16, 1
    %p53 = por %p51, %p52
    %p55 = scmp.ne.s32.totalorder %s38, %s54
    %p56 = scmp.eq.s32.totalorder %s16, 0
    %p57 = por %p55, %p56
    %s59 = sadd.s32 %s58, 1
    %p62 = scmp.eq.s32.totalorder %s10, 1
    %p63 = scmp.ne.s32.totalorder %s58, %s60
    %p64 = scmp.eq.s32.totalorder %s10, 0
    %p65 = por %p63, %p64
    %p66 = scmp.ne.s32.totalorder %s58, %s60
    %p67 = scmp.eq.s32.totalorder %s15, 1
    %p68 = por %p66, %p67
    %p69 = scmp.ne.s32.totalorder %s60, %s61
    %p70 = scmp.eq.s32.totalorder %s15, 0
    %p71 = por %p69, %p70
    %p72 = scmp.ne.s32.totalorder %s60, %s61
    %p73 = scmp.eq.s32.totalorder %s16, 1
    %p74 = por %p72, %p73
    %p76 = scmp.ne.s32.totalorder %s61, %s75
    %p77 = scmp.eq.s32.totalorder %s16, 0
    %p78 = por %p76, %p77
    %s80 = sadd.s32 %s79, 1
    %p83 = scmp.eq.s32.totalorder %s10, 1
    %p84 = scmp.ne.s32.totalorder %s79, %s81
    %p85 = scmp.eq.s32.totalorder %s10, 0
    %p86 = por %p84, %p85
    %p87 = scmp.ne.s32.totalorder %s79, %s81
    %p88 = scmp.eq.s32.totalorder %s15, 1
    %p89 = por %p87, %p88
    %p90 = scmp.ne.s32.totalorder %s81, %s82
    %p91 = scmp.eq.s32.totalorder %s15, 0
    %p92 = por %p90, %p91
    %p93 = scmp.ne.s32.totalorder %s81, %s82
    %p94 = scmp.eq.s32.totalorder %s16, 1
    %p95 = por %p93, %p94
    %p97 = scmp.ne.s32.totalorder %s82, %s96
    %p98 = scmp.eq.s32.totalorder %s16, 0
    %p99 = por %p97, %p98
    %s101 = sadd.s32 %s100, 1
    %p104 = scmp.eq.s32.totalorder %s10, 1
    %p105 = scmp.ne.s32.totalorder %s100, %s102
    %p106 = scmp.eq.s32.totalorder %s10, 0
    %p107 = por %p105, %p106
    %p108 = scmp.ne.s32.totalorder %s100, %s102
    %p109 = scmp.eq.s32.totalorder %s15, 1
    %p110 = por %p108, %p109
    %p111 = scmp.ne.s32.totalorder %s102, %s103
    %p112 = scmp.eq.s32.totalorder %s15, 0
    %p113 = por %p111, %p112
    %p114 = scmp.ne.s32.totalorder %s102, %s103
    %p115 = scmp.eq.s32.totalorder %s16, 1
    %p116 = por %p114, %p115
    %p118 = scmp.ne.s32.totalorder %s103, %s117
    %p119 = scmp.eq.s32.totalorder %s16, 0
    %p120 = por %p118, %p119
    %s121 = ssub.s32 %s17, %s29
    %s122 = ssub.s32 %s18, %s25
    %s123 = sor.u32 %s121, %s122
    %p124 = scmp.eq.s32.totalorder %s123, 0
    %s126 = sadd.s32 %s125, 1
    %s127 = scalar_select %p124, %s125, %s126
    %p130 = pneg %p124
    %p131 = scmp.eq.s32.totalorder %s10, 1
    %p132 = por %p130, %p131
    %p133 = scmp.ne.s32.totalorder %s125, %s128
    %p134 = scmp.eq.s32.totalorder %s10, 0
    %p135 = por %p133, %p134
    %p136 = scmp.ne.s32.totalorder %s125, %s128
    %p137 = scmp.eq.s32.totalorder %s15, 1
    %p138 = por %p136, %p137
    %p139 = scmp.ne.s32.totalorder %s128, %s129
    %p140 = scmp.eq.s32.totalorder %s15, 0
    %p141 = por %p139, %p140
    %p142 = scmp.ne.s32.totalorder %s128, %s129
    %p143 = scmp.eq.s32.totalorder %s16, 1
    %p144 = por %p142, %p143
    %p146 = scmp.ne.s32.totalorder %s129, %s145
    %p147 = scmp.eq.s32.totalorder %s16, 0
    %p148 = por %p146, %p147
    %p149 = scmp.le.s32.totalorder 1, %s10
    %p150 = scmp.lt.s32.totalorder %s10, 3
    %p151 = pnand %p149, %p150
    %p152 = pneg %p151
    // Predicated region
    $region9: #{encoder_forward.14} parent=5 // pred_check
      _
    $region10: #{encoder_forward.14} parent=5 // pred_check_branch
      %154 = sbr.rel (%p151) target = $region12
    $region11: #{encoder_forward.14} parent=5 // pred_region
      %s155 = ssub.s32 %s10, 1
      // Predicated region
      $region13: #{encoder_forward.14} parent=11 // pred_check
        %p156 = pneg %p71
      $region14: #{encoder_forward.14} parent=11 // pred_check_branch
        %158 = sbr.rel (%p156) target = $region16
      $region15: #{encoder_forward.14} parent=11 // pred_region
        _
      $region16: #{encoder_forward.14} parent=11 // pred_fallthru
        _
      // Predicated region
      $region17: #{encoder_forward.14} parent=11 // pred_check
        %p159 = pneg %p92
      $region18: #{encoder_forward.14} parent=11 // pred_check_branch
        %161 = sbr.rel (%p159) target = $region20
      $region19: #{encoder_forward.14} parent=11 // pred_region
        _
      $region20: #{encoder_forward.14} parent=11 // pred_fallthru
        _
      // Predicated region
      $region21: #{encoder_forward.14} parent=11 // pred_check
        %p162 = pneg %p113
      $region22: #{encoder_forward.14} parent=11 // pred_check_branch
        %164 = sbr.rel (%p162) target = $region24
      $region23: #{encoder_forward.14} parent=11 // pred_region
        _
      $region24: #{encoder_forward.14} parent=11 // pred_fallthru
        _
    $region12: #{encoder_forward.14} parent=5 // pred_fallthru
      _
    %p165 = scmp.lt.s32.totalorder %s10, 2
    // Predicated region
    $region25: #{encoder_forward.14} parent=5 // pred_check
      %p166 = pneg %p165
    $region26: #{encoder_forward.14} parent=5 // pred_check_branch
      %168 = sbr.rel (%p166) target = $region28
    $region27: #{encoder_forward.14} parent=5 // pred_region
      // Predicated region
      $region29: #{encoder_forward.14} parent=27 // pred_check
        %p169 = pneg %p44
      $region30: #{encoder_forward.14} parent=27 // pred_check_branch
        %171 = sbr.rel (%p169) target = $region32
      $region31: #{encoder_forward.14} parent=27 // pred_region
        %s172 = smul.u32 4, %s18
        %p173 = scmp.lt.s32.totalorder %s17, 1
        %s174 = scalar_select %p173, %s17, 1
        %p175 = scmp.lt.s32.totalorder %s172, 3
        %s176 = scalar_select %p175, %s172, 3
        %s177 = smul.addr %s174, 4
        %s178 = sadd.s32 %s176, %s177
        %s179 = smul.addr %s178, 4
        %s180 = scalar_lea.vmem %s0, %s179
        %s181 = smul.u32 4, %s18
      $region32: #{encoder_forward.14} parent=27 // pred_fallthru
        _
    $region28: #{encoder_forward.14} parent=5 // pred_fallthru
      _
    %p182 = scmp.le.s32.totalorder 1, %s10
    %p183 = scmp.lt.s32.totalorder %s10, 3
    %p184 = pnand %p182, %p183
    %p185 = pneg %p184
    // Predicated region
    $region33: #{encoder_forward.14} parent=5 // pred_check
      _
    $region34: #{encoder_forward.14} parent=5 // pred_check_branch
      %187 = sbr.rel (%p184) target = $region36
    $region35: #{encoder_forward.14} parent=5 // pred_region
      %s188 = ssub.s32 %s10, 1
      %s189 = smul.u32 4, %s20
      %p190 = scmp.lt.s32.totalorder %s19, 1
      %s191 = scalar_select %p190, %s19, 1
      %p192 = scmp.lt.s32.totalorder %s189, 3
      %s193 = scalar_select %p192, %s189, 3
      %s194 = smul.addr %s191, 4
      %s195 = sadd.s32 %s193, %s194
      %s196 = smul.addr %s195, 4
      %s197 = scalar_lea.vmem %s0, %s196
      %p198 = pneg %p50
      %p199 = pneg %p47
      %p200 = pneg %p71
      %p201 = pneg %p68
      %p202 = pneg %p92
      %p203 = pneg %p89
      %p204 = pneg %p113
      %p205 = pneg %p110
      %p206 = pneg %p141
      %p207 = pneg %p138
      %s208 = smul.u32 4, %s20
      %p209 = scmp.lt.s32.totalorder %s19, 1
      %s210 = scalar_select %p209, %s19, 1
      %p211 = scmp.lt.s32.totalorder %s208, 3
      %s212 = scalar_select %p211, %s208, 3
      %s213 = smul.addr %s210, 4
      %s214 = sadd.s32 %s212, %s213
      %s215 = smul.addr %s214, 2
      %s216 = scalar_lea.vmem %s4, %s215
      %s217 = smul.u32 4, %s20
      %p218 = scmp.lt.s32.totalorder %s19, 1
      %s219 = scalar_select %p218, %s19, 1
      %p220 = scmp.lt.s32.totalorder %s217, 3
      %s221 = scalar_select %p220, %s217, 3
      %s222 = smul.addr %s219, 4
      %s223 = sadd.s32 %s221, %s222
      %s224 = smul.addr %s223, 4
      %s225 = scalar_lea.vmem %s0, %s224
      %s226 = smul.u32 4, %s20
      %s227 = smul.u32 4, %s20
      %p228 = scmp.lt.s32.totalorder %s19, 1
      %s229 = scalar_select %p228, %s19, 1
      %p230 = scmp.lt.s32.totalorder %s227, 3
      %s231 = scalar_select %p230, %s227, 3
      %s232 = smul.addr %s229, 4
      %s233 = sadd.s32 %s231, %s232
      %s234 = smul.addr %s233, 2
      %s235 = scalar_lea.vmem %s4, %s234
      %s236 = smul.u32 4, %s20
      %v237 = vld [vmem:[%s1] sm:$0x3]
      %v238 = vmul.f32 %v237, 0.03125
      %v239 = vmul.f32 %v238, %v238
      %v241 = vrot.slane %v239, 7
      %v243 = vsub.f32 %v238, %v241
      %v244 = vld [vmem:[%s2] sm:$0x1]
      %v245 = vadd.f32 %v243, 1e-05
      %v246 = vrsqrt.pop %v245
      %v249 = vunpack.c.l.s4 1966171168
      %v250 = vunpack.c.0.s8 %v249
      %v251 = vlaneseq
      %v252 = vshrl.u32 %v251, 7
      %v253 = vsub.s32 %v250, %v252
      %v254 = vrot.slane %v246, %v253
      %v255 = vcombine.high %v254, %v254
      %v257 = vunpack.c.l.s4 1966171168
      %v258 = vunpack.c.0.s8 %v257
      %v259 = vlaneseq
      %v260 = vshrl.u32 %v259, 7
      %v261 = vsub.s32 %v258, %v260
      %v262 = vrot.slane %v255, %v261
      %v264 = vmul.f32 %v244, %v262
      %v265 = vld [vmem:[%s3] sm:$0x1]
      %v266 = vmul.f32 %v238, %v264
      %v267 = vsub.f32 %v265, %v266
      %v268 = vld [vmem:[%s225] sm:$0xf]
      %v269 = vld [vmem:[%s225 + $0x4] sm:$0xf]
      %v270 = vld [vmem:[%s225 + $0x8] sm:$0xf]
      %v271 = vld [vmem:[%s225 + $0xc] sm:$0xf]
      %v273 = vlaneseq
      %v274 = vshrl.u32 %v273, 7
      %v275 = vsub.s32 0, %v274
      %v276 = vrot.slane %v264, %v275
      %v278 = vmul.f32 %v268, %v276
      %v279 = vmul.f32 %v269, %v276
      %v280 = vmul.f32 %v270, %v276
      %v281 = vmul.f32 %v271, %v276
      %v283 = vlaneseq
      %v284 = vshrl.u32 %v283, 7
      %v285 = vsub.s32 0, %v284
      %v286 = vrot.slane %v267, %v285
      %v288 = vadd.f32 %v278, %v286
      %v289 = vadd.f32 %v279, %v286
      %v290 = vadd.f32 %v280, %v286
      %v291 = vadd.f32 %v281, %v286
      %v292 = vmax.f32 %v288, 0.0
      %v293 = vmax.f32 %v289, 0.0
      %v294 = vmax.f32 %v290, 0.0
      %v295 = vmax.f32 %v291, 0.0
      %v296 = vpack.c.bf16 %v292, %v292
      %v297 = vpack.c.bf16 %v293, %v293
      %v298 = vpack.c.bf16 %v294, %v294
      %v299 = vpack.c.bf16 %v295, %v295
      %300 = vst [vmem:[%s235] sm:$0x3] %v296
      %301 = vst [vmem:[%s235 + $0x2] sm:$0x3] %v297
      %302 = vst [vmem:[%s235 + $0x4] sm:$0x3] %v298
      %303 = vst [vmem:[%s235 + $0x6] sm:$0x3] %v299
      %s304 = smul.u32 4, %s20
      %p305 = scmp.lt.s32.totalorder %s19, 1
      %s306 = scalar_select %p305, %s19, 1
      %p307 = scmp.lt.s32.totalorder %s304, 3
      %s308 = scalar_select %p307, %s304, 3
      %s309 = smul.addr %s306, 4
      %s310 = sadd.s32 %s308, %s309
      %s311 = smul.addr %s310, 2
      %s312 = scalar_lea.vmem %s4, %s311
      // Predicated region
      $region37: #{encoder_forward.14} parent=35 // pred_check
        %p313 = pneg %p138
      $region38: #{encoder_forward.14} parent=35 // pred_check_branch
        %315 = sbr.rel (%p313) target = $region40
      $region39: #{encoder_forward.14} parent=35 // pred_region
        %s316 = smul.u32 4, %s20
      $region40: #{encoder_forward.14} parent=35 // pred_fallthru
        _
    $region36: #{encoder_forward.14} parent=5 // pred_fallthru
      _
    %p317 = scmp.le.s32.totalorder 2, %s10
    // Predicated region
    $region41: #{encoder_forward.14} parent=5 // pred_check
      %p318 = pneg %p317
    $region42: #{encoder_forward.14} parent=5 // pred_check_branch
      %320 = sbr.rel (%p318) target = $region44
    $region43: #{encoder_forward.14} parent=5 // pred_region
      %s321 = ssub.s32 %s10, 2
      // Predicated region
      $region45: #{encoder_forward.14} parent=43 // pred_check
        %p322 = pneg %p144
      $region46: #{encoder_forward.14} parent=43 // pred_check_branch
        %324 = sbr.rel (%p322) target = $region48
      $region47: #{encoder_forward.14} parent=43 // pred_region
        %s325 = smul.u32 4, %s22
        %p326 = scmp.lt.s32.totalorder %s21, 1
        %s327 = scalar_select %p326, %s21, 1
        %p328 = scmp.lt.s32.totalorder %s325, 3
        %s329 = scalar_select %p328, %s325, 3
        %s330 = smul.addr %s327, 4
        %s331 = sadd.s32 %s329, %s330
        %s332 = smul.addr %s331, 2
        %s333 = scalar_lea.vmem %s4, %s332
      $region48: #{encoder_forward.14} parent=43 // pred_fallthru
        _
    $region44: #{encoder_forward.14} parent=5 // pred_fallthru
      _
  $region6: #{encoder_forward.14} parent=0 // loop_footer
    %s14 = sadd.s32 1, %s10
  $region7: #{encoder_forward.14} parent=0 // loop_footer_branch
    %9 = sbr.rel target = $region3
  $region8: #{encoder_forward.14} parent=0 // loop_exit
    _

// kernel: encoder_forward.13
$region0: #{encoder_forward.13}
  #allocation0 [shape = 'u32[]', space=smem, size = 0x4, offset = 0x4, fixed_abs, tag = 'smem constant byte address 0x4 - core index']
  #allocation1 [shape = 'u32[144,128]{1,0:T(1,128)}', space=vmem, size = 0x12000, scoped, tag = 'internal scratch']
  %s0 = inlined_call_operand.vmem [shape: bf16[2,10,5,64], index: 0, kind: input, shape index: {}]
  %s1 = inlined_call_operand.vmem [shape: bf16[2,10,5,64], index: 1, kind: input, shape index: {}]
  %s2 = inlined_call_operand.vmem [shape: bf16[9,64,128], index: 2, kind: input, shape index: {}]
  %s3 = inlined_call_operand.vmem [shape: f32[2,4,4,128], index: 3, kind: output, shape index: {0}]
  %s4 = inlined_call_operand.vmem [shape: f32[2,1,2,128], index: 4, kind: output, shape index: {1}]
  %5 = xla_tuple %s3, %s4
  %s6 = sld [smem:[#allocation0]]
  $region60: #{encoder_forward.13} parent=0
    _
  %s8 = ssub.s32 1, %s6
  %s9 = scalar_select 0, %s8, %s6
  loop: start=0, step=1, limit=4
  $region2: #{encoder_forward.13} parent=0 // loop_pre_header
    _
  $region3: #{encoder_forward.13} parent=0 // loop_header
    %s11 = sphi 0, %s15
    %p12 = scmp.ge.s32.totalorder %s11, 4
    %s18 = sphi 0, %s30
    %s19 = sphi 0, %s26
    %s20 = sphi 0, %s18
    %s21 = sphi 0, %s19
    %s22 = sphi 0, %s20
    %s23 = sphi 0, %s21
    %s33 = sphi 0, %s35
    %s36 = sphi 0, %s33
    %s37 = sphi 0, %s36
    %s53 = sphi 0, %s37
    %s59 = sphi 0, %s61
    %s62 = sphi 0, %s59
    %s63 = sphi 0, %s62
    %s79 = sphi 0, %s63
    %s83 = sphi 0, %s83
    %s85 = sphi 0, %s83
    %s86 = sphi 0, %s85
    %s100 = sphi 0, %s86
    %s108 = sphi 0, %s110
    %s111 = sphi 0, %s108
    %s112 = sphi 0, %s111
    %s128 = sphi 0, %s112
    %s136 = sphi 0, %s138
    %s139 = sphi 0, %s136
    %s140 = sphi 0, %s139
    %s156 = sphi 0, %s140
  $region4: #{encoder_forward.13} parent=0 // loop_header_branch
    %14 = sbr.rel (%p12) target = $region8
  $region5: #{encoder_forward.13} parent=0 // loop_body
    %s16 = ssub.s32 %s11, 1
    %s17 = ssub.s32 %s11, 2
    %s24 = sadd.s32 1, %s19
    %p25 = scmp.ge.s32.totalorder %s24, 1
    %s26 = scalar_select %p25, 0, %s24
    %s27 = sadd.s32 1, %s18
    %s28 = scalar_select %p25, %s27, %s18
    %p29 = scmp.ge.s32.totalorder %s28, 2
    %s30 = scalar_select %p29, 0, %s28
    %s31 = ssub.s32 %s18, %s30
    %p32 = scmp.eq.s32.totalorder %s31, 0
    %s34 = sadd.s32 %s33, 1
    %s35 = scalar_select %p32, %s33, %s34
    %p38 = pneg %p32
    %p39 = scmp.eq.s32.totalorder %s11, 1
    %p40 = por %p38, %p39
    %p41 = scmp.ne.s32.totalorder %s33, %s36
    %p42 = scmp.eq.s32.totalorder %s11, 0
    %p43 = por %p41, %p42
    %p44 = scmp.ne.s32.totalorder %s33, %s36
    %p45 = scmp.eq.s32.totalorder %s16, 1
    %p46 = por %p44, %p45
    %p47 = scmp.ne.s32.totalorder %s36, %s37
    %p48 = scmp.eq.s32.totalorder %s16, 0
    %p49 = por %p47, %p48
    %p50 = scmp.ne.s32.totalorder %s36, %s37
    %p51 = scmp.eq.s32.totalorder %s17, 1
    %p52 = por %p50, %p51
    %p54 = scmp.ne.s32.totalorder %s37, %s53
    %p55 = scmp.eq.s32.totalorder %s17, 0
    %p56 = por %p54, %p55
    %s57 = ssub.s32 %s18, %s30
    %p58 = scmp.eq.s32.totalorder %s57, 0
    %s60 = sadd.s32 %s59, 1
    %s61 = scalar_select %p58, %s59, %s60
    %p64 = pneg %p58
    %p65 = scmp.eq.s32.totalorder %s11, 1
    %p66 = por %p64, %p65
    %p67 = scmp.ne.s32.totalorder %s59, %s62
    %p68 = scmp.eq.s32.totalorder %s11, 0
    %p69 = por %p67, %p68
    %p70 = scmp.ne.s32.totalorder %s59, %s62
    %p71 = scmp.eq.s32.totalorder %s16, 1
    %p72 = por %p70, %p71
    %p73 = scmp.ne.s32.totalorder %s62, %s63
    %p74 = scmp.eq.s32.totalorder %s16, 0
    %p75 = por %p73, %p74
    %p76 = scmp.ne.s32.totalorder %s62, %s63
    %p77 = scmp.eq.s32.totalorder %s17, 1
    %p78 = por %p76, %p77
    %p80 = scmp.ne.s32.totalorder %s63, %s79
    %p81 = scmp.eq.s32.totalorder %s17, 0
    %p82 = por %p80, %p81
    %s84 = sadd.s32 %s83, 1
    %p87 = scmp.eq.s32.totalorder %s11, 1
    %p88 = scmp.ne.s32.totalorder %s83, %s85
    %p89 = scmp.eq.s32.totalorder %s11, 0
    %p90 = por %p88, %p89
    %p91 = scmp.ne.s32.totalorder %s83, %s85
    %p92 = scmp.eq.s32.totalorder %s16, 1
    %p93 = por %p91, %p92
    %p94 = scmp.ne.s32.totalorder %s85, %s86
    %p95 = scmp.eq.s32.totalorder %s16, 0
    %p96 = por %p94, %p95
    %p97 = scmp.ne.s32.totalorder %s85, %s86
    %p98 = scmp.eq.s32.totalorder %s17, 1
    %p99 = por %p97, %p98
    %p101 = scmp.ne.s32.totalorder %s86, %s100
    %p102 = scmp.eq.s32.totalorder %s17, 0
    %p103 = por %p101, %p102
    %s104 = ssub.s32 %s18, %s30
    %s105 = ssub.s32 %s19, %s26
    %s106 = sor.u32 %s104, %s105
    %p107 = scmp.eq.s32.totalorder %s106, 0
    %s109 = sadd.s32 %s108, 1
    %s110 = scalar_select %p107, %s108, %s109
    %p113 = pneg %p107
    %p114 = scmp.eq.s32.totalorder %s11, 1
    %p115 = por %p113, %p114
    %p116 = scmp.ne.s32.totalorder %s108, %s111
    %p117 = scmp.eq.s32.totalorder %s11, 0
    %p118 = por %p116, %p117
    %p119 = scmp.ne.s32.totalorder %s108, %s111
    %p120 = scmp.eq.s32.totalorder %s16, 1
    %p121 = por %p119, %p120
    %p122 = scmp.ne.s32.totalorder %s111, %s112
    %p123 = scmp.eq.s32.totalorder %s16, 0
    %p124 = por %p122, %p123
    %p125 = scmp.ne.s32.totalorder %s111, %s112
    %p126 = scmp.eq.s32.totalorder %s17, 1
    %p127 = por %p125, %p126
    %p129 = scmp.ne.s32.totalorder %s112, %s128
    %p130 = scmp.eq.s32.totalorder %s17, 0
    %p131 = por %p129, %p130
    %s132 = ssub.s32 %s18, %s30
    %s133 = ssub.s32 %s19, %s26
    %s134 = sor.u32 %s132, %s133
    %p135 = scmp.eq.s32.totalorder %s134, 0
    %s137 = sadd.s32 %s136, 1
    %s138 = scalar_select %p135, %s136, %s137
    %p141 = pneg %p135
    %p142 = scmp.eq.s32.totalorder %s11, 1
    %p143 = por %p141, %p142
    %p144 = scmp.ne.s32.totalorder %s136, %s139
    %p145 = scmp.eq.s32.totalorder %s11, 0
    %p146 = por %p144, %p145
    %p147 = scmp.ne.s32.totalorder %s136, %s139
    %p148 = scmp.eq.s32.totalorder %s16, 1
    %p149 = por %p147, %p148
    %p150 = scmp.ne.s32.totalorder %s139, %s140
    %p151 = scmp.eq.s32.totalorder %s16, 0
    %p152 = por %p150, %p151
    %p153 = scmp.ne.s32.totalorder %s139, %s140
    %p154 = scmp.eq.s32.totalorder %s17, 1
    %p155 = por %p153, %p154
    %p157 = scmp.ne.s32.totalorder %s140, %s156
    %p158 = scmp.eq.s32.totalorder %s17, 0
    %p159 = por %p157, %p158
    %p160 = scmp.le.s32.totalorder 1, %s11
    %p161 = scmp.lt.s32.totalorder %s11, 3
    %p162 = pnand %p160, %p161
    %p163 = pneg %p162
    // Predicated region
    $region9: #{encoder_forward.13} parent=5 // pred_check
      _
    $region10: #{encoder_forward.13} parent=5 // pred_check_branch
      %165 = sbr.rel (%p162) target = $region12
    $region11: #{encoder_forward.13} parent=5 // pred_region
      %s166 = ssub.s32 %s11, 1
      // Predicated region
      $region13: #{encoder_forward.13} parent=11 // pred_check
        %p167 = pneg %p96
      $region14: #{encoder_forward.13} parent=11 // pred_check_branch
        %169 = sbr.rel (%p167) target = $region16
      $region15: #{encoder_forward.13} parent=11 // pred_region
        _
      $region16: #{encoder_forward.13} parent=11 // pred_fallthru
        _
    $region12: #{encoder_forward.13} parent=5 // pred_fallthru
      _
    %p170 = scmp.lt.s32.totalorder %s11, 2
    // Predicated region
    $region17: #{encoder_forward.13} parent=5 // pred_check
      %p171 = pneg %p170
    $region18: #{encoder_forward.13} parent=5 // pred_check_branch
      %173 = sbr.rel (%p171) target = $region20
    $region19: #{encoder_forward.13} parent=5 // pred_region
      // Predicated region
      $region21: #{encoder_forward.13} parent=19 // pred_check
        %p174 = pneg %p43
      $region22: #{encoder_forward.13} parent=19 // pred_check_branch
        %176 = sbr.rel (%p174) target = $region24
      $region23: #{encoder_forward.13} parent=19 // pred_region
        %p177 = scmp.lt.s32.totalorder %s18, 1
        %s178 = scalar_select %p177, %s18, 1
        %s179 = smul.addr %s178, 10
        %s180 = smul.addr %s179, 4
        %s181 = scalar_lea.vmem %s0, %s180
      $region24: #{encoder_forward.13} parent=19 // pred_fallthru
        _
      // Predicated region
      $region25: #{encoder_forward.13} parent=19 // pred_check
        %p182 = pneg %p69
      $region26: #{encoder_forward.13} parent=19 // pred_check_branch
        %184 = sbr.rel (%p182) target = $region28
      $region27: #{encoder_forward.13} parent=19 // pred_region
        %p185 = scmp.lt.s32.totalorder %s18, 1
        %s186 = scalar_select %p185, %s18, 1
        %s187 = smul.addr %s186, 10
        %s188 = smul.addr %s187, 4
        %s189 = scalar_lea.vmem %s1, %s188
      $region28: #{encoder_forward.13} parent=19 // pred_fallthru
        _
    $region20: #{encoder_forward.13} parent=5 // pred_fallthru
      _
    %p190 = scmp.le.s32.totalorder 1, %s11
    %p191 = scmp.lt.s32.totalorder %s11, 3
    %p192 = pnand %p190, %p191
    %p193 = pneg %p192
    // Predicated region
    $region29: #{encoder_forward.13} parent=5 // pred_check
      _
    $region30: #{encoder_forward.13} parent=5 // pred_check_branch
      %195 = sbr.rel (%p192) target = $region32
    $region31: #{encoder_forward.13} parent=5 // pred_region
      %s196 = ssub.s32 %s11, 1
      %p197 = scmp.lt.s32.totalorder %s20, 1
      %s198 = scalar_select %p197, %s20, 1
      %s199 = smul.addr %s198, 10
      %s200 = smul.addr %s199, 4
      %s201 = scalar_lea.vmem %s0, %s200
      %p202 = pneg %p49
      %p203 = pneg %p46
      %p204 = scmp.lt.s32.totalorder %s20, 1
      %s205 = scalar_select %p204, %s20, 1
      %s206 = smul.addr %s205, 10
      %s207 = smul.addr %s206, 4
      %s208 = scalar_lea.vmem %s1, %s207
      %p209 = pneg %p75
      %p210 = pneg %p72
      %p211 = pneg %p96
      %p212 = pneg %p93
      %p213 = pneg %p124
      %p214 = pneg %p121
      %s215 = smul.u32 4, %s21
      %p216 = scmp.lt.s32.totalorder %s20, 1
      %s217 = scalar_select %p216, %s20, 1
      %p218 = scmp.lt.s32.totalorder %s215, 3
      %s219 = scalar_select %p218, %s215, 3
      %s220 = smul.addr %s217, 4
      %s221 = sadd.s32 %s219, %s220
      %s222 = smul.addr %s221, 4
      %s223 = scalar_lea.vmem %s3, %s222
      %p224 = pneg %p152
      %p225 = pneg %p149
      %p226 = scmp.lt.s32.totalorder %s20, 1
      %s227 = scalar_select %p226, %s20, 1
      %p228 = scmp.lt.s32.totalorder %s21, 0
      %s229 = scalar_select %p228, %s21, 0
      %s230 = sadd.s32 %s229, %s227
      %s231 = smul.addr %s230, 2
      %s232 = scalar_lea.vmem %s4, %s231
      %p233 = scmp.lt.s32.totalorder %s20, 1
      %s234 = scalar_select %p233, %s20, 1
      %s235 = smul.addr %s234, 10
      %s236 = smul.addr %s235, 4
      %s237 = scalar_lea.vmem %s0, %s236
      %p238 = scmp.lt.s32.totalorder %s20, 1
      %s239 = scalar_select %p238, %s20, 1
      %s240 = smul.addr %s239, 10
      %s241 = smul.addr %s240, 4
      %s242 = scalar_lea.vmem %s1, %s241
      %s243 = smul.u32 4, %s21
      %p244 = scmp.lt.s32.totalorder %s20, 1
      %s245 = scalar_select %p244, %s20, 1
      %p246 = scmp.lt.s32.totalorder %s243, 3
      %s247 = scalar_select %p246, %s243, 3
      %s248 = smul.addr %s245, 4
      %s249 = sadd.s32 %s247, %s248
      %s250 = smul.addr %s249, 4
      %s251 = scalar_lea.vmem %s3, %s250
      %s252 = smul.u32 4, %s21
      %p253 = scmp.lt.s32.totalorder %s20, 1
      %s254 = scalar_select %p253, %s20, 1
      %p255 = scmp.lt.s32.totalorder %s21, 0
      %s256 = scalar_select %p255, %s21, 0
      %s257 = sadd.s32 %s256, %s254
      %s258 = smul.addr %s257, 2
      %s259 = scalar_lea.vmem %s4, %s258
      %s261 = smul.u32 %s21, 4
      loop: start=0, step=1, limit=4
      $region33: #{encoder_forward.13} parent=31 // loop_pre_header
        _
      $region34: #{encoder_forward.13} parent=31 // loop_header
        %s263 = sphi 0, %s267
        %p264 = scmp.ge.s32.totalorder %s263, 4
      $region35: #{encoder_forward.13} parent=31 // loop_header_branch
        %266 = sbr.rel (%p264) target = $region39
      $region36: #{encoder_forward.13} parent=31 // loop_body
        %s268 = sadd.s32 %s261, %s263
        %s269 = smul.u32 %s268, 2
        %s270 = smul.addr %s269, 4
        %s271 = scalar_lea.vmem %s237, %s270
        %v272 = vld [vmem:[%s271] sm:$0x3]
        %v273 = vld [vmem:[%s2] sm:$0xf]
        %v274 = vld [vmem:[%s2 + $0x4] sm:$0xf]
        %v275 = vld [vmem:[%s2 + $0x8] sm:$0xf]
        %v276 = vld [vmem:[%s2 + $0xc] sm:$0xf]
        %v277 = vld [vmem:[%s2 + $0x10] sm:$0xf]
        %v278 = vld [vmem:[%s2 + $0x14] sm:$0xf]
        %v279 = vld [vmem:[%s2 + $0x18] sm:$0xf]
        %v280 = vld [vmem:[%s2 + $0x1c] sm:$0xf]
        %s281 = smul.addr %s269, 4
        %s282 = scalar_lea.vmem %s242, %s281
        %v283 = vld [vmem:[%s282] sm:$0x3]
        %s284 = scalar_lea.vmem %s2, 32
        %v285 = vld [vmem:[%s284] sm:$0xf]
        %v286 = vld [vmem:[%s284 + $0x4] sm:$0xf]
        %v287 = vld [vmem:[%s284 + $0x8] sm:$0xf]
        %v288 = vld [vmem:[%s284 + $0xc] sm:$0xf]
        %v289 = vld [vmem:[%s284 + $0x10] sm:$0xf]
        %v290 = vld [vmem:[%s284 + $0x14] sm:$0xf]
        %v291 = vld [vmem:[%s284 + $0x18] sm:$0xf]
        %v292 = vld [vmem:[%s284 + $0x1c] sm:$0xf]
        %v301 = vunpack.c.l.b16 %v285
        %v302 = vunpack.c.l.b16 %v286
        %v303 = vunpack.c.l.b16 %v287
        %v304 = vunpack.c.l.b16 %v288
        %v305 = vunpack.c.l.b16 %v289
        %v306 = vunpack.c.l.b16 %v290
        %v307 = vunpack.c.l.b16 %v291
        %v308 = vunpack.c.l.b16 %v292
        %v309 = vpack.c.b16 %v302, %v301
        %v310 = vpack.c.b16 %v304, %v303
        %v311 = vpack.c.b16 %v306, %v305
        %v312 = vpack.c.b16 %v308, %v307
        %vm317 = vcmask 523264
        %v319 = vsel %vm317, %v283, 0
        %321 = vmatprep.subr.bf16.mxu0 0
        %322 = vmatpush1.bf16.msra.mxu0 %v309
        %323 = vmatprep.subr.bf16.mxu0 0
        %324 = vmatpush1.bf16.msra.mxu0 %v310
        %325 = vmatprep.subr.bf16.mxu0 0
        %326 = vmatpush1.bf16.msra.mxu0 %v311
        %327 = vmatprep.subr.bf16.mxu0 0
        %328 = vmatpush1.bf16.msra.mxu0 %v312
        %329 = vmatprep.subr.bf16.mxu0 0
        %330 = vmatpush1.bf16.msra.mxu0 0
        %331 = vmatprep.subr.bf16.mxu0 0
        %332 = vmatpush1.bf16.msra.mxu0 0
        %333 = vmatprep.subr.bf16.mxu0 0
        %334 = vmatpush1.bf16.msra.mxu0 0
        %335 = vmatprep.subr.bf16.mxu0 0
        %336 = vmatpush1.bf16.msra.mxu0 0
        %337 = vmatprep.subr.bf16.mxu0 0
        %338 = vmatpush1.bf16.msra.mxu0 0
        %339 = vmatprep.subr.bf16.mxu0 0
        %340 = vmatpush1.bf16.msra.mxu0 0
        %341 = vmatprep.subr.bf16.mxu0 0
        %342 = vmatpush1.bf16.msra.mxu0 0
        %343 = vmatprep.subr.bf16.mxu0 0
        %344 = vmatpush1.bf16.msra.mxu0 0
        %345 = vmatprep.subr.bf16.mxu0 0
        %346 = vmatpush1.bf16.msra.mxu0 0
        %347 = vmatprep.subr.bf16.mxu0 0
        %348 = vmatpush1.bf16.msra.mxu0 0
        %349 = vmatprep.subr.bf16.mxu0 0
        %350 = vmatpush1.bf16.msra.mxu0 0
        %351 = vmatprep.subr.bf16.mxu0 0
        %352 = vmatpush1.bf16.msra.mxu0 0
        %353 = vmatprep.mubr.bf16.mxu0 0
        %354 = vmatmul.mubr.bf16.gmra.mrb[0].mxu0 %v319
        %v355 = vpop.f32.mrb[0].mxu0
        %v356 = vadd.f32 0.0, %v355
        %v357 = vpop.f32.mrb[0].mxu0
        %v358 = vpop.f32.mrb[0].mxu0
        %v359 = vpop.f32.mrb[0].mxu0
        %360 = vdwg.mxu0
        %v369 = vunpack.c.l.b16 %v273
        %v370 = vunpack.c.l.b16 %v274
        %v371 = vunpack.c.l.b16 %v275
        %v372 = vunpack.c.l.b16 %v276
        %v373 = vunpack.c.l.b16 %v277
        %v374 = vunpack.c.l.b16 %v278
        %v375 = vunpack.c.l.b16 %v279
        %v376 = vunpack.c.l.b16 %v280
        %v377 = vpack.c.b16 %v370, %v369
        %v378 = vpack.c.b16 %v372, %v371
        %v379 = vpack.c.b16 %v374, %v373
        %v380 = vpack.c.b16 %v376, %v375
        %v386 = vsel %vm317, %v272, 0
        %388 = vmatprep.subr.bf16.mxu0 0
        %389 = vmatpush1.bf16.msra.mxu0 %v377
        %390 = vmatprep.subr.bf16.mxu0 0
        %391 = vmatpush1.bf16.msra.mxu0 %v378
        %392 = vmatprep.subr.bf16.mxu0 0
        %393 = vmatpush1.bf16.msra.mxu0 %v379
        %394 = vmatprep.subr.bf16.mxu0 0
        %395 = vmatpush1.bf16.msra.mxu0 %v380
        %396 = vmatprep.subr.bf16.mxu0 0
        %397 = vmatpush1.bf16.msra.mxu0 0
        %398 = vmatprep.subr.bf16.mxu0 0
        %399 = vmatpush1.bf16.msra.mxu0 0
        %400 = vmatprep.subr.bf16.mxu0 0
        %401 = vmatpush1.bf16.msra.mxu0 0
        %402 = vmatprep.subr.bf16.mxu0 0
        %403 = vmatpush1.bf16.msra.mxu0 0
        %404 = vmatprep.subr.bf16.mxu0 0
        %405 = vmatpush1.bf16.msra.mxu0 0
        %406 = vmatprep.subr.bf16.mxu0 0
        %407 = vmatpush1.bf16.msra.mxu0 0
        %408 = vmatprep.subr.bf16.mxu0 0
        %409 = vmatpush1.bf16.msra.mxu0 0
        %410 = vmatprep.subr.bf16.mxu0 0
        %411 = vmatpush1.bf16.msra.mxu0 0
        %412 = vmatprep.subr.bf16.mxu0 0
        %413 = vmatpush1.bf16.msra.mxu0 0
        %414 = vmatprep.subr.bf16.mxu0 0
        %415 = vmatpush1.bf16.msra.mxu0 0
        %416 = vmatprep.subr.bf16.mxu0 0
        %417 = vmatpush1.bf16.msra.mxu0 0
        %418 = vmatprep.subr.bf16.mxu0 0
        %419 = vmatpush1.bf16.msra.mxu0 0
        %420 = vmatprep.mubr.bf16.mxu0 0
        %421 = vmatmul.mubr.bf16.gmra.mrb[0].mxu0 %v386
        %v422 = vpop.f32.mrb[0].mxu0
        %v423 = vadd.f32 %v356, %v422
        %v424 = vpop.f32.mrb[0].mxu0
        %v425 = vpop.f32.mrb[0].mxu0
        %v426 = vpop.f32.mrb[0].mxu0
        %427 = vdwg.mxu0
        %v428 = vld [vmem:[%s271] sm:$0x7]
        %s429 = scalar_lea.vmem %s2, 64
        %v430 = vld [vmem:[%s429] sm:$0xf]
        %v431 = vld [vmem:[%s429 + $0x4] sm:$0xf]
        %v432 = vld [vmem:[%s429 + $0x8] sm:$0xf]
        %v433 = vld [vmem:[%s429 + $0xc] sm:$0xf]
        %v434 = vld [vmem:[%s429 + $0x10] sm:$0xf]
        %v435 = vld [vmem:[%s429 + $0x14] sm:$0xf]
        %v436 = vld [vmem:[%s429 + $0x18] sm:$0xf]
        %v437 = vld [vmem:[%s429 + $0x1c] sm:$0xf]
        %v439 = vunpack.c.l.b16 %v428
        %v440 = vpack.c.b16 %v439, %v439
        %v442 = vshrl.u32 %v440, 16
        %v444 = vshll.u32 %v440, 16
        %v446 = vrot.slane %v444, 1
        %v447 = vor.u32 %v442, %v446
        %v456 = vunpack.c.l.b16 %v430
        %v457 = vunpack.c.l.b16 %v431
        %v458 = vunpack.c.l.b16 %v432
        %v459 = vunpack.c.l.b16 %v433
        %v460 = vunpack.c.l.b16 %v434
        %v461 = vunpack.c.l.b16 %v435
        %v462 = vunpack.c.l.b16 %v436
        %v463 = vunpack.c.l.b16 %v437
        %v464 = vpack.c.b16 %v457, %v456
        %v465 = vpack.c.b16 %v459, %v458
        %v466 = vpack.c.b16 %v461, %v460
        %v467 = vpack.c.b16 %v463, %v462
        %v473 = vsel %vm317, %v447, 0
        %475 = vmatprep.subr.bf16.mxu0 0
        %476 = vmatpush1.bf16.msra.mxu0 %v464
        %477 = vmatprep.subr.bf16.mxu0 0
        %478 = vmatpush1.bf16.msra.mxu0 %v465
        %479 = vmatprep.subr.bf16.mxu0 0
        %480 = vmatpush1.bf16.msra.mxu0 %v466
        %481 = vmatprep.subr.bf16.mxu0 0
        %482 = vmatpush1.bf16.msra.mxu0 %v467
        %483 = vmatprep.subr.bf16.mxu0 0
        %484 = vmatpush1.bf16.msra.mxu0 0
        %485 = vmatprep.subr.bf16.mxu0 0
        %486 = vmatpush1.bf16.msra.mxu0 0
        %487 = vmatprep.subr.bf16.mxu0 0
        %488 = vmatpush1.bf16.msra.mxu0 0
        %489 = vmatprep.subr.bf16.mxu0 0
        %490 = vmatpush1.bf16.msra.mxu0 0
        %491 = vmatprep.subr.bf16.mxu0 0
        %492 = vmatpush1.bf16.msra.mxu0 0
        %493 = vmatprep.subr.bf16.mxu0 0
        %494 = vmatpush1.bf16.msra.mxu0 0
        %495 = vmatprep.subr.bf16.mxu0 0
        %496 = vmatpush1.bf16.msra.mxu0 0
        %497 = vmatprep.subr.bf16.mxu0 0
        %498 = vmatpush1.bf16.msra.mxu0 0
        %499 = vmatprep.subr.bf16.mxu0 0
        %500 = vmatpush1.bf16.msra.mxu0 0
        %501 = vmatprep.subr.bf16.mxu0 0
        %502 = vmatpush1.bf16.msra.mxu0 0
        %503 = vmatprep.subr.bf16.mxu0 0
        %504 = vmatpush1.bf16.msra.mxu0 0
        %505 = vmatprep.subr.bf16.mxu0 0
        %506 = vmatpush1.bf16.msra.mxu0 0
        %507 = vmatprep.mubr.bf16.mxu0 0
        %508 = vmatmul.mubr.bf16.gmra.mrb[0].mxu0 %v473
        %v509 = vpop.f32.mrb[0].mxu0
        %v510 = vadd.f32 0.0, %v509
        %v511 = vpop.f32.mrb[0].mxu0
        %v512 = vpop.f32.mrb[0].mxu0
        %v513 = vpop.f32.mrb[0].mxu0
        %514 = vdwg.mxu0
        %v515 = vadd.f32 %v423, %v510
        %s516 = sadd.s32 %s269, 1
        %s517 = smul.addr %s516, 4
        %s518 = scalar_lea.vmem %s237, %s517
        %v519 = vld [vmem:[%s518] sm:$0x3]
        %s520 = scalar_lea.vmem %s2, 96
        %v521 = vld [vmem:[%s520] sm:$0xf]
        %v522 = vld [vmem:[%s520 + $0x4] sm:$0xf]
        %v523 = vld [vmem:[%s520 + $0x8] sm:$0xf]
        %v524 = vld [vmem:[%s520 + $0xc] sm:$0xf]
        %v525 = vld [vmem:[%s520 + $0x10] sm:$0xf]
        %v526 = vld [vmem:[%s520 + $0x14] sm:$0xf]
        %v527 = vld [vmem:[%s520 + $0x18] sm:$0xf]
        %v528 = vld [vmem:[%s520 + $0x1c] sm:$0xf]
        %v537 = vunpack.c.l.b16 %v521
        %v538 = vunpack.c.l.b16 %v522
        %v539 = vunpack.c.l.b16 %v523
        %v540 = vunpack.c.l.b16 %v524
        %v541 = vunpack.c.l.b16 %v525
        %v542 = vunpack.c.l.b16 %v526
        %v543 = vunpack.c.l.b16 %v527
        %v544 = vunpack.c.l.b16 %v528
        %v545 = vpack.c.b16 %v538, %v537
        %v546 = vpack.c.b16 %v540, %v539
        %v547 = vpack.c.b16 %v542, %v541
        %v548 = vpack.c.b16 %v544, %v543
        %v554 = vsel %vm317, %v519, 0
        %556 = vmatprep.subr.bf16.mxu0 0
        %557 = vmatpush1.bf16.msra.mxu0 %v545
        %558 = vmatprep.subr.bf16.mxu0 0
        %559 = vmatpush1.bf16.msra.mxu0 %v546
        %560 = vmatprep.subr.bf16.mxu0 0
        %561 = vmatpush1.bf16.msra.mxu0 %v547
        %562 = vmatprep.subr.bf16.mxu0 0
        %563 = vmatpush1.bf16.msra.mxu0 %v548
        %564 = vmatprep.subr.bf16.mxu0 0
        %565 = vmatpush1.bf16.msra.mxu0 0
        %566 = vmatprep.subr.bf16.mxu0 0
        %567 = vmatpush1.bf16.msra.mxu0 0
        %568 = vmatprep.subr.bf16.mxu0 0
        %569 = vmatpush1.bf16.msra.mxu0 0
        %570 = vmatprep.subr.bf16.mxu0 0
        %571 = vmatpush1.bf16.msra.mxu0 0
        %572 = vmatprep.subr.bf16.mxu0 0
        %573 = vmatpush1.bf16.msra.mxu0 0
        %574 = vmatprep.subr.bf16.mxu0 0
        %575 = vmatpush1.bf16.msra.mxu0 0
        %576 = vmatprep.subr.bf16.mxu0 0
        %577 = vmatpush1.bf16.msra.mxu0 0
        %578 = vmatprep.subr.bf16.mxu0 0
        %579 = vmatpush1.bf16.msra.mxu0 0
        %580 = vmatprep.subr.bf16.mxu0 0
        %581 = vmatpush1.bf16.msra.mxu0 0
        %582 = vmatprep.subr.bf16.mxu0 0
        %583 = vmatpush1.bf16.msra.mxu0 0
        %584 = vmatprep.subr.bf16.mxu0 0
        %585 = vmatpush1.bf16.msra.mxu0 0
        %586 = vmatprep.subr.bf16.mxu0 0
        %587 = vmatpush1.bf16.msra.mxu0 0
        %588 = vmatprep.mubr.bf16.mxu0 0
        %589 = vmatmul.mubr.bf16.gmra.mrb[0].mxu0 %v554
        %v590 = vpop.f32.mrb[0].mxu0
        %v591 = vadd.f32 0.0, %v590
        %v592 = vpop.f32.mrb[0].mxu0
        %v593 = vpop.f32.mrb[0].mxu0
        %v594 = vpop.f32.mrb[0].mxu0
        %595 = vdwg.mxu0
        %v596 = vadd.f32 %v515, %v591
        %s597 = smul.addr %s516, 4
        %s598 = scalar_lea.vmem %s242, %s597
        %v599 = vld [vmem:[%s598] sm:$0x3]
        %s600 = scalar_lea.vmem %s2, 128
        %v601 = vld [vmem:[%s600] sm:$0xf]
        %v602 = vld [vmem:[%s600 + $0x4] sm:$0xf]
        %v603 = vld [vmem:[%s600 + $0x8] sm:$0xf]
        %v604 = vld [vmem:[%s600 + $0xc] sm:$0xf]
        %v605 = vld [vmem:[%s600 + $0x10] sm:$0xf]
        %v606 = vld [vmem:[%s600 + $0x14] sm:$0xf]
        %v607 = vld [vmem:[%s600 + $0x18] sm:$0xf]
        %v608 = vld [vmem:[%s600 + $0x1c] sm:$0xf]
        %v617 = vunpack.c.l.b16 %v601
        %v618 = vunpack.c.l.b16 %v602
        %v619 = vunpack.c.l.b16 %v603
        %v620 = vunpack.c.l.b16 %v604
        %v621 = vunpack.c.l.b16 %v605
        %v622 = vunpack.c.l.b16 %v606
        %v623 = vunpack.c.l.b16 %v607
        %v624 = vunpack.c.l.b16 %v608
        %v625 = vpack.c.b16 %v618, %v617
        %v626 = vpack.c.b16 %v620, %v619
        %v627 = vpack.c.b16 %v622, %v621
        %v628 = vpack.c.b16 %v624, %v623
        %v634 = vsel %vm317, %v599, 0
        %636 = vmatprep.subr.bf16.mxu0 0
        %637 = vmatpush1.bf16.msra.mxu0 %v625
        %638 = vmatprep.subr.bf16.mxu0 0
        %639 = vmatpush1.bf16.msra.mxu0 %v626
        %640 = vmatprep.subr.bf16.mxu0 0
        %641 = vmatpush1.bf16.msra.mxu0 %v627
        %642 = vmatprep.subr.bf16.mxu0 0
        %643 = vmatpush1.bf16.msra.mxu0 %v628
        %644 = vmatprep.subr.bf16.mxu0 0
        %645 = vmatpush1.bf16.msra.mxu0 0
        %646 = vmatprep.subr.bf16.mxu0 0
        %647 = vmatpush1.bf16.msra.mxu0 0
        %648 = vmatprep.subr.bf16.mxu0 0
        %649 = vmatpush1.bf16.msra.mxu0 0
        %650 = vmatprep.subr.bf16.mxu0 0
        %651 = vmatpush1.bf16.msra.mxu0 0
        %652 = vmatprep.subr.bf16.mxu0 0
        %653 = vmatpush1.bf16.msra.mxu0 0
        %654 = vmatprep.subr.bf16.mxu0 0
        %655 = vmatpush1.bf16.msra.mxu0 0
        %656 = vmatprep.subr.bf16.mxu0 0
        %657 = vmatpush1.bf16.msra.mxu0 0
        %658 = vmatprep.subr.bf16.mxu0 0
        %659 = vmatpush1.bf16.msra.mxu0 0
        %660 = vmatprep.subr.bf16.mxu0 0
        %661 = vmatpush1.bf16.msra.mxu0 0
        %662 = vmatprep.subr.bf16.mxu0 0
        %663 = vmatpush1.bf16.msra.mxu0 0
        %664 = vmatprep.subr.bf16.mxu0 0
        %665 = vmatpush1.bf16.msra.mxu0 0
        %666 = vmatprep.subr.bf16.mxu0 0
        %667 = vmatpush1.bf16.msra.mxu0 0
        %668 = vmatprep.mubr.bf16.mxu0 0
        %669 = vmatmul.mubr.bf16.gmra.mrb[0].mxu0 %v634
        %v670 = vpop.f32.mrb[0].mxu0
        %v671 = vadd.f32 0.0, %v670
        %v672 = vpop.f32.mrb[0].mxu0
        %v673 = vpop.f32.mrb[0].mxu0
        %v674 = vpop.f32.mrb[0].mxu0
        %675 = vdwg.mxu0
        %v676 = vadd.f32 %v596, %v671
        %v677 = vld [vmem:[%s518] sm:$0x7]
        %s678 = scalar_lea.vmem %s2, 160
        %v679 = vld [vmem:[%s678] sm:$0xf]
        %v680 = vld [vmem:[%s678 + $0x4] sm:$0xf]
        %v681 = vld [vmem:[%s678 + $0x8] sm:$0xf]
        %v682 = vld [vmem:[%s678 + $0xc] sm:$0xf]
        %v683 = vld [vmem:[%s678 + $0x10] sm:$0xf]
        %v684 = vld [vmem:[%s678 + $0x14] sm:$0xf]
        %v685 = vld [vmem:[%s678 + $0x18] sm:$0xf]
        %v686 = vld [vmem:[%s678 + $0x1c] sm:$0xf]
        %v688 = vunpack.c.l.b16 %v677
        %v689 = vpack.c.b16 %v688, %v688
        %v691 = vshrl.u32 %v689, 16
        %v693 = vshll.u32 %v689, 16
        %v695 = vrot.slane %v693, 1
        %v696 = vor.u32 %v691, %v695
        %v705 = vunpack.c.l.b16 %v679
        %v706 = vunpack.c.l.b16 %v680
        %v707 = vunpack.c.l.b16 %v681
        %v708 = vunpack.c.l.b16 %v682
        %v709 = vunpack.c.l.b16 %v683
        %v710 = vunpack.c.l.b16 %v684
        %v711 = vunpack.c.l.b16 %v685
        %v712 = vunpack.c.l.b16 %v686
        %v713 = vpack.c.b16 %v706, %v705
        %v714 = vpack.c.b16 %v708, %v707
        %v715 = vpack.c.b16 %v710, %v709
        %v716 = vpack.c.b16 %v712, %v711
        %v722 = vsel %vm317, %v696, 0
        %724 = vmatprep.subr.bf16.mxu0 0
        %725 = vmatpush1.bf16.msra.mxu0 %v713
        %726 = vmatprep.subr.bf16.mxu0 0
        %727 = vmatpush1.bf16.msra.mxu0 %v714
        %728 = vmatprep.subr.bf16.mxu0 0
        %729 = vmatpush1.bf16.msra.mxu0 %v715
        %730 = vmatprep.subr.bf16.mxu0 0
        %731 = vmatpush1.bf16.msra.mxu0 %v716
        %732 = vmatprep.subr.bf16.mxu0 0
        %733 = vmatpush1.bf16.msra.mxu0 0
        %734 = vmatprep.subr.bf16.mxu0 0
        %735 = vmatpush1.bf16.msra.mxu0 0
        %736 = vmatprep.subr.bf16.mxu0 0
        %737 = vmatpush1.bf16.msra.mxu0 0
        %738 = vmatprep.subr.bf16.mxu0 0
        %739 = vmatpush1.bf16.msra.mxu0 0
        %740 = vmatprep.subr.bf16.mxu0 0
        %741 = vmatpush1.bf16.msra.mxu0 0
        %742 = vmatprep.subr.bf16.mxu0 0
        %743 = vmatpush1.bf16.msra.mxu0 0
        %744 = vmatprep.subr.bf16.mxu0 0
        %745 = vmatpush1.bf16.msra.mxu0 0
        %746 = vmatprep.subr.bf16.mxu0 0
        %747 = vmatpush1.bf16.msra.mxu0 0
        %748 = vmatprep.subr.bf16.mxu0 0
        %749 = vmatpush1.bf16.msra.mxu0 0
        %750 = vmatprep.subr.bf16.mxu0 0
        %751 = vmatpush1.bf16.msra.mxu0 0
        %752 = vmatprep.subr.bf16.mxu0 0
        %753 = vmatpush1.bf16.msra.mxu0 0
        %754 = vmatprep.subr.bf16.mxu0 0
        %755 = vmatpush1.bf16.msra.mxu0 0
        %756 = vmatprep.mubr.bf16.mxu0 0
        %757 = vmatmul.mubr.bf16.gmra.mrb[0].mxu0 %v722
        %v758 = vpop.f32.mrb[0].mxu0
        %v759 = vadd.f32 0.0, %v758
        %v760 = vpop.f32.mrb[0].mxu0
        %v761 = vpop.f32.mrb[0].mxu0
        %v762 = vpop.f32.mrb[0].mxu0
        %763 = vdwg.mxu0
        %v764 = vadd.f32 %v676, %v759
        %s765 = sadd.s32 %s269, 2
        %s766 = smul.addr %s765, 4
        %s767 = scalar_lea.vmem %s237, %s766
        %v768 = vld [vmem:[%s767] sm:$0x3]
        %s769 = scalar_lea.vmem %s2, 192
        %v770 = vld [vmem:[%s769] sm:$0xf]
        %v771 = vld [vmem:[%s769 + $0x4] sm:$0xf]
        %v772 = vld [vmem:[%s769 + $0x8] sm:$0xf]
        %v773 = vld [vmem:[%s769 + $0xc] sm:$0xf]
        %v774 = vld [vmem:[%s769 + $0x10] sm:$0xf]
        %v775 = vld [vmem:[%s769 + $0x14] sm:$0xf]
        %v776 = vld [vmem:[%s769 + $0x18] sm:$0xf]
        %v777 = vld [vmem:[%s769 + $0x1c] sm:$0xf]
        %v786 = vunpack.c.l.b16 %v770
        %v787 = vunpack.c.l.b16 %v771
        %v788 = vunpack.c.l.b16 %v772
        %v789 = vunpack.c.l.b16 %v773
        %v790 = vunpack.c.l.b16 %v774
        %v791 = vunpack.c.l.b16 %v775
        %v792 = vunpack.c.l.b16 %v776
        %v793 = vunpack.c.l.b16 %v777
        %v794 = vpack.c.b16 %v787, %v786
        %v795 = vpack.c.b16 %v789, %v788
        %v796 = vpack.c.b16 %v791, %v790
        %v797 = vpack.c.b16 %v793, %v792
        %v803 = vsel %vm317, %v768, 0
        %805 = vmatprep.subr.bf16.mxu0 0
        %806 = vmatpush1.bf16.msra.mxu0 %v794
        %807 = vmatprep.subr.bf16.mxu0 0
        %808 = vmatpush1.bf16.msra.mxu0 %v795
        %809 = vmatprep.subr.bf16.mxu0 0
        %810 = vmatpush1.bf16.msra.mxu0 %v796
        %811 = vmatprep.subr.bf16.mxu0 0
        %812 = vmatpush1.bf16.msra.mxu0 %v797
        %813 = vmatprep.subr.bf16.mxu0 0
        %814 = vmatpush1.bf16.msra.mxu0 0
        %815 = vmatprep.subr.bf16.mxu0 0
        %816 = vmatpush1.bf16.msra.mxu0 0
        %817 = vmatprep.subr.bf16.mxu0 0
        %818 = vmatpush1.bf16.msra.mxu0 0
        %819 = vmatprep.subr.bf16.mxu0 0
        %820 = vmatpush1.bf16.msra.mxu0 0
        %821 = vmatprep.subr.bf16.mxu0 0
        %822 = vmatpush1.bf16.msra.mxu0 0
        %823 = vmatprep.subr.bf16.mxu0 0
        %824 = vmatpush1.bf16.msra.mxu0 0
        %825 = vmatprep.subr.bf16.mxu0 0
        %826 = vmatpush1.bf16.msra.mxu0 0
        %827 = vmatprep.subr.bf16.mxu0 0
        %828 = vmatpush1.bf16.msra.mxu0 0
        %829 = vmatprep.subr.bf16.mxu0 0
        %830 = vmatpush1.bf16.msra.mxu0 0
        %831 = vmatprep.subr.bf16.mxu0 0
        %832 = vmatpush1.bf16.msra.mxu0 0
        %833 = vmatprep.subr.bf16.mxu0 0
        %834 = vmatpush1.bf16.msra.mxu0 0
        %835 = vmatprep.subr.bf16.mxu0 0
        %836 = vmatpush1.bf16.msra.mxu0 0
        %837 = vmatprep.mubr.bf16.mxu0 0
        %838 = vmatmul.mubr.bf16.gmra.mrb[0].mxu0 %v803
        %v839 = vpop.f32.mrb[0].mxu0
        %v840 = vadd.f32 0.0, %v839
        %v841 = vpop.f32.mrb[0].mxu0
        %v842 = vpop.f32.mrb[0].mxu0
        %v843 = vpop.f32.mrb[0].mxu0
        %844 = vdwg.mxu0
        %v845 = vadd.f32 %v764, %v840
        %s846 = smul.addr %s765, 4
        %s847 = scalar_lea.vmem %s242, %s846
        %v848 = vld [vmem:[%s847] sm:$0x3]
        %s849 = scalar_lea.vmem %s2, 224
        %v850 = vld [vmem:[%s849] sm:$0xf]
        %v851 = vld [vmem:[%s849 + $0x4] sm:$0xf]
        %v852 = vld [vmem:[%s849 + $0x8] sm:$0xf]
        %v853 = vld [vmem:[%s849 + $0xc] sm:$0xf]
        %v854 = vld [vmem:[%s849 + $0x10] sm:$0xf]
        %v855 = vld [vmem:[%s849 + $0x14] sm:$0xf]
        %v856 = vld [vmem:[%s849 + $0x18] sm:$0xf]
        %v857 = vld [vmem:[%s849 + $0x1c] sm:$0xf]
        %v866 = vunpack.c.l.b16 %v850
        %v867 = vunpack.c.l.b16 %v851
        %v868 = vunpack.c.l.b16 %v852
        %v869 = vunpack.c.l.b16 %v853
        %v870 = vunpack.c.l.b16 %v854
        %v871 = vunpack.c.l.b16 %v855
        %v872 = vunpack.c.l.b16 %v856
        %v873 = vunpack.c.l.b16 %v857
        %v874 = vpack.c.b16 %v867, %v866
        %v875 = vpack.c.b16 %v869, %v868
        %v876 = vpack.c.b16 %v871, %v870
        %v877 = vpack.c.b16 %v873, %v872
        %v883 = vsel %vm317, %v848, 0
        %885 = vmatprep.subr.bf16.mxu0 0
        %886 = vmatpush1.bf16.msra.mxu0 %v874
        %887 = vmatprep.subr.bf16.mxu0 0
        %888 = vmatpush1.bf16.msra.mxu0 %v875
        %889 = vmatprep.subr.bf16.mxu0 0
        %890 = vmatpush1.bf16.msra.mxu0 %v876
        %891 = vmatprep.subr.bf16.mxu0 0
        %892 = vmatpush1.bf16.msra.mxu0 %v877
        %893 = vmatprep.subr.bf16.mxu0 0
        %894 = vmatpush1.bf16.msra.mxu0 0
        %895 = vmatprep.subr.bf16.mxu0 0
        %896 = vmatpush1.bf16.msra.mxu0 0
        %897 = vmatprep.subr.bf16.mxu0 0
        %898 = vmatpush1.bf16.msra.mxu0 0
        %899 = vmatprep.subr.bf16.mxu0 0
        %900 = vmatpush1.bf16.msra.mxu0 0
        %901 = vmatprep.subr.bf16.mxu0 0
        %902 = vmatpush1.bf16.msra.mxu0 0
        %903 = vmatprep.subr.bf16.mxu0 0
        %904 = vmatpush1.bf16.msra.mxu0 0
        %905 = vmatprep.subr.bf16.mxu0 0
        %906 = vmatpush1.bf16.msra.mxu0 0
        %907 = vmatprep.subr.bf16.mxu0 0
        %908 = vmatpush1.bf16.msra.mxu0 0
        %909 = vmatprep.subr.bf16.mxu0 0
        %910 = vmatpush1.bf16.msra.mxu0 0
        %911 = vmatprep.subr.bf16.mxu0 0
        %912 = vmatpush1.bf16.msra.mxu0 0
        %913 = vmatprep.subr.bf16.mxu0 0
        %914 = vmatpush1.bf16.msra.mxu0 0
        %915 = vmatprep.subr.bf16.mxu0 0
        %916 = vmatpush1.bf16.msra.mxu0 0
        %917 = vmatprep.mubr.bf16.mxu0 0
        %918 = vmatmul.mubr.bf16.gmra.mrb[0].mxu0 %v883
        %v919 = vpop.f32.mrb[0].mxu0
        %v920 = vadd.f32 0.0, %v919
        %v921 = vpop.f32.mrb[0].mxu0
        %v922 = vpop.f32.mrb[0].mxu0
        %v923 = vpop.f32.mrb[0].mxu0
        %924 = vdwg.mxu0
        %v925 = vadd.f32 %v845, %v920
        %v926 = vld [vmem:[%s767] sm:$0x7]
        %s927 = scalar_lea.vmem %s2, 256
        %v928 = vld [vmem:[%s927] sm:$0xf]
        %v929 = vld [vmem:[%s927 + $0x4] sm:$0xf]
        %v930 = vld [vmem:[%s927 + $0x8] sm:$0xf]
        %v931 = vld [vmem:[%s927 + $0xc] sm:$0xf]
        %v932 = vld [vmem:[%s927 + $0x10] sm:$0xf]
        %v933 = vld [vmem:[%s927 + $0x14] sm:$0xf]
        %v934 = vld [vmem:[%s927 + $0x18] sm:$0xf]
        %v935 = vld [vmem:[%s927 + $0x1c] sm:$0xf]
        %v937 = vunpack.c.l.b16 %v926
        %v938 = vpack.c.b16 %v937, %v937
        %v940 = vshrl.u32 %v938, 16
        %v942 = vshll.u32 %v938, 16
        %v944 = vrot.slane %v942, 1
        %v945 = vor.u32 %v940, %v944
        %v954 = vunpack.c.l.b16 %v928
        %v955 = vunpack.c.l.b16 %v929
        %v956 = vunpack.c.l.b16 %v930
        %v957 = vunpack.c.l.b16 %v931
        %v958 = vunpack.c.l.b16 %v932
        %v959 = vunpack.c.l.b16 %v933
        %v960 = vunpack.c.l.b16 %v934
        %v961 = vunpack.c.l.b16 %v935
        %v962 = vpack.c.b16 %v955, %v954
        %v963 = vpack.c.b16 %v957, %v956
        %v964 = vpack.c.b16 %v959, %v958
        %v965 = vpack.c.b16 %v961, %v960
        %v971 = vsel %vm317, %v945, 0
        %973 = vmatprep.subr.bf16.mxu0 0
        %974 = vmatpush1.bf16.msra.mxu0 %v962
        %975 = vmatprep.subr.bf16.mxu0 0
        %976 = vmatpush1.bf16.msra.mxu0 %v963
        %977 = vmatprep.subr.bf16.mxu0 0
        %978 = vmatpush1.bf16.msra.mxu0 %v964
        %979 = vmatprep.subr.bf16.mxu0 0
        %980 = vmatpush1.bf16.msra.mxu0 %v965
        %981 = vmatprep.subr.bf16.mxu0 0
        %982 = vmatpush1.bf16.msra.mxu0 0
        %983 = vmatprep.subr.bf16.mxu0 0
        %984 = vmatpush1.bf16.msra.mxu0 0
        %985 = vmatprep.subr.bf16.mxu0 0
        %986 = vmatpush1.bf16.msra.mxu0 0
        %987 = vmatprep.subr.bf16.mxu0 0
        %988 = vmatpush1.bf16.msra.mxu0 0
        %989 = vmatprep.subr.bf16.mxu0 0
        %990 = vmatpush1.bf16.msra.mxu0 0
        %991 = vmatprep.subr.bf16.mxu0 0
        %992 = vmatpush1.bf16.msra.mxu0 0
        %993 = vmatprep.subr.bf16.mxu0 0
        %994 = vmatpush1.bf16.msra.mxu0 0
        %995 = vmatprep.subr.bf16.mxu0 0
        %996 = vmatpush1.bf16.msra.mxu0 0
        %997 = vmatprep.subr.bf16.mxu0 0
        %998 = vmatpush1.bf16.msra.mxu0 0
        %999 = vmatprep.subr.bf16.mxu0 0
        %1000 = vmatpush1.bf16.msra.mxu0 0
        %1001 = vmatprep.subr.bf16.mxu0 0
        %1002 = vmatpush1.bf16.msra.mxu0 0
        %1003 = vmatprep.subr.bf16.mxu0 0
        %1004 = vmatpush1.bf16.msra.mxu0 0
        %1005 = vmatprep.mubr.bf16.mxu0 0
        %1006 = vmatmul.mubr.bf16.gmra.mrb[0].mxu0 %v971
        %v1007 = vpop.f32.mrb[0].mxu0
        %v1008 = vadd.f32 0.0, %v1007
        %v1009 = vpop.f32.mrb[0].mxu0
        %v1010 = vpop.f32.mrb[0].mxu0
        %v1011 = vpop.f32.mrb[0].mxu0
        %1012 = vdwg.mxu0
        %v1013 = vadd.f32 %v925, %v1008
        %s1014 = smul.u32 %s263, 4
        %s1015 = scalar_lea.vmem %s251, %s1014
        %1016 = vst [vmem:[%s1015] sm:$0xf] %v1013
      $region37: #{encoder_forward.13} parent=31 // loop_footer
        %s267 = sadd.s32 1, %s263
      $region38: #{encoder_forward.13} parent=31 // loop_footer_branch
        %262 = sbr.rel target = $region34
      $region39: #{encoder_forward.13} parent=31 // loop_exit
        _
      %v1017 = vld [vmem:[%s251] sm:$0xf]
      %v1018 = vld [vmem:[%s251 + $0x4] sm:$0xf]
      %v1019 = vld [vmem:[%s251 + $0x8] sm:$0xf]
      %v1020 = vld [vmem:[%s251 + $0xc] sm:$0xf]
      %vm1021 = vcmask 1043456
      %v1022 = vsel %vm1021, %v1017, 0.0
      %v1023 = vsel %vm1021, %v1018, 0.0
      %v1024 = vadd.f32 %v1022, %v1023
      %v1025 = vsel %vm1021, %v1019, 0.0
      %v1026 = vadd.f32 %v1024, %v1025
      %v1027 = vsel %vm1021, %v1020, 0.0
      %v1028 = vadd.f32 %v1026, %v1027
      %v1029 = vrot.slane %v1028, 4
      %v1030 = vadd.f32 %v1028, %v1029
      %v1031 = vrot.slane %v1030, 2
      %v1032 = vadd.f32 %v1030, %v1031
      %v1033 = vrot.slane %v1032, 1
      %v1034 = vadd.f32 %v1032, %v1033
      %1035 = vst [vmem:[%s259] sm:$0x1] %v1034
      %v1036 = vmul.f32 %v1017, %v1017
      %v1037 = vmul.f32 %v1018, %v1018
      %v1038 = vmul.f32 %v1019, %v1019
      %v1039 = vmul.f32 %v1020, %v1020
      %v1040 = vsel %vm1021, %v1036, 0.0
      %v1041 = vsel %vm1021, %v1037, 0.0
      %v1042 = vadd.f32 %v1040, %v1041
      %v1043 = vsel %vm1021, %v1038, 0.0
      %v1044 = vadd.f32 %v1042, %v1043
      %v1045 = vsel %vm1021, %v1039, 0.0
      %v1046 = vadd.f32 %v1044, %v1045
      %v1047 = vrot.slane %v1046, 4
      %v1048 = vadd.f32 %v1046, %v1047
      %v1049 = vrot.slane %v1048, 2
      %v1050 = vadd.f32 %v1048, %v1049
      %v1051 = vrot.slane %v1050, 1
      %v1052 = vadd.f32 %v1050, %v1051
      %1053 = vst [vmem:[%s259 + $0x1] sm:$0x1] %v1052
      %s1054 = smul.u32 4, %s21
      %p1055 = scmp.lt.s32.totalorder %s20, 1
      %s1056 = scalar_select %p1055, %s20, 1
      %p1057 = scmp.lt.s32.totalorder %s1054, 3
      %s1058 = scalar_select %p1057, %s1054, 3
      %s1059 = smul.addr %s1056, 4
      %s1060 = sadd.s32 %s1058, %s1059
      %s1061 = smul.addr %s1060, 4
      %s1062 = scalar_lea.vmem %s3, %s1061
      %p1063 = scmp.lt.s32.totalorder %s20, 1
      %s1064 = scalar_select %p1063, %s20, 1
      %p1065 = scmp.lt.s32.totalorder %s21, 0
      %s1066 = scalar_select %p1065, %s21, 0
      %s1067 = sadd.s32 %s1066, %s1064
      %s1068 = smul.addr %s1067, 2
      %s1069 = scalar_lea.vmem %s4, %s1068
      // Predicated region
      $region40: #{encoder_forward.13} parent=31 // pred_check
        %p1070 = pneg %p121
      $region41: #{encoder_forward.13} parent=31 // pred_check_branch
        %1072 = sbr.rel (%p1070) target = $region43
      $region42: #{encoder_forward.13} parent=31 // pred_region
        %s1073 = smul.u32 4, %s21
      $region43: #{encoder_forward.13} parent=31 // pred_fallthru
        _
      // Predicated region
      $region44: #{encoder_forward.13} parent=31 // pred_check
        %p1074 = pneg %p149
      $region45: #{encoder_forward.13} parent=31 // pred_check_branch
        %1076 = sbr.rel (%p1074) target = $region47
      $region46: #{encoder_forward.13} parent=31 // pred_region
        _
      $region47: #{encoder_forward.13} parent=31 // pred_fallthru
        _
    $region32: #{encoder_forward.13} parent=5 // pred_fallthru
      _
    %p1077 = scmp.le.s32.totalorder 2, %s11
    // Predicated region
    $region48: #{encoder_forward.13} parent=5 // pred_check
      %p1078 = pneg %p1077
    $region49: #{encoder_forward.13} parent=5 // pred_check_branch
      %1080 = sbr.rel (%p1078) target = $region51
    $region50: #{encoder_forward.13} parent=5 // pred_region
      %s1081 = ssub.s32 %s11, 2
      // Predicated region
      $region52: #{encoder_forward.13} parent=50 // pred_check
        %p1082 = pneg %p127
      $region53: #{encoder_forward.13} parent=50 // pred_check_branch
        %1084 = sbr.rel (%p1082) target = $region55
      $region54: #{encoder_forward.13} parent=50 // pred_region
        %s1085 = smul.u32 4, %s23
        %p1086 = scmp.lt.s32.totalorder %s22, 1
        %s1087 = scalar_select %p1086, %s22, 1
        %p1088 = scmp.lt.s32.totalorder %s1085, 3
        %s1089 = scalar_select %p1088, %s1085, 3
        %s1090 = smul.addr %s1087, 4
        %s1091 = sadd.s32 %s1089, %s1090
        %s1092 = smul.addr %s1091, 4
        %s1093 = scalar_lea.vmem %s3, %s1092
      $region55: #{encoder_forward.13} parent=50 // pred_fallthru
        _
      // Predicated region
      $region56: #{encoder_forward.13} parent=50 // pred_check
        %p1094 = pneg %p155
      $region57: #{encoder_forward.13} parent=50 // pred_check_branch
        %1096 = sbr.rel (%p1094) target = $region59
      $region58: #{encoder_forward.13} parent=50 // pred_region
        %p1097 = scmp.lt.s32.totalorder %s22, 1
        %s1098 = scalar_select %p1097, %s22, 1
        %p1099 = scmp.lt.s32.totalorder %s23, 0
        %s1100 = scalar_select %p1099, %s23, 0
        %s1101 = sadd.s32 %s1100, %s1098
        %s1102 = smul.addr %s1101, 2
        %s1103 = scalar_lea.vmem %s4, %s1102
      $region59: #{encoder_forward.13} parent=50 // pred_fallthru
        _
    $region51: #{encoder_forward.13} parent=5 // pred_fallthru
      _
  $region6: #{encoder_forward.13} parent=0 // loop_footer
    %s15 = sadd.s32 1, %s11
  $region7: #{encoder_forward.13} parent=0 // loop_footer_branch
    %10 = sbr.rel target = $region3
  $region8: #{encoder_forward.13} parent=0 // loop_exit
    _

// kernel: encoder_forward.16
$region0: #{encoder_forward.16}
  #allocation0 [shape = 'u32[]', space=smem, size = 0x4, offset = 0x4, fixed_abs, tag = 'smem constant byte address 0x4 - core index']
  #allocation1 [shape = 'u32[144,128]{1,0:T(1,128)}', space=vmem, size = 0x12000, scoped, tag = 'internal scratch']
  %s0 = inlined_call_operand.vmem [shape: f32[2,2,2,256], index: 0, kind: input, shape index: {}]
  %s1 = inlined_call_operand.vmem [shape: f32[2,256], index: 1, kind: input, shape index: {}]
  %s2 = inlined_call_operand.vmem [shape: f32[1,256], index: 2, kind: input, shape index: {}]
  %s3 = inlined_call_operand.vmem [shape: f32[1,256], index: 3, kind: input, shape index: {}]
  %s4 = inlined_call_operand.vmem [shape: bf16[2,2,2,256], index: 4, kind: output, shape index: {}]
  %s5 = sld [smem:[#allocation0]]
  $region49: #{encoder_forward.16} parent=0
    _
  %s7 = ssub.s32 1, %s5
  %s8 = scalar_select 0, %s7, %s5
  loop: start=0, step=1, limit=4
  $region2: #{encoder_forward.16} parent=0 // loop_pre_header
    _
  $region3: #{encoder_forward.16} parent=0 // loop_header
    %s10 = sphi 0, %s14
    %p11 = scmp.ge.s32.totalorder %s10, 4
    %s17 = sphi 0, %s29
    %s18 = sphi 0, %s25
    %s19 = sphi 0, %s17
    %s20 = sphi 0, %s18
    %s21 = sphi 0, %s19
    %s22 = sphi 0, %s20
    %s34 = sphi 0, %s36
    %s37 = sphi 0, %s34
    %s38 = sphi 0, %s37
    %s54 = sphi 0, %s38
    %s58 = sphi 0, %s58
    %s60 = sphi 0, %s58
    %s61 = sphi 0, %s60
    %s75 = sphi 0, %s61
    %s79 = sphi 0, %s79
    %s81 = sphi 0, %s79
    %s82 = sphi 0, %s81
    %s96 = sphi 0, %s82
    %s100 = sphi 0, %s100
    %s102 = sphi 0, %s100
    %s103 = sphi 0, %s102
    %s117 = sphi 0, %s103
    %s125 = sphi 0, %s127
    %s128 = sphi 0, %s125
    %s129 = sphi 0, %s128
    %s145 = sphi 0, %s129
  $region4: #{encoder_forward.16} parent=0 // loop_header_branch
    %13 = sbr.rel (%p11) target = $region8
  $region5: #{encoder_forward.16} parent=0 // loop_body
    %s15 = ssub.s32 %s10, 1
    %s16 = ssub.s32 %s10, 2
    %s23 = sadd.s32 1, %s18
    %p24 = scmp.ge.s32.totalorder %s23, 1
    %s25 = scalar_select %p24, 0, %s23
    %s26 = sadd.s32 1, %s17
    %s27 = scalar_select %p24, %s26, %s17
    %p28 = scmp.ge.s32.totalorder %s27, 2
    %s29 = scalar_select %p28, 0, %s27
    %s30 = ssub.s32 %s17, %s29
    %s31 = ssub.s32 %s18, %s25
    %s32 = sor.u32 %s30, %s31
    %p33 = scmp.eq.s32.totalorder %s32, 0
    %s35 = sadd.s32 %s34, 1
    %s36 = scalar_select %p33, %s34, %s35
    %p39 = pneg %p33
    %p40 = scmp.eq.s32.totalorder %s10, 1
    %p41 = por %p39, %p40
    %p42 = scmp.ne.s32.totalorder %s34, %s37
    %p43 = scmp.eq.s32.totalorder %s10, 0
    %p44 = por %p42, %p43
    %p45 = scmp.ne.s32.totalorder %s34, %s37
    %p46 = scmp.eq.s32.totalorder %s15, 1
    %p47 = por %p45, %p46
    %p48 = scmp.ne.s32.totalorder %s37, %s38
    %p49 = scmp.eq.s32.totalorder %s15, 0
    %p50 = por %p48, %p49
    %p51 = scmp.ne.s32.totalorder %s37, %s38
    %p52 = scmp.eq.s32.totalorder %s16, 1
    %p53 = por %p51, %p52
    %p55 = scmp.ne.s32.totalorder %s38, %s54
    %p56 = scmp.eq.s32.totalorder %s16, 0
    %p57 = por %p55, %p56
    %s59 = sadd.s32 %s58, 1
    %p62 = scmp.eq.s32.totalorder %s10, 1
    %p63 = scmp.ne.s32.totalorder %s58, %s60
    %p64 = scmp.eq.s32.totalorder %s10, 0
    %p65 = por %p63, %p64
    %p66 = scmp.ne.s32.totalorder %s58, %s60
    %p67 = scmp.eq.s32.totalorder %s15, 1
    %p68 = por %p66, %p67
    %p69 = scmp.ne.s32.totalorder %s60, %s61
    %p70 = scmp.eq.s32.totalorder %s15, 0
    %p71 = por %p69, %p70
    %p72 = scmp.ne.s32.totalorder %s60, %s61
    %p73 = scmp.eq.s32.totalorder %s16, 1
    %p74 = por %p72, %p73
    %p76 = scmp.ne.s32.totalorder %s61, %s75
    %p77 = scmp.eq.s32.totalorder %s16, 0
    %p78 = por %p76, %p77
    %s80 = sadd.s32 %s79, 1
    %p83 = scmp.eq.s32.totalorder %s10, 1
    %p84 = scmp.ne.s32.totalorder %s79, %s81
    %p85 = scmp.eq.s32.totalorder %s10, 0
    %p86 = por %p84, %p85
    %p87 = scmp.ne.s32.totalorder %s79, %s81
    %p88 = scmp.eq.s32.totalorder %s15, 1
    %p89 = por %p87, %p88
    %p90 = scmp.ne.s32.totalorder %s81, %s82
    %p91 = scmp.eq.s32.totalorder %s15, 0
    %p92 = por %p90, %p91
    %p93 = scmp.ne.s32.totalorder %s81, %s82
    %p94 = scmp.eq.s32.totalorder %s16, 1
    %p95 = por %p93, %p94
    %p97 = scmp.ne.s32.totalorder %s82, %s96
    %p98 = scmp.eq.s32.totalorder %s16, 0
    %p99 = por %p97, %p98
    %s101 = sadd.s32 %s100, 1
    %p104 = scmp.eq.s32.totalorder %s10, 1
    %p105 = scmp.ne.s32.totalorder %s100, %s102
    %p106 = scmp.eq.s32.totalorder %s10, 0
    %p107 = por %p105, %p106
    %p108 = scmp.ne.s32.totalorder %s100, %s102
    %p109 = scmp.eq.s32.totalorder %s15, 1
    %p110 = por %p108, %p109
    %p111 = scmp.ne.s32.totalorder %s102, %s103
    %p112 = scmp.eq.s32.totalorder %s15, 0
    %p113 = por %p111, %p112
    %p114 = scmp.ne.s32.totalorder %s102, %s103
    %p115 = scmp.eq.s32.totalorder %s16, 1
    %p116 = por %p114, %p115
    %p118 = scmp.ne.s32.totalorder %s103, %s117
    %p119 = scmp.eq.s32.totalorder %s16, 0
    %p120 = por %p118, %p119
    %s121 = ssub.s32 %s17, %s29
    %s122 = ssub.s32 %s18, %s25
    %s123 = sor.u32 %s121, %s122
    %p124 = scmp.eq.s32.totalorder %s123, 0
    %s126 = sadd.s32 %s125, 1
    %s127 = scalar_select %p124, %s125, %s126
    %p130 = pneg %p124
    %p131 = scmp.eq.s32.totalorder %s10, 1
    %p132 = por %p130, %p131
    %p133 = scmp.ne.s32.totalorder %s125, %s128
    %p134 = scmp.eq.s32.totalorder %s10, 0
    %p135 = por %p133, %p134
    %p136 = scmp.ne.s32.totalorder %s125, %s128
    %p137 = scmp.eq.s32.totalorder %s15, 1
    %p138 = por %p136, %p137
    %p139 = scmp.ne.s32.totalorder %s128, %s129
    %p140 = scmp.eq.s32.totalorder %s15, 0
    %p141 = por %p139, %p140
    %p142 = scmp.ne.s32.totalorder %s128, %s129
    %p143 = scmp.eq.s32.totalorder %s16, 1
    %p144 = por %p142, %p143
    %p146 = scmp.ne.s32.totalorder %s129, %s145
    %p147 = scmp.eq.s32.totalorder %s16, 0
    %p148 = por %p146, %p147
    %p149 = scmp.le.s32.totalorder 1, %s10
    %p150 = scmp.lt.s32.totalorder %s10, 3
    %p151 = pnand %p149, %p150
    %p152 = pneg %p151
    // Predicated region
    $region9: #{encoder_forward.16} parent=5 // pred_check
      _
    $region10: #{encoder_forward.16} parent=5 // pred_check_branch
      %154 = sbr.rel (%p151) target = $region12
    $region11: #{encoder_forward.16} parent=5 // pred_region
      %s155 = ssub.s32 %s10, 1
      // Predicated region
      $region13: #{encoder_forward.16} parent=11 // pred_check
        %p156 = pneg %p71
      $region14: #{encoder_forward.16} parent=11 // pred_check_branch
        %158 = sbr.rel (%p156) target = $region16
      $region15: #{encoder_forward.16} parent=11 // pred_region
        _
      $region16: #{encoder_forward.16} parent=11 // pred_fallthru
        _
      // Predicated region
      $region17: #{encoder_forward.16} parent=11 // pred_check
        %p159 = pneg %p92
      $region18: #{encoder_forward.16} parent=11 // pred_check_branch
        %161 = sbr.rel (%p159) target = $region20
      $region19: #{encoder_forward.16} parent=11 // pred_region
        _
      $region20: #{encoder_forward.16} parent=11 // pred_fallthru
        _
      // Predicated region
      $region21: #{encoder_forward.16} parent=11 // pred_check
        %p162 = pneg %p113
      $region22: #{encoder_forward.16} parent=11 // pred_check_branch
        %164 = sbr.rel (%p162) target = $region24
      $region23: #{encoder_forward.16} parent=11 // pred_region
        _
      $region24: #{encoder_forward.16} parent=11 // pred_fallthru
        _
    $region12: #{encoder_forward.16} parent=5 // pred_fallthru
      _
    %p165 = scmp.lt.s32.totalorder %s10, 2
    // Predicated region
    $region25: #{encoder_forward.16} parent=5 // pred_check
      %p166 = pneg %p165
    $region26: #{encoder_forward.16} parent=5 // pred_check_branch
      %168 = sbr.rel (%p166) target = $region28
    $region27: #{encoder_forward.16} parent=5 // pred_region
      // Predicated region
      $region29: #{encoder_forward.16} parent=27 // pred_check
        %p169 = pneg %p44
      $region30: #{encoder_forward.16} parent=27 // pred_check_branch
        %171 = sbr.rel (%p169) target = $region32
      $region31: #{encoder_forward.16} parent=27 // pred_region
        %s172 = smul.u32 2, %s18
        %p173 = scmp.lt.s32.totalorder %s17, 1
        %s174 = scalar_select %p173, %s17, 1
        %p175 = scmp.lt.s32.totalorder %s172, 1
        %s176 = scalar_select %p175, %s172, 1
        %s177 = smul.addr %s176, 2
        %s178 = smul.addr %s174, 4
        %s179 = sadd.s32 %s177, %s178
        %s180 = smul.addr %s179, 2
        %s181 = scalar_lea.vmem %s0, %s180
        %s182 = smul.u32 2, %s18
      $region32: #{encoder_forward.16} parent=27 // pred_fallthru
        _
    $region28: #{encoder_forward.16} parent=5 // pred_fallthru
      _
    %p183 = scmp.le.s32.totalorder 1, %s10
    %p184 = scmp.lt.s32.totalorder %s10, 3
    %p185 = pnand %p183, %p184
    %p186 = pneg %p185
    // Predicated region
    $region33: #{encoder_forward.16} parent=5 // pred_check
      _
    $region34: #{encoder_forward.16} parent=5 // pred_check_branch
      %188 = sbr.rel (%p185) target = $region36
    $region35: #{encoder_forward.16} parent=5 // pred_region
      %s189 = ssub.s32 %s10, 1
      %s190 = smul.u32 2, %s20
      %p191 = scmp.lt.s32.totalorder %s19, 1
      %s192 = scalar_select %p191, %s19, 1
      %p193 = scmp.lt.s32.totalorder %s190, 1
      %s194 = scalar_select %p193, %s190, 1
      %s195 = smul.addr %s194, 2
      %s196 = smul.addr %s192, 4
      %s197 = sadd.s32 %s195, %s196
      %s198 = smul.addr %s197, 2
      %s199 = scalar_lea.vmem %s0, %s198
      %p200 = pneg %p50
      %p201 = pneg %p47
      %p202 = pneg %p71
      %p203 = pneg %p68
      %p204 = pneg %p92
      %p205 = pneg %p89
      %p206 = pneg %p113
      %p207 = pneg %p110
      %p208 = pneg %p141
      %p209 = pneg %p138
      %s210 = smul.u32 2, %s20
      %p211 = scmp.lt.s32.totalorder %s19, 1
      %s212 = scalar_select %p211, %s19, 1
      %p213 = scmp.lt.s32.totalorder %s210, 1
      %s214 = scalar_select %p213, %s210, 1
      %s215 = smul.addr %s214, 2
      %s216 = smul.addr %s212, 4
      %s217 = sadd.s32 %s215, %s216
      %s218 = scalar_lea.vmem %s4, %s217
      %s219 = smul.u32 2, %s20
      %p220 = scmp.lt.s32.totalorder %s19, 1
      %s221 = scalar_select %p220, %s19, 1
      %p222 = scmp.lt.s32.totalorder %s219, 1
      %s223 = scalar_select %p222, %s219, 1
      %s224 = smul.addr %s223, 2
      %s225 = smul.addr %s221, 4
      %s226 = sadd.s32 %s224, %s225
      %s227 = smul.addr %s226, 2
      %s228 = scalar_lea.vmem %s0, %s227
      %s229 = smul.u32 2, %s20
      %s230 = smul.u32 2, %s20
      %p231 = scmp.lt.s32.totalorder %s19, 1
      %s232 = scalar_select %p231, %s19, 1
      %p233 = scmp.lt.s32.totalorder %s230, 1
      %s234 = scalar_select %p233, %s230, 1
      %s235 = smul.addr %s234, 2
      %s236 = smul.addr %s232, 4
      %s237 = sadd.s32 %s235, %s236
      %s238 = scalar_lea.vmem %s4, %s237
      %s239 = smul.u32 2, %s20
      %v240 = vld [vmem:[%s1] sm:$0xf]
      %v241 = vmul.f32 %v240, 0.125
      %v242 = vmul.f32 %v241, %v241
      %v244 = vrot.slane %v242, 7
      %v246 = vsub.f32 %v241, %v244
      %v247 = vld [vmem:[%s2] sm:$0x3]
      %v248 = vadd.f32 %v246, 1e-05
      %v249 = vrsqrt.pop %v248
      %v252 = vunpack.c.l.s4 1966171168
      %v253 = vunpack.c.0.s8 %v252
      %v254 = vlaneseq
      %v255 = vshrl.u32 %v254, 7
      %v256 = vsub.s32 %v253, %v255
      %v257 = vrot.slane %v249, %v256
      %v258 = vcombine.high %v257, %v257
      %v260 = vmul.f32 %v247, %v258
      %v261 = vld [vmem:[%s3] sm:$0x3]
      %v264 = vunpack.c.l.s4 857870592
      %v265 = vunpack.c.0.s8 %v264
      %v266 = vlaneseq
      %v267 = vshrl.u32 %v266, 7
      %v268 = vsub.s32 %v265, %v267
      %v269 = vrot.slane %v260, %v268
      %v271 = vmul.f32 %v241, %v269
      %v274 = vunpack.c.l.s4 1966171168
      %v275 = vunpack.c.0.s8 %v274
      %v276 = vlaneseq
      %v277 = vshrl.u32 %v276, 7
      %v278 = vsub.s32 %v275, %v277
      %v279 = vrot.slane %v271, %v278
      %v281 = vsub.f32 %v261, %v279
      %v282 = vld [vmem:[%s228] sm:$0xf]
      %v283 = vld [vmem:[%s228 + $0x4] sm:$0xf]
      %v284 = vlaneseq
      %v285 = vshrl.u32 %v284, 7
      %v286 = vsub.s32 0, %v285
      %v287 = vrot.slane %v260, %v286
      %v288 = vlaneseq
      %v289 = vshrl.u32 %v288, 7
      %v290 = vsub.s32 1, %v289
      %v291 = vrot.slane %v260, %v290
      %v292 = vcombine.low %v287, %v291
      %v294 = vunpack.c.l.s4 1983009808
      %v295 = vunpack.c.0.s8 %v294
      %v296 = vlaneseq
      %v297 = vshrl.u32 %v296, 7
      %v298 = vsub.s32 %v295, %v297
      %v299 = vrot.slane %v292, %v298
      %v301 = vmul.f32 %v282, %v299
      %v302 = vmul.f32 %v283, %v299
      %v304 = vlaneseq
      %v305 = vshrl.u32 %v304, 7
      %v306 = vsub.s32 0, %v305
      %v307 = vrot.slane %v281, %v306
      %v308 = vlaneseq
      %v309 = vshrl.u32 %v308, 7
      %v310 = vsub.s32 1, %v309
      %v311 = vrot.slane %v281, %v310
      %v312 = vcombine.low %v307, %v311
      %v314 = vunpack.c.l.s4 1983009808
      %v315 = vunpack.c.0.s8 %v314
      %v316 = vlaneseq
      %v317 = vshrl.u32 %v316, 7
      %v318 = vsub.s32 %v315, %v317
      %v319 = vrot.slane %v312, %v318
      %v321 = vadd.f32 %v301, %v319
      %v322 = vadd.f32 %v302, %v319
      %v323 = vmax.f32 %v321, 0.0
      %v324 = vmax.f32 %v322, 0.0
      %v328 = vunpack.c.l.s4 1983009808
      %v329 = vunpack.c.0.s8 %v328
      %v330 = vlaneseq
      %v331 = vshrl.u32 %v330, 7
      %v332 = vsub.s32 %v329, %v331
      %v333 = vrot.slane %v323, %v332
      %v334 = vcombine.high %v333, %v333
      %v336 = vunpack.c.l.s4 1983009808
      %v337 = vunpack.c.0.s8 %v336
      %v338 = vlaneseq
      %v339 = vshrl.u32 %v338, 7
      %v340 = vsub.s32 %v337, %v339
      %v341 = vrot.slane %v324, %v340
      %v342 = vcombine.high %v341, %v341
      %v347 = vpack.c.bf16 %v333, %v333
      %v348 = vpack.c.bf16 %v334, %v334
      %v349 = vpack.c.bf16 %v341, %v341
      %v350 = vpack.c.bf16 %v342, %v342
      %v355 = vcombine.low %v347, %v348
      %v357 = vunpack.c.l.s4 1966171168
      %v358 = vunpack.c.0.s8 %v357
      %v359 = vlaneseq
      %v360 = vshrl.u32 %v359, 7
      %v361 = vsub.s32 %v358, %v360
      %v362 = vrot.slane %v355, %v361
      %v364 = vunpack.c.l.s4 1966171168
      %v365 = vunpack.c.0.s8 %v364
      %v366 = vlaneseq
      %v367 = vshrl.u32 %v366, 7
      %v368 = vsub.s32 %v365, %v367
      %v369 = vrot.slane %v362, %v368
      %v370 = vcombine.low %v349, %v350
      %v372 = vunpack.c.l.s4 1966171168
      %v373 = vunpack.c.0.s8 %v372
      %v374 = vlaneseq
      %v375 = vshrl.u32 %v374, 7
      %v376 = vsub.s32 %v373, %v375
      %v377 = vrot.slane %v370, %v376
      %v379 = vunpack.c.l.s4 1966171168
      %v380 = vunpack.c.0.s8 %v379
      %v381 = vlaneseq
      %v382 = vshrl.u32 %v381, 7
      %v383 = vsub.s32 %v380, %v382
      %v384 = vrot.slane %v377, %v383
      %387 = vst [vmem:[%s238] sm:$0x3] %v369
      %388 = vst [vmem:[%s238 + $0x2] sm:$0x3] %v384
      %s389 = smul.u32 2, %s20
      %p390 = scmp.lt.s32.totalorder %s19, 1
      %s391 = scalar_select %p390, %s19, 1
      %p392 = scmp.lt.s32.totalorder %s389, 1
      %s393 = scalar_select %p392, %s389, 1
      %s394 = smul.addr %s393, 2
      %s395 = smul.addr %s391, 4
      %s396 = sadd.s32 %s394, %s395
      %s397 = scalar_lea.vmem %s4, %s396
      // Predicated region
      $region37: #{encoder_forward.16} parent=35 // pred_check
        %p398 = pneg %p138
      $region38: #{encoder_forward.16} parent=35 // pred_check_branch
        %400 = sbr.rel (%p398) target = $region40
      $region39: #{encoder_forward.16} parent=35 // pred_region
        %s401 = smul.u32 2, %s20
      $region40: #{encoder_forward.16} parent=35 // pred_fallthru
        _
    $region36: #{encoder_forward.16} parent=5 // pred_fallthru
      _
    %p402 = scmp.le.s32.totalorder 2, %s10
    // Predicated region
    $region41: #{encoder_forward.16} parent=5 // pred_check
      %p403 = pneg %p402
    $region42: #{encoder_forward.16} parent=5 // pred_check_branch
      %405 = sbr.rel (%p403) target = $region44
    $region43: #{encoder_forward.16} parent=5 // pred_region
      %s406 = ssub.s32 %s10, 2
      // Predicated region
      $region45: #{encoder_forward.16} parent=43 // pred_check
        %p407 = pneg %p144
      $region46: #{encoder_forward.16} parent=43 // pred_check_branch
        %409 = sbr.rel (%p407) target = $region48
      $region47: #{encoder_forward.16} parent=43 // pred_region
        %s410 = smul.u32 2, %s22
        %p411 = scmp.lt.s32.totalorder %s21, 1
        %s412 = scalar_select %p411, %s21, 1
        %p413 = scmp.lt.s32.totalorder %s410, 1
        %s414 = scalar_select %p413, %s410, 1
        %s415 = smul.addr %s414, 2
        %s416 = smul.addr %s412, 4
        %s417 = sadd.s32 %s415, %s416
        %s418 = scalar_lea.vmem %s4, %s417
      $region48: #{encoder_forward.16} parent=43 // pred_fallthru
        _
    $region44: #{encoder_forward.16} parent=5 // pred_fallthru
      _
  $region6: #{encoder_forward.16} parent=0 // loop_footer
    %s14 = sadd.s32 1, %s10
  $region7: #{encoder_forward.16} parent=0 // loop_footer_branch
    %9 = sbr.rel target = $region3
  $region8: #{encoder_forward.16} parent=0 // loop_exit
    _

// kernel: encoder_forward.17
$region0: #{encoder_forward.17}
  #allocation0 [shape = 'u32[]', space=smem, size = 0x4, offset = 0x4, fixed_abs, tag = 'smem constant byte address 0x4 - core index']
  #allocation1 [shape = 'u32[144,128]{1,0:T(1,128)}', space=vmem, size = 0x12000, scoped, tag = 'internal scratch']
  %s0 = inlined_call_operand.vmem [shape: bf16[2,1024], index: 0, kind: input, shape index: {}]
  %s1 = inlined_call_operand.vmem [shape: bf16[1024,16], index: 1, kind: input, shape index: {}]
  %s2 = inlined_call_operand.vmem [shape: f32[1,16], index: 2, kind: input, shape index: {}]
  %s3 = inlined_call_operand.vmem [shape: f32[2,16], index: 3, kind: output, shape index: {}]
  %s4 = sld [smem:[#allocation0]]
  $region22: #{encoder_forward.17} parent=0
    _
  %s6 = ssub.s32 1, %s4
  %s7 = scalar_select 0, %s6, %s4
  // Predicated region
  $region2: #{encoder_forward.17} parent=0 // pred_check
    _
  $region3: #{encoder_forward.17} parent=0 // pred_check_branch
    %9 = sbr.rel (0) target = $region5
  $region4: #{encoder_forward.17} parent=0 // pred_region
    _
  $region5: #{encoder_forward.17} parent=0 // pred_fallthru
    _
  // Predicated region
  $region6: #{encoder_forward.17} parent=0 // pred_check
    _
  $region7: #{encoder_forward.17} parent=0 // pred_check_branch
    %11 = sbr.rel (0) target = $region9
  $region8: #{encoder_forward.17} parent=0 // pred_region
    _
  $region9: #{encoder_forward.17} parent=0 // pred_fallthru
    _
  // Predicated region
  $region10: #{encoder_forward.17} parent=0 // pred_check
    _
  $region11: #{encoder_forward.17} parent=0 // pred_check_branch
    %13 = sbr.rel (0) target = $region13
  $region12: #{encoder_forward.17} parent=0 // pred_region
    _
  $region13: #{encoder_forward.17} parent=0 // pred_fallthru
    _
  %v15 = vld [vmem:[%s0] sm:$0xff]
  %v16 = vld [vmem:[%s1] sm:$0xf]
  %v17 = vld [vmem:[%s1 + $0x4] sm:$0xf]
  %v18 = vld [vmem:[%s1 + $0x8] sm:$0xf]
  %v19 = vld [vmem:[%s1 + $0xc] sm:$0xf]
  %v20 = vld [vmem:[%s1 + $0x10] sm:$0xf]
  %v21 = vld [vmem:[%s1 + $0x14] sm:$0xf]
  %v22 = vld [vmem:[%s1 + $0x18] sm:$0xf]
  %v23 = vld [vmem:[%s1 + $0x1c] sm:$0xf]
  %v24 = vld [vmem:[%s1 + $0x20] sm:$0xf]
  %v25 = vld [vmem:[%s1 + $0x24] sm:$0xf]
  %v26 = vld [vmem:[%s1 + $0x28] sm:$0xf]
  %v27 = vld [vmem:[%s1 + $0x2c] sm:$0xf]
  %v28 = vld [vmem:[%s1 + $0x30] sm:$0xf]
  %v29 = vld [vmem:[%s1 + $0x34] sm:$0xf]
  %v30 = vld [vmem:[%s1 + $0x38] sm:$0xf]
  %v31 = vld [vmem:[%s1 + $0x3c] sm:$0xf]
  %v32 = vld [vmem:[%s1 + $0x40] sm:$0xf]
  %v33 = vld [vmem:[%s1 + $0x44] sm:$0xf]
  %v34 = vld [vmem:[%s1 + $0x48] sm:$0xf]
  %v35 = vld [vmem:[%s1 + $0x4c] sm:$0xf]
  %v36 = vld [vmem:[%s1 + $0x50] sm:$0xf]
  %v37 = vld [vmem:[%s1 + $0x54] sm:$0xf]
  %v38 = vld [vmem:[%s1 + $0x58] sm:$0xf]
  %v39 = vld [vmem:[%s1 + $0x5c] sm:$0xf]
  %v40 = vld [vmem:[%s1 + $0x60] sm:$0xf]
  %v41 = vld [vmem:[%s1 + $0x64] sm:$0xf]
  %v42 = vld [vmem:[%s1 + $0x68] sm:$0xf]
  %v43 = vld [vmem:[%s1 + $0x6c] sm:$0xf]
  %v44 = vld [vmem:[%s1 + $0x70] sm:$0xf]
  %v45 = vld [vmem:[%s1 + $0x74] sm:$0xf]
  %v46 = vld [vmem:[%s1 + $0x78] sm:$0xf]
  %v47 = vld [vmem:[%s1 + $0x7c] sm:$0xf]
  %v48 = vld [vmem:[%s1 + $0x80] sm:$0xf]
  %v49 = vld [vmem:[%s1 + $0x84] sm:$0xf]
  %v50 = vld [vmem:[%s1 + $0x88] sm:$0xf]
  %v51 = vld [vmem:[%s1 + $0x8c] sm:$0xf]
  %v52 = vld [vmem:[%s1 + $0x90] sm:$0xf]
  %v53 = vld [vmem:[%s1 + $0x94] sm:$0xf]
  %v54 = vld [vmem:[%s1 + $0x98] sm:$0xf]
  %v55 = vld [vmem:[%s1 + $0x9c] sm:$0xf]
  %v56 = vld [vmem:[%s1 + $0xa0] sm:$0xf]
  %v57 = vld [vmem:[%s1 + $0xa4] sm:$0xf]
  %v58 = vld [vmem:[%s1 + $0xa8] sm:$0xf]
  %v59 = vld [vmem:[%s1 + $0xac] sm:$0xf]
  %v60 = vld [vmem:[%s1 + $0xb0] sm:$0xf]
  %v61 = vld [vmem:[%s1 + $0xb4] sm:$0xf]
  %v62 = vld [vmem:[%s1 + $0xb8] sm:$0xf]
  %v63 = vld [vmem:[%s1 + $0xbc] sm:$0xf]
  %v64 = vld [vmem:[%s1 + $0xc0] sm:$0xf]
  %v65 = vld [vmem:[%s1 + $0xc4] sm:$0xf]
  %v66 = vld [vmem:[%s1 + $0xc8] sm:$0xf]
  %v67 = vld [vmem:[%s1 + $0xcc] sm:$0xf]
  %v68 = vld [vmem:[%s1 + $0xd0] sm:$0xf]
  %v69 = vld [vmem:[%s1 + $0xd4] sm:$0xf]
  %v70 = vld [vmem:[%s1 + $0xd8] sm:$0xf]
  %v71 = vld [vmem:[%s1 + $0xdc] sm:$0xf]
  %v72 = vld [vmem:[%s1 + $0xe0] sm:$0xf]
  %v73 = vld [vmem:[%s1 + $0xe4] sm:$0xf]
  %v74 = vld [vmem:[%s1 + $0xe8] sm:$0xf]
  %v75 = vld [vmem:[%s1 + $0xec] sm:$0xf]
  %v76 = vld [vmem:[%s1 + $0xf0] sm:$0xf]
  %v77 = vld [vmem:[%s1 + $0xf4] sm:$0xf]
  %v78 = vld [vmem:[%s1 + $0xf8] sm:$0xf]
  %v79 = vld [vmem:[%s1 + $0xfc] sm:$0xf]
  %v80 = vld [vmem:[%s1 + $0x100] sm:$0xf]
  %v81 = vld [vmem:[%s1 + $0x104] sm:$0xf]
  %v82 = vld [vmem:[%s1 + $0x108] sm:$0xf]
  %v83 = vld [vmem:[%s1 + $0x10c] sm:$0xf]
  %v84 = vld [vmem:[%s1 + $0x110] sm:$0xf]
  %v85 = vld [vmem:[%s1 + $0x114] sm:$0xf]
  %v86 = vld [vmem:[%s1 + $0x118] sm:$0xf]
  %v87 = vld [vmem:[%s1 + $0x11c] sm:$0xf]
  %v88 = vld [vmem:[%s1 + $0x120] sm:$0xf]
  %v89 = vld [vmem:[%s1 + $0x124] sm:$0xf]
  %v90 = vld [vmem:[%s1 + $0x128] sm:$0xf]
  %v91 = vld [vmem:[%s1 + $0x12c] sm:$0xf]
  %v92 = vld [vmem:[%s1 + $0x130] sm:$0xf]
  %v93 = vld [vmem:[%s1 + $0x134] sm:$0xf]
  %v94 = vld [vmem:[%s1 + $0x138] sm:$0xf]
  %v95 = vld [vmem:[%s1 + $0x13c] sm:$0xf]
  %v96 = vld [vmem:[%s1 + $0x140] sm:$0xf]
  %v97 = vld [vmem:[%s1 + $0x144] sm:$0xf]
  %v98 = vld [vmem:[%s1 + $0x148] sm:$0xf]
  %v99 = vld [vmem:[%s1 + $0x14c] sm:$0xf]
  %v100 = vld [vmem:[%s1 + $0x150] sm:$0xf]
  %v101 = vld [vmem:[%s1 + $0x154] sm:$0xf]
  %v102 = vld [vmem:[%s1 + $0x158] sm:$0xf]
  %v103 = vld [vmem:[%s1 + $0x15c] sm:$0xf]
  %v104 = vld [vmem:[%s1 + $0x160] sm:$0xf]
  %v105 = vld [vmem:[%s1 + $0x164] sm:$0xf]
  %v106 = vld [vmem:[%s1 + $0x168] sm:$0xf]
  %v107 = vld [vmem:[%s1 + $0x16c] sm:$0xf]
  %v108 = vld [vmem:[%s1 + $0x170] sm:$0xf]
  %v109 = vld [vmem:[%s1 + $0x174] sm:$0xf]
  %v110 = vld [vmem:[%s1 + $0x178] sm:$0xf]
  %v111 = vld [vmem:[%s1 + $0x17c] sm:$0xf]
  %v112 = vld [vmem:[%s1 + $0x180] sm:$0xf]
  %v113 = vld [vmem:[%s1 + $0x184] sm:$0xf]
  %v114 = vld [vmem:[%s1 + $0x188] sm:$0xf]
  %v115 = vld [vmem:[%s1 + $0x18c] sm:$0xf]
  %v116 = vld [vmem:[%s1 + $0x190] sm:$0xf]
  %v117 = vld [vmem:[%s1 + $0x194] sm:$0xf]
  %v118 = vld [vmem:[%s1 + $0x198] sm:$0xf]
  %v119 = vld [vmem:[%s1 + $0x19c] sm:$0xf]
  %v120 = vld [vmem:[%s1 + $0x1a0] sm:$0xf]
  %v121 = vld [vmem:[%s1 + $0x1a4] sm:$0xf]
  %v122 = vld [vmem:[%s1 + $0x1a8] sm:$0xf]
  %v123 = vld [vmem:[%s1 + $0x1ac] sm:$0xf]
  %v124 = vld [vmem:[%s1 + $0x1b0] sm:$0xf]
  %v125 = vld [vmem:[%s1 + $0x1b4] sm:$0xf]
  %v126 = vld [vmem:[%s1 + $0x1b8] sm:$0xf]
  %v127 = vld [vmem:[%s1 + $0x1bc] sm:$0xf]
  %v128 = vld [vmem:[%s1 + $0x1c0] sm:$0xf]
  %v129 = vld [vmem:[%s1 + $0x1c4] sm:$0xf]
  %v130 = vld [vmem:[%s1 + $0x1c8] sm:$0xf]
  %v131 = vld [vmem:[%s1 + $0x1cc] sm:$0xf]
  %v132 = vld [vmem:[%s1 + $0x1d0] sm:$0xf]
  %v133 = vld [vmem:[%s1 + $0x1d4] sm:$0xf]
  %v134 = vld [vmem:[%s1 + $0x1d8] sm:$0xf]
  %v135 = vld [vmem:[%s1 + $0x1dc] sm:$0xf]
  %v136 = vld [vmem:[%s1 + $0x1e0] sm:$0xf]
  %v137 = vld [vmem:[%s1 + $0x1e4] sm:$0xf]
  %v138 = vld [vmem:[%s1 + $0x1e8] sm:$0xf]
  %v139 = vld [vmem:[%s1 + $0x1ec] sm:$0xf]
  %v140 = vld [vmem:[%s1 + $0x1f0] sm:$0xf]
  %v141 = vld [vmem:[%s1 + $0x1f4] sm:$0xf]
  %v142 = vld [vmem:[%s1 + $0x1f8] sm:$0xf]
  %v143 = vld [vmem:[%s1 + $0x1fc] sm:$0xf]
  %v144 = vld [vmem:[%s2] sm:$0x1]
  %v146 = vlaneseq
  %v147 = vshrl.u32 %v146, 7
  %v148 = vsub.s32 0, %v147
  %v149 = vrot.slane %v144, %v148
  %v152 = vcombine.high %v15, %v15
  %v154 = vunpack.c.l.s4 1966171168
  %v155 = vunpack.c.0.s8 %v154
  %v156 = vlaneseq
  %v157 = vshrl.u32 %v156, 7
  %v158 = vsub.s32 %v155, %v157
  %v159 = vrot.slane %v15, %v158
  %v161 = vunpack.c.l.s4 1966171168
  %v162 = vunpack.c.0.s8 %v161
  %v163 = vlaneseq
  %v164 = vshrl.u32 %v163, 7
  %v165 = vsub.s32 %v162, %v164
  %v166 = vrot.slane %v152, %v165
  %v167 = vcombine.high %v159, %v159
  %v168 = vcombine.high %v166, %v166
  %v170 = vunpack.c.l.s4 1966171168
  %v171 = vunpack.c.0.s8 %v170
  %v172 = vlaneseq
  %v173 = vshrl.u32 %v172, 7
  %v174 = vsub.s32 %v171, %v173
  %v175 = vrot.slane %v159, %v174
  %v177 = vunpack.c.l.s4 1966171168
  %v178 = vunpack.c.0.s8 %v177
  %v179 = vlaneseq
  %v180 = vshrl.u32 %v179, 7
  %v181 = vsub.s32 %v178, %v180
  %v182 = vrot.slane %v166, %v181
  %v184 = vunpack.c.l.s4 1966171168
  %v185 = vunpack.c.0.s8 %v184
  %v186 = vlaneseq
  %v187 = vshrl.u32 %v186, 7
  %v188 = vsub.s32 %v185, %v187
  %v189 = vrot.slane %v167, %v188
  %v191 = vunpack.c.l.s4 1966171168
  %v192 = vunpack.c.0.s8 %v191
  %v193 = vlaneseq
  %v194 = vshrl.u32 %v193, 7
  %v195 = vsub.s32 %v192, %v194
  %v196 = vrot.slane %v168, %v195
  %v197 = vcombine.high %v175, %v175
  %v198 = vcombine.high %v182, %v182
  %v199 = vcombine.high %v189, %v189
  %v200 = vcombine.high %v196, %v196
  %v337 = vunpack.c.l.b16 %v16
  %v338 = vunpack.c.l.b16 %v17
  %v339 = vunpack.c.l.b16 %v18
  %v340 = vunpack.c.l.b16 %v19
  %v341 = vunpack.c.l.b16 %v20
  %v342 = vunpack.c.l.b16 %v21
  %v343 = vunpack.c.l.b16 %v22
  %v344 = vunpack.c.l.b16 %v23
  %v345 = vunpack.c.l.b16 %v24
  %v346 = vunpack.c.l.b16 %v25
  %v347 = vunpack.c.l.b16 %v26
  %v348 = vunpack.c.l.b16 %v27
  %v349 = vunpack.c.l.b16 %v28
  %v350 = vunpack.c.l.b16 %v29
  %v351 = vunpack.c.l.b16 %v30
  %v352 = vunpack.c.l.b16 %v31
  %v353 = vunpack.c.l.b16 %v32
  %v354 = vunpack.c.l.b16 %v33
  %v355 = vunpack.c.l.b16 %v34
  %v356 = vunpack.c.l.b16 %v35
  %v357 = vunpack.c.l.b16 %v36
  %v358 = vunpack.c.l.b16 %v37
  %v359 = vunpack.c.l.b16 %v38
  %v360 = vunpack.c.l.b16 %v39
  %v361 = vunpack.c.l.b16 %v40
  %v362 = vunpack.c.l.b16 %v41
  %v363 = vunpack.c.l.b16 %v42
  %v364 = vunpack.c.l.b16 %v43
  %v365 = vunpack.c.l.b16 %v44
  %v366 = vunpack.c.l.b16 %v45
  %v367 = vunpack.c.l.b16 %v46
  %v368 = vunpack.c.l.b16 %v47
  %v369 = vunpack.c.l.b16 %v48
  %v370 = vunpack.c.l.b16 %v49
  %v371 = vunpack.c.l.b16 %v50
  %v372 = vunpack.c.l.b16 %v51
  %v373 = vunpack.c.l.b16 %v52
  %v374 = vunpack.c.l.b16 %v53
  %v375 = vunpack.c.l.b16 %v54
  %v376 = vunpack.c.l.b16 %v55
  %v377 = vunpack.c.l.b16 %v56
  %v378 = vunpack.c.l.b16 %v57
  %v379 = vunpack.c.l.b16 %v58
  %v380 = vunpack.c.l.b16 %v59
  %v381 = vunpack.c.l.b16 %v60
  %v382 = vunpack.c.l.b16 %v61
  %v383 = vunpack.c.l.b16 %v62
  %v384 = vunpack.c.l.b16 %v63
  %v385 = vunpack.c.l.b16 %v64
  %v386 = vunpack.c.l.b16 %v65
  %v387 = vunpack.c.l.b16 %v66
  %v388 = vunpack.c.l.b16 %v67
  %v389 = vunpack.c.l.b16 %v68
  %v390 = vunpack.c.l.b16 %v69
  %v391 = vunpack.c.l.b16 %v70
  %v392 = vunpack.c.l.b16 %v71
  %v393 = vunpack.c.l.b16 %v72
  %v394 = vunpack.c.l.b16 %v73
  %v395 = vunpack.c.l.b16 %v74
  %v396 = vunpack.c.l.b16 %v75
  %v397 = vunpack.c.l.b16 %v76
  %v398 = vunpack.c.l.b16 %v77
  %v399 = vunpack.c.l.b16 %v78
  %v400 = vunpack.c.l.b16 %v79
  %v401 = vunpack.c.l.b16 %v80
  %v402 = vunpack.c.l.b16 %v81
  %v403 = vunpack.c.l.b16 %v82
  %v404 = vunpack.c.l.b16 %v83
  %v405 = vunpack.c.l.b16 %v84
  %v406 = vunpack.c.l.b16 %v85
  %v407 = vunpack.c.l.b16 %v86
  %v408 = vunpack.c.l.b16 %v87
  %v409 = vunpack.c.l.b16 %v88
  %v410 = vunpack.c.l.b16 %v89
  %v411 = vunpack.c.l.b16 %v90
  %v412 = vunpack.c.l.b16 %v91
  %v413 = vunpack.c.l.b16 %v92
  %v414 = vunpack.c.l.b16 %v93
  %v415 = vunpack.c.l.b16 %v94
  %v416 = vunpack.c.l.b16 %v95
  %v417 = vunpack.c.l.b16 %v96
  %v418 = vunpack.c.l.b16 %v97
  %v419 = vunpack.c.l.b16 %v98
  %v420 = vunpack.c.l.b16 %v99
  %v421 = vunpack.c.l.b16 %v100
  %v422 = vunpack.c.l.b16 %v101
  %v423 = vunpack.c.l.b16 %v102
  %v424 = vunpack.c.l.b16 %v103
  %v425 = vunpack.c.l.b16 %v104
  %v426 = vunpack.c.l.b16 %v105
  %v427 = vunpack.c.l.b16 %v106
  %v428 = vunpack.c.l.b16 %v107
  %v429 = vunpack.c.l.b16 %v108
  %v430 = vunpack.c.l.b16 %v109
  %v431 = vunpack.c.l.b16 %v110
  %v432 = vunpack.c.l.b16 %v111
  %v433 = vunpack.c.l.b16 %v112
  %v434 = vunpack.c.l.b16 %v113
  %v435 = vunpack.c.l.b16 %v114
  %v436 = vunpack.c.l.b16 %v115
  %v437 = vunpack.c.l.b16 %v116
  %v438 = vunpack.c.l.b16 %v117
  %v439 = vunpack.c.l.b16 %v118
  %v440 = vunpack.c.l.b16 %v119
  %v441 = vunpack.c.l.b16 %v120
  %v442 = vunpack.c.l.b16 %v121
  %v443 = vunpack.c.l.b16 %v122
  %v444 = vunpack.c.l.b16 %v123
  %v445 = vunpack.c.l.b16 %v124
  %v446 = vunpack.c.l.b16 %v125
  %v447 = vunpack.c.l.b16 %v126
  %v448 = vunpack.c.l.b16 %v127
  %v449 = vunpack.c.l.b16 %v128
  %v450 = vunpack.c.l.b16 %v129
  %v451 = vunpack.c.l.b16 %v130
  %v452 = vunpack.c.l.b16 %v131
  %v453 = vunpack.c.l.b16 %v132
  %v454 = vunpack.c.l.b16 %v133
  %v455 = vunpack.c.l.b16 %v134
  %v456 = vunpack.c.l.b16 %v135
  %v457 = vunpack.c.l.b16 %v136
  %v458 = vunpack.c.l.b16 %v137
  %v459 = vunpack.c.l.b16 %v138
  %v460 = vunpack.c.l.b16 %v139
  %v461 = vunpack.c.l.b16 %v140
  %v462 = vunpack.c.l.b16 %v141
  %v463 = vunpack.c.l.b16 %v142
  %v464 = vunpack.c.l.b16 %v143
  %v465 = vpack.c.b16 %v338, %v337
  %v466 = vpack.c.b16 %v340, %v339
  %v467 = vpack.c.b16 %v342, %v341
  %v468 = vpack.c.b16 %v344, %v343
  %v469 = vpack.c.b16 %v346, %v345
  %v470 = vpack.c.b16 %v348, %v347
  %v471 = vpack.c.b16 %v350, %v349
  %v472 = vpack.c.b16 %v352, %v351
  %v473 = vpack.c.b16 %v354, %v353
  %v474 = vpack.c.b16 %v356, %v355
  %v475 = vpack.c.b16 %v358, %v357
  %v476 = vpack.c.b16 %v360, %v359
  %v477 = vpack.c.b16 %v362, %v361
  %v478 = vpack.c.b16 %v364, %v363
  %v479 = vpack.c.b16 %v366, %v365
  %v480 = vpack.c.b16 %v368, %v367
  %v481 = vpack.c.b16 %v370, %v369
  %v482 = vpack.c.b16 %v372, %v371
  %v483 = vpack.c.b16 %v374, %v373
  %v484 = vpack.c.b16 %v376, %v375
  %v485 = vpack.c.b16 %v378, %v377
  %v486 = vpack.c.b16 %v380, %v379
  %v487 = vpack.c.b16 %v382, %v381
  %v488 = vpack.c.b16 %v384, %v383
  %v489 = vpack.c.b16 %v386, %v385
  %v490 = vpack.c.b16 %v388, %v387
  %v491 = vpack.c.b16 %v390, %v389
  %v492 = vpack.c.b16 %v392, %v391
  %v493 = vpack.c.b16 %v394, %v393
  %v494 = vpack.c.b16 %v396, %v395
  %v495 = vpack.c.b16 %v398, %v397
  %v496 = vpack.c.b16 %v400, %v399
  %v497 = vpack.c.b16 %v402, %v401
  %v498 = vpack.c.b16 %v404, %v403
  %v499 = vpack.c.b16 %v406, %v405
  %v500 = vpack.c.b16 %v408, %v407
  %v501 = vpack.c.b16 %v410, %v409
  %v502 = vpack.c.b16 %v412, %v411
  %v503 = vpack.c.b16 %v414, %v413
  %v504 = vpack.c.b16 %v416, %v415
  %v505 = vpack.c.b16 %v418, %v417
  %v506 = vpack.c.b16 %v420, %v419
  %v507 = vpack.c.b16 %v422, %v421
  %v508 = vpack.c.b16 %v424, %v423
  %v509 = vpack.c.b16 %v426, %v425
  %v510 = vpack.c.b16 %v428, %v427
  %v511 = vpack.c.b16 %v430, %v429
  %v512 = vpack.c.b16 %v432, %v431
  %v513 = vpack.c.b16 %v434, %v433
  %v514 = vpack.c.b16 %v436, %v435
  %v515 = vpack.c.b16 %v438, %v437
  %v516 = vpack.c.b16 %v440, %v439
  %v517 = vpack.c.b16 %v442, %v441
  %v518 = vpack.c.b16 %v444, %v443
  %v519 = vpack.c.b16 %v446, %v445
  %v520 = vpack.c.b16 %v448, %v447
  %v521 = vpack.c.b16 %v450, %v449
  %v522 = vpack.c.b16 %v452, %v451
  %v523 = vpack.c.b16 %v454, %v453
  %v524 = vpack.c.b16 %v456, %v455
  %v525 = vpack.c.b16 %v458, %v457
  %v526 = vpack.c.b16 %v460, %v459
  %v527 = vpack.c.b16 %v462, %v461
  %v528 = vpack.c.b16 %v464, %v463
  %593 = vmatprep.subr.bf16.mxu0 0
  %594 = vmatpush1.bf16.msra.mxu0 %v465
  %595 = vmatprep.subr.bf16.mxu0 0
  %596 = vmatpush1.bf16.msra.mxu0 %v466
  %597 = vmatprep.subr.bf16.mxu0 0
  %598 = vmatpush1.bf16.msra.mxu0 %v467
  %599 = vmatprep.subr.bf16.mxu0 0
  %600 = vmatpush1.bf16.msra.mxu0 %v468
  %601 = vmatprep.subr.bf16.mxu0 0
  %602 = vmatpush1.bf16.msra.mxu0 %v469
  %603 = vmatprep.subr.bf16.mxu0 0
  %604 = vmatpush1.bf16.msra.mxu0 %v470
  %605 = vmatprep.subr.bf16.mxu0 0
  %606 = vmatpush1.bf16.msra.mxu0 %v471
  %607 = vmatprep.subr.bf16.mxu0 0
  %608 = vmatpush1.bf16.msra.mxu0 %v472
  %609 = vmatprep.subr.bf16.mxu0 0
  %610 = vmatpush1.bf16.msra.mxu0 %v473
  %611 = vmatprep.subr.bf16.mxu0 0
  %612 = vmatpush1.bf16.msra.mxu0 %v474
  %613 = vmatprep.subr.bf16.mxu0 0
  %614 = vmatpush1.bf16.msra.mxu0 %v475
  %615 = vmatprep.subr.bf16.mxu0 0
  %616 = vmatpush1.bf16.msra.mxu0 %v476
  %617 = vmatprep.subr.bf16.mxu0 0
  %618 = vmatpush1.bf16.msra.mxu0 %v477
  %619 = vmatprep.subr.bf16.mxu0 0
  %620 = vmatpush1.bf16.msra.mxu0 %v478
  %621 = vmatprep.subr.bf16.mxu0 0
  %622 = vmatpush1.bf16.msra.mxu0 %v479
  %623 = vmatprep.subr.bf16.mxu0 0
  %624 = vmatpush1.bf16.msra.mxu0 %v480
  %625 = vmatprep.mubr.bf16.mxu0 %v189
  %626 = vmatmul.mubr.bf16.gmra.mrb[0].mxu0 %v175
  %v627 = vpop.f32.mrb[0].mxu0
  %v628 = vadd.f32 %v149, %v627
  %v629 = vpop.f32.mrb[0].mxu0
  %v630 = vpop.f32.mrb[0].mxu0
  %v631 = vpop.f32.mrb[0].mxu0
  %632 = vdwg.mxu0
  %633 = vmatprep.subr.bf16.mxu0 0
  %634 = vmatpush1.bf16.msra.mxu0 %v481
  %635 = vmatprep.subr.bf16.mxu0 0
  %636 = vmatpush1.bf16.msra.mxu0 %v482
  %637 = vmatprep.subr.bf16.mxu0 0
  %638 = vmatpush1.bf16.msra.mxu0 %v483
  %639 = vmatprep.subr.bf16.mxu0 0
  %640 = vmatpush1.bf16.msra.mxu0 %v484
  %641 = vmatprep.subr.bf16.mxu0 0
  %642 = vmatpush1.bf16.msra.mxu0 %v485
  %643 = vmatprep.subr.bf16.mxu0 0
  %644 = vmatpush1.bf16.msra.mxu0 %v486
  %645 = vmatprep.subr.bf16.mxu0 0
  %646 = vmatpush1.bf16.msra.mxu0 %v487
  %647 = vmatprep.subr.bf16.mxu0 0
  %648 = vmatpush1.bf16.msra.mxu0 %v488
  %649 = vmatprep.subr.bf16.mxu0 0
  %650 = vmatpush1.bf16.msra.mxu0 %v489
  %651 = vmatprep.subr.bf16.mxu0 0
  %652 = vmatpush1.bf16.msra.mxu0 %v490
  %653 = vmatprep.subr.bf16.mxu0 0
  %654 = vmatpush1.bf16.msra.mxu0 %v491
  %655 = vmatprep.subr.bf16.mxu0 0
  %656 = vmatpush1.bf16.msra.mxu0 %v492
  %657 = vmatprep.subr.bf16.mxu0 0
  %658 = vmatpush1.bf16.msra.mxu0 %v493
  %659 = vmatprep.subr.bf16.mxu0 0
  %660 = vmatpush1.bf16.msra.mxu0 %v494
  %661 = vmatprep.subr.bf16.mxu0 0
  %662 = vmatpush1.bf16.msra.mxu0 %v495
  %663 = vmatprep.subr.bf16.mxu0 0
  %664 = vmatpush1.bf16.msra.mxu0 %v496
  %665 = vmatprep.mubr.bf16.mxu0 %v199
  %666 = vmatmul.mubr.bf16.gmra.mrb[0].mxu0 %v197
  %v667 = vpop.f32.mrb[0].mxu0
  %v668 = vadd.f32 %v628, %v667
  %v669 = vpop.f32.mrb[0].mxu0
  %v670 = vpop.f32.mrb[0].mxu0
  %v671 = vpop.f32.mrb[0].mxu0
  %672 = vdwg.mxu0
  %673 = vmatprep.subr.bf16.mxu0 0
  %674 = vmatpush1.bf16.msra.mxu0 %v497
  %675 = vmatprep.subr.bf16.mxu0 0
  %676 = vmatpush1.bf16.msra.mxu0 %v498
  %677 = vmatprep.subr.bf16.mxu0 0
  %678 = vmatpush1.bf16.msra.mxu0 %v499
  %679 = vmatprep.subr.bf16.mxu0 0
  %680 = vmatpush1.bf16.msra.mxu0 %v500
  %681 = vmatprep.subr.bf16.mxu0 0
  %682 = vmatpush1.bf16.msra.mxu0 %v501
  %683 = vmatprep.subr.bf16.mxu0 0
  %684 = vmatpush1.bf16.msra.mxu0 %v502
  %685 = vmatprep.subr.bf16.mxu0 0
  %686 = vmatpush1.bf16.msra.mxu0 %v503
  %687 = vmatprep.subr.bf16.mxu0 0
  %688 = vmatpush1.bf16.msra.mxu0 %v504
  %689 = vmatprep.subr.bf16.mxu0 0
  %690 = vmatpush1.bf16.msra.mxu0 %v505
  %691 = vmatprep.subr.bf16.mxu0 0
  %692 = vmatpush1.bf16.msra.mxu0 %v506
  %693 = vmatprep.subr.bf16.mxu0 0
  %694 = vmatpush1.bf16.msra.mxu0 %v507
  %695 = vmatprep.subr.bf16.mxu0 0
  %696 = vmatpush1.bf16.msra.mxu0 %v508
  %697 = vmatprep.subr.bf16.mxu0 0
  %698 = vmatpush1.bf16.msra.mxu0 %v509
  %699 = vmatprep.subr.bf16.mxu0 0
  %700 = vmatpush1.bf16.msra.mxu0 %v510
  %701 = vmatprep.subr.bf16.mxu0 0
  %702 = vmatpush1.bf16.msra.mxu0 %v511
  %703 = vmatprep.subr.bf16.mxu0 0
  %704 = vmatpush1.bf16.msra.mxu0 %v512
  %705 = vmatprep.mubr.bf16.mxu0 %v196
  %706 = vmatmul.mubr.bf16.gmra.mrb[0].mxu0 %v182
  %v707 = vpop.f32.mrb[0].mxu0
  %v708 = vadd.f32 %v668, %v707
  %v709 = vpop.f32.mrb[0].mxu0
  %v710 = vpop.f32.mrb[0].mxu0
  %v711 = vpop.f32.mrb[0].mxu0
  %712 = vdwg.mxu0
  %713 = vmatprep.subr.bf16.mxu0 0
  %714 = vmatpush1.bf16.msra.mxu0 %v513
  %715 = vmatprep.subr.bf16.mxu0 0
  %716 = vmatpush1.bf16.msra.mxu0 %v514
  %717 = vmatprep.subr.bf16.mxu0 0
  %718 = vmatpush1.bf16.msra.mxu0 %v515
  %719 = vmatprep.subr.bf16.mxu0 0
  %720 = vmatpush1.bf16.msra.mxu0 %v516
  %721 = vmatprep.subr.bf16.mxu0 0
  %722 = vmatpush1.bf16.msra.mxu0 %v517
  %723 = vmatprep.subr.bf16.mxu0 0
  %724 = vmatpush1.bf16.msra.mxu0 %v518
  %725 = vmatprep.subr.bf16.mxu0 0
  %726 = vmatpush1.bf16.msra.mxu0 %v519
  %727 = vmatprep.subr.bf16.mxu0 0
  %728 = vmatpush1.bf16.msra.mxu0 %v520
  %729 = vmatprep.subr.bf16.mxu0 0
  %730 = vmatpush1.bf16.msra.mxu0 %v521
  %731 = vmatprep.subr.bf16.mxu0 0
  %732 = vmatpush1.bf16.msra.mxu0 %v522
  %733 = vmatprep.subr.bf16.mxu0 0
  %734 = vmatpush1.bf16.msra.mxu0 %v523
  %735 = vmatprep.subr.bf16.mxu0 0
  %736 = vmatpush1.bf16.msra.mxu0 %v524
  %737 = vmatprep.subr.bf16.mxu0 0
  %738 = vmatpush1.bf16.msra.mxu0 %v525
  %739 = vmatprep.subr.bf16.mxu0 0
  %740 = vmatpush1.bf16.msra.mxu0 %v526
  %741 = vmatprep.subr.bf16.mxu0 0
  %742 = vmatpush1.bf16.msra.mxu0 %v527
  %743 = vmatprep.subr.bf16.mxu0 0
  %744 = vmatpush1.bf16.msra.mxu0 %v528
  %745 = vmatprep.mubr.bf16.mxu0 %v200
  %746 = vmatmul.mubr.bf16.gmra.mrb[0].mxu0 %v198
  %v747 = vpop.f32.mrb[0].mxu0
  %v748 = vadd.f32 %v708, %v747
  %v749 = vpop.f32.mrb[0].mxu0
  %v750 = vpop.f32.mrb[0].mxu0
  %v751 = vpop.f32.mrb[0].mxu0
  %752 = vdwg.mxu0
  %vm753 = vcmask 123904
  %754 = vst.msk [vmem:[%s3] sm:$0x3] %vm753, %v748
  // Predicated region
  $region14: #{encoder_forward.17} parent=0 // pred_check
    _
  $region15: #{encoder_forward.17} parent=0 // pred_check_branch
    %756 = sbr.rel (0) target = $region17
  $region16: #{encoder_forward.17} parent=0 // pred_region
    _
  $region17: #{encoder_forward.17} parent=0 // pred_fallthru
    _
  // Predicated region
  $region18: #{encoder_forward.17} parent=0 // pred_check
    _
  $region19: #{encoder_forward.17} parent=0 // pred_check_branch
    %758 = sbr.rel (0) target = $region21
  $region20: #{encoder_forward.17} parent=0 // pred_region
    _
  $region21: #{encoder_forward.17} parent=0 // pred_fallthru
    _

// kernel: encoder_forward.15
$region0: #{encoder_forward.15}
  #allocation0 [shape = 'u32[]', space=smem, size = 0x4, offset = 0x4, fixed_abs, tag = 'smem constant byte address 0x4 - core index']
  #allocation1 [shape = 'u32[144,128]{1,0:T(1,128)}', space=vmem, size = 0x12000, scoped, tag = 'internal scratch']
  %s0 = inlined_call_operand.vmem [shape: bf16[2,6,3,128], index: 0, kind: input, shape index: {}]
  %s1 = inlined_call_operand.vmem [shape: bf16[2,6,3,128], index: 1, kind: input, shape index: {}]
  %s2 = inlined_call_operand.vmem [shape: bf16[9,128,256], index: 2, kind: input, shape index: {}]
  %s3 = inlined_call_operand.vmem [shape: f32[2,2,2,256], index: 3, kind: output, shape index: {0}]
  %s4 = inlined_call_operand.vmem [shape: f32[2,1,2,256], index: 4, kind: output, shape index: {1}]
  %5 = xla_tuple %s3, %s4
  %s6 = sld [smem:[#allocation0]]
  $region60: #{encoder_forward.15} parent=0
    _
  %s8 = ssub.s32 1, %s6
  %s9 = scalar_select 0, %s8, %s6
  loop: start=0, step=1, limit=4
  $region2: #{encoder_forward.15} parent=0 // loop_pre_header
    _
  $region3: #{encoder_forward.15} parent=0 // loop_header
    %s11 = sphi 0, %s15
    %p12 = scmp.ge.s32.totalorder %s11, 4
    %s18 = sphi 0, %s30
    %s19 = sphi 0, %s26
    %s20 = sphi 0, %s18
    %s21 = sphi 0, %s19
    %s22 = sphi 0, %s20
    %s23 = sphi 0, %s21
    %s33 = sphi 0, %s35
    %s36 = sphi 0, %s33
    %s37 = sphi 0, %s36
    %s53 = sphi 0, %s37
    %s59 = sphi 0, %s61
    %s62 = sphi 0, %s59
    %s63 = sphi 0, %s62
    %s79 = sphi 0, %s63
    %s83 = sphi 0, %s83
    %s85 = sphi 0, %s83
    %s86 = sphi 0, %s85
    %s100 = sphi 0, %s86
    %s108 = sphi 0, %s110
    %s111 = sphi 0, %s108
    %s112 = sphi 0, %s111
    %s128 = sphi 0, %s112
    %s136 = sphi 0, %s138
    %s139 = sphi 0, %s136
    %s140 = sphi 0, %s139
    %s156 = sphi 0, %s140
  $region4: #{encoder_forward.15} parent=0 // loop_header_branch
    %14 = sbr.rel (%p12) target = $region8
  $region5: #{encoder_forward.15} parent=0 // loop_body
    %s16 = ssub.s32 %s11, 1
    %s17 = ssub.s32 %s11, 2
    %s24 = sadd.s32 1, %s19
    %p25 = scmp.ge.s32.totalorder %s24, 1
    %s26 = scalar_select %p25, 0, %s24
    %s27 = sadd.s32 1, %s18
    %s28 = scalar_select %p25, %s27, %s18
    %p29 = scmp.ge.s32.totalorder %s28, 2
    %s30 = scalar_select %p29, 0, %s28
    %s31 = ssub.s32 %s18, %s30
    %p32 = scmp.eq.s32.totalorder %s31, 0
    %s34 = sadd.s32 %s33, 1
    %s35 = scalar_select %p32, %s33, %s34
    %p38 = pneg %p32
    %p39 = scmp.eq.s32.totalorder %s11, 1
    %p40 = por %p38, %p39
    %p41 = scmp.ne.s32.totalorder %s33, %s36
    %p42 = scmp.eq.s32.totalorder %s11, 0
    %p43 = por %p41, %p42
    %p44 = scmp.ne.s32.totalorder %s33, %s36
    %p45 = scmp.eq.s32.totalorder %s16, 1
    %p46 = por %p44, %p45
    %p47 = scmp.ne.s32.totalorder %s36, %s37
    %p48 = scmp.eq.s32.totalorder %s16, 0
    %p49 = por %p47, %p48
    %p50 = scmp.ne.s32.totalorder %s36, %s37
    %p51 = scmp.eq.s32.totalorder %s17, 1
    %p52 = por %p50, %p51
    %p54 = scmp.ne.s32.totalorder %s37, %s53
    %p55 = scmp.eq.s32.totalorder %s17, 0
    %p56 = por %p54, %p55
    %s57 = ssub.s32 %s18, %s30
    %p58 = scmp.eq.s32.totalorder %s57, 0
    %s60 = sadd.s32 %s59, 1
    %s61 = scalar_select %p58, %s59, %s60
    %p64 = pneg %p58
    %p65 = scmp.eq.s32.totalorder %s11, 1
    %p66 = por %p64, %p65
    %p67 = scmp.ne.s32.totalorder %s59, %s62
    %p68 = scmp.eq.s32.totalorder %s11, 0
    %p69 = por %p67, %p68
    %p70 = scmp.ne.s32.totalorder %s59, %s62
    %p71 = scmp.eq.s32.totalorder %s16, 1
    %p72 = por %p70, %p71
    %p73 = scmp.ne.s32.totalorder %s62, %s63
    %p74 = scmp.eq.s32.totalorder %s16, 0
    %p75 = por %p73, %p74
    %p76 = scmp.ne.s32.totalorder %s62, %s63
    %p77 = scmp.eq.s32.totalorder %s17, 1
    %p78 = por %p76, %p77
    %p80 = scmp.ne.s32.totalorder %s63, %s79
    %p81 = scmp.eq.s32.totalorder %s17, 0
    %p82 = por %p80, %p81
    %s84 = sadd.s32 %s83, 1
    %p87 = scmp.eq.s32.totalorder %s11, 1
    %p88 = scmp.ne.s32.totalorder %s83, %s85
    %p89 = scmp.eq.s32.totalorder %s11, 0
    %p90 = por %p88, %p89
    %p91 = scmp.ne.s32.totalorder %s83, %s85
    %p92 = scmp.eq.s32.totalorder %s16, 1
    %p93 = por %p91, %p92
    %p94 = scmp.ne.s32.totalorder %s85, %s86
    %p95 = scmp.eq.s32.totalorder %s16, 0
    %p96 = por %p94, %p95
    %p97 = scmp.ne.s32.totalorder %s85, %s86
    %p98 = scmp.eq.s32.totalorder %s17, 1
    %p99 = por %p97, %p98
    %p101 = scmp.ne.s32.totalorder %s86, %s100
    %p102 = scmp.eq.s32.totalorder %s17, 0
    %p103 = por %p101, %p102
    %s104 = ssub.s32 %s18, %s30
    %s105 = ssub.s32 %s19, %s26
    %s106 = sor.u32 %s104, %s105
    %p107 = scmp.eq.s32.totalorder %s106, 0
    %s109 = sadd.s32 %s108, 1
    %s110 = scalar_select %p107, %s108, %s109
    %p113 = pneg %p107
    %p114 = scmp.eq.s32.totalorder %s11, 1
    %p115 = por %p113, %p114
    %p116 = scmp.ne.s32.totalorder %s108, %s111
    %p117 = scmp.eq.s32.totalorder %s11, 0
    %p118 = por %p116, %p117
    %p119 = scmp.ne.s32.totalorder %s108, %s111
    %p120 = scmp.eq.s32.totalorder %s16, 1
    %p121 = por %p119, %p120
    %p122 = scmp.ne.s32.totalorder %s111, %s112
    %p123 = scmp.eq.s32.totalorder %s16, 0
    %p124 = por %p122, %p123
    %p125 = scmp.ne.s32.totalorder %s111, %s112
    %p126 = scmp.eq.s32.totalorder %s17, 1
    %p127 = por %p125, %p126
    %p129 = scmp.ne.s32.totalorder %s112, %s128
    %p130 = scmp.eq.s32.totalorder %s17, 0
    %p131 = por %p129, %p130
    %s132 = ssub.s32 %s18, %s30
    %s133 = ssub.s32 %s19, %s26
    %s134 = sor.u32 %s132, %s133
    %p135 = scmp.eq.s32.totalorder %s134, 0
    %s137 = sadd.s32 %s136, 1
    %s138 = scalar_select %p135, %s136, %s137
    %p141 = pneg %p135
    %p142 = scmp.eq.s32.totalorder %s11, 1
    %p143 = por %p141, %p142
    %p144 = scmp.ne.s32.totalorder %s136, %s139
    %p145 = scmp.eq.s32.totalorder %s11, 0
    %p146 = por %p144, %p145
    %p147 = scmp.ne.s32.totalorder %s136, %s139
    %p148 = scmp.eq.s32.totalorder %s16, 1
    %p149 = por %p147, %p148
    %p150 = scmp.ne.s32.totalorder %s139, %s140
    %p151 = scmp.eq.s32.totalorder %s16, 0
    %p152 = por %p150, %p151
    %p153 = scmp.ne.s32.totalorder %s139, %s140
    %p154 = scmp.eq.s32.totalorder %s17, 1
    %p155 = por %p153, %p154
    %p157 = scmp.ne.s32.totalorder %s140, %s156
    %p158 = scmp.eq.s32.totalorder %s17, 0
    %p159 = por %p157, %p158
    %p160 = scmp.le.s32.totalorder 1, %s11
    %p161 = scmp.lt.s32.totalorder %s11, 3
    %p162 = pnand %p160, %p161
    %p163 = pneg %p162
    // Predicated region
    $region9: #{encoder_forward.15} parent=5 // pred_check
      _
    $region10: #{encoder_forward.15} parent=5 // pred_check_branch
      %165 = sbr.rel (%p162) target = $region12
    $region11: #{encoder_forward.15} parent=5 // pred_region
      %s166 = ssub.s32 %s11, 1
      // Predicated region
      $region13: #{encoder_forward.15} parent=11 // pred_check
        %p167 = pneg %p96
      $region14: #{encoder_forward.15} parent=11 // pred_check_branch
        %169 = sbr.rel (%p167) target = $region16
      $region15: #{encoder_forward.15} parent=11 // pred_region
        _
      $region16: #{encoder_forward.15} parent=11 // pred_fallthru
        _
    $region12: #{encoder_forward.15} parent=5 // pred_fallthru
      _
    %p170 = scmp.lt.s32.totalorder %s11, 2
    // Predicated region
    $region17: #{encoder_forward.15} parent=5 // pred_check
      %p171 = pneg %p170
    $region18: #{encoder_forward.15} parent=5 // pred_check_branch
      %173 = sbr.rel (%p171) target = $region20
    $region19: #{encoder_forward.15} parent=5 // pred_region
      // Predicated region
      $region21: #{encoder_forward.15} parent=19 // pred_check
        %p174 = pneg %p43
      $region22: #{encoder_forward.15} parent=19 // pred_check_branch
        %176 = sbr.rel (%p174) target = $region24
      $region23: #{encoder_forward.15} parent=19 // pred_region
        %p177 = scmp.lt.s32.totalorder %s18, 1
        %s178 = scalar_select %p177, %s18, 1
        %s179 = smul.addr %s178, 6
        %s180 = smul.addr %s179, 2
        %s181 = scalar_lea.vmem %s0, %s180
      $region24: #{encoder_forward.15} parent=19 // pred_fallthru
        _
      // Predicated region
      $region25: #{encoder_forward.15} parent=19 // pred_check
        %p182 = pneg %p69
      $region26: #{encoder_forward.15} parent=19 // pred_check_branch
        %184 = sbr.rel (%p182) target = $region28
      $region27: #{encoder_forward.15} parent=19 // pred_region
        %p185 = scmp.lt.s32.totalorder %s18, 1
        %s186 = scalar_select %p185, %s18, 1
        %s187 = smul.addr %s186, 6
        %s188 = smul.addr %s187, 2
        %s189 = scalar_lea.vmem %s1, %s188
      $region28: #{encoder_forward.15} parent=19 // pred_fallthru
        _
    $region20: #{encoder_forward.15} parent=5 // pred_fallthru
      _
    %p190 = scmp.le.s32.totalorder 1, %s11
    %p191 = scmp.lt.s32.totalorder %s11, 3
    %p192 = pnand %p190, %p191
    %p193 = pneg %p192
    // Predicated region
    $region29: #{encoder_forward.15} parent=5 // pred_check
      _
    $region30: #{encoder_forward.15} parent=5 // pred_check_branch
      %195 = sbr.rel (%p192) target = $region32
    $region31: #{encoder_forward.15} parent=5 // pred_region
      %s196 = ssub.s32 %s11, 1
      %p197 = scmp.lt.s32.totalorder %s20, 1
      %s198 = scalar_select %p197, %s20, 1
      %s199 = smul.addr %s198, 6
      %s200 = smul.addr %s199, 2
      %s201 = scalar_lea.vmem %s0, %s200
      %p202 = pneg %p49
      %p203 = pneg %p46
      %p204 = scmp.lt.s32.totalorder %s20, 1
      %s205 = scalar_select %p204, %s20, 1
      %s206 = smul.addr %s205, 6
      %s207 = smul.addr %s206, 2
      %s208 = scalar_lea.vmem %s1, %s207
      %p209 = pneg %p75
      %p210 = pneg %p72
      %p211 = pneg %p96
      %p212 = pneg %p93
      %p213 = pneg %p124
      %p214 = pneg %p121
      %s215 = smul.u32 2, %s21
      %p216 = scmp.lt.s32.totalorder %s20, 1
      %s217 = scalar_select %p216, %s20, 1
      %p218 = scmp.lt.s32.totalorder %s215, 1
      %s219 = scalar_select %p218, %s215, 1
      %s220 = smul.addr %s219, 2
      %s221 = smul.addr %s217, 4
      %s222 = sadd.s32 %s220, %s221
      %s223 = smul.addr %s222, 2
      %s224 = scalar_lea.vmem %s3, %s223
      %p225 = pneg %p152
      %p226 = pneg %p149
      %p227 = scmp.lt.s32.totalorder %s20, 1
      %s228 = scalar_select %p227, %s20, 1
      %p229 = scmp.lt.s32.totalorder %s21, 0
      %s230 = scalar_select %p229, %s21, 0
      %s231 = smul.addr %s230, 2
      %s232 = smul.addr %s228, 2
      %s233 = sadd.s32 %s231, %s232
      %s234 = smul.addr %s233, 2
      %s235 = scalar_lea.vmem %s4, %s234
      %p236 = scmp.lt.s32.totalorder %s20, 1
      %s237 = scalar_select %p236, %s20, 1
      %s238 = smul.addr %s237, 6
      %s239 = smul.addr %s238, 2
      %s240 = scalar_lea.vmem %s0, %s239
      %p241 = scmp.lt.s32.totalorder %s20, 1
      %s242 = scalar_select %p241, %s20, 1
      %s243 = smul.addr %s242, 6
      %s244 = smul.addr %s243, 2
      %s245 = scalar_lea.vmem %s1, %s244
      %s246 = smul.u32 2, %s21
      %p247 = scmp.lt.s32.totalorder %s20, 1
      %s248 = scalar_select %p247, %s20, 1
      %p249 = scmp.lt.s32.totalorder %s246, 1
      %s250 = scalar_select %p249, %s246, 1
      %s251 = smul.addr %s250, 2
      %s252 = smul.addr %s248, 4
      %s253 = sadd.s32 %s251, %s252
      %s254 = smul.addr %s253, 2
      %s255 = scalar_lea.vmem %s3, %s254
      %s256 = smul.u32 2, %s21
      %p257 = scmp.lt.s32.totalorder %s20, 1
      %s258 = scalar_select %p257, %s20, 1
      %p259 = scmp.lt.s32.totalorder %s21, 0
      %s260 = scalar_select %p259, %s21, 0
      %s261 = smul.addr %s260, 2
      %s262 = smul.addr %s258, 2
      %s263 = sadd.s32 %s261, %s262
      %s264 = smul.addr %s263, 2
      %s265 = scalar_lea.vmem %s4, %s264
      %s267 = smul.u32 %s21, 2
      loop: start=0, step=1, limit=2
      $region33: #{encoder_forward.15} parent=31 // loop_pre_header
        _
      $region34: #{encoder_forward.15} parent=31 // loop_header
        %s269 = sphi 0, %s273
        %p270 = scmp.ge.s32.totalorder %s269, 2
      $region35: #{encoder_forward.15} parent=31 // loop_header_branch
        %272 = sbr.rel (%p270) target = $region39
      $region36: #{encoder_forward.15} parent=31 // loop_body
        %s274 = sadd.s32 %s267, %s269
        %s275 = smul.u32 %s274, 2
        %s276 = smul.addr %s275, 2
        %s277 = scalar_lea.vmem %s240, %s276
        %v278 = vld [vmem:[%s277] sm:$0x1]
        %v279 = vld [vmem:[%s2] sm:$0xff]
        %v280 = vld [vmem:[%s2 + $0x8] sm:$0xff]
        %v281 = vld [vmem:[%s2 + $0x10] sm:$0xff]
        %v282 = vld [vmem:[%s2 + $0x18] sm:$0xff]
        %v283 = vld [vmem:[%s2 + $0x20] sm:$0xff]
        %v284 = vld [vmem:[%s2 + $0x28] sm:$0xff]
        %v285 = vld [vmem:[%s2 + $0x30] sm:$0xff]
        %v286 = vld [vmem:[%s2 + $0x38] sm:$0xff]
        %v287 = vld [vmem:[%s2 + $0x40] sm:$0xff]
        %v288 = vld [vmem:[%s2 + $0x48] sm:$0xff]
        %v289 = vld [vmem:[%s2 + $0x50] sm:$0xff]
        %v290 = vld [vmem:[%s2 + $0x58] sm:$0xff]
        %v291 = vld [vmem:[%s2 + $0x60] sm:$0xff]
        %v292 = vld [vmem:[%s2 + $0x68] sm:$0xff]
        %v293 = vld [vmem:[%s2 + $0x70] sm:$0xff]
        %v294 = vld [vmem:[%s2 + $0x78] sm:$0xff]
        %s295 = smul.addr %s275, 2
        %s296 = scalar_lea.vmem %s245, %s295
        %v297 = vld [vmem:[%s296] sm:$0x1]
        %s298 = scalar_lea.vmem %s2, 128
        %v299 = vld [vmem:[%s298] sm:$0xff]
        %v300 = vld [vmem:[%s298 + $0x8] sm:$0xff]
        %v301 = vld [vmem:[%s298 + $0x10] sm:$0xff]
        %v302 = vld [vmem:[%s298 + $0x18] sm:$0xff]
        %v303 = vld [vmem:[%s298 + $0x20] sm:$0xff]
        %v304 = vld [vmem:[%s298 + $0x28] sm:$0xff]
        %v305 = vld [vmem:[%s298 + $0x30] sm:$0xff]
        %v306 = vld [vmem:[%s298 + $0x38] sm:$0xff]
        %v307 = vld [vmem:[%s298 + $0x40] sm:$0xff]
        %v308 = vld [vmem:[%s298 + $0x48] sm:$0xff]
        %v309 = vld [vmem:[%s298 + $0x50] sm:$0xff]
        %v310 = vld [vmem:[%s298 + $0x58] sm:$0xff]
        %v311 = vld [vmem:[%s298 + $0x60] sm:$0xff]
        %v312 = vld [vmem:[%s298 + $0x68] sm:$0xff]
        %v313 = vld [vmem:[%s298 + $0x70] sm:$0xff]
        %v314 = vld [vmem:[%s298 + $0x78] sm:$0xff]
        %v331 = vunpack.c.l.b16 %v299
        %v332 = vunpack.c.h.b16 %v299
        %v333 = vunpack.c.l.b16 %v300
        %v334 = vunpack.c.h.b16 %v300
        %v335 = vunpack.c.l.b16 %v301
        %v336 = vunpack.c.h.b16 %v301
        %v337 = vunpack.c.l.b16 %v302
        %v338 = vunpack.c.h.b16 %v302
        %v339 = vunpack.c.l.b16 %v303
        %v340 = vunpack.c.h.b16 %v303
        %v341 = vunpack.c.l.b16 %v304
        %v342 = vunpack.c.h.b16 %v304
        %v343 = vunpack.c.l.b16 %v305
        %v344 = vunpack.c.h.b16 %v305
        %v345 = vunpack.c.l.b16 %v306
        %v346 = vunpack.c.h.b16 %v306
        %v347 = vunpack.c.l.b16 %v307
        %v348 = vunpack.c.h.b16 %v307
        %v349 = vunpack.c.l.b16 %v308
        %v350 = vunpack.c.h.b16 %v308
        %v351 = vunpack.c.l.b16 %v309
        %v352 = vunpack.c.h.b16 %v309
        %v353 = vunpack.c.l.b16 %v310
        %v354 = vunpack.c.h.b16 %v310
        %v355 = vunpack.c.l.b16 %v311
        %v356 = vunpack.c.h.b16 %v311
        %v357 = vunpack.c.l.b16 %v312
        %v358 = vunpack.c.h.b16 %v312
        %v359 = vunpack.c.l.b16 %v313
        %v360 = vunpack.c.h.b16 %v313
        %v361 = vunpack.c.l.b16 %v314
        %v362 = vunpack.c.h.b16 %v314
        %v363 = vpack.c.b16 %v333, %v331
        %v364 = vpack.c.b16 %v334, %v332
        %v365 = vpack.c.b16 %v337, %v335
        %v366 = vpack.c.b16 %v338, %v336
        %v367 = vpack.c.b16 %v341, %v339
        %v368 = vpack.c.b16 %v342, %v340
        %v369 = vpack.c.b16 %v345, %v343
        %v370 = vpack.c.b16 %v346, %v344
        %v371 = vpack.c.b16 %v349, %v347
        %v372 = vpack.c.b16 %v350, %v348
        %v373 = vpack.c.b16 %v353, %v351
        %v374 = vpack.c.b16 %v354, %v352
        %v375 = vpack.c.b16 %v357, %v355
        %v376 = vpack.c.b16 %v358, %v356
        %v377 = vpack.c.b16 %v361, %v359
        %v378 = vpack.c.b16 %v362, %v360
        %395 = vmatprep.subr.bf16.mxu0 %v364
        %396 = vmatpush1.bf16.msra.mxu0 %v363
        %397 = vmatprep.subr.bf16.mxu0 %v366
        %398 = vmatpush1.bf16.msra.mxu0 %v365
        %399 = vmatprep.subr.bf16.mxu0 %v368
        %400 = vmatpush1.bf16.msra.mxu0 %v367
        %401 = vmatprep.subr.bf16.mxu0 %v370
        %402 = vmatpush1.bf16.msra.mxu0 %v369
        %403 = vmatprep.subr.bf16.mxu0 %v372
        %404 = vmatpush1.bf16.msra.mxu0 %v371
        %405 = vmatprep.subr.bf16.mxu0 %v374
        %406 = vmatpush1.bf16.msra.mxu0 %v373
        %407 = vmatprep.subr.bf16.mxu0 %v376
        %408 = vmatpush1.bf16.msra.mxu0 %v375
        %409 = vmatprep.subr.bf16.mxu0 %v378
        %410 = vmatpush1.bf16.msra.mxu0 %v377
        %411 = vmatprep.subr.bf16.mxu0 0
        %412 = vmatpush1.bf16.msra.mxu0 0
        %413 = vmatprep.subr.bf16.mxu0 0
        %414 = vmatpush1.bf16.msra.mxu0 0
        %415 = vmatprep.subr.bf16.mxu0 0
        %416 = vmatpush1.bf16.msra.mxu0 0
        %417 = vmatprep.subr.bf16.mxu0 0
        %418 = vmatpush1.bf16.msra.mxu0 0
        %419 = vmatprep.subr.bf16.mxu0 0
        %420 = vmatpush1.bf16.msra.mxu0 0
        %421 = vmatprep.subr.bf16.mxu0 0
        %422 = vmatpush1.bf16.msra.mxu0 0
        %423 = vmatprep.subr.bf16.mxu0 0
        %424 = vmatpush1.bf16.msra.mxu0 0
        %425 = vmatprep.subr.bf16.mxu0 0
        %426 = vmatpush1.bf16.msra.mxu0 0
        %427 = vmatprep.mubr.bf16.mxu0 0
        %428 = vmatmul.mubr.bf16.gmra.mrb[0].mxu0 %v297
        %v429 = vpop.f32.mrb[0].mxu0
        %v430 = vadd.f32 0.0, %v429
        %v431 = vpop.f32.mrb[0].mxu0
        %v432 = vadd.f32 0.0, %v431
        %v433 = vpop.f32.mrb[0].mxu0
        %v434 = vpop.f32.mrb[0].mxu0
        %435 = vdwg.mxu0
        %v452 = vunpack.c.l.b16 %v279
        %v453 = vunpack.c.h.b16 %v279
        %v454 = vunpack.c.l.b16 %v280
        %v455 = vunpack.c.h.b16 %v280
        %v456 = vunpack.c.l.b16 %v281
        %v457 = vunpack.c.h.b16 %v281
        %v458 = vunpack.c.l.b16 %v282
        %v459 = vunpack.c.h.b16 %v282
        %v460 = vunpack.c.l.b16 %v283
        %v461 = vunpack.c.h.b16 %v283
        %v462 = vunpack.c.l.b16 %v284
        %v463 = vunpack.c.h.b16 %v284
        %v464 = vunpack.c.l.b16 %v285
        %v465 = vunpack.c.h.b16 %v285
        %v466 = vunpack.c.l.b16 %v286
        %v467 = vunpack.c.h.b16 %v286
        %v468 = vunpack.c.l.b16 %v287
        %v469 = vunpack.c.h.b16 %v287
        %v470 = vunpack.c.l.b16 %v288
        %v471 = vunpack.c.h.b16 %v288
        %v472 = vunpack.c.l.b16 %v289
        %v473 = vunpack.c.h.b16 %v289
        %v474 = vunpack.c.l.b16 %v290
        %v475 = vunpack.c.h.b16 %v290
        %v476 = vunpack.c.l.b16 %v291
        %v477 = vunpack.c.h.b16 %v291
        %v478 = vunpack.c.l.b16 %v292
        %v479 = vunpack.c.h.b16 %v292
        %v480 = vunpack.c.l.b16 %v293
        %v481 = vunpack.c.h.b16 %v293
        %v482 = vunpack.c.l.b16 %v294
        %v483 = vunpack.c.h.b16 %v294
        %v484 = vpack.c.b16 %v454, %v452
        %v485 = vpack.c.b16 %v455, %v453
        %v486 = vpack.c.b16 %v458, %v456
        %v487 = vpack.c.b16 %v459, %v457
        %v488 = vpack.c.b16 %v462, %v460
        %v489 = vpack.c.b16 %v463, %v461
        %v490 = vpack.c.b16 %v466, %v464
        %v491 = vpack.c.b16 %v467, %v465
        %v492 = vpack.c.b16 %v470, %v468
        %v493 = vpack.c.b16 %v471, %v469
        %v494 = vpack.c.b16 %v474, %v472
        %v495 = vpack.c.b16 %v475, %v473
        %v496 = vpack.c.b16 %v478, %v476
        %v497 = vpack.c.b16 %v479, %v477
        %v498 = vpack.c.b16 %v482, %v480
        %v499 = vpack.c.b16 %v483, %v481
        %516 = vmatprep.subr.bf16.mxu0 %v485
        %517 = vmatpush1.bf16.msra.mxu0 %v484
        %518 = vmatprep.subr.bf16.mxu0 %v487
        %519 = vmatpush1.bf16.msra.mxu0 %v486
        %520 = vmatprep.subr.bf16.mxu0 %v489
        %521 = vmatpush1.bf16.msra.mxu0 %v488
        %522 = vmatprep.subr.bf16.mxu0 %v491
        %523 = vmatpush1.bf16.msra.mxu0 %v490
        %524 = vmatprep.subr.bf16.mxu0 %v493
        %525 = vmatpush1.bf16.msra.mxu0 %v492
        %526 = vmatprep.subr.bf16.mxu0 %v495
        %527 = vmatpush1.bf16.msra.mxu0 %v494
        %528 = vmatprep.subr.bf16.mxu0 %v497
        %529 = vmatpush1.bf16.msra.mxu0 %v496
        %530 = vmatprep.subr.bf16.mxu0 %v499
        %531 = vmatpush1.bf16.msra.mxu0 %v498
        %532 = vmatprep.subr.bf16.mxu0 0
        %533 = vmatpush1.bf16.msra.mxu0 0
        %534 = vmatprep.subr.bf16.mxu0 0
        %535 = vmatpush1.bf16.msra.mxu0 0
        %536 = vmatprep.subr.bf16.mxu0 0
        %537 = vmatpush1.bf16.msra.mxu0 0
        %538 = vmatprep.subr.bf16.mxu0 0
        %539 = vmatpush1.bf16.msra.mxu0 0
        %540 = vmatprep.subr.bf16.mxu0 0
        %541 = vmatpush1.bf16.msra.mxu0 0
        %542 = vmatprep.subr.bf16.mxu0 0
        %543 = vmatpush1.bf16.msra.mxu0 0
        %544 = vmatprep.subr.bf16.mxu0 0
        %545 = vmatpush1.bf16.msra.mxu0 0
        %546 = vmatprep.subr.bf16.mxu0 0
        %547 = vmatpush1.bf16.msra.mxu0 0
        %548 = vmatprep.mubr.bf16.mxu0 0
        %549 = vmatmul.mubr.bf16.gmra.mrb[0].mxu0 %v278
        %v550 = vpop.f32.mrb[0].mxu0
        %v551 = vadd.f32 %v430, %v550
        %v552 = vpop.f32.mrb[0].mxu0
        %v553 = vadd.f32 %v432, %v552
        %v554 = vpop.f32.mrb[0].mxu0
        %v555 = vpop.f32.mrb[0].mxu0
        %556 = vdwg.mxu0
        %v557 = vld [vmem:[%s277] sm:$0x3]
        %s558 = scalar_lea.vmem %s2, 256
        %v559 = vld [vmem:[%s558] sm:$0xff]
        %v560 = vld [vmem:[%s558 + $0x8] sm:$0xff]
        %v561 = vld [vmem:[%s558 + $0x10] sm:$0xff]
        %v562 = vld [vmem:[%s558 + $0x18] sm:$0xff]
        %v563 = vld [vmem:[%s558 + $0x20] sm:$0xff]
        %v564 = vld [vmem:[%s558 + $0x28] sm:$0xff]
        %v565 = vld [vmem:[%s558 + $0x30] sm:$0xff]
        %v566 = vld [vmem:[%s558 + $0x38] sm:$0xff]
        %v567 = vld [vmem:[%s558 + $0x40] sm:$0xff]
        %v568 = vld [vmem:[%s558 + $0x48] sm:$0xff]
        %v569 = vld [vmem:[%s558 + $0x50] sm:$0xff]
        %v570 = vld [vmem:[%s558 + $0x58] sm:$0xff]
        %v571 = vld [vmem:[%s558 + $0x60] sm:$0xff]
        %v572 = vld [vmem:[%s558 + $0x68] sm:$0xff]
        %v573 = vld [vmem:[%s558 + $0x70] sm:$0xff]
        %v574 = vld [vmem:[%s558 + $0x78] sm:$0xff]
        %v577 = vunpack.c.l.s4 1983009808
        %v578 = vunpack.c.0.s8 %v577
        %v579 = vlaneseq
        %v580 = vshrl.u32 %v579, 7
        %v581 = vsub.s32 %v578, %v580
        %v582 = vrot.slane %v557, %v581
        %v584 = vshrl.u32 %v582, 16
        %v586 = vshll.u32 %v582, 16
        %v588 = vrot.slane %v586, 1
        %v589 = vor.u32 %v584, %v588
        %v607 = vunpack.c.l.b16 %v559
        %v608 = vunpack.c.h.b16 %v559
        %v609 = vunpack.c.l.b16 %v560
        %v610 = vunpack.c.h.b16 %v560
        %v611 = vunpack.c.l.b16 %v561
        %v612 = vunpack.c.h.b16 %v561
        %v613 = vunpack.c.l.b16 %v562
        %v614 = vunpack.c.h.b16 %v562
        %v615 = vunpack.c.l.b16 %v563
        %v616 = vunpack.c.h.b16 %v563
        %v617 = vunpack.c.l.b16 %v564
        %v618 = vunpack.c.h.b16 %v564
        %v619 = vunpack.c.l.b16 %v565
        %v620 = vunpack.c.h.b16 %v565
        %v621 = vunpack.c.l.b16 %v566
        %v622 = vunpack.c.h.b16 %v566
        %v623 = vunpack.c.l.b16 %v567
        %v624 = vunpack.c.h.b16 %v567
        %v625 = vunpack.c.l.b16 %v568
        %v626 = vunpack.c.h.b16 %v568
        %v627 = vunpack.c.l.b16 %v569
        %v628 = vunpack.c.h.b16 %v569
        %v629 = vunpack.c.l.b16 %v570
        %v630 = vunpack.c.h.b16 %v570
        %v631 = vunpack.c.l.b16 %v571
        %v632 = vunpack.c.h.b16 %v571
        %v633 = vunpack.c.l.b16 %v572
        %v634 = vunpack.c.h.b16 %v572
        %v635 = vunpack.c.l.b16 %v573
        %v636 = vunpack.c.h.b16 %v573
        %v637 = vunpack.c.l.b16 %v574
        %v638 = vunpack.c.h.b16 %v574
        %v639 = vpack.c.b16 %v609, %v607
        %v640 = vpack.c.b16 %v610, %v608
        %v641 = vpack.c.b16 %v613, %v611
        %v642 = vpack.c.b16 %v614, %v612
        %v643 = vpack.c.b16 %v617, %v615
        %v644 = vpack.c.b16 %v618, %v616
        %v645 = vpack.c.b16 %v621, %v619
        %v646 = vpack.c.b16 %v622, %v620
        %v647 = vpack.c.b16 %v625, %v623
        %v648 = vpack.c.b16 %v626, %v624
        %v649 = vpack.c.b16 %v629, %v627
        %v650 = vpack.c.b16 %v630, %v628
        %v651 = vpack.c.b16 %v633, %v631
        %v652 = vpack.c.b16 %v634, %v632
        %v653 = vpack.c.b16 %v637, %v635
        %v654 = vpack.c.b16 %v638, %v636
        %671 = vmatprep.subr.bf16.mxu0 %v640
        %672 = vmatpush1.bf16.msra.mxu0 %v639
        %673 = vmatprep.subr.bf16.mxu0 %v642
        %674 = vmatpush1.bf16.msra.mxu0 %v641
        %675 = vmatprep.subr.bf16.mxu0 %v644
        %676 = vmatpush1.bf16.msra.mxu0 %v643
        %677 = vmatprep.subr.bf16.mxu0 %v646
        %678 = vmatpush1.bf16.msra.mxu0 %v645
        %679 = vmatprep.subr.bf16.mxu0 %v648
        %680 = vmatpush1.bf16.msra.mxu0 %v647
        %681 = vmatprep.subr.bf16.mxu0 %v650
        %682 = vmatpush1.bf16.msra.mxu0 %v649
        %683 = vmatprep.subr.bf16.mxu0 %v652
        %684 = vmatpush1.bf16.msra.mxu0 %v651
        %685 = vmatprep.subr.bf16.mxu0 %v654
        %686 = vmatpush1.bf16.msra.mxu0 %v653
        %687 = vmatprep.subr.bf16.mxu0 0
        %688 = vmatpush1.bf16.msra.mxu0 0
        %689 = vmatprep.subr.bf16.mxu0 0
        %690 = vmatpush1.bf16.msra.mxu0 0
        %691 = vmatprep.subr.bf16.mxu0 0
        %692 = vmatpush1.bf16.msra.mxu0 0
        %693 = vmatprep.subr.bf16.mxu0 0
        %694 = vmatpush1.bf16.msra.mxu0 0
        %695 = vmatprep.subr.bf16.mxu0 0
        %696 = vmatpush1.bf16.msra.mxu0 0
        %697 = vmatprep.subr.bf16.mxu0 0
        %698 = vmatpush1.bf16.msra.mxu0 0
        %699 = vmatprep.subr.bf16.mxu0 0
        %700 = vmatpush1.bf16.msra.mxu0 0
        %701 = vmatprep.subr.bf16.mxu0 0
        %702 = vmatpush1.bf16.msra.mxu0 0
        %703 = vmatprep.mubr.bf16.mxu0 0
        %704 = vmatmul.mubr.bf16.gmra.mrb[0].mxu0 %v589
        %v705 = vpop.f32.mrb[0].mxu0
        %v706 = vadd.f32 0.0, %v705
        %v707 = vpop.f32.mrb[0].mxu0
        %v708 = vadd.f32 0.0, %v707
        %v709 = vpop.f32.mrb[0].mxu0
        %v710 = vpop.f32.mrb[0].mxu0
        %711 = vdwg.mxu0
        %v712 = vadd.f32 %v551, %v706
        %v713 = vadd.f32 %v553, %v708
        %s714 = sadd.s32 %s275, 1
        %s715 = smul.addr %s714, 2
        %s716 = scalar_lea.vmem %s240, %s715
        %v717 = vld [vmem:[%s716] sm:$0x1]
        %s718 = scalar_lea.vmem %s2, 384
        %v719 = vld [vmem:[%s718] sm:$0xff]
        %v720 = vld [vmem:[%s718 + $0x8] sm:$0xff]
        %v721 = vld [vmem:[%s718 + $0x10] sm:$0xff]
        %v722 = vld [vmem:[%s718 + $0x18] sm:$0xff]
        %v723 = vld [vmem:[%s718 + $0x20] sm:$0xff]
        %v724 = vld [vmem:[%s718 + $0x28] sm:$0xff]
        %v725 = vld [vmem:[%s718 + $0x30] sm:$0xff]
        %v726 = vld [vmem:[%s718 + $0x38] sm:$0xff]
        %v727 = vld [vmem:[%s718 + $0x40] sm:$0xff]
        %v728 = vld [vmem:[%s718 + $0x48] sm:$0xff]
        %v729 = vld [vmem:[%s718 + $0x50] sm:$0xff]
        %v730 = vld [vmem:[%s718 + $0x58] sm:$0xff]
        %v731 = vld [vmem:[%s718 + $0x60] sm:$0xff]
        %v732 = vld [vmem:[%s718 + $0x68] sm:$0xff]
        %v733 = vld [vmem:[%s718 + $0x70] sm:$0xff]
        %v734 = vld [vmem:[%s718 + $0x78] sm:$0xff]
        %v751 = vunpack.c.l.b16 %v719
        %v752 = vunpack.c.h.b16 %v719
        %v753 = vunpack.c.l.b16 %v720
        %v754 = vunpack.c.h.b16 %v720
        %v755 = vunpack.c.l.b16 %v721
        %v756 = vunpack.c.h.b16 %v721
        %v757 = vunpack.c.l.b16 %v722
        %v758 = vunpack.c.h.b16 %v722
        %v759 = vunpack.c.l.b16 %v723
        %v760 = vunpack.c.h.b16 %v723
        %v761 = vunpack.c.l.b16 %v724
        %v762 = vunpack.c.h.b16 %v724
        %v763 = vunpack.c.l.b16 %v725
        %v764 = vunpack.c.h.b16 %v725
        %v765 = vunpack.c.l.b16 %v726
        %v766 = vunpack.c.h.b16 %v726
        %v767 = vunpack.c.l.b16 %v727
        %v768 = vunpack.c.h.b16 %v727
        %v769 = vunpack.c.l.b16 %v728
        %v770 = vunpack.c.h.b16 %v728
        %v771 = vunpack.c.l.b16 %v729
        %v772 = vunpack.c.h.b16 %v729
        %v773 = vunpack.c.l.b16 %v730
        %v774 = vunpack.c.h.b16 %v730
        %v775 = vunpack.c.l.b16 %v731
        %v776 = vunpack.c.h.b16 %v731
        %v777 = vunpack.c.l.b16 %v732
        %v778 = vunpack.c.h.b16 %v732
        %v779 = vunpack.c.l.b16 %v733
        %v780 = vunpack.c.h.b16 %v733
        %v781 = vunpack.c.l.b16 %v734
        %v782 = vunpack.c.h.b16 %v734
        %v783 = vpack.c.b16 %v753, %v751
        %v784 = vpack.c.b16 %v754, %v752
        %v785 = vpack.c.b16 %v757, %v755
        %v786 = vpack.c.b16 %v758, %v756
        %v787 = vpack.c.b16 %v761, %v759
        %v788 = vpack.c.b16 %v762, %v760
        %v789 = vpack.c.b16 %v765, %v763
        %v790 = vpack.c.b16 %v766, %v764
        %v791 = vpack.c.b16 %v769, %v767
        %v792 = vpack.c.b16 %v770, %v768
        %v793 = vpack.c.b16 %v773, %v771
        %v794 = vpack.c.b16 %v774, %v772
        %v795 = vpack.c.b16 %v777, %v775
        %v796 = vpack.c.b16 %v778, %v776
        %v797 = vpack.c.b16 %v781, %v779
        %v798 = vpack.c.b16 %v782, %v780
        %815 = vmatprep.subr.bf16.mxu0 %v784
        %816 = vmatpush1.bf16.msra.mxu0 %v783
        %817 = vmatprep.subr.bf16.mxu0 %v786
        %818 = vmatpush1.bf16.msra.mxu0 %v785
        %819 = vmatprep.subr.bf16.mxu0 %v788
        %820 = vmatpush1.bf16.msra.mxu0 %v787
        %821 = vmatprep.subr.bf16.mxu0 %v790
        %822 = vmatpush1.bf16.msra.mxu0 %v789
        %823 = vmatprep.subr.bf16.mxu0 %v792
        %824 = vmatpush1.bf16.msra.mxu0 %v791
        %825 = vmatprep.subr.bf16.mxu0 %v794
        %826 = vmatpush1.bf16.msra.mxu0 %v793
        %827 = vmatprep.subr.bf16.mxu0 %v796
        %828 = vmatpush1.bf16.msra.mxu0 %v795
        %829 = vmatprep.subr.bf16.mxu0 %v798
        %830 = vmatpush1.bf16.msra.mxu0 %v797
        %831 = vmatprep.subr.bf16.mxu0 0
        %832 = vmatpush1.bf16.msra.mxu0 0
        %833 = vmatprep.subr.bf16.mxu0 0
        %834 = vmatpush1.bf16.msra.mxu0 0
        %835 = vmatprep.subr.bf16.mxu0 0
        %836 = vmatpush1.bf16.msra.mxu0 0
        %837 = vmatprep.subr.bf16.mxu0 0
        %838 = vmatpush1.bf16.msra.mxu0 0
        %839 = vmatprep.subr.bf16.mxu0 0
        %840 = vmatpush1.bf16.msra.mxu0 0
        %841 = vmatprep.subr.bf16.mxu0 0
        %842 = vmatpush1.bf16.msra.mxu0 0
        %843 = vmatprep.subr.bf16.mxu0 0
        %844 = vmatpush1.bf16.msra.mxu0 0
        %845 = vmatprep.subr.bf16.mxu0 0
        %846 = vmatpush1.bf16.msra.mxu0 0
        %847 = vmatprep.mubr.bf16.mxu0 0
        %848 = vmatmul.mubr.bf16.gmra.mrb[0].mxu0 %v717
        %v849 = vpop.f32.mrb[0].mxu0
        %v850 = vadd.f32 0.0, %v849
        %v851 = vpop.f32.mrb[0].mxu0
        %v852 = vadd.f32 0.0, %v851
        %v853 = vpop.f32.mrb[0].mxu0
        %v854 = vpop.f32.mrb[0].mxu0
        %855 = vdwg.mxu0
        %v856 = vadd.f32 %v712, %v850
        %v857 = vadd.f32 %v713, %v852
        %s858 = smul.addr %s714, 2
        %s859 = scalar_lea.vmem %s245, %s858
        %v860 = vld [vmem:[%s859] sm:$0x1]
        %s861 = scalar_lea.vmem %s2, 512
        %v862 = vld [vmem:[%s861] sm:$0xff]
        %v863 = vld [vmem:[%s861 + $0x8] sm:$0xff]
        %v864 = vld [vmem:[%s861 + $0x10] sm:$0xff]
        %v865 = vld [vmem:[%s861 + $0x18] sm:$0xff]
        %v866 = vld [vmem:[%s861 + $0x20] sm:$0xff]
        %v867 = vld [vmem:[%s861 + $0x28] sm:$0xff]
        %v868 = vld [vmem:[%s861 + $0x30] sm:$0xff]
        %v869 = vld [vmem:[%s861 + $0x38] sm:$0xff]
        %v870 = vld [vmem:[%s861 + $0x40] sm:$0xff]
        %v871 = vld [vmem:[%s861 + $0x48] sm:$0xff]
        %v872 = vld [vmem:[%s861 + $0x50] sm:$0xff]
        %v873 = vld [vmem:[%s861 + $0x58] sm:$0xff]
        %v874 = vld [vmem:[%s861 + $0x60] sm:$0xff]
        %v875 = vld [vmem:[%s861 + $0x68] sm:$0xff]
        %v876 = vld [vmem:[%s861 + $0x70] sm:$0xff]
        %v877 = vld [vmem:[%s861 + $0x78] sm:$0xff]
        %v894 = vunpack.c.l.b16 %v862
        %v895 = vunpack.c.h.b16 %v862
        %v896 = vunpack.c.l.b16 %v863
        %v897 = vunpack.c.h.b16 %v863
        %v898 = vunpack.c.l.b16 %v864
        %v899 = vunpack.c.h.b16 %v864
        %v900 = vunpack.c.l.b16 %v865
        %v901 = vunpack.c.h.b16 %v865
        %v902 = vunpack.c.l.b16 %v866
        %v903 = vunpack.c.h.b16 %v866
        %v904 = vunpack.c.l.b16 %v867
        %v905 = vunpack.c.h.b16 %v867
        %v906 = vunpack.c.l.b16 %v868
        %v907 = vunpack.c.h.b16 %v868
        %v908 = vunpack.c.l.b16 %v869
        %v909 = vunpack.c.h.b16 %v869
        %v910 = vunpack.c.l.b16 %v870
        %v911 = vunpack.c.h.b16 %v870
        %v912 = vunpack.c.l.b16 %v871
        %v913 = vunpack.c.h.b16 %v871
        %v914 = vunpack.c.l.b16 %v872
        %v915 = vunpack.c.h.b16 %v872
        %v916 = vunpack.c.l.b16 %v873
        %v917 = vunpack.c.h.b16 %v873
        %v918 = vunpack.c.l.b16 %v874
        %v919 = vunpack.c.h.b16 %v874
        %v920 = vunpack.c.l.b16 %v875
        %v921 = vunpack.c.h.b16 %v875
        %v922 = vunpack.c.l.b16 %v876
        %v923 = vunpack.c.h.b16 %v876
        %v924 = vunpack.c.l.b16 %v877
        %v925 = vunpack.c.h.b16 %v877
        %v926 = vpack.c.b16 %v896, %v894
        %v927 = vpack.c.b16 %v897, %v895
        %v928 = vpack.c.b16 %v900, %v898
        %v929 = vpack.c.b16 %v901, %v899
        %v930 = vpack.c.b16 %v904, %v902
        %v931 = vpack.c.b16 %v905, %v903
        %v932 = vpack.c.b16 %v908, %v906
        %v933 = vpack.c.b16 %v909, %v907
        %v934 = vpack.c.b16 %v912, %v910
        %v935 = vpack.c.b16 %v913, %v911
        %v936 = vpack.c.b16 %v916, %v914
        %v937 = vpack.c.b16 %v917, %v915
        %v938 = vpack.c.b16 %v920, %v918
        %v939 = vpack.c.b16 %v921, %v919
        %v940 = vpack.c.b16 %v924, %v922
        %v941 = vpack.c.b16 %v925, %v923
        %958 = vmatprep.subr.bf16.mxu0 %v927
        %959 = vmatpush1.bf16.msra.mxu0 %v926
        %960 = vmatprep.subr.bf16.mxu0 %v929
        %961 = vmatpush1.bf16.msra.mxu0 %v928
        %962 = vmatprep.subr.bf16.mxu0 %v931
        %963 = vmatpush1.bf16.msra.mxu0 %v930
        %964 = vmatprep.subr.bf16.mxu0 %v933
        %965 = vmatpush1.bf16.msra.mxu0 %v932
        %966 = vmatprep.subr.bf16.mxu0 %v935
        %967 = vmatpush1.bf16.msra.mxu0 %v934
        %968 = vmatprep.subr.bf16.mxu0 %v937
        %969 = vmatpush1.bf16.msra.mxu0 %v936
        %970 = vmatprep.subr.bf16.mxu0 %v939
        %971 = vmatpush1.bf16.msra.mxu0 %v938
        %972 = vmatprep.subr.bf16.mxu0 %v941
        %973 = vmatpush1.bf16.msra.mxu0 %v940
        %974 = vmatprep.subr.bf16.mxu0 0
        %975 = vmatpush1.bf16.msra.mxu0 0
        %976 = vmatprep.subr.bf16.mxu0 0
        %977 = vmatpush1.bf16.msra.mxu0 0
        %978 = vmatprep.subr.bf16.mxu0 0
        %979 = vmatpush1.bf16.msra.mxu0 0
        %980 = vmatprep.subr.bf16.mxu0 0
        %981 = vmatpush1.bf16.msra.mxu0 0
        %982 = vmatprep.subr.bf16.mxu0 0
        %983 = vmatpush1.bf16.msra.mxu0 0
        %984 = vmatprep.subr.bf16.mxu0 0
        %985 = vmatpush1.bf16.msra.mxu0 0
        %986 = vmatprep.subr.bf16.mxu0 0
        %987 = vmatpush1.bf16.msra.mxu0 0
        %988 = vmatprep.subr.bf16.mxu0 0
        %989 = vmatpush1.bf16.msra.mxu0 0
        %990 = vmatprep.mubr.bf16.mxu0 0
        %991 = vmatmul.mubr.bf16.gmra.mrb[0].mxu0 %v860
        %v992 = vpop.f32.mrb[0].mxu0
        %v993 = vadd.f32 0.0, %v992
        %v994 = vpop.f32.mrb[0].mxu0
        %v995 = vadd.f32 0.0, %v994
        %v996 = vpop.f32.mrb[0].mxu0
        %v997 = vpop.f32.mrb[0].mxu0
        %998 = vdwg.mxu0
        %v999 = vadd.f32 %v856, %v993
        %v1000 = vadd.f32 %v857, %v995
        %v1001 = vld [vmem:[%s716] sm:$0x3]
        %s1002 = scalar_lea.vmem %s2, 640
        %v1003 = vld [vmem:[%s1002] sm:$0xff]
        %v1004 = vld [vmem:[%s1002 + $0x8] sm:$0xff]
        %v1005 = vld [vmem:[%s1002 + $0x10] sm:$0xff]
        %v1006 = vld [vmem:[%s1002 + $0x18] sm:$0xff]
        %v1007 = vld [vmem:[%s1002 + $0x20] sm:$0xff]
        %v1008 = vld [vmem:[%s1002 + $0x28] sm:$0xff]
        %v1009 = vld [vmem:[%s1002 + $0x30] sm:$0xff]
        %v1010 = vld [vmem:[%s1002 + $0x38] sm:$0xff]
        %v1011 = vld [vmem:[%s1002 + $0x40] sm:$0xff]
        %v1012 = vld [vmem:[%s1002 + $0x48] sm:$0xff]
        %v1013 = vld [vmem:[%s1002 + $0x50] sm:$0xff]
        %v1014 = vld [vmem:[%s1002 + $0x58] sm:$0xff]
        %v1015 = vld [vmem:[%s1002 + $0x60] sm:$0xff]
        %v1016 = vld [vmem:[%s1002 + $0x68] sm:$0xff]
        %v1017 = vld [vmem:[%s1002 + $0x70] sm:$0xff]
        %v1018 = vld [vmem:[%s1002 + $0x78] sm:$0xff]
        %v1021 = vunpack.c.l.s4 1983009808
        %v1022 = vunpack.c.0.s8 %v1021
        %v1023 = vlaneseq
        %v1024 = vshrl.u32 %v1023, 7
        %v1025 = vsub.s32 %v1022, %v1024
        %v1026 = vrot.slane %v1001, %v1025
        %v1028 = vshrl.u32 %v1026, 16
        %v1030 = vshll.u32 %v1026, 16
        %v1032 = vrot.slane %v1030, 1
        %v1033 = vor.u32 %v1028, %v1032
        %v1051 = vunpack.c.l.b16 %v1003
        %v1052 = vunpack.c.h.b16 %v1003
        %v1053 = vunpack.c.l.b16 %v1004
        %v1054 = vunpack.c.h.b16 %v1004
        %v1055 = vunpack.c.l.b16 %v1005
        %v1056 = vunpack.c.h.b16 %v1005
        %v1057 = vunpack.c.l.b16 %v1006
        %v1058 = vunpack.c.h.b16 %v1006
        %v1059 = vunpack.c.l.b16 %v1007
        %v1060 = vunpack.c.h.b16 %v1007
        %v1061 = vunpack.c.l.b16 %v1008
        %v1062 = vunpack.c.h.b16 %v1008
        %v1063 = vunpack.c.l.b16 %v1009
        %v1064 = vunpack.c.h.b16 %v1009
        %v1065 = vunpack.c.l.b16 %v1010
        %v1066 = vunpack.c.h.b16 %v1010
        %v1067 = vunpack.c.l.b16 %v1011
        %v1068 = vunpack.c.h.b16 %v1011
        %v1069 = vunpack.c.l.b16 %v1012
        %v1070 = vunpack.c.h.b16 %v1012
        %v1071 = vunpack.c.l.b16 %v1013
        %v1072 = vunpack.c.h.b16 %v1013
        %v1073 = vunpack.c.l.b16 %v1014
        %v1074 = vunpack.c.h.b16 %v1014
        %v1075 = vunpack.c.l.b16 %v1015
        %v1076 = vunpack.c.h.b16 %v1015
        %v1077 = vunpack.c.l.b16 %v1016
        %v1078 = vunpack.c.h.b16 %v1016
        %v1079 = vunpack.c.l.b16 %v1017
        %v1080 = vunpack.c.h.b16 %v1017
        %v1081 = vunpack.c.l.b16 %v1018
        %v1082 = vunpack.c.h.b16 %v1018
        %v1083 = vpack.c.b16 %v1053, %v1051
        %v1084 = vpack.c.b16 %v1054, %v1052
        %v1085 = vpack.c.b16 %v1057, %v1055
        %v1086 = vpack.c.b16 %v1058, %v1056
        %v1087 = vpack.c.b16 %v1061, %v1059
        %v1088 = vpack.c.b16 %v1062, %v1060
        %v1089 = vpack.c.b16 %v1065, %v1063
        %v1090 = vpack.c.b16 %v1066, %v1064
        %v1091 = vpack.c.b16 %v1069, %v1067
        %v1092 = vpack.c.b16 %v1070, %v1068
        %v1093 = vpack.c.b16 %v1073, %v1071
        %v1094 = vpack.c.b16 %v1074, %v1072
        %v1095 = vpack.c.b16 %v1077, %v1075
        %v1096 = vpack.c.b16 %v1078, %v1076
        %v1097 = vpack.c.b16 %v1081, %v1079
        %v1098 = vpack.c.b16 %v1082, %v1080
        %1115 = vmatprep.subr.bf16.mxu0 %v1084
        %1116 = vmatpush1.bf16.msra.mxu0 %v1083
        %1117 = vmatprep.subr.bf16.mxu0 %v1086
        %1118 = vmatpush1.bf16.msra.mxu0 %v1085
        %1119 = vmatprep.subr.bf16.mxu0 %v1088
        %1120 = vmatpush1.bf16.msra.mxu0 %v1087
        %1121 = vmatprep.subr.bf16.mxu0 %v1090
        %1122 = vmatpush1.bf16.msra.mxu0 %v1089
        %1123 = vmatprep.subr.bf16.mxu0 %v1092
        %1124 = vmatpush1.bf16.msra.mxu0 %v1091
        %1125 = vmatprep.subr.bf16.mxu0 %v1094
        %1126 = vmatpush1.bf16.msra.mxu0 %v1093
        %1127 = vmatprep.subr.bf16.mxu0 %v1096
        %1128 = vmatpush1.bf16.msra.mxu0 %v1095
        %1129 = vmatprep.subr.bf16.mxu0 %v1098
        %1130 = vmatpush1.bf16.msra.mxu0 %v1097
        %1131 = vmatprep.subr.bf16.mxu0 0
        %1132 = vmatpush1.bf16.msra.mxu0 0
        %1133 = vmatprep.subr.bf16.mxu0 0
        %1134 = vmatpush1.bf16.msra.mxu0 0
        %1135 = vmatprep.subr.bf16.mxu0 0
        %1136 = vmatpush1.bf16.msra.mxu0 0
        %1137 = vmatprep.subr.bf16.mxu0 0
        %1138 = vmatpush1.bf16.msra.mxu0 0
        %1139 = vmatprep.subr.bf16.mxu0 0
        %1140 = vmatpush1.bf16.msra.mxu0 0
        %1141 = vmatprep.subr.bf16.mxu0 0
        %1142 = vmatpush1.bf16.msra.mxu0 0
        %1143 = vmatprep.subr.bf16.mxu0 0
        %1144 = vmatpush1.bf16.msra.mxu0 0
        %1145 = vmatprep.subr.bf16.mxu0 0
        %1146 = vmatpush1.bf16.msra.mxu0 0
        %1147 = vmatprep.mubr.bf16.mxu0 0
        %1148 = vmatmul.mubr.bf16.gmra.mrb[0].mxu0 %v1033
        %v1149 = vpop.f32.mrb[0].mxu0
        %v1150 = vadd.f32 0.0, %v1149
        %v1151 = vpop.f32.mrb[0].mxu0
        %v1152 = vadd.f32 0.0, %v1151
        %v1153 = vpop.f32.mrb[0].mxu0
        %v1154 = vpop.f32.mrb[0].mxu0
        %1155 = vdwg.mxu0
        %v1156 = vadd.f32 %v999, %v1150
        %v1157 = vadd.f32 %v1000, %v1152
        %s1158 = sadd.s32 %s275, 2
        %s1159 = smul.addr %s1158, 2
        %s1160 = scalar_lea.vmem %s240, %s1159
        %v1161 = vld [vmem:[%s1160] sm:$0x1]
        %s1162 = scalar_lea.vmem %s2, 768
        %v1163 = vld [vmem:[%s1162] sm:$0xff]
        %v1164 = vld [vmem:[%s1162 + $0x8] sm:$0xff]
        %v1165 = vld [vmem:[%s1162 + $0x10] sm:$0xff]
        %v1166 = vld [vmem:[%s1162 + $0x18] sm:$0xff]
        %v1167 = vld [vmem:[%s1162 + $0x20] sm:$0xff]
        %v1168 = vld [vmem:[%s1162 + $0x28] sm:$0xff]
        %v1169 = vld [vmem:[%s1162 + $0x30] sm:$0xff]
        %v1170 = vld [vmem:[%s1162 + $0x38] sm:$0xff]
        %v1171 = vld [vmem:[%s1162 + $0x40] sm:$0xff]
        %v1172 = vld [vmem:[%s1162 + $0x48] sm:$0xff]
        %v1173 = vld [vmem:[%s1162 + $0x50] sm:$0xff]
        %v1174 = vld [vmem:[%s1162 + $0x58] sm:$0xff]
        %v1175 = vld [vmem:[%s1162 + $0x60] sm:$0xff]
        %v1176 = vld [vmem:[%s1162 + $0x68] sm:$0xff]
        %v1177 = vld [vmem:[%s1162 + $0x70] sm:$0xff]
        %v1178 = vld [vmem:[%s1162 + $0x78] sm:$0xff]
        %v1195 = vunpack.c.l.b16 %v1163
        %v1196 = vunpack.c.h.b16 %v1163
        %v1197 = vunpack.c.l.b16 %v1164
        %v1198 = vunpack.c.h.b16 %v1164
        %v1199 = vunpack.c.l.b16 %v1165
        %v1200 = vunpack.c.h.b16 %v1165
        %v1201 = vunpack.c.l.b16 %v1166
        %v1202 = vunpack.c.h.b16 %v1166
        %v1203 = vunpack.c.l.b16 %v1167
        %v1204 = vunpack.c.h.b16 %v1167
        %v1205 = vunpack.c.l.b16 %v1168
        %v1206 = vunpack.c.h.b16 %v1168
        %v1207 = vunpack.c.l.b16 %v1169
        %v1208 = vunpack.c.h.b16 %v1169
        %v1209 = vunpack.c.l.b16 %v1170
        %v1210 = vunpack.c.h.b16 %v1170
        %v1211 = vunpack.c.l.b16 %v1171
        %v1212 = vunpack.c.h.b16 %v1171
        %v1213 = vunpack.c.l.b16 %v1172
        %v1214 = vunpack.c.h.b16 %v1172
        %v1215 = vunpack.c.l.b16 %v1173
        %v1216 = vunpack.c.h.b16 %v1173
        %v1217 = vunpack.c.l.b16 %v1174
        %v1218 = vunpack.c.h.b16 %v1174
        %v1219 = vunpack.c.l.b16 %v1175
        %v1220 = vunpack.c.h.b16 %v1175
        %v1221 = vunpack.c.l.b16 %v1176
        %v1222 = vunpack.c.h.b16 %v1176
        %v1223 = vunpack.c.l.b16 %v1177
        %v1224 = vunpack.c.h.b16 %v1177
        %v1225 = vunpack.c.l.b16 %v1178
        %v1226 = vunpack.c.h.b16 %v1178
        %v1227 = vpack.c.b16 %v1197, %v1195
        %v1228 = vpack.c.b16 %v1198, %v1196
        %v1229 = vpack.c.b16 %v1201, %v1199
        %v1230 = vpack.c.b16 %v1202, %v1200
        %v1231 = vpack.c.b16 %v1205, %v1203
        %v1232 = vpack.c.b16 %v1206, %v1204
        %v1233 = vpack.c.b16 %v1209, %v1207
        %v1234 = vpack.c.b16 %v1210, %v1208
        %v1235 = vpack.c.b16 %v1213, %v1211
        %v1236 = vpack.c.b16 %v1214, %v1212
        %v1237 = vpack.c.b16 %v1217, %v1215
        %v1238 = vpack.c.b16 %v1218, %v1216
        %v1239 = vpack.c.b16 %v1221, %v1219
        %v1240 = vpack.c.b16 %v1222, %v1220
        %v1241 = vpack.c.b16 %v1225, %v1223
        %v1242 = vpack.c.b16 %v1226, %v1224
        %1259 = vmatprep.subr.bf16.mxu0 %v1228
        %1260 = vmatpush1.bf16.msra.mxu0 %v1227
        %1261 = vmatprep.subr.bf16.mxu0 %v1230
        %1262 = vmatpush1.bf16.msra.mxu0 %v1229
        %1263 = vmatprep.subr.bf16.mxu0 %v1232
        %1264 = vmatpush1.bf16.msra.mxu0 %v1231
        %1265 = vmatprep.subr.bf16.mxu0 %v1234
        %1266 = vmatpush1.bf16.msra.mxu0 %v1233
        %1267 = vmatprep.subr.bf16.mxu0 %v1236
        %1268 = vmatpush1.bf16.msra.mxu0 %v1235
        %1269 = vmatprep.subr.bf16.mxu0 %v1238
        %1270 = vmatpush1.bf16.msra.mxu0 %v1237
        %1271 = vmatprep.subr.bf16.mxu0 %v1240
        %1272 = vmatpush1.bf16.msra.mxu0 %v1239
        %1273 = vmatprep.subr.bf16.mxu0 %v1242
        %1274 = vmatpush1.bf16.msra.mxu0 %v1241
        %1275 = vmatprep.subr.bf16.mxu0 0
        %1276 = vmatpush1.bf16.msra.mxu0 0
        %1277 = vmatprep.subr.bf16.mxu0 0
        %1278 = vmatpush1.bf16.msra.mxu0 0
        %1279 = vmatprep.subr.bf16.mxu0 0
        %1280 = vmatpush1.bf16.msra.mxu0 0
        %1281 = vmatprep.subr.bf16.mxu0 0
        %1282 = vmatpush1.bf16.msra.mxu0 0
        %1283 = vmatprep.subr.bf16.mxu0 0
        %1284 = vmatpush1.bf16.msra.mxu0 0
        %1285 = vmatprep.subr.bf16.mxu0 0
        %1286 = vmatpush1.bf16.msra.mxu0 0
        %1287 = vmatprep.subr.bf16.mxu0 0
        %1288 = vmatpush1.bf16.msra.mxu0 0
        %1289 = vmatprep.subr.bf16.mxu0 0
        %1290 = vmatpush1.bf16.msra.mxu0 0
        %1291 = vmatprep.mubr.bf16.mxu0 0
        %1292 = vmatmul.mubr.bf16.gmra.mrb[0].mxu0 %v1161
        %v1293 = vpop.f32.mrb[0].mxu0
        %v1294 = vadd.f32 0.0, %v1293
        %v1295 = vpop.f32.mrb[0].mxu0
        %v1296 = vadd.f32 0.0, %v1295
        %v1297 = vpop.f32.mrb[0].mxu0
        %v1298 = vpop.f32.mrb[0].mxu0
        %1299 = vdwg.mxu0
        %v1300 = vadd.f32 %v1156, %v1294
        %v1301 = vadd.f32 %v1157, %v1296
        %s1302 = smul.addr %s1158, 2
        %s1303 = scalar_lea.vmem %s245, %s1302
        %v1304 = vld [vmem:[%s1303] sm:$0x1]
        %s1305 = scalar_lea.vmem %s2, 896
        %v1306 = vld [vmem:[%s1305] sm:$0xff]
        %v1307 = vld [vmem:[%s1305 + $0x8] sm:$0xff]
        %v1308 = vld [vmem:[%s1305 + $0x10] sm:$0xff]
        %v1309 = vld [vmem:[%s1305 + $0x18] sm:$0xff]
        %v1310 = vld [vmem:[%s1305 + $0x20] sm:$0xff]
        %v1311 = vld [vmem:[%s1305 + $0x28] sm:$0xff]
        %v1312 = vld [vmem:[%s1305 + $0x30] sm:$0xff]
        %v1313 = vld [vmem:[%s1305 + $0x38] sm:$0xff]
        %v1314 = vld [vmem:[%s1305 + $0x40] sm:$0xff]
        %v1315 = vld [vmem:[%s1305 + $0x48] sm:$0xff]
        %v1316 = vld [vmem:[%s1305 + $0x50] sm:$0xff]
        %v1317 = vld [vmem:[%s1305 + $0x58] sm:$0xff]
        %v1318 = vld [vmem:[%s1305 + $0x60] sm:$0xff]
        %v1319 = vld [vmem:[%s1305 + $0x68] sm:$0xff]
        %v1320 = vld [vmem:[%s1305 + $0x70] sm:$0xff]
        %v1321 = vld [vmem:[%s1305 + $0x78] sm:$0xff]
        %v1338 = vunpack.c.l.b16 %v1306
        %v1339 = vunpack.c.h.b16 %v1306
        %v1340 = vunpack.c.l.b16 %v1307
        %v1341 = vunpack.c.h.b16 %v1307
        %v1342 = vunpack.c.l.b16 %v1308
        %v1343 = vunpack.c.h.b16 %v1308
        %v1344 = vunpack.c.l.b16 %v1309
        %v1345 = vunpack.c.h.b16 %v1309
        %v1346 = vunpack.c.l.b16 %v1310
        %v1347 = vunpack.c.h.b16 %v1310
        %v1348 = vunpack.c.l.b16 %v1311
        %v1349 = vunpack.c.h.b16 %v1311
        %v1350 = vunpack.c.l.b16 %v1312
        %v1351 = vunpack.c.h.b16 %v1312
        %v1352 = vunpack.c.l.b16 %v1313
        %v1353 = vunpack.c.h.b16 %v1313
        %v1354 = vunpack.c.l.b16 %v1314
        %v1355 = vunpack.c.h.b16 %v1314
        %v1356 = vunpack.c.l.b16 %v1315
        %v1357 = vunpack.c.h.b16 %v1315
        %v1358 = vunpack.c.l.b16 %v1316
        %v1359 = vunpack.c.h.b16 %v1316
        %v1360 = vunpack.c.l.b16 %v1317
        %v1361 = vunpack.c.h.b16 %v1317
        %v1362 = vunpack.c.l.b16 %v1318
        %v1363 = vunpack.c.h.b16 %v1318
        %v1364 = vunpack.c.l.b16 %v1319
        %v1365 = vunpack.c.h.b16 %v1319
        %v1366 = vunpack.c.l.b16 %v1320
        %v1367 = vunpack.c.h.b16 %v1320
        %v1368 = vunpack.c.l.b16 %v1321
        %v1369 = vunpack.c.h.b16 %v1321
        %v1370 = vpack.c.b16 %v1340, %v1338
        %v1371 = vpack.c.b16 %v1341, %v1339
        %v1372 = vpack.c.b16 %v1344, %v1342
        %v1373 = vpack.c.b16 %v1345, %v1343
        %v1374 = vpack.c.b16 %v1348, %v1346
        %v1375 = vpack.c.b16 %v1349, %v1347
        %v1376 = vpack.c.b16 %v1352, %v1350
        %v1377 = vpack.c.b16 %v1353, %v1351
        %v1378 = vpack.c.b16 %v1356, %v1354
        %v1379 = vpack.c.b16 %v1357, %v1355
        %v1380 = vpack.c.b16 %v1360, %v1358
        %v1381 = vpack.c.b16 %v1361, %v1359
        %v1382 = vpack.c.b16 %v1364, %v1362
        %v1383 = vpack.c.b16 %v1365, %v1363
        %v1384 = vpack.c.b16 %v1368, %v1366
        %v1385 = vpack.c.b16 %v1369, %v1367
        %1402 = vmatprep.subr.bf16.mxu0 %v1371
        %1403 = vmatpush1.bf16.msra.mxu0 %v1370
        %1404 = vmatprep.subr.bf16.mxu0 %v1373
        %1405 = vmatpush1.bf16.msra.mxu0 %v1372
        %1406 = vmatprep.subr.bf16.mxu0 %v1375
        %1407 = vmatpush1.bf16.msra.mxu0 %v1374
        %1408 = vmatprep.subr.bf16.mxu0 %v1377
        %1409 = vmatpush1.bf16.msra.mxu0 %v1376
        %1410 = vmatprep.subr.bf16.mxu0 %v1379
        %1411 = vmatpush1.bf16.msra.mxu0 %v1378
        %1412 = vmatprep.subr.bf16.mxu0 %v1381
        %1413 = vmatpush1.bf16.msra.mxu0 %v1380
        %1414 = vmatprep.subr.bf16.mxu0 %v1383
        %1415 = vmatpush1.bf16.msra.mxu0 %v1382
        %1416 = vmatprep.subr.bf16.mxu0 %v1385
        %1417 = vmatpush1.bf16.msra.mxu0 %v1384
        %1418 = vmatprep.subr.bf16.mxu0 0
        %1419 = vmatpush1.bf16.msra.mxu0 0
        %1420 = vmatprep.subr.bf16.mxu0 0
        %1421 = vmatpush1.bf16.msra.mxu0 0
        %1422 = vmatprep.subr.bf16.mxu0 0
        %1423 = vmatpush1.bf16.msra.mxu0 0
        %1424 = vmatprep.subr.bf16.mxu0 0
        %1425 = vmatpush1.bf16.msra.mxu0 0
        %1426 = vmatprep.subr.bf16.mxu0 0
        %1427 = vmatpush1.bf16.msra.mxu0 0
        %1428 = vmatprep.subr.bf16.mxu0 0
        %1429 = vmatpush1.bf16.msra.mxu0 0
        %1430 = vmatprep.subr.bf16.mxu0 0
        %1431 = vmatpush1.bf16.msra.mxu0 0
        %1432 = vmatprep.subr.bf16.mxu0 0
        %1433 = vmatpush1.bf16.msra.mxu0 0
        %1434 = vmatprep.mubr.bf16.mxu0 0
        %1435 = vmatmul.mubr.bf16.gmra.mrb[0].mxu0 %v1304
        %v1436 = vpop.f32.mrb[0].mxu0
        %v1437 = vadd.f32 0.0, %v1436
        %v1438 = vpop.f32.mrb[0].mxu0
        %v1439 = vadd.f32 0.0, %v1438
        %v1440 = vpop.f32.mrb[0].mxu0
        %v1441 = vpop.f32.mrb[0].mxu0
        %1442 = vdwg.mxu0
        %v1443 = vadd.f32 %v1300, %v1437
        %v1444 = vadd.f32 %v1301, %v1439
        %v1445 = vld [vmem:[%s1160] sm:$0x3]
        %s1446 = scalar_lea.vmem %s2, 1024
        %v1447 = vld [vmem:[%s1446] sm:$0xff]
        %v1448 = vld [vmem:[%s1446 + $0x8] sm:$0xff]
        %v1449 = vld [vmem:[%s1446 + $0x10] sm:$0xff]
        %v1450 = vld [vmem:[%s1446 + $0x18] sm:$0xff]
        %v1451 = vld [vmem:[%s1446 + $0x20] sm:$0xff]
        %v1452 = vld [vmem:[%s1446 + $0x28] sm:$0xff]
        %v1453 = vld [vmem:[%s1446 + $0x30] sm:$0xff]
        %v1454 = vld [vmem:[%s1446 + $0x38] sm:$0xff]
        %v1455 = vld [vmem:[%s1446 + $0x40] sm:$0xff]
        %v1456 = vld [vmem:[%s1446 + $0x48] sm:$0xff]
        %v1457 = vld [vmem:[%s1446 + $0x50] sm:$0xff]
        %v1458 = vld [vmem:[%s1446 + $0x58] sm:$0xff]
        %v1459 = vld [vmem:[%s1446 + $0x60] sm:$0xff]
        %v1460 = vld [vmem:[%s1446 + $0x68] sm:$0xff]
        %v1461 = vld [vmem:[%s1446 + $0x70] sm:$0xff]
        %v1462 = vld [vmem:[%s1446 + $0x78] sm:$0xff]
        %v1465 = vunpack.c.l.s4 1983009808
        %v1466 = vunpack.c.0.s8 %v1465
        %v1467 = vlaneseq
        %v1468 = vshrl.u32 %v1467, 7
        %v1469 = vsub.s32 %v1466, %v1468
        %v1470 = vrot.slane %v1445, %v1469
        %v1472 = vshrl.u32 %v1470, 16
        %v1474 = vshll.u32 %v1470, 16
        %v1476 = vrot.slane %v1474, 1
        %v1477 = vor.u32 %v1472, %v1476
        %v1495 = vunpack.c.l.b16 %v1447
        %v1496 = vunpack.c.h.b16 %v1447
        %v1497 = vunpack.c.l.b16 %v1448
        %v1498 = vunpack.c.h.b16 %v1448
        %v1499 = vunpack.c.l.b16 %v1449
        %v1500 = vunpack.c.h.b16 %v1449
        %v1501 = vunpack.c.l.b16 %v1450
        %v1502 = vunpack.c.h.b16 %v1450
        %v1503 = vunpack.c.l.b16 %v1451
        %v1504 = vunpack.c.h.b16 %v1451
        %v1505 = vunpack.c.l.b16 %v1452
        %v1506 = vunpack.c.h.b16 %v1452
        %v1507 = vunpack.c.l.b16 %v1453
        %v1508 = vunpack.c.h.b16 %v1453
        %v1509 = vunpack.c.l.b16 %v1454
        %v1510 = vunpack.c.h.b16 %v1454
        %v1511 = vunpack.c.l.b16 %v1455
        %v1512 = vunpack.c.h.b16 %v1455
        %v1513 = vunpack.c.l.b16 %v1456
        %v1514 = vunpack.c.h.b16 %v1456
        %v1515 = vunpack.c.l.b16 %v1457
        %v1516 = vunpack.c.h.b16 %v1457
        %v1517 = vunpack.c.l.b16 %v1458
        %v1518 = vunpack.c.h.b16 %v1458
        %v1519 = vunpack.c.l.b16 %v1459
        %v1520 = vunpack.c.h.b16 %v1459
        %v1521 = vunpack.c.l.b16 %v1460
        %v1522 = vunpack.c.h.b16 %v1460
        %v1523 = vunpack.c.l.b16 %v1461
        %v1524 = vunpack.c.h.b16 %v1461
        %v1525 = vunpack.c.l.b16 %v1462
        %v1526 = vunpack.c.h.b16 %v1462
        %v1527 = vpack.c.b16 %v1497, %v1495
        %v1528 = vpack.c.b16 %v1498, %v1496
        %v1529 = vpack.c.b16 %v1501, %v1499
        %v1530 = vpack.c.b16 %v1502, %v1500
        %v1531 = vpack.c.b16 %v1505, %v1503
        %v1532 = vpack.c.b16 %v1506, %v1504
        %v1533 = vpack.c.b16 %v1509, %v1507
        %v1534 = vpack.c.b16 %v1510, %v1508
        %v1535 = vpack.c.b16 %v1513, %v1511
        %v1536 = vpack.c.b16 %v1514, %v1512
        %v1537 = vpack.c.b16 %v1517, %v1515
        %v1538 = vpack.c.b16 %v1518, %v1516
        %v1539 = vpack.c.b16 %v1521, %v1519
        %v1540 = vpack.c.b16 %v1522, %v1520
        %v1541 = vpack.c.b16 %v1525, %v1523
        %v1542 = vpack.c.b16 %v1526, %v1524
        %1559 = vmatprep.subr.bf16.mxu0 %v1528
        %1560 = vmatpush1.bf16.msra.mxu0 %v1527
        %1561 = vmatprep.subr.bf16.mxu0 %v1530
        %1562 = vmatpush1.bf16.msra.mxu0 %v1529
        %1563 = vmatprep.subr.bf16.mxu0 %v1532
        %1564 = vmatpush1.bf16.msra.mxu0 %v1531
        %1565 = vmatprep.subr.bf16.mxu0 %v1534
        %1566 = vmatpush1.bf16.msra.mxu0 %v1533
        %1567 = vmatprep.subr.bf16.mxu0 %v1536
        %1568 = vmatpush1.bf16.msra.mxu0 %v1535
        %1569 = vmatprep.subr.bf16.mxu0 %v1538
        %1570 = vmatpush1.bf16.msra.mxu0 %v1537
        %1571 = vmatprep.subr.bf16.mxu0 %v1540
        %1572 = vmatpush1.bf16.msra.mxu0 %v1539
        %1573 = vmatprep.subr.bf16.mxu0 %v1542
        %1574 = vmatpush1.bf16.msra.mxu0 %v1541
        %1575 = vmatprep.subr.bf16.mxu0 0
        %1576 = vmatpush1.bf16.msra.mxu0 0
        %1577 = vmatprep.subr.bf16.mxu0 0
        %1578 = vmatpush1.bf16.msra.mxu0 0
        %1579 = vmatprep.subr.bf16.mxu0 0
        %1580 = vmatpush1.bf16.msra.mxu0 0
        %1581 = vmatprep.subr.bf16.mxu0 0
        %1582 = vmatpush1.bf16.msra.mxu0 0
        %1583 = vmatprep.subr.bf16.mxu0 0
        %1584 = vmatpush1.bf16.msra.mxu0 0
        %1585 = vmatprep.subr.bf16.mxu0 0
        %1586 = vmatpush1.bf16.msra.mxu0 0
        %1587 = vmatprep.subr.bf16.mxu0 0
        %1588 = vmatpush1.bf16.msra.mxu0 0
        %1589 = vmatprep.subr.bf16.mxu0 0
        %1590 = vmatpush1.bf16.msra.mxu0 0
        %1591 = vmatprep.mubr.bf16.mxu0 0
        %1592 = vmatmul.mubr.bf16.gmra.mrb[0].mxu0 %v1477
        %v1593 = vpop.f32.mrb[0].mxu0
        %v1594 = vadd.f32 0.0, %v1593
        %v1595 = vpop.f32.mrb[0].mxu0
        %v1596 = vadd.f32 0.0, %v1595
        %v1597 = vpop.f32.mrb[0].mxu0
        %v1598 = vpop.f32.mrb[0].mxu0
        %1599 = vdwg.mxu0
        %v1600 = vadd.f32 %v1443, %v1594
        %v1601 = vadd.f32 %v1444, %v1596
        %v1604 = vcombine.low %v1600, %v1601
        %v1606 = vunpack.c.l.s4 1983009808
        %v1607 = vunpack.c.0.s8 %v1606
        %v1608 = vlaneseq
        %v1609 = vshrl.u32 %v1608, 7
        %v1610 = vsub.s32 %v1607, %v1609
        %v1611 = vrot.slane %v1604, %v1610
        %s1613 = smul.u32 %s269, 2
        %s1614 = smul.addr %s1613, 2
        %s1615 = scalar_lea.vmem %s255, %s1614
        %1616 = vst [vmem:[%s1615] sm:$0xf] %v1611
      $region37: #{encoder_forward.15} parent=31 // loop_footer
        %s273 = sadd.s32 1, %s269
      $region38: #{encoder_forward.15} parent=31 // loop_footer_branch
        %268 = sbr.rel target = $region34
      $region39: #{encoder_forward.15} parent=31 // loop_exit
        _
      %v1617 = vld [vmem:[%s255] sm:$0xf]
      %v1618 = vld [vmem:[%s255 + $0x4] sm:$0xf]
      %v1622 = vunpack.c.l.s4 1983009808
      %v1623 = vunpack.c.0.s8 %v1622
      %v1624 = vlaneseq
      %v1625 = vshrl.u32 %v1624, 7
      %v1626 = vsub.s32 %v1623, %v1625
      %v1627 = vrot.slane %v1617, %v1626
      %v1628 = vcombine.high %v1627, %v1627
      %v1630 = vunpack.c.l.s4 1983009808
      %v1631 = vunpack.c.0.s8 %v1630
      %v1632 = vlaneseq
      %v1633 = vshrl.u32 %v1632, 7
      %v1634 = vsub.s32 %v1631, %v1633
      %v1635 = vrot.slane %v1618, %v1634
      %v1636 = vcombine.high %v1635, %v1635
      %vm1641 = vcmask 1041408
      %v1642 = vsel %vm1641, %v1627, 0.0
      %v1643 = vsel %vm1641, %v1635, 0.0
      %v1644 = vadd.f32 %v1642, %v1643
      %v1645 = vrot.slane %v1644, 4
      %v1646 = vadd.f32 %v1644, %v1645
      %v1647 = vrot.slane %v1646, 2
      %v1648 = vadd.f32 %v1646, %v1647
      %v1649 = vrot.slane %v1648, 1
      %v1650 = vadd.f32 %v1648, %v1649
      %v1651 = vsel %vm1641, %v1628, 0.0
      %v1652 = vsel %vm1641, %v1636, 0.0
      %v1653 = vadd.f32 %v1651, %v1652
      %v1654 = vrot.slane %v1653, 4
      %v1655 = vadd.f32 %v1653, %v1654
      %v1656 = vrot.slane %v1655, 2
      %v1657 = vadd.f32 %v1655, %v1656
      %v1658 = vrot.slane %v1657, 1
      %v1659 = vadd.f32 %v1657, %v1658
      %v1662 = vcombine.low %v1650, %v1659
      %v1664 = vunpack.c.l.s4 1966171168
      %v1665 = vunpack.c.0.s8 %v1664
      %v1666 = vlaneseq
      %v1667 = vshrl.u32 %v1666, 7
      %v1668 = vsub.s32 %v1665, %v1667
      %v1669 = vrot.slane %v1662, %v1668
      %v1671 = vunpack.c.l.s4 1966171168
      %v1672 = vunpack.c.0.s8 %v1671
      %v1673 = vlaneseq
      %v1674 = vshrl.u32 %v1673, 7
      %v1675 = vsub.s32 %v1672, %v1674
      %v1676 = vrot.slane %v1669, %v1675
      %v1678 = vlaneseq
      %vm1679 = vcmp.ge.s32.totalorder %v1678, 0
      %vm1680 = vcmp.lt.s32.totalorder %v1678, 256
      %vm1681 = vmand %vm1679, %vm1680
      %1682 = vst.msk [vmem:[%s265] ss:$2 sm:$0x3] %vm1681, %v1676
      %v1683 = vmul.f32 %v1617, %v1617
      %v1684 = vmul.f32 %v1618, %v1618
      %v1688 = vunpack.c.l.s4 1983009808
      %v1689 = vunpack.c.0.s8 %v1688
      %v1690 = vlaneseq
      %v1691 = vshrl.u32 %v1690, 7
      %v1692 = vsub.s32 %v1689, %v1691
      %v1693 = vrot.slane %v1683, %v1692
      %v1694 = vcombine.high %v1693, %v1693
      %v1696 = vunpack.c.l.s4 1983009808
      %v1697 = vunpack.c.0.s8 %v1696
      %v1698 = vlaneseq
      %v1699 = vshrl.u32 %v1698, 7
      %v1700 = vsub.s32 %v1697, %v1699
      %v1701 = vrot.slane %v1684, %v1700
      %v1702 = vcombine.high %v1701, %v1701
      %v1707 = vsel %vm1641, %v1693, 0.0
      %v1708 = vsel %vm1641, %v1701, 0.0
      %v1709 = vadd.f32 %v1707, %v1708
      %v1710 = vrot.slane %v1709, 4
      %v1711 = vadd.f32 %v1709, %v1710
      %v1712 = vrot.slane %v1711, 2
      %v1713 = vadd.f32 %v1711, %v1712
      %v1714 = vrot.slane %v1713, 1
      %v1715 = vadd.f32 %v1713, %v1714
      %v1716 = vsel %vm1641, %v1694, 0.0
      %v1717 = vsel %vm1641, %v1702, 0.0
      %v1718 = vadd.f32 %v1716, %v1717
      %v1719 = vrot.slane %v1718, 4
      %v1720 = vadd.f32 %v1718, %v1719
      %v1721 = vrot.slane %v1720, 2
      %v1722 = vadd.f32 %v1720, %v1721
      %v1723 = vrot.slane %v1722, 1
      %v1724 = vadd.f32 %v1722, %v1723
      %v1727 = vcombine.low %v1715, %v1724
      %v1729 = vunpack.c.l.s4 1966171168
      %v1730 = vunpack.c.0.s8 %v1729
      %v1731 = vlaneseq
      %v1732 = vshrl.u32 %v1731, 7
      %v1733 = vsub.s32 %v1730, %v1732
      %v1734 = vrot.slane %v1727, %v1733
      %v1736 = vunpack.c.l.s4 1966171168
      %v1737 = vunpack.c.0.s8 %v1736
      %v1738 = vlaneseq
      %v1739 = vshrl.u32 %v1738, 7
      %v1740 = vsub.s32 %v1737, %v1739
      %v1741 = vrot.slane %v1734, %v1740
      %s1743 = scalar_lea.vmem %s265, 1
      %1744 = vst.msk [vmem:[%s1743] ss:$2 sm:$0x3] %vm1681, %v1741
      %s1745 = smul.u32 2, %s21
      %p1746 = scmp.lt.s32.totalorder %s20, 1
      %s1747 = scalar_select %p1746, %s20, 1
      %p1748 = scmp.lt.s32.totalorder %s1745, 1
      %s1749 = scalar_select %p1748, %s1745, 1
      %s1750 = smul.addr %s1749, 2
      %s1751 = smul.addr %s1747, 4
      %s1752 = sadd.s32 %s1750, %s1751
      %s1753 = smul.addr %s1752, 2
      %s1754 = scalar_lea.vmem %s3, %s1753
      %p1755 = scmp.lt.s32.totalorder %s20, 1
      %s1756 = scalar_select %p1755, %s20, 1
      %p1757 = scmp.lt.s32.totalorder %s21, 0
      %s1758 = scalar_select %p1757, %s21, 0
      %s1759 = smul.addr %s1758, 2
      %s1760 = smul.addr %s1756, 2
      %s1761 = sadd.s32 %s1759, %s1760
      %s1762 = smul.addr %s1761, 2
      %s1763 = scalar_lea.vmem %s4, %s1762
      // Predicated region
      $region40: #{encoder_forward.15} parent=31 // pred_check
        %p1764 = pneg %p121
      $region41: #{encoder_forward.15} parent=31 // pred_check_branch
        %1766 = sbr.rel (%p1764) target = $region43
      $region42: #{encoder_forward.15} parent=31 // pred_region
        %s1767 = smul.u32 2, %s21
      $region43: #{encoder_forward.15} parent=31 // pred_fallthru
        _
      // Predicated region
      $region44: #{encoder_forward.15} parent=31 // pred_check
        %p1768 = pneg %p149
      $region45: #{encoder_forward.15} parent=31 // pred_check_branch
        %1770 = sbr.rel (%p1768) target = $region47
      $region46: #{encoder_forward.15} parent=31 // pred_region
        _
      $region47: #{encoder_forward.15} parent=31 // pred_fallthru
        _
    $region32: #{encoder_forward.15} parent=5 // pred_fallthru
      _
    %p1771 = scmp.le.s32.totalorder 2, %s11
    // Predicated region
    $region48: #{encoder_forward.15} parent=5 // pred_check
      %p1772 = pneg %p1771
    $region49: #{encoder_forward.15} parent=5 // pred_check_branch
      %1774 = sbr.rel (%p1772) target = $region51
    $region50: #{encoder_forward.15} parent=5 // pred_region
      %s1775 = ssub.s32 %s11, 2
      // Predicated region
      $region52: #{encoder_forward.15} parent=50 // pred_check
        %p1776 = pneg %p127
      $region53: #{encoder_forward.15} parent=50 // pred_check_branch
        %1778 = sbr.rel (%p1776) target = $region55
      $region54: #{encoder_forward.15} parent=50 // pred_region
        %s1779 = smul.u32 2, %s23
        %p1780 = scmp.lt.s32.totalorder %s22, 1
        %s1781 = scalar_select %p1780, %s22, 1
        %p1782 = scmp.lt.s32.totalorder %s1779, 1
        %s1783 = scalar_select %p1782, %s1779, 1
        %s1784 = smul.addr %s1783, 2
        %s1785 = smul.addr %s1781, 4
        %s1786 = sadd.s32 %s1784, %s1785
        %s1787 = smul.addr %s1786, 2
        %s1788 = scalar_lea.vmem %s3, %s1787
      $region55: #{encoder_forward.15} parent=50 // pred_fallthru
        _
      // Predicated region
      $region56: #{encoder_forward.15} parent=50 // pred_check
        %p1789 = pneg %p155
      $region57: #{encoder_forward.15} parent=50 // pred_check_branch
        %1791 = sbr.rel (%p1789) target = $region59
      $region58: #{encoder_forward.15} parent=50 // pred_region
        %p1792 = scmp.lt.s32.totalorder %s22, 1
        %s1793 = scalar_select %p1792, %s22, 1
        %p1794 = scmp.lt.s32.totalorder %s23, 0
        %s1795 = scalar_select %p1794, %s23, 0
        %s1796 = smul.addr %s1795, 2
        %s1797 = smul.addr %s1793, 2
        %s1798 = sadd.s32 %s1796, %s1797
        %s1799 = smul.addr %s1798, 2
        %s1800 = scalar_lea.vmem %s4, %s1799
      $region59: #{encoder_forward.15} parent=50 // pred_fallthru
        _
    $region51: #{encoder_forward.15} parent=5 // pred_fallthru
      _
  $region6: #{encoder_forward.15} parent=0 // loop_footer
    %s15 = sadd.s32 1, %s11
  $region7: #{encoder_forward.15} parent=0 // loop_footer_branch
    %10 = sbr.rel target = $region3
  $region8: #{encoder_forward.15} parent=0 // loop_exit
    _

</llo_original>
